<compile_context>
chip_gen: v7x
topology: tpu7x:2x2x1
jax: 0.10.0
libtpu: 0.0.40
codegen_flags: <defaults>
</compile_context>

<pallas_src>
import jax
import jax.numpy as jnp
from jax.experimental import pallas as pl
from jax.experimental.pallas import tpu as pltpu

INPUT_SIZE = 1
HIDDEN = 32
NUM_LAYERS = 7
OUTPUT_SIZE = 1


def lstm_kernel(xw0_ref, wih_ref, whh_ref, b_ref, out_ref, seq_ref):
    # xw0_ref: (T, Bt, 4H) f32   layer-0 input projection (precomputed in XLA)
    # wih_ref: (L-1, H, 4H) bf16 W_ih^T of layers 1..L-1 (wih_ref[l] = layer l+1)
    # whh_ref: (L, H, 4H) bf16   W_hh^T of all layers
    # b_ref:   (L-1, 1, 4H) f32  combined bias of layers 1..L-1
    # out_ref: (Bt, H)     f32   last hidden state of the last layer
    # seq_ref: (T, Bt, 4H) f32   scratch: current layer's input projections
    # Gate column order everywhere: [i, f, o, g].
    T, Bt, G = xw0_ref.shape
    L = whh_ref.shape[0]
    H = G // 4

    h = None
    for layer in range(L):                                # static unroll (L = 7)
        whh = whh_ref[layer]                              # (H, 4H) bf16
        if layer < L - 1:
            w_next = wih_ref[layer]                       # (H, 4H) bf16
            b_next = b_ref[layer]                         # (1, 4H) f32
        c = None
        for t in range(T):                                # static unroll (T = 8)
            # layer 0 reads the precomputed projection; layers >=1 read the
            # scratch slot written (fused) during the previous layer's loop.
            xw_t = xw0_ref[t] if layer == 0 else seq_ref[t]      # (Bt, 4H) f32
            if t == 0:
                gates = xw_t                              # h_0 == 0
            else:
                gates = xw_t + jnp.dot(h.astype(jnp.bfloat16), whh,
                                       preferred_element_type=jnp.float32)
            sig = jax.nn.sigmoid(gates[:, :3 * H])        # [i, f, o] in one push
            i_g = sig[:, 0 * H:1 * H]
            f_g = sig[:, 1 * H:2 * H]
            o_g = sig[:, 2 * H:3 * H]
            g_g = jnp.tanh(gates[:, 3 * H:4 * H])
            c = i_g * g_g if t == 0 else f_g * c + i_g * g_g     # c_0 == 0
            h = o_g * jnp.tanh(c)
            if layer < L - 1:
                # Fused next-layer projection: lane-dense (Bt, 4H) store,
                # overlapping the MXU with this step's pointwise tail.
                # (Read-before-write on seq_ref[t] is enforced by the data
                #  dependency xw_t -> gates -> h -> stored value.)
                seq_ref[t] = jnp.dot(h.astype(jnp.bfloat16), w_next,
                                     preferred_element_type=jnp.float32) + b_next

    out_ref[...] = h


def init_params(key):
    """Deterministic init mimicking PyTorch's uniform(-1/sqrt(H), 1/sqrt(H)).

    Canonical f32 params, gate-column order [i, f, o, g] (a fixed column
    permutation of PyTorch's [i, f, g, o] layout — identical LSTM math)."""
    bound = 1.0 / (HIDDEN ** 0.5)
    keys = jax.random.split(key, NUM_LAYERS * 4 + 2)
    wih_list, whh_list, b_list = [], [], []
    idx = 0
    for layer in range(NUM_LAYERS):
        in_dim = INPUT_SIZE if layer == 0 else HIDDEN
        w_ih = jax.random.uniform(keys[idx], (4 * HIDDEN, in_dim),
                                  jnp.float32, -bound, bound); idx += 1
        w_hh = jax.random.uniform(keys[idx], (4 * HIDDEN, HIDDEN),
                                  jnp.float32, -bound, bound); idx += 1
        b_ih = jax.random.uniform(keys[idx], (4 * HIDDEN,),
                                  jnp.float32, -bound, bound); idx += 1
        b_hh = jax.random.uniform(keys[idx], (4 * HIDDEN,),
                                  jnp.float32, -bound, bound); idx += 1
        wih_list.append(w_ih.T)                  # (in_dim, 4H)
        whh_list.append(w_hh.T)                  # (H, 4H)
        b_list.append(b_ih + b_hh)               # (4H,)
    w_out = jax.random.uniform(keys[idx], (OUTPUT_SIZE, HIDDEN),
                               jnp.float32, -bound, bound); idx += 1
    b_out = jax.random.uniform(keys[idx], (OUTPUT_SIZE,),
                               jnp.float32, -bound, bound)
    wih0 = wih_list[0]                           # (1, 4H)     layer 0
    wih = jnp.stack(wih_list[1:])                # (L-1, H, 4H) layers 1..L-1
    whh = jnp.stack(whh_list)                    # (L, H, 4H)
    b = jnp.stack(b_list)                        # (L, 4H)
    return wih0, wih, whh, b, w_out.T, b_out[None, :]


def _batch_tiling(B):
    """f32-sublane-padded batch, vreg-pressure-aware tile, >=2 grid steps when
    possible so the parallel axis can shard across both v7x TensorCores."""
    b_pad = -(-B // 8) * 8
    if b_pad <= 8:
        return b_pad, b_pad
    half = -(-(b_pad // 2) // 8) * 8
    b_tile = min(128, half)
    b_pad = -(-b_pad // b_tile) * b_tile
    return b_pad, b_tile


@jax.jit
def lstm_forward(x, wih0, wih, whh, b, wout, bout):
    B, T, _ = x.shape
    B_pad, B_tile = _batch_tiling(B)
    G = 4 * HIDDEN

    # Layer-0 input projection in XLA (input_size == 1 -> tiny outer product),
    # time-major, batch padded, lane-dense last dim of 128.
    x_tm = jnp.transpose(x, (1, 0, 2)).astype(jnp.float32)           # (T, B, 1)
    xw0 = x_tm * wih0[0][None, None, :] + b[0][None, None, :]        # (T, B, 4H)
    xw0_p = jnp.zeros((T, B_pad, G), jnp.float32).at[:, :B, :].set(xw0)

    wih_b = wih.astype(jnp.bfloat16)             # (L-1, H, 4H)
    whh_b = whh.astype(jnp.bfloat16)             # (L, H, 4H)
    b_nxt = b[1:][:, None, :]                    # (L-1, 1, 4H) f32

    h_last = pl.pallas_call(
        lstm_kernel,
        out_shape=jax.ShapeDtypeStruct((B_pad, HIDDEN), jnp.float32),
        grid=(B_pad // B_tile,),
        in_specs=[
            pl.BlockSpec((T, B_tile, G), lambda i: (0, i, 0)),
            pl.BlockSpec((NUM_LAYERS - 1, HIDDEN, G), lambda i: (0, 0, 0)),
            pl.BlockSpec((NUM_LAYERS, HIDDEN, G), lambda i: (0, 0, 0)),
            pl.BlockSpec((NUM_LAYERS - 1, 1, G), lambda i: (0, 0, 0)),
        ],
        out_specs=pl.BlockSpec((B_tile, HIDDEN), lambda i: (i, 0)),
        scratch_shapes=[pltpu.VMEM((T, B_tile, G), jnp.float32)],
        compiler_params=pltpu.CompilerParams(
            dimension_semantics=("parallel",)),
    )(xw0_p, wih_b, whh_b, b_nxt)

    # Final Linear (32 -> 1): lane-sparse output, cheaper in XLA on the
    # lane-dense (B, 32) hidden-state slab emitted by the kernel.
    y = h_last[:B] @ wout + bout                                     # (B, 1)
    return y[:, :, None]                                             # (B, 1, 1)


def lstm_ref(x, wih0, wih, whh, b, wout, bout):
    """Pure-JAX f32 reference (same math, no Pallas) for correctness checking."""
    B, T, _ = x.shape
    seq = jnp.transpose(x, (1, 0, 2)).astype(jnp.float32)            # (T, B, 1)
    h = jnp.zeros((B, HIDDEN), jnp.float32)
    for layer in range(NUM_LAYERS):
        w_in = wih0 if layer == 0 else wih[layer - 1]
        h = jnp.zeros((B, HIDDEN), jnp.float32)
        c = jnp.zeros((B, HIDDEN), jnp.float32)
        outs = []
        for t in range(T):
            gates = seq[t] @ w_in + h @ whh[layer] + b[layer]
            i = jax.nn.sigmoid(gates[:, 0 * HIDDEN:1 * HIDDEN])
            f = jax.nn.sigmoid(gates[:, 1 * HIDDEN:2 * HIDDEN])
            o = jax.nn.sigmoid(gates[:, 2 * HIDDEN:3 * HIDDEN])
            g = jnp.tanh(gates[:, 3 * HIDDEN:4 * HIDDEN])
            c = f * c + i * g
            h = o * jnp.tanh(c)
            outs.append(h)
        seq = jnp.stack(outs)
    return (h @ wout + bout)[:, :, None]


if __name__ == "__main__":
    key = jax.random.PRNGKey(0)
    pkey, xkey = jax.random.split(key)
    params = init_params(pkey)

    B, T = 2, 8
    x = jax.random.normal(xkey, (B, T, INPUT_SIZE), jnp.float32)

    y = lstm_forward(x, *params)
    y = jax.block_until_ready(y)

    y_ref = lstm_ref(x, *params)
    assert y.shape == (B, OUTPUT_SIZE, 1), y.shape
    # bf16 MXU operands vs. f32 reference -> loosened tolerance (review note).
    assert jnp.allclose(y, y_ref, atol=2e-2, rtol=2e-2), (y, y_ref)

    print("KERNEL_OK")
</pallas_src>

<mosaic_0001>
module attributes {stable_mosaic.version = 11 : i64} {
  func.func @lstm_kernel(%arg0: i32, %arg1: memref<8x8x128xf32, #tpu.memory_space<vmem>>, %arg2: memref<6x32x128xbf16, #tpu.memory_space<vmem>>, %arg3: memref<7x32x128xbf16, #tpu.memory_space<vmem>>, %arg4: memref<6x1x128xf32, #tpu.memory_space<vmem>>, %arg5: memref<8x32xf32, #tpu.memory_space<vmem>>, %arg6: memref<8x8x128xf32, #tpu.memory_space<vmem>>) attributes {dimension_semantics = [#tpu.dimension_semantics<parallel>], iteration_bounds = array<i64: 1>, scalar_prefetch = 0 : i64, scratch_operands = 1 : i64, tpu.core_type = #tpu.core_type<tc>, window_params = [{transform_indices = @transform_0, window_bounds = array<i64: 8, 8, 128>}, {pipeline_mode = #tpu.pipeline_mode<synchronous>, transform_indices = @transform_1, window_bounds = array<i64: 6, 32, 128>}, {pipeline_mode = #tpu.pipeline_mode<synchronous>, transform_indices = @transform_2, window_bounds = array<i64: 7, 32, 128>}, {pipeline_mode = #tpu.pipeline_mode<synchronous>, transform_indices = @transform_3, window_bounds = array<i64: 6, 1, 128>}, {transform_indices = @transform_4, window_bounds = array<i64: 8, 32>}]} {
    %c0 = arith.constant 0 : index
    %c0_0 = arith.constant 0 : index
    %c0_1 = arith.constant 0 : index
    %0 = vector.load %arg3[%c0, %c0_0, %c0_1] : memref<7x32x128xbf16, #tpu.memory_space<vmem>>, vector<1x32x128xbf16>
    %1 = vector.shape_cast %0 : vector<1x32x128xbf16> to vector<32x128xbf16>
    %c0_2 = arith.constant 0 : index
    %c0_3 = arith.constant 0 : index
    %c0_4 = arith.constant 0 : index
    %2 = vector.load %arg2[%c0_2, %c0_3, %c0_4] : memref<6x32x128xbf16, #tpu.memory_space<vmem>>, vector<1x32x128xbf16>
    %3 = vector.shape_cast %2 : vector<1x32x128xbf16> to vector<32x128xbf16>
    %c0_5 = arith.constant 0 : index
    %c0_6 = arith.constant 0 : index
    %c0_7 = arith.constant 0 : index
    %4 = vector.load %arg4[%c0_5, %c0_6, %c0_7] : memref<6x1x128xf32, #tpu.memory_space<vmem>>, vector<1x1x128xf32>
    %5 = vector.shape_cast %4 : vector<1x1x128xf32> to vector<1x128xf32>
    %c0_8 = arith.constant 0 : index
    %c0_9 = arith.constant 0 : index
    %c0_10 = arith.constant 0 : index
    %6 = vector.load %arg1[%c0_8, %c0_9, %c0_10] : memref<8x8x128xf32, #tpu.memory_space<vmem>>, vector<1x8x128xf32>
    %7 = vector.shape_cast %6 : vector<1x8x128xf32> to vector<8x128xf32>
    %8 = vector.extract_strided_slice %7 {offsets = [0, 0], sizes = [8, 96], strides = [1, 1]} : vector<8x128xf32> to vector<8x96xf32>
    %9 = arith.negf %8 : vector<8x96xf32>
    %10 = math.exp %9 : vector<8x96xf32>
    %cst = arith.constant 1.000000e+00 : f32
    %11 = vector.broadcast %cst : f32 to vector<8x96xf32>
    %12 = arith.addf %11, %10 : vector<8x96xf32>
    %13 = arith.divf %11, %12 : vector<8x96xf32>
    %14 = vector.extract_strided_slice %13 {offsets = [0, 0], sizes = [8, 32], strides = [1, 1]} : vector<8x96xf32> to vector<8x32xf32>
    %15 = vector.extract_strided_slice %13 {offsets = [0, 64], sizes = [8, 32], strides = [1, 1]} : vector<8x96xf32> to vector<8x32xf32>
    %16 = vector.extract_strided_slice %7 {offsets = [0, 96], sizes = [8, 32], strides = [1, 1]} : vector<8x128xf32> to vector<8x32xf32>
    %17 = math.tanh %16 : vector<8x32xf32>
    %18 = arith.mulf %14, %17 : vector<8x32xf32>
    %19 = math.tanh %18 : vector<8x32xf32>
    %20 = arith.mulf %15, %19 : vector<8x32xf32>
    %21 = arith.truncf %20 : vector<8x32xf32> to vector<8x32xbf16>
    %cst_11 = arith.constant dense<0.000000e+00> : vector<8x128xf32>
    %22 = tpu.matmul %21, %3, %cst_11 {dimension_numbers = #tpu.dot_dimension_numbers<[1], [0], [0], [1], [0, 0, 1, 1], [], []>} : vector<8x32xbf16>, vector<32x128xbf16>, vector<8x128xf32> -> vector<8x128xf32>
    %23 = vector.broadcast %5 : vector<1x128xf32> to vector<8x128xf32>
    %24 = arith.addf %22, %23 : vector<8x128xf32>
    %c0_12 = arith.constant 0 : index
    %c0_13 = arith.constant 0 : index
    %c0_14 = arith.constant 0 : index
    %25 = vector.load %arg6[%c0_12, %c0_13, %c0_14] : memref<8x8x128xf32, #tpu.memory_space<vmem>>, vector<1x8x128xf32>
    %26 = vector.shape_cast %25 : vector<1x8x128xf32> to vector<8x128xf32>
    %27 = vector.shape_cast %24 : vector<8x128xf32> to vector<1x8x128xf32>
    tpu.vector_store %arg6[%c0_12, %c0_13, %c0_14], %27 {strides = array<i32>} : memref<8x8x128xf32, #tpu.memory_space<vmem>>, vector<1x8x128xf32>,
    %c1 = arith.constant 1 : index
    %c0_15 = arith.constant 0 : index
    %c0_16 = arith.constant 0 : index
    %28 = vector.load %arg1[%c1, %c0_15, %c0_16] : memref<8x8x128xf32, #tpu.memory_space<vmem>>, vector<1x8x128xf32>
    %29 = vector.shape_cast %28 : vector<1x8x128xf32> to vector<8x128xf32>
    %30 = arith.truncf %20 : vector<8x32xf32> to vector<8x32xbf16>
    %cst_17 = arith.constant dense<0.000000e+00> : vector<8x128xf32>
    %31 = tpu.matmul %30, %1, %cst_17 {dimension_numbers = #tpu.dot_dimension_numbers<[1], [0], [0], [1], [0, 0, 1, 1], [], []>} : vector<8x32xbf16>, vector<32x128xbf16>, vector<8x128xf32> -> vector<8x128xf32>
    %32 = arith.addf %29, %31 : vector<8x128xf32>
    %33 = vector.extract_strided_slice %32 {offsets = [0, 0], sizes = [8, 96], strides = [1, 1]} : vector<8x128xf32> to vector<8x96xf32>
    %34 = arith.negf %33 : vector<8x96xf32>
    %35 = math.exp %34 : vector<8x96xf32>
    %cst_18 = arith.constant 1.000000e+00 : f32
    %36 = vector.broadcast %cst_18 : f32 to vector<8x96xf32>
    %37 = arith.addf %36, %35 : vector<8x96xf32>
    %38 = arith.divf %36, %37 : vector<8x96xf32>
    %39 = vector.extract_strided_slice %38 {offsets = [0, 0], sizes = [8, 32], strides = [1, 1]} : vector<8x96xf32> to vector<8x32xf32>
    %40 = vector.extract_strided_slice %38 {offsets = [0, 32], sizes = [8, 32], strides = [1, 1]} : vector<8x96xf32> to vector<8x32xf32>
    %41 = vector.extract_strided_slice %38 {offsets = [0, 64], sizes = [8, 32], strides = [1, 1]} : vector<8x96xf32> to vector<8x32xf32>
    %42 = vector.extract_strided_slice %32 {offsets = [0, 96], sizes = [8, 32], strides = [1, 1]} : vector<8x128xf32> to vector<8x32xf32>
    %43 = math.tanh %42 : vector<8x32xf32>
    %44 = arith.mulf %40, %18 : vector<8x32xf32>
    %45 = arith.mulf %39, %43 : vector<8x32xf32>
    %46 = arith.addf %44, %45 : vector<8x32xf32>
    %47 = math.tanh %46 : vector<8x32xf32>
    %48 = arith.mulf %41, %47 : vector<8x32xf32>
    %49 = arith.truncf %48 : vector<8x32xf32> to vector<8x32xbf16>
    %cst_19 = arith.constant dense<0.000000e+00> : vector<8x128xf32>
    %50 = tpu.matmul %49, %3, %cst_19 {dimension_numbers = #tpu.dot_dimension_numbers<[1], [0], [0], [1], [0, 0, 1, 1], [], []>} : vector<8x32xbf16>, vector<32x128xbf16>, vector<8x128xf32> -> vector<8x128xf32>
    %51 = vector.broadcast %5 : vector<1x128xf32> to vector<8x128xf32>
    %52 = arith.addf %50, %51 : vector<8x128xf32>
    %c1_20 = arith.constant 1 : index
    %c0_21 = arith.constant 0 : index
    %c0_22 = arith.constant 0 : index
    %53 = vector.load %arg6[%c1_20, %c0_21, %c0_22] : memref<8x8x128xf32, #tpu.memory_space<vmem>>, vector<1x8x128xf32>
    %54 = vector.shape_cast %53 : vector<1x8x128xf32> to vector<8x128xf32>
    %55 = vector.shape_cast %52 : vector<8x128xf32> to vector<1x8x128xf32>
    tpu.vector_store %arg6[%c1_20, %c0_21, %c0_22], %55 {strides = array<i32>} : memref<8x8x128xf32, #tpu.memory_space<vmem>>, vector<1x8x128xf32>,
    %c2 = arith.constant 2 : index
    %c0_23 = arith.constant 0 : index
    %c0_24 = arith.constant 0 : index
    %56 = vector.load %arg1[%c2, %c0_23, %c0_24] : memref<8x8x128xf32, #tpu.memory_space<vmem>>, vector<1x8x128xf32>
    %57 = vector.shape_cast %56 : vector<1x8x128xf32> to vector<8x128xf32>
    %58 = arith.truncf %48 : vector<8x32xf32> to vector<8x32xbf16>
    %cst_25 = arith.constant dense<0.000000e+00> : vector<8x128xf32>
    %59 = tpu.matmul %58, %1, %cst_25 {dimension_numbers = #tpu.dot_dimension_numbers<[1], [0], [0], [1], [0, 0, 1, 1], [], []>} : vector<8x32xbf16>, vector<32x128xbf16>, vector<8x128xf32> -> vector<8x128xf32>
    %60 = arith.addf %57, %59 : vector<8x128xf32>
    %61 = vector.extract_strided_slice %60 {offsets = [0, 0], sizes = [8, 96], strides = [1, 1]} : vector<8x128xf32> to vector<8x96xf32>
    %62 = arith.negf %61 : vector<8x96xf32>
    %63 = math.exp %62 : vector<8x96xf32>
    %cst_26 = arith.constant 1.000000e+00 : f32
    %64 = vector.broadcast %cst_26 : f32 to vector<8x96xf32>
    %65 = arith.addf %64, %63 : vector<8x96xf32>
    %66 = arith.divf %64, %65 : vector<8x96xf32>
    %67 = vector.extract_strided_slice %66 {offsets = [0, 0], sizes = [8, 32], strides = [1, 1]} : vector<8x96xf32> to vector<8x32xf32>
    %68 = vector.extract_strided_slice %66 {offsets = [0, 32], sizes = [8, 32], strides = [1, 1]} : vector<8x96xf32> to vector<8x32xf32>
    %69 = vector.extract_strided_slice %66 {offsets = [0, 64], sizes = [8, 32], strides = [1, 1]} : vector<8x96xf32> to vector<8x32xf32>
    %70 = vector.extract_strided_slice %60 {offsets = [0, 96], sizes = [8, 32], strides = [1, 1]} : vector<8x128xf32> to vector<8x32xf32>
    %71 = math.tanh %70 : vector<8x32xf32>
    %72 = arith.mulf %68, %46 : vector<8x32xf32>
    %73 = arith.mulf %67, %71 : vector<8x32xf32>
    %74 = arith.addf %72, %73 : vector<8x32xf32>
    %75 = math.tanh %74 : vector<8x32xf32>
    %76 = arith.mulf %69, %75 : vector<8x32xf32>
    %77 = arith.truncf %76 : vector<8x32xf32> to vector<8x32xbf16>
    %cst_27 = arith.constant dense<0.000000e+00> : vector<8x128xf32>
    %78 = tpu.matmul %77, %3, %cst_27 {dimension_numbers = #tpu.dot_dimension_numbers<[1], [0], [0], [1], [0, 0, 1, 1], [], []>} : vector<8x32xbf16>, vector<32x128xbf16>, vector<8x128xf32> -> vector<8x128xf32>
    %79 = vector.broadcast %5 : vector<1x128xf32> to vector<8x128xf32>
    %80 = arith.addf %78, %79 : vector<8x128xf32>
    %c2_28 = arith.constant 2 : index
    %c0_29 = arith.constant 0 : index
    %c0_30 = arith.constant 0 : index
    %81 = vector.load %arg6[%c2_28, %c0_29, %c0_30] : memref<8x8x128xf32, #tpu.memory_space<vmem>>, vector<1x8x128xf32>
    %82 = vector.shape_cast %81 : vector<1x8x128xf32> to vector<8x128xf32>
    %83 = vector.shape_cast %80 : vector<8x128xf32> to vector<1x8x128xf32>
    tpu.vector_store %arg6[%c2_28, %c0_29, %c0_30], %83 {strides = array<i32>} : memref<8x8x128xf32, #tpu.memory_space<vmem>>, vector<1x8x128xf32>,
    %c3 = arith.constant 3 : index
    %c0_31 = arith.constant 0 : index
    %c0_32 = arith.constant 0 : index
    %84 = vector.load %arg1[%c3, %c0_31, %c0_32] : memref<8x8x128xf32, #tpu.memory_space<vmem>>, vector<1x8x128xf32>
    %85 = vector.shape_cast %84 : vector<1x8x128xf32> to vector<8x128xf32>
    %86 = arith.truncf %76 : vector<8x32xf32> to vector<8x32xbf16>
    %cst_33 = arith.constant dense<0.000000e+00> : vector<8x128xf32>
    %87 = tpu.matmul %86, %1, %cst_33 {dimension_numbers = #tpu.dot_dimension_numbers<[1], [0], [0], [1], [0, 0, 1, 1], [], []>} : vector<8x32xbf16>, vector<32x128xbf16>, vector<8x128xf32> -> vector<8x128xf32>
    %88 = arith.addf %85, %87 : vector<8x128xf32>
    %89 = vector.extract_strided_slice %88 {offsets = [0, 0], sizes = [8, 96], strides = [1, 1]} : vector<8x128xf32> to vector<8x96xf32>
    %90 = arith.negf %89 : vector<8x96xf32>
    %91 = math.exp %90 : vector<8x96xf32>
    %cst_34 = arith.constant 1.000000e+00 : f32
    %92 = vector.broadcast %cst_34 : f32 to vector<8x96xf32>
    %93 = arith.addf %92, %91 : vector<8x96xf32>
    %94 = arith.divf %92, %93 : vector<8x96xf32>
    %95 = vector.extract_strided_slice %94 {offsets = [0, 0], sizes = [8, 32], strides = [1, 1]} : vector<8x96xf32> to vector<8x32xf32>
    %96 = vector.extract_strided_slice %94 {offsets = [0, 32], sizes = [8, 32], strides = [1, 1]} : vector<8x96xf32> to vector<8x32xf32>
    %97 = vector.extract_strided_slice %94 {offsets = [0, 64], sizes = [8, 32], strides = [1, 1]} : vector<8x96xf32> to vector<8x32xf32>
    %98 = vector.extract_strided_slice %88 {offsets = [0, 96], sizes = [8, 32], strides = [1, 1]} : vector<8x128xf32> to vector<8x32xf32>
    %99 = math.tanh %98 : vector<8x32xf32>
    %100 = arith.mulf %96, %74 : vector<8x32xf32>
    %101 = arith.mulf %95, %99 : vector<8x32xf32>
    %102 = arith.addf %100, %101 : vector<8x32xf32>
    %103 = math.tanh %102 : vector<8x32xf32>
    %104 = arith.mulf %97, %103 : vector<8x32xf32>
    %105 = arith.truncf %104 : vector<8x32xf32> to vector<8x32xbf16>
    %cst_35 = arith.constant dense<0.000000e+00> : vector<8x128xf32>
    %106 = tpu.matmul %105, %3, %cst_35 {dimension_numbers = #tpu.dot_dimension_numbers<[1], [0], [0], [1], [0, 0, 1, 1], [], []>} : vector<8x32xbf16>, vector<32x128xbf16>, vector<8x128xf32> -> vector<8x128xf32>
    %107 = vector.broadcast %5 : vector<1x128xf32> to vector<8x128xf32>
    %108 = arith.addf %106, %107 : vector<8x128xf32>
    %c3_36 = arith.constant 3 : index
    %c0_37 = arith.constant 0 : index
    %c0_38 = arith.constant 0 : index
    %109 = vector.load %arg6[%c3_36, %c0_37, %c0_38] : memref<8x8x128xf32, #tpu.memory_space<vmem>>, vector<1x8x128xf32>
    %110 = vector.shape_cast %109 : vector<1x8x128xf32> to vector<8x128xf32>
    %111 = vector.shape_cast %108 : vector<8x128xf32> to vector<1x8x128xf32>
    tpu.vector_store %arg6[%c3_36, %c0_37, %c0_38], %111 {strides = array<i32>} : memref<8x8x128xf32, #tpu.memory_space<vmem>>, vector<1x8x128xf32>,
    %c4 = arith.constant 4 : index
    %c0_39 = arith.constant 0 : index
    %c0_40 = arith.constant 0 : index
    %112 = vector.load %arg1[%c4, %c0_39, %c0_40] : memref<8x8x128xf32, #tpu.memory_space<vmem>>, vector<1x8x128xf32>
    %113 = vector.shape_cast %112 : vector<1x8x128xf32> to vector<8x128xf32>
    %114 = arith.truncf %104 : vector<8x32xf32> to vector<8x32xbf16>
    %cst_41 = arith.constant dense<0.000000e+00> : vector<8x128xf32>
    %115 = tpu.matmul %114, %1, %cst_41 {dimension_numbers = #tpu.dot_dimension_numbers<[1], [0], [0], [1], [0, 0, 1, 1], [], []>} : vector<8x32xbf16>, vector<32x128xbf16>, vector<8x128xf32> -> vector<8x128xf32>
    %116 = arith.addf %113, %115 : vector<8x128xf32>
    %117 = vector.extract_strided_slice %116 {offsets = [0, 0], sizes = [8, 96], strides = [1, 1]} : vector<8x128xf32> to vector<8x96xf32>
    %118 = arith.negf %117 : vector<8x96xf32>
    %119 = math.exp %118 : vector<8x96xf32>
    %cst_42 = arith.constant 1.000000e+00 : f32
    %120 = vector.broadcast %cst_42 : f32 to vector<8x96xf32>
    %121 = arith.addf %120, %119 : vector<8x96xf32>
    %122 = arith.divf %120, %121 : vector<8x96xf32>
    %123 = vector.extract_strided_slice %122 {offsets = [0, 0], sizes = [8, 32], strides = [1, 1]} : vector<8x96xf32> to vector<8x32xf32>
    %124 = vector.extract_strided_slice %122 {offsets = [0, 32], sizes = [8, 32], strides = [1, 1]} : vector<8x96xf32> to vector<8x32xf32>
    %125 = vector.extract_strided_slice %122 {offsets = [0, 64], sizes = [8, 32], strides = [1, 1]} : vector<8x96xf32> to vector<8x32xf32>
    %126 = vector.extract_strided_slice %116 {offsets = [0, 96], sizes = [8, 32], strides = [1, 1]} : vector<8x128xf32> to vector<8x32xf32>
    %127 = math.tanh %126 : vector<8x32xf32>
    %128 = arith.mulf %124, %102 : vector<8x32xf32>
    %129 = arith.mulf %123, %127 : vector<8x32xf32>
    %130 = arith.addf %128, %129 : vector<8x32xf32>
    %131 = math.tanh %130 : vector<8x32xf32>
    %132 = arith.mulf %125, %131 : vector<8x32xf32>
    %133 = arith.truncf %132 : vector<8x32xf32> to vector<8x32xbf16>
    %cst_43 = arith.constant dense<0.000000e+00> : vector<8x128xf32>
    %134 = tpu.matmul %133, %3, %cst_43 {dimension_numbers = #tpu.dot_dimension_numbers<[1], [0], [0], [1], [0, 0, 1, 1], [], []>} : vector<8x32xbf16>, vector<32x128xbf16>, vector<8x128xf32> -> vector<8x128xf32>
    %135 = vector.broadcast %5 : vector<1x128xf32> to vector<8x128xf32>
    %136 = arith.addf %134, %135 : vector<8x128xf32>
    %c4_44 = arith.constant 4 : index
    %c0_45 = arith.constant 0 : index
    %c0_46 = arith.constant 0 : index
    %137 = vector.load %arg6[%c4_44, %c0_45, %c0_46] : memref<8x8x128xf32, #tpu.memory_space<vmem>>, vector<1x8x128xf32>
    %138 = vector.shape_cast %137 : vector<1x8x128xf32> to vector<8x128xf32>
    %139 = vector.shape_cast %136 : vector<8x128xf32> to vector<1x8x128xf32>
    tpu.vector_store %arg6[%c4_44, %c0_45, %c0_46], %139 {strides = array<i32>} : memref<8x8x128xf32, #tpu.memory_space<vmem>>, vector<1x8x128xf32>,
    %c5 = arith.constant 5 : index
    %c0_47 = arith.constant 0 : index
    %c0_48 = arith.constant 0 : index
    %140 = vector.load %arg1[%c5, %c0_47, %c0_48] : memref<8x8x128xf32, #tpu.memory_space<vmem>>, vector<1x8x128xf32>
    %141 = vector.shape_cast %140 : vector<1x8x128xf32> to vector<8x128xf32>
    %142 = arith.truncf %132 : vector<8x32xf32> to vector<8x32xbf16>
    %cst_49 = arith.constant dense<0.000000e+00> : vector<8x128xf32>
    %143 = tpu.matmul %142, %1, %cst_49 {dimension_numbers = #tpu.dot_dimension_numbers<[1], [0], [0], [1], [0, 0, 1, 1], [], []>} : vector<8x32xbf16>, vector<32x128xbf16>, vector<8x128xf32> -> vector<8x128xf32>
    %144 = arith.addf %141, %143 : vector<8x128xf32>
    %145 = vector.extract_strided_slice %144 {offsets = [0, 0], sizes = [8, 96], strides = [1, 1]} : vector<8x128xf32> to vector<8x96xf32>
    %146 = arith.negf %145 : vector<8x96xf32>
    %147 = math.exp %146 : vector<8x96xf32>
    %cst_50 = arith.constant 1.000000e+00 : f32
    %148 = vector.broadcast %cst_50 : f32 to vector<8x96xf32>
    %149 = arith.addf %148, %147 : vector<8x96xf32>
    %150 = arith.divf %148, %149 : vector<8x96xf32>
    %151 = vector.extract_strided_slice %150 {offsets = [0, 0], sizes = [8, 32], strides = [1, 1]} : vector<8x96xf32> to vector<8x32xf32>
    %152 = vector.extract_strided_slice %150 {offsets = [0, 32], sizes = [8, 32], strides = [1, 1]} : vector<8x96xf32> to vector<8x32xf32>
    %153 = vector.extract_strided_slice %150 {offsets = [0, 64], sizes = [8, 32], strides = [1, 1]} : vector<8x96xf32> to vector<8x32xf32>
    %154 = vector.extract_strided_slice %144 {offsets = [0, 96], sizes = [8, 32], strides = [1, 1]} : vector<8x128xf32> to vector<8x32xf32>
    %155 = math.tanh %154 : vector<8x32xf32>
    %156 = arith.mulf %152, %130 : vector<8x32xf32>
    %157 = arith.mulf %151, %155 : vector<8x32xf32>
    %158 = arith.addf %156, %157 : vector<8x32xf32>
    %159 = math.tanh %158 : vector<8x32xf32>
    %160 = arith.mulf %153, %159 : vector<8x32xf32>
    %161 = arith.truncf %160 : vector<8x32xf32> to vector<8x32xbf16>
    %cst_51 = arith.constant dense<0.000000e+00> : vector<8x128xf32>
    %162 = tpu.matmul %161, %3, %cst_51 {dimension_numbers = #tpu.dot_dimension_numbers<[1], [0], [0], [1], [0, 0, 1, 1], [], []>} : vector<8x32xbf16>, vector<32x128xbf16>, vector<8x128xf32> -> vector<8x128xf32>
    %163 = vector.broadcast %5 : vector<1x128xf32> to vector<8x128xf32>
    %164 = arith.addf %162, %163 : vector<8x128xf32>
    %c5_52 = arith.constant 5 : index
    %c0_53 = arith.constant 0 : index
    %c0_54 = arith.constant 0 : index
    %165 = vector.load %arg6[%c5_52, %c0_53, %c0_54] : memref<8x8x128xf32, #tpu.memory_space<vmem>>, vector<1x8x128xf32>
    %166 = vector.shape_cast %165 : vector<1x8x128xf32> to vector<8x128xf32>
    %167 = vector.shape_cast %164 : vector<8x128xf32> to vector<1x8x128xf32>
    tpu.vector_store %arg6[%c5_52, %c0_53, %c0_54], %167 {strides = array<i32>} : memref<8x8x128xf32, #tpu.memory_space<vmem>>, vector<1x8x128xf32>,
    %c6 = arith.constant 6 : index
    %c0_55 = arith.constant 0 : index
    %c0_56 = arith.constant 0 : index
    %168 = vector.load %arg1[%c6, %c0_55, %c0_56] : memref<8x8x128xf32, #tpu.memory_space<vmem>>, vector<1x8x128xf32>
    %169 = vector.shape_cast %168 : vector<1x8x128xf32> to vector<8x128xf32>
    %170 = arith.truncf %160 : vector<8x32xf32> to vector<8x32xbf16>
    %cst_57 = arith.constant dense<0.000000e+00> : vector<8x128xf32>
    %171 = tpu.matmul %170, %1, %cst_57 {dimension_numbers = #tpu.dot_dimension_numbers<[1], [0], [0], [1], [0, 0, 1, 1], [], []>} : vector<8x32xbf16>, vector<32x128xbf16>, vector<8x128xf32> -> vector<8x128xf32>
    %172 = arith.addf %169, %171 : vector<8x128xf32>
    %173 = vector.extract_strided_slice %172 {offsets = [0, 0], sizes = [8, 96], strides = [1, 1]} : vector<8x128xf32> to vector<8x96xf32>
    %174 = arith.negf %173 : vector<8x96xf32>
    %175 = math.exp %174 : vector<8x96xf32>
    %cst_58 = arith.constant 1.000000e+00 : f32
    %176 = vector.broadcast %cst_58 : f32 to vector<8x96xf32>
    %177 = arith.addf %176, %175 : vector<8x96xf32>
    %178 = arith.divf %176, %177 : vector<8x96xf32>
    %179 = vector.extract_strided_slice %178 {offsets = [0, 0], sizes = [8, 32], strides = [1, 1]} : vector<8x96xf32> to vector<8x32xf32>
    %180 = vector.extract_strided_slice %178 {offsets = [0, 32], sizes = [8, 32], strides = [1, 1]} : vector<8x96xf32> to vector<8x32xf32>
    %181 = vector.extract_strided_slice %178 {offsets = [0, 64], sizes = [8, 32], strides = [1, 1]} : vector<8x96xf32> to vector<8x32xf32>
    %182 = vector.extract_strided_slice %172 {offsets = [0, 96], sizes = [8, 32], strides = [1, 1]} : vector<8x128xf32> to vector<8x32xf32>
    %183 = math.tanh %182 : vector<8x32xf32>
    %184 = arith.mulf %180, %158 : vector<8x32xf32>
    %185 = arith.mulf %179, %183 : vector<8x32xf32>
    %186 = arith.addf %184, %185 : vector<8x32xf32>
    %187 = math.tanh %186 : vector<8x32xf32>
    %188 = arith.mulf %181, %187 : vector<8x32xf32>
    %189 = arith.truncf %188 : vector<8x32xf32> to vector<8x32xbf16>
    %cst_59 = arith.constant dense<0.000000e+00> : vector<8x128xf32>
    %190 = tpu.matmul %189, %3, %cst_59 {dimension_numbers = #tpu.dot_dimension_numbers<[1], [0], [0], [1], [0, 0, 1, 1], [], []>} : vector<8x32xbf16>, vector<32x128xbf16>, vector<8x128xf32> -> vector<8x128xf32>
    %191 = vector.broadcast %5 : vector<1x128xf32> to vector<8x128xf32>
    %192 = arith.addf %190, %191 : vector<8x128xf32>
    %c6_60 = arith.constant 6 : index
    %c0_61 = arith.constant 0 : index
    %c0_62 = arith.constant 0 : index
    %193 = vector.load %arg6[%c6_60, %c0_61, %c0_62] : memref<8x8x128xf32, #tpu.memory_space<vmem>>, vector<1x8x128xf32>
    %194 = vector.shape_cast %193 : vector<1x8x128xf32> to vector<8x128xf32>
    %195 = vector.shape_cast %192 : vector<8x128xf32> to vector<1x8x128xf32>
    tpu.vector_store %arg6[%c6_60, %c0_61, %c0_62], %195 {strides = array<i32>} : memref<8x8x128xf32, #tpu.memory_space<vmem>>, vector<1x8x128xf32>,
    %c7 = arith.constant 7 : index
    %c0_63 = arith.constant 0 : index
    %c0_64 = arith.constant 0 : index
    %196 = vector.load %arg1[%c7, %c0_63, %c0_64] : memref<8x8x128xf32, #tpu.memory_space<vmem>>, vector<1x8x128xf32>
    %197 = vector.shape_cast %196 : vector<1x8x128xf32> to vector<8x128xf32>
    %198 = arith.truncf %188 : vector<8x32xf32> to vector<8x32xbf16>
    %cst_65 = arith.constant dense<0.000000e+00> : vector<8x128xf32>
    %199 = tpu.matmul %198, %1, %cst_65 {dimension_numbers = #tpu.dot_dimension_numbers<[1], [0], [0], [1], [0, 0, 1, 1], [], []>} : vector<8x32xbf16>, vector<32x128xbf16>, vector<8x128xf32> -> vector<8x128xf32>
    %200 = arith.addf %197, %199 : vector<8x128xf32>
    %201 = vector.extract_strided_slice %200 {offsets = [0, 0], sizes = [8, 96], strides = [1, 1]} : vector<8x128xf32> to vector<8x96xf32>
    %202 = arith.negf %201 : vector<8x96xf32>
    %203 = math.exp %202 : vector<8x96xf32>
    %cst_66 = arith.constant 1.000000e+00 : f32
    %204 = vector.broadcast %cst_66 : f32 to vector<8x96xf32>
    %205 = arith.addf %204, %203 : vector<8x96xf32>
    %206 = arith.divf %204, %205 : vector<8x96xf32>
    %207 = vector.extract_strided_slice %206 {offsets = [0, 0], sizes = [8, 32], strides = [1, 1]} : vector<8x96xf32> to vector<8x32xf32>
    %208 = vector.extract_strided_slice %206 {offsets = [0, 32], sizes = [8, 32], strides = [1, 1]} : vector<8x96xf32> to vector<8x32xf32>
    %209 = vector.extract_strided_slice %206 {offsets = [0, 64], sizes = [8, 32], strides = [1, 1]} : vector<8x96xf32> to vector<8x32xf32>
    %210 = vector.extract_strided_slice %200 {offsets = [0, 96], sizes = [8, 32], strides = [1, 1]} : vector<8x128xf32> to vector<8x32xf32>
    %211 = math.tanh %210 : vector<8x32xf32>
    %212 = arith.mulf %208, %186 : vector<8x32xf32>
    %213 = arith.mulf %207, %211 : vector<8x32xf32>
    %214 = arith.addf %212, %213 : vector<8x32xf32>
    %215 = math.tanh %214 : vector<8x32xf32>
    %216 = arith.mulf %209, %215 : vector<8x32xf32>
    %217 = arith.truncf %216 : vector<8x32xf32> to vector<8x32xbf16>
    %cst_67 = arith.constant dense<0.000000e+00> : vector<8x128xf32>
    %218 = tpu.matmul %217, %3, %cst_67 {dimension_numbers = #tpu.dot_dimension_numbers<[1], [0], [0], [1], [0, 0, 1, 1], [], []>} : vector<8x32xbf16>, vector<32x128xbf16>, vector<8x128xf32> -> vector<8x128xf32>
    %219 = vector.broadcast %5 : vector<1x128xf32> to vector<8x128xf32>
    %220 = arith.addf %218, %219 : vector<8x128xf32>
    %c7_68 = arith.constant 7 : index
    %c0_69 = arith.constant 0 : index
    %c0_70 = arith.constant 0 : index
    %221 = vector.load %arg6[%c7_68, %c0_69, %c0_70] : memref<8x8x128xf32, #tpu.memory_space<vmem>>, vector<1x8x128xf32>
    %222 = vector.shape_cast %221 : vector<1x8x128xf32> to vector<8x128xf32>
    %223 = vector.shape_cast %220 : vector<8x128xf32> to vector<1x8x128xf32>
    tpu.vector_store %arg6[%c7_68, %c0_69, %c0_70], %223 {strides = array<i32>} : memref<8x8x128xf32, #tpu.memory_space<vmem>>, vector<1x8x128xf32>,
    %c1_71 = arith.constant 1 : index
    %c0_72 = arith.constant 0 : index
    %c0_73 = arith.constant 0 : index
    %224 = vector.load %arg3[%c1_71, %c0_72, %c0_73] : memref<7x32x128xbf16, #tpu.memory_space<vmem>>, vector<1x32x128xbf16>
    %225 = vector.shape_cast %224 : vector<1x32x128xbf16> to vector<32x128xbf16>
    %c1_74 = arith.constant 1 : index
    %c0_75 = arith.constant 0 : index
    %c0_76 = arith.constant 0 : index
    %226 = vector.load %arg2[%c1_74, %c0_75, %c0_76] : memref<6x32x128xbf16, #tpu.memory_space<vmem>>, vector<1x32x128xbf16>
    %227 = vector.shape_cast %226 : vector<1x32x128xbf16> to vector<32x128xbf16>
    %c1_77 = arith.constant 1 : index
    %c0_78 = arith.constant 0 : index
    %c0_79 = arith.constant 0 : index
    %228 = vector.load %arg4[%c1_77, %c0_78, %c0_79] : memref<6x1x128xf32, #tpu.memory_space<vmem>>, vector<1x1x128xf32>
    %229 = vector.shape_cast %228 : vector<1x1x128xf32> to vector<1x128xf32>
    %c0_80 = arith.constant 0 : index
    %c0_81 = arith.constant 0 : index
    %c0_82 = arith.constant 0 : index
    %230 = vector.load %arg6[%c0_80, %c0_81, %c0_82] : memref<8x8x128xf32, #tpu.memory_space<vmem>>, vector<1x8x128xf32>
    %231 = vector.shape_cast %230 : vector<1x8x128xf32> to vector<8x128xf32>
    %232 = vector.extract_strided_slice %231 {offsets = [0, 0], sizes = [8, 96], strides = [1, 1]} : vector<8x128xf32> to vector<8x96xf32>
    %233 = arith.negf %232 : vector<8x96xf32>
    %234 = math.exp %233 : vector<8x96xf32>
    %cst_83 = arith.constant 1.000000e+00 : f32
    %235 = vector.broadcast %cst_83 : f32 to vector<8x96xf32>
    %236 = arith.addf %235, %234 : vector<8x96xf32>
    %237 = arith.divf %235, %236 : vector<8x96xf32>
    %238 = vector.extract_strided_slice %237 {offsets = [0, 0], sizes = [8, 32], strides = [1, 1]} : vector<8x96xf32> to vector<8x32xf32>
    %239 = vector.extract_strided_slice %237 {offsets = [0, 64], sizes = [8, 32], strides = [1, 1]} : vector<8x96xf32> to vector<8x32xf32>
    %240 = vector.extract_strided_slice %231 {offsets = [0, 96], sizes = [8, 32], strides = [1, 1]} : vector<8x128xf32> to vector<8x32xf32>
    %241 = math.tanh %240 : vector<8x32xf32>
    %242 = arith.mulf %238, %241 : vector<8x32xf32>
    %243 = math.tanh %242 : vector<8x32xf32>
    %244 = arith.mulf %239, %243 : vector<8x32xf32>
    %245 = arith.truncf %244 : vector<8x32xf32> to vector<8x32xbf16>
    %cst_84 = arith.constant dense<0.000000e+00> : vector<8x128xf32>
    %246 = tpu.matmul %245, %227, %cst_84 {dimension_numbers = #tpu.dot_dimension_numbers<[1], [0], [0], [1], [0, 0, 1, 1], [], []>} : vector<8x32xbf16>, vector<32x128xbf16>, vector<8x128xf32> -> vector<8x128xf32>
    %247 = vector.broadcast %229 : vector<1x128xf32> to vector<8x128xf32>
    %248 = arith.addf %246, %247 : vector<8x128xf32>
    %c0_85 = arith.constant 0 : index
    %c0_86 = arith.constant 0 : index
    %c0_87 = arith.constant 0 : index
    %249 = vector.load %arg6[%c0_85, %c0_86, %c0_87] : memref<8x8x128xf32, #tpu.memory_space<vmem>>, vector<1x8x128xf32>
    %250 = vector.shape_cast %249 : vector<1x8x128xf32> to vector<8x128xf32>
    %251 = vector.shape_cast %248 : vector<8x128xf32> to vector<1x8x128xf32>
    tpu.vector_store %arg6[%c0_85, %c0_86, %c0_87], %251 {strides = array<i32>} : memref<8x8x128xf32, #tpu.memory_space<vmem>>, vector<1x8x128xf32>,
    %c1_88 = arith.constant 1 : index
    %c0_89 = arith.constant 0 : index
    %c0_90 = arith.constant 0 : index
    %252 = vector.load %arg6[%c1_88, %c0_89, %c0_90] : memref<8x8x128xf32, #tpu.memory_space<vmem>>, vector<1x8x128xf32>
    %253 = vector.shape_cast %252 : vector<1x8x128xf32> to vector<8x128xf32>
    %254 = arith.truncf %244 : vector<8x32xf32> to vector<8x32xbf16>
    %cst_91 = arith.constant dense<0.000000e+00> : vector<8x128xf32>
    %255 = tpu.matmul %254, %225, %cst_91 {dimension_numbers = #tpu.dot_dimension_numbers<[1], [0], [0], [1], [0, 0, 1, 1], [], []>} : vector<8x32xbf16>, vector<32x128xbf16>, vector<8x128xf32> -> vector<8x128xf32>
    %256 = arith.addf %253, %255 : vector<8x128xf32>
    %257 = vector.extract_strided_slice %256 {offsets = [0, 0], sizes = [8, 96], strides = [1, 1]} : vector<8x128xf32> to vector<8x96xf32>
    %258 = arith.negf %257 : vector<8x96xf32>
    %259 = math.exp %258 : vector<8x96xf32>
    %cst_92 = arith.constant 1.000000e+00 : f32
    %260 = vector.broadcast %cst_92 : f32 to vector<8x96xf32>
    %261 = arith.addf %260, %259 : vector<8x96xf32>
    %262 = arith.divf %260, %261 : vector<8x96xf32>
    %263 = vector.extract_strided_slice %262 {offsets = [0, 0], sizes = [8, 32], strides = [1, 1]} : vector<8x96xf32> to vector<8x32xf32>
    %264 = vector.extract_strided_slice %262 {offsets = [0, 32], sizes = [8, 32], strides = [1, 1]} : vector<8x96xf32> to vector<8x32xf32>
    %265 = vector.extract_strided_slice %262 {offsets = [0, 64], sizes = [8, 32], strides = [1, 1]} : vector<8x96xf32> to vector<8x32xf32>
    %266 = vector.extract_strided_slice %256 {offsets = [0, 96], sizes = [8, 32], strides = [1, 1]} : vector<8x128xf32> to vector<8x32xf32>
    %267 = math.tanh %266 : vector<8x32xf32>
    %268 = arith.mulf %264, %242 : vector<8x32xf32>
    %269 = arith.mulf %263, %267 : vector<8x32xf32>
    %270 = arith.addf %268, %269 : vector<8x32xf32>
    %271 = math.tanh %270 : vector<8x32xf32>
    %272 = arith.mulf %265, %271 : vector<8x32xf32>
    %273 = arith.truncf %272 : vector<8x32xf32> to vector<8x32xbf16>
    %cst_93 = arith.constant dense<0.000000e+00> : vector<8x128xf32>
    %274 = tpu.matmul %273, %227, %cst_93 {dimension_numbers = #tpu.dot_dimension_numbers<[1], [0], [0], [1], [0, 0, 1, 1], [], []>} : vector<8x32xbf16>, vector<32x128xbf16>, vector<8x128xf32> -> vector<8x128xf32>
    %275 = vector.broadcast %229 : vector<1x128xf32> to vector<8x128xf32>
    %276 = arith.addf %274, %275 : vector<8x128xf32>
    %c1_94 = arith.constant 1 : index
    %c0_95 = arith.constant 0 : index
    %c0_96 = arith.constant 0 : index
    %277 = vector.load %arg6[%c1_94, %c0_95, %c0_96] : memref<8x8x128xf32, #tpu.memory_space<vmem>>, vector<1x8x128xf32>
    %278 = vector.shape_cast %277 : vector<1x8x128xf32> to vector<8x128xf32>
    %279 = vector.shape_cast %276 : vector<8x128xf32> to vector<1x8x128xf32>
    tpu.vector_store %arg6[%c1_94, %c0_95, %c0_96], %279 {strides = array<i32>} : memref<8x8x128xf32, #tpu.memory_space<vmem>>, vector<1x8x128xf32>,
    %c2_97 = arith.constant 2 : index
    %c0_98 = arith.constant 0 : index
    %c0_99 = arith.constant 0 : index
    %280 = vector.load %arg6[%c2_97, %c0_98, %c0_99] : memref<8x8x128xf32, #tpu.memory_space<vmem>>, vector<1x8x128xf32>
    %281 = vector.shape_cast %280 : vector<1x8x128xf32> to vector<8x128xf32>
    %282 = arith.truncf %272 : vector<8x32xf32> to vector<8x32xbf16>
    %cst_100 = arith.constant dense<0.000000e+00> : vector<8x128xf32>
    %283 = tpu.matmul %282, %225, %cst_100 {dimension_numbers = #tpu.dot_dimension_numbers<[1], [0], [0], [1], [0, 0, 1, 1], [], []>} : vector<8x32xbf16>, vector<32x128xbf16>, vector<8x128xf32> -> vector<8x128xf32>
    %284 = arith.addf %281, %283 : vector<8x128xf32>
    %285 = vector.extract_strided_slice %284 {offsets = [0, 0], sizes = [8, 96], strides = [1, 1]} : vector<8x128xf32> to vector<8x96xf32>
    %286 = arith.negf %285 : vector<8x96xf32>
    %287 = math.exp %286 : vector<8x96xf32>
    %cst_101 = arith.constant 1.000000e+00 : f32
    %288 = vector.broadcast %cst_101 : f32 to vector<8x96xf32>
    %289 = arith.addf %288, %287 : vector<8x96xf32>
    %290 = arith.divf %288, %289 : vector<8x96xf32>
    %291 = vector.extract_strided_slice %290 {offsets = [0, 0], sizes = [8, 32], strides = [1, 1]} : vector<8x96xf32> to vector<8x32xf32>
    %292 = vector.extract_strided_slice %290 {offsets = [0, 32], sizes = [8, 32], strides = [1, 1]} : vector<8x96xf32> to vector<8x32xf32>
    %293 = vector.extract_strided_slice %290 {offsets = [0, 64], sizes = [8, 32], strides = [1, 1]} : vector<8x96xf32> to vector<8x32xf32>
    %294 = vector.extract_strided_slice %284 {offsets = [0, 96], sizes = [8, 32], strides = [1, 1]} : vector<8x128xf32> to vector<8x32xf32>
    %295 = math.tanh %294 : vector<8x32xf32>
    %296 = arith.mulf %292, %270 : vector<8x32xf32>
    %297 = arith.mulf %291, %295 : vector<8x32xf32>
    %298 = arith.addf %296, %297 : vector<8x32xf32>
    %299 = math.tanh %298 : vector<8x32xf32>
    %300 = arith.mulf %293, %299 : vector<8x32xf32>
    %301 = arith.truncf %300 : vector<8x32xf32> to vector<8x32xbf16>
    %cst_102 = arith.constant dense<0.000000e+00> : vector<8x128xf32>
    %302 = tpu.matmul %301, %227, %cst_102 {dimension_numbers = #tpu.dot_dimension_numbers<[1], [0], [0], [1], [0, 0, 1, 1], [], []>} : vector<8x32xbf16>, vector<32x128xbf16>, vector<8x128xf32> -> vector<8x128xf32>
    %303 = vector.broadcast %229 : vector<1x128xf32> to vector<8x128xf32>
    %304 = arith.addf %302, %303 : vector<8x128xf32>
    %c2_103 = arith.constant 2 : index
    %c0_104 = arith.constant 0 : index
    %c0_105 = arith.constant 0 : index
    %305 = vector.load %arg6[%c2_103, %c0_104, %c0_105] : memref<8x8x128xf32, #tpu.memory_space<vmem>>, vector<1x8x128xf32>
    %306 = vector.shape_cast %305 : vector<1x8x128xf32> to vector<8x128xf32>
    %307 = vector.shape_cast %304 : vector<8x128xf32> to vector<1x8x128xf32>
    tpu.vector_store %arg6[%c2_103, %c0_104, %c0_105], %307 {strides = array<i32>} : memref<8x8x128xf32, #tpu.memory_space<vmem>>, vector<1x8x128xf32>,
    %c3_106 = arith.constant 3 : index
    %c0_107 = arith.constant 0 : index
    %c0_108 = arith.constant 0 : index
    %308 = vector.load %arg6[%c3_106, %c0_107, %c0_108] : memref<8x8x128xf32, #tpu.memory_space<vmem>>, vector<1x8x128xf32>
    %309 = vector.shape_cast %308 : vector<1x8x128xf32> to vector<8x128xf32>
    %310 = arith.truncf %300 : vector<8x32xf32> to vector<8x32xbf16>
    %cst_109 = arith.constant dense<0.000000e+00> : vector<8x128xf32>
    %311 = tpu.matmul %310, %225, %cst_109 {dimension_numbers = #tpu.dot_dimension_numbers<[1], [0], [0], [1], [0, 0, 1, 1], [], []>} : vector<8x32xbf16>, vector<32x128xbf16>, vector<8x128xf32> -> vector<8x128xf32>
    %312 = arith.addf %309, %311 : vector<8x128xf32>
    %313 = vector.extract_strided_slice %312 {offsets = [0, 0], sizes = [8, 96], strides = [1, 1]} : vector<8x128xf32> to vector<8x96xf32>
    %314 = arith.negf %313 : vector<8x96xf32>
    %315 = math.exp %314 : vector<8x96xf32>
    %cst_110 = arith.constant 1.000000e+00 : f32
    %316 = vector.broadcast %cst_110 : f32 to vector<8x96xf32>
    %317 = arith.addf %316, %315 : vector<8x96xf32>
    %318 = arith.divf %316, %317 : vector<8x96xf32>
    %319 = vector.extract_strided_slice %318 {offsets = [0, 0], sizes = [8, 32], strides = [1, 1]} : vector<8x96xf32> to vector<8x32xf32>
    %320 = vector.extract_strided_slice %318 {offsets = [0, 32], sizes = [8, 32], strides = [1, 1]} : vector<8x96xf32> to vector<8x32xf32>
    %321 = vector.extract_strided_slice %318 {offsets = [0, 64], sizes = [8, 32], strides = [1, 1]} : vector<8x96xf32> to vector<8x32xf32>
    %322 = vector.extract_strided_slice %312 {offsets = [0, 96], sizes = [8, 32], strides = [1, 1]} : vector<8x128xf32> to vector<8x32xf32>
    %323 = math.tanh %322 : vector<8x32xf32>
    %324 = arith.mulf %320, %298 : vector<8x32xf32>
    %325 = arith.mulf %319, %323 : vector<8x32xf32>
    %326 = arith.addf %324, %325 : vector<8x32xf32>
    %327 = math.tanh %326 : vector<8x32xf32>
    %328 = arith.mulf %321, %327 : vector<8x32xf32>
    %329 = arith.truncf %328 : vector<8x32xf32> to vector<8x32xbf16>
    %cst_111 = arith.constant dense<0.000000e+00> : vector<8x128xf32>
    %330 = tpu.matmul %329, %227, %cst_111 {dimension_numbers = #tpu.dot_dimension_numbers<[1], [0], [0], [1], [0, 0, 1, 1], [], []>} : vector<8x32xbf16>, vector<32x128xbf16>, vector<8x128xf32> -> vector<8x128xf32>
    %331 = vector.broadcast %229 : vector<1x128xf32> to vector<8x128xf32>
    %332 = arith.addf %330, %331 : vector<8x128xf32>
    %c3_112 = arith.constant 3 : index
    %c0_113 = arith.constant 0 : index
    %c0_114 = arith.constant 0 : index
    %333 = vector.load %arg6[%c3_112, %c0_113, %c0_114] : memref<8x8x128xf32, #tpu.memory_space<vmem>>, vector<1x8x128xf32>
    %334 = vector.shape_cast %333 : vector<1x8x128xf32> to vector<8x128xf32>
    %335 = vector.shape_cast %332 : vector<8x128xf32> to vector<1x8x128xf32>
    tpu.vector_store %arg6[%c3_112, %c0_113, %c0_114], %335 {strides = array<i32>} : memref<8x8x128xf32, #tpu.memory_space<vmem>>, vector<1x8x128xf32>,
    %c4_115 = arith.constant 4 : index
    %c0_116 = arith.constant 0 : index
    %c0_117 = arith.constant 0 : index
    %336 = vector.load %arg6[%c4_115, %c0_116, %c0_117] : memref<8x8x128xf32, #tpu.memory_space<vmem>>, vector<1x8x128xf32>
    %337 = vector.shape_cast %336 : vector<1x8x128xf32> to vector<8x128xf32>
    %338 = arith.truncf %328 : vector<8x32xf32> to vector<8x32xbf16>
    %cst_118 = arith.constant dense<0.000000e+00> : vector<8x128xf32>
    %339 = tpu.matmul %338, %225, %cst_118 {dimension_numbers = #tpu.dot_dimension_numbers<[1], [0], [0], [1], [0, 0, 1, 1], [], []>} : vector<8x32xbf16>, vector<32x128xbf16>, vector<8x128xf32> -> vector<8x128xf32>
    %340 = arith.addf %337, %339 : vector<8x128xf32>
    %341 = vector.extract_strided_slice %340 {offsets = [0, 0], sizes = [8, 96], strides = [1, 1]} : vector<8x128xf32> to vector<8x96xf32>
    %342 = arith.negf %341 : vector<8x96xf32>
    %343 = math.exp %342 : vector<8x96xf32>
    %cst_119 = arith.constant 1.000000e+00 : f32
    %344 = vector.broadcast %cst_119 : f32 to vector<8x96xf32>
    %345 = arith.addf %344, %343 : vector<8x96xf32>
    %346 = arith.divf %344, %345 : vector<8x96xf32>
    %347 = vector.extract_strided_slice %346 {offsets = [0, 0], sizes = [8, 32], strides = [1, 1]} : vector<8x96xf32> to vector<8x32xf32>
    %348 = vector.extract_strided_slice %346 {offsets = [0, 32], sizes = [8, 32], strides = [1, 1]} : vector<8x96xf32> to vector<8x32xf32>
    %349 = vector.extract_strided_slice %346 {offsets = [0, 64], sizes = [8, 32], strides = [1, 1]} : vector<8x96xf32> to vector<8x32xf32>
    %350 = vector.extract_strided_slice %340 {offsets = [0, 96], sizes = [8, 32], strides = [1, 1]} : vector<8x128xf32> to vector<8x32xf32>
    %351 = math.tanh %350 : vector<8x32xf32>
    %352 = arith.mulf %348, %326 : vector<8x32xf32>
    %353 = arith.mulf %347, %351 : vector<8x32xf32>
    %354 = arith.addf %352, %353 : vector<8x32xf32>
    %355 = math.tanh %354 : vector<8x32xf32>
    %356 = arith.mulf %349, %355 : vector<8x32xf32>
    %357 = arith.truncf %356 : vector<8x32xf32> to vector<8x32xbf16>
    %cst_120 = arith.constant dense<0.000000e+00> : vector<8x128xf32>
    %358 = tpu.matmul %357, %227, %cst_120 {dimension_numbers = #tpu.dot_dimension_numbers<[1], [0], [0], [1], [0, 0, 1, 1], [], []>} : vector<8x32xbf16>, vector<32x128xbf16>, vector<8x128xf32> -> vector<8x128xf32>
    %359 = vector.broadcast %229 : vector<1x128xf32> to vector<8x128xf32>
    %360 = arith.addf %358, %359 : vector<8x128xf32>
    %c4_121 = arith.constant 4 : index
    %c0_122 = arith.constant 0 : index
    %c0_123 = arith.constant 0 : index
    %361 = vector.load %arg6[%c4_121, %c0_122, %c0_123] : memref<8x8x128xf32, #tpu.memory_space<vmem>>, vector<1x8x128xf32>
    %362 = vector.shape_cast %361 : vector<1x8x128xf32> to vector<8x128xf32>
    %363 = vector.shape_cast %360 : vector<8x128xf32> to vector<1x8x128xf32>
    tpu.vector_store %arg6[%c4_121, %c0_122, %c0_123], %363 {strides = array<i32>} : memref<8x8x128xf32, #tpu.memory_space<vmem>>, vector<1x8x128xf32>,
    %c5_124 = arith.constant 5 : index
    %c0_125 = arith.constant 0 : index
    %c0_126 = arith.constant 0 : index
    %364 = vector.load %arg6[%c5_124, %c0_125, %c0_126] : memref<8x8x128xf32, #tpu.memory_space<vmem>>, vector<1x8x128xf32>
    %365 = vector.shape_cast %364 : vector<1x8x128xf32> to vector<8x128xf32>
    %366 = arith.truncf %356 : vector<8x32xf32> to vector<8x32xbf16>
    %cst_127 = arith.constant dense<0.000000e+00> : vector<8x128xf32>
    %367 = tpu.matmul %366, %225, %cst_127 {dimension_numbers = #tpu.dot_dimension_numbers<[1], [0], [0], [1], [0, 0, 1, 1], [], []>} : vector<8x32xbf16>, vector<32x128xbf16>, vector<8x128xf32> -> vector<8x128xf32>
    %368 = arith.addf %365, %367 : vector<8x128xf32>
    %369 = vector.extract_strided_slice %368 {offsets = [0, 0], sizes = [8, 96], strides = [1, 1]} : vector<8x128xf32> to vector<8x96xf32>
    %370 = arith.negf %369 : vector<8x96xf32>
    %371 = math.exp %370 : vector<8x96xf32>
    %cst_128 = arith.constant 1.000000e+00 : f32
    %372 = vector.broadcast %cst_128 : f32 to vector<8x96xf32>
    %373 = arith.addf %372, %371 : vector<8x96xf32>
    %374 = arith.divf %372, %373 : vector<8x96xf32>
    %375 = vector.extract_strided_slice %374 {offsets = [0, 0], sizes = [8, 32], strides = [1, 1]} : vector<8x96xf32> to vector<8x32xf32>
    %376 = vector.extract_strided_slice %374 {offsets = [0, 32], sizes = [8, 32], strides = [1, 1]} : vector<8x96xf32> to vector<8x32xf32>
    %377 = vector.extract_strided_slice %374 {offsets = [0, 64], sizes = [8, 32], strides = [1, 1]} : vector<8x96xf32> to vector<8x32xf32>
    %378 = vector.extract_strided_slice %368 {offsets = [0, 96], sizes = [8, 32], strides = [1, 1]} : vector<8x128xf32> to vector<8x32xf32>
    %379 = math.tanh %378 : vector<8x32xf32>
    %380 = arith.mulf %376, %354 : vector<8x32xf32>
    %381 = arith.mulf %375, %379 : vector<8x32xf32>
    %382 = arith.addf %380, %381 : vector<8x32xf32>
    %383 = math.tanh %382 : vector<8x32xf32>
    %384 = arith.mulf %377, %383 : vector<8x32xf32>
    %385 = arith.truncf %384 : vector<8x32xf32> to vector<8x32xbf16>
    %cst_129 = arith.constant dense<0.000000e+00> : vector<8x128xf32>
    %386 = tpu.matmul %385, %227, %cst_129 {dimension_numbers = #tpu.dot_dimension_numbers<[1], [0], [0], [1], [0, 0, 1, 1], [], []>} : vector<8x32xbf16>, vector<32x128xbf16>, vector<8x128xf32> -> vector<8x128xf32>
    %387 = vector.broadcast %229 : vector<1x128xf32> to vector<8x128xf32>
    %388 = arith.addf %386, %387 : vector<8x128xf32>
    %c5_130 = arith.constant 5 : index
    %c0_131 = arith.constant 0 : index
    %c0_132 = arith.constant 0 : index
    %389 = vector.load %arg6[%c5_130, %c0_131, %c0_132] : memref<8x8x128xf32, #tpu.memory_space<vmem>>, vector<1x8x128xf32>
    %390 = vector.shape_cast %389 : vector<1x8x128xf32> to vector<8x128xf32>
    %391 = vector.shape_cast %388 : vector<8x128xf32> to vector<1x8x128xf32>
    tpu.vector_store %arg6[%c5_130, %c0_131, %c0_132], %391 {strides = array<i32>} : memref<8x8x128xf32, #tpu.memory_space<vmem>>, vector<1x8x128xf32>,
    %c6_133 = arith.constant 6 : index
    %c0_134 = arith.constant 0 : index
    %c0_135 = arith.constant 0 : index
    %392 = vector.load %arg6[%c6_133, %c0_134, %c0_135] : memref<8x8x128xf32, #tpu.memory_space<vmem>>, vector<1x8x128xf32>
    %393 = vector.shape_cast %392 : vector<1x8x128xf32> to vector<8x128xf32>
    %394 = arith.truncf %384 : vector<8x32xf32> to vector<8x32xbf16>
    %cst_136 = arith.constant dense<0.000000e+00> : vector<8x128xf32>
    %395 = tpu.matmul %394, %225, %cst_136 {dimension_numbers = #tpu.dot_dimension_numbers<[1], [0], [0], [1], [0, 0, 1, 1], [], []>} : vector<8x32xbf16>, vector<32x128xbf16>, vector<8x128xf32> -> vector<8x128xf32>
    %396 = arith.addf %393, %395 : vector<8x128xf32>
    %397 = vector.extract_strided_slice %396 {offsets = [0, 0], sizes = [8, 96], strides = [1, 1]} : vector<8x128xf32> to vector<8x96xf32>
    %398 = arith.negf %397 : vector<8x96xf32>
    %399 = math.exp %398 : vector<8x96xf32>
    %cst_137 = arith.constant 1.000000e+00 : f32
    %400 = vector.broadcast %cst_137 : f32 to vector<8x96xf32>
    %401 = arith.addf %400, %399 : vector<8x96xf32>
    %402 = arith.divf %400, %401 : vector<8x96xf32>
    %403 = vector.extract_strided_slice %402 {offsets = [0, 0], sizes = [8, 32], strides = [1, 1]} : vector<8x96xf32> to vector<8x32xf32>
    %404 = vector.extract_strided_slice %402 {offsets = [0, 32], sizes = [8, 32], strides = [1, 1]} : vector<8x96xf32> to vector<8x32xf32>
    %405 = vector.extract_strided_slice %402 {offsets = [0, 64], sizes = [8, 32], strides = [1, 1]} : vector<8x96xf32> to vector<8x32xf32>
    %406 = vector.extract_strided_slice %396 {offsets = [0, 96], sizes = [8, 32], strides = [1, 1]} : vector<8x128xf32> to vector<8x32xf32>
    %407 = math.tanh %406 : vector<8x32xf32>
    %408 = arith.mulf %404, %382 : vector<8x32xf32>
    %409 = arith.mulf %403, %407 : vector<8x32xf32>
    %410 = arith.addf %408, %409 : vector<8x32xf32>
    %411 = math.tanh %410 : vector<8x32xf32>
    %412 = arith.mulf %405, %411 : vector<8x32xf32>
    %413 = arith.truncf %412 : vector<8x32xf32> to vector<8x32xbf16>
    %cst_138 = arith.constant dense<0.000000e+00> : vector<8x128xf32>
    %414 = tpu.matmul %413, %227, %cst_138 {dimension_numbers = #tpu.dot_dimension_numbers<[1], [0], [0], [1], [0, 0, 1, 1], [], []>} : vector<8x32xbf16>, vector<32x128xbf16>, vector<8x128xf32> -> vector<8x128xf32>
    %415 = vector.broadcast %229 : vector<1x128xf32> to vector<8x128xf32>
    %416 = arith.addf %414, %415 : vector<8x128xf32>
    %c6_139 = arith.constant 6 : index
    %c0_140 = arith.constant 0 : index
    %c0_141 = arith.constant 0 : index
    %417 = vector.load %arg6[%c6_139, %c0_140, %c0_141] : memref<8x8x128xf32, #tpu.memory_space<vmem>>, vector<1x8x128xf32>
    %418 = vector.shape_cast %417 : vector<1x8x128xf32> to vector<8x128xf32>
    %419 = vector.shape_cast %416 : vector<8x128xf32> to vector<1x8x128xf32>
    tpu.vector_store %arg6[%c6_139, %c0_140, %c0_141], %419 {strides = array<i32>} : memref<8x8x128xf32, #tpu.memory_space<vmem>>, vector<1x8x128xf32>,
    %c7_142 = arith.constant 7 : index
    %c0_143 = arith.constant 0 : index
    %c0_144 = arith.constant 0 : index
    %420 = vector.load %arg6[%c7_142, %c0_143, %c0_144] : memref<8x8x128xf32, #tpu.memory_space<vmem>>, vector<1x8x128xf32>
    %421 = vector.shape_cast %420 : vector<1x8x128xf32> to vector<8x128xf32>
    %422 = arith.truncf %412 : vector<8x32xf32> to vector<8x32xbf16>
    %cst_145 = arith.constant dense<0.000000e+00> : vector<8x128xf32>
    %423 = tpu.matmul %422, %225, %cst_145 {dimension_numbers = #tpu.dot_dimension_numbers<[1], [0], [0], [1], [0, 0, 1, 1], [], []>} : vector<8x32xbf16>, vector<32x128xbf16>, vector<8x128xf32> -> vector<8x128xf32>
    %424 = arith.addf %421, %423 : vector<8x128xf32>
    %425 = vector.extract_strided_slice %424 {offsets = [0, 0], sizes = [8, 96], strides = [1, 1]} : vector<8x128xf32> to vector<8x96xf32>
    %426 = arith.negf %425 : vector<8x96xf32>
    %427 = math.exp %426 : vector<8x96xf32>
    %cst_146 = arith.constant 1.000000e+00 : f32
    %428 = vector.broadcast %cst_146 : f32 to vector<8x96xf32>
    %429 = arith.addf %428, %427 : vector<8x96xf32>
    %430 = arith.divf %428, %429 : vector<8x96xf32>
    %431 = vector.extract_strided_slice %430 {offsets = [0, 0], sizes = [8, 32], strides = [1, 1]} : vector<8x96xf32> to vector<8x32xf32>
    %432 = vector.extract_strided_slice %430 {offsets = [0, 32], sizes = [8, 32], strides = [1, 1]} : vector<8x96xf32> to vector<8x32xf32>
    %433 = vector.extract_strided_slice %430 {offsets = [0, 64], sizes = [8, 32], strides = [1, 1]} : vector<8x96xf32> to vector<8x32xf32>
    %434 = vector.extract_strided_slice %424 {offsets = [0, 96], sizes = [8, 32], strides = [1, 1]} : vector<8x128xf32> to vector<8x32xf32>
    %435 = math.tanh %434 : vector<8x32xf32>
    %436 = arith.mulf %432, %410 : vector<8x32xf32>
    %437 = arith.mulf %431, %435 : vector<8x32xf32>
    %438 = arith.addf %436, %437 : vector<8x32xf32>
    %439 = math.tanh %438 : vector<8x32xf32>
    %440 = arith.mulf %433, %439 : vector<8x32xf32>
    %441 = arith.truncf %440 : vector<8x32xf32> to vector<8x32xbf16>
    %cst_147 = arith.constant dense<0.000000e+00> : vector<8x128xf32>
    %442 = tpu.matmul %441, %227, %cst_147 {dimension_numbers = #tpu.dot_dimension_numbers<[1], [0], [0], [1], [0, 0, 1, 1], [], []>} : vector<8x32xbf16>, vector<32x128xbf16>, vector<8x128xf32> -> vector<8x128xf32>
    %443 = vector.broadcast %229 : vector<1x128xf32> to vector<8x128xf32>
    %444 = arith.addf %442, %443 : vector<8x128xf32>
    %c7_148 = arith.constant 7 : index
    %c0_149 = arith.constant 0 : index
    %c0_150 = arith.constant 0 : index
    %445 = vector.load %arg6[%c7_148, %c0_149, %c0_150] : memref<8x8x128xf32, #tpu.memory_space<vmem>>, vector<1x8x128xf32>
    %446 = vector.shape_cast %445 : vector<1x8x128xf32> to vector<8x128xf32>
    %447 = vector.shape_cast %444 : vector<8x128xf32> to vector<1x8x128xf32>
    tpu.vector_store %arg6[%c7_148, %c0_149, %c0_150], %447 {strides = array<i32>} : memref<8x8x128xf32, #tpu.memory_space<vmem>>, vector<1x8x128xf32>,
    %c2_151 = arith.constant 2 : index
    %c0_152 = arith.constant 0 : index
    %c0_153 = arith.constant 0 : index
    %448 = vector.load %arg3[%c2_151, %c0_152, %c0_153] : memref<7x32x128xbf16, #tpu.memory_space<vmem>>, vector<1x32x128xbf16>
    %449 = vector.shape_cast %448 : vector<1x32x128xbf16> to vector<32x128xbf16>
    %c2_154 = arith.constant 2 : index
    %c0_155 = arith.constant 0 : index
    %c0_156 = arith.constant 0 : index
    %450 = vector.load %arg2[%c2_154, %c0_155, %c0_156] : memref<6x32x128xbf16, #tpu.memory_space<vmem>>, vector<1x32x128xbf16>
    %451 = vector.shape_cast %450 : vector<1x32x128xbf16> to vector<32x128xbf16>
    %c2_157 = arith.constant 2 : index
    %c0_158 = arith.constant 0 : index
    %c0_159 = arith.constant 0 : index
    %452 = vector.load %arg4[%c2_157, %c0_158, %c0_159] : memref<6x1x128xf32, #tpu.memory_space<vmem>>, vector<1x1x128xf32>
    %453 = vector.shape_cast %452 : vector<1x1x128xf32> to vector<1x128xf32>
    %c0_160 = arith.constant 0 : index
    %c0_161 = arith.constant 0 : index
    %c0_162 = arith.constant 0 : index
    %454 = vector.load %arg6[%c0_160, %c0_161, %c0_162] : memref<8x8x128xf32, #tpu.memory_space<vmem>>, vector<1x8x128xf32>
    %455 = vector.shape_cast %454 : vector<1x8x128xf32> to vector<8x128xf32>
    %456 = vector.extract_strided_slice %455 {offsets = [0, 0], sizes = [8, 96], strides = [1, 1]} : vector<8x128xf32> to vector<8x96xf32>
    %457 = arith.negf %456 : vector<8x96xf32>
    %458 = math.exp %457 : vector<8x96xf32>
    %cst_163 = arith.constant 1.000000e+00 : f32
    %459 = vector.broadcast %cst_163 : f32 to vector<8x96xf32>
    %460 = arith.addf %459, %458 : vector<8x96xf32>
    %461 = arith.divf %459, %460 : vector<8x96xf32>
    %462 = vector.extract_strided_slice %461 {offsets = [0, 0], sizes = [8, 32], strides = [1, 1]} : vector<8x96xf32> to vector<8x32xf32>
    %463 = vector.extract_strided_slice %461 {offsets = [0, 64], sizes = [8, 32], strides = [1, 1]} : vector<8x96xf32> to vector<8x32xf32>
    %464 = vector.extract_strided_slice %455 {offsets = [0, 96], sizes = [8, 32], strides = [1, 1]} : vector<8x128xf32> to vector<8x32xf32>
    %465 = math.tanh %464 : vector<8x32xf32>
    %466 = arith.mulf %462, %465 : vector<8x32xf32>
    %467 = math.tanh %466 : vector<8x32xf32>
    %468 = arith.mulf %463, %467 : vector<8x32xf32>
    %469 = arith.truncf %468 : vector<8x32xf32> to vector<8x32xbf16>
    %cst_164 = arith.constant dense<0.000000e+00> : vector<8x128xf32>
    %470 = tpu.matmul %469, %451, %cst_164 {dimension_numbers = #tpu.dot_dimension_numbers<[1], [0], [0], [1], [0, 0, 1, 1], [], []>} : vector<8x32xbf16>, vector<32x128xbf16>, vector<8x128xf32> -> vector<8x128xf32>
    %471 = vector.broadcast %453 : vector<1x128xf32> to vector<8x128xf32>
    %472 = arith.addf %470, %471 : vector<8x128xf32>
    %c0_165 = arith.constant 0 : index
    %c0_166 = arith.constant 0 : index
    %c0_167 = arith.constant 0 : index
    %473 = vector.load %arg6[%c0_165, %c0_166, %c0_167] : memref<8x8x128xf32, #tpu.memory_space<vmem>>, vector<1x8x128xf32>
    %474 = vector.shape_cast %473 : vector<1x8x128xf32> to vector<8x128xf32>
    %475 = vector.shape_cast %472 : vector<8x128xf32> to vector<1x8x128xf32>
    tpu.vector_store %arg6[%c0_165, %c0_166, %c0_167], %475 {strides = array<i32>} : memref<8x8x128xf32, #tpu.memory_space<vmem>>, vector<1x8x128xf32>,
    %c1_168 = arith.constant 1 : index
    %c0_169 = arith.constant 0 : index
    %c0_170 = arith.constant 0 : index
    %476 = vector.load %arg6[%c1_168, %c0_169, %c0_170] : memref<8x8x128xf32, #tpu.memory_space<vmem>>, vector<1x8x128xf32>
    %477 = vector.shape_cast %476 : vector<1x8x128xf32> to vector<8x128xf32>
    %478 = arith.truncf %468 : vector<8x32xf32> to vector<8x32xbf16>
    %cst_171 = arith.constant dense<0.000000e+00> : vector<8x128xf32>
    %479 = tpu.matmul %478, %449, %cst_171 {dimension_numbers = #tpu.dot_dimension_numbers<[1], [0], [0], [1], [0, 0, 1, 1], [], []>} : vector<8x32xbf16>, vector<32x128xbf16>, vector<8x128xf32> -> vector<8x128xf32>
    %480 = arith.addf %477, %479 : vector<8x128xf32>
    %481 = vector.extract_strided_slice %480 {offsets = [0, 0], sizes = [8, 96], strides = [1, 1]} : vector<8x128xf32> to vector<8x96xf32>
    %482 = arith.negf %481 : vector<8x96xf32>
    %483 = math.exp %482 : vector<8x96xf32>
    %cst_172 = arith.constant 1.000000e+00 : f32
    %484 = vector.broadcast %cst_172 : f32 to vector<8x96xf32>
    %485 = arith.addf %484, %483 : vector<8x96xf32>
    %486 = arith.divf %484, %485 : vector<8x96xf32>
    %487 = vector.extract_strided_slice %486 {offsets = [0, 0], sizes = [8, 32], strides = [1, 1]} : vector<8x96xf32> to vector<8x32xf32>
    %488 = vector.extract_strided_slice %486 {offsets = [0, 32], sizes = [8, 32], strides = [1, 1]} : vector<8x96xf32> to vector<8x32xf32>
    %489 = vector.extract_strided_slice %486 {offsets = [0, 64], sizes = [8, 32], strides = [1, 1]} : vector<8x96xf32> to vector<8x32xf32>
    %490 = vector.extract_strided_slice %480 {offsets = [0, 96], sizes = [8, 32], strides = [1, 1]} : vector<8x128xf32> to vector<8x32xf32>
    %491 = math.tanh %490 : vector<8x32xf32>
    %492 = arith.mulf %488, %466 : vector<8x32xf32>
    %493 = arith.mulf %487, %491 : vector<8x32xf32>
    %494 = arith.addf %492, %493 : vector<8x32xf32>
    %495 = math.tanh %494 : vector<8x32xf32>
    %496 = arith.mulf %489, %495 : vector<8x32xf32>
    %497 = arith.truncf %496 : vector<8x32xf32> to vector<8x32xbf16>
    %cst_173 = arith.constant dense<0.000000e+00> : vector<8x128xf32>
    %498 = tpu.matmul %497, %451, %cst_173 {dimension_numbers = #tpu.dot_dimension_numbers<[1], [0], [0], [1], [0, 0, 1, 1], [], []>} : vector<8x32xbf16>, vector<32x128xbf16>, vector<8x128xf32> -> vector<8x128xf32>
    %499 = vector.broadcast %453 : vector<1x128xf32> to vector<8x128xf32>
    %500 = arith.addf %498, %499 : vector<8x128xf32>
    %c1_174 = arith.constant 1 : index
    %c0_175 = arith.constant 0 : index
    %c0_176 = arith.constant 0 : index
    %501 = vector.load %arg6[%c1_174, %c0_175, %c0_176] : memref<8x8x128xf32, #tpu.memory_space<vmem>>, vector<1x8x128xf32>
    %502 = vector.shape_cast %501 : vector<1x8x128xf32> to vector<8x128xf32>
    %503 = vector.shape_cast %500 : vector<8x128xf32> to vector<1x8x128xf32>
    tpu.vector_store %arg6[%c1_174, %c0_175, %c0_176], %503 {strides = array<i32>} : memref<8x8x128xf32, #tpu.memory_space<vmem>>, vector<1x8x128xf32>,
    %c2_177 = arith.constant 2 : index
    %c0_178 = arith.constant 0 : index
    %c0_179 = arith.constant 0 : index
    %504 = vector.load %arg6[%c2_177, %c0_178, %c0_179] : memref<8x8x128xf32, #tpu.memory_space<vmem>>, vector<1x8x128xf32>
    %505 = vector.shape_cast %504 : vector<1x8x128xf32> to vector<8x128xf32>
    %506 = arith.truncf %496 : vector<8x32xf32> to vector<8x32xbf16>
    %cst_180 = arith.constant dense<0.000000e+00> : vector<8x128xf32>
    %507 = tpu.matmul %506, %449, %cst_180 {dimension_numbers = #tpu.dot_dimension_numbers<[1], [0], [0], [1], [0, 0, 1, 1], [], []>} : vector<8x32xbf16>, vector<32x128xbf16>, vector<8x128xf32> -> vector<8x128xf32>
    %508 = arith.addf %505, %507 : vector<8x128xf32>
    %509 = vector.extract_strided_slice %508 {offsets = [0, 0], sizes = [8, 96], strides = [1, 1]} : vector<8x128xf32> to vector<8x96xf32>
    %510 = arith.negf %509 : vector<8x96xf32>
    %511 = math.exp %510 : vector<8x96xf32>
    %cst_181 = arith.constant 1.000000e+00 : f32
    %512 = vector.broadcast %cst_181 : f32 to vector<8x96xf32>
    %513 = arith.addf %512, %511 : vector<8x96xf32>
    %514 = arith.divf %512, %513 : vector<8x96xf32>
    %515 = vector.extract_strided_slice %514 {offsets = [0, 0], sizes = [8, 32], strides = [1, 1]} : vector<8x96xf32> to vector<8x32xf32>
    %516 = vector.extract_strided_slice %514 {offsets = [0, 32], sizes = [8, 32], strides = [1, 1]} : vector<8x96xf32> to vector<8x32xf32>
    %517 = vector.extract_strided_slice %514 {offsets = [0, 64], sizes = [8, 32], strides = [1, 1]} : vector<8x96xf32> to vector<8x32xf32>
    %518 = vector.extract_strided_slice %508 {offsets = [0, 96], sizes = [8, 32], strides = [1, 1]} : vector<8x128xf32> to vector<8x32xf32>
    %519 = math.tanh %518 : vector<8x32xf32>
    %520 = arith.mulf %516, %494 : vector<8x32xf32>
    %521 = arith.mulf %515, %519 : vector<8x32xf32>
    %522 = arith.addf %520, %521 : vector<8x32xf32>
    %523 = math.tanh %522 : vector<8x32xf32>
    %524 = arith.mulf %517, %523 : vector<8x32xf32>
    %525 = arith.truncf %524 : vector<8x32xf32> to vector<8x32xbf16>
    %cst_182 = arith.constant dense<0.000000e+00> : vector<8x128xf32>
    %526 = tpu.matmul %525, %451, %cst_182 {dimension_numbers = #tpu.dot_dimension_numbers<[1], [0], [0], [1], [0, 0, 1, 1], [], []>} : vector<8x32xbf16>, vector<32x128xbf16>, vector<8x128xf32> -> vector<8x128xf32>
    %527 = vector.broadcast %453 : vector<1x128xf32> to vector<8x128xf32>
    %528 = arith.addf %526, %527 : vector<8x128xf32>
    %c2_183 = arith.constant 2 : index
    %c0_184 = arith.constant 0 : index
    %c0_185 = arith.constant 0 : index
    %529 = vector.load %arg6[%c2_183, %c0_184, %c0_185] : memref<8x8x128xf32, #tpu.memory_space<vmem>>, vector<1x8x128xf32>
    %530 = vector.shape_cast %529 : vector<1x8x128xf32> to vector<8x128xf32>
    %531 = vector.shape_cast %528 : vector<8x128xf32> to vector<1x8x128xf32>
    tpu.vector_store %arg6[%c2_183, %c0_184, %c0_185], %531 {strides = array<i32>} : memref<8x8x128xf32, #tpu.memory_space<vmem>>, vector<1x8x128xf32>,
    %c3_186 = arith.constant 3 : index
    %c0_187 = arith.constant 0 : index
    %c0_188 = arith.constant 0 : index
    %532 = vector.load %arg6[%c3_186, %c0_187, %c0_188] : memref<8x8x128xf32, #tpu.memory_space<vmem>>, vector<1x8x128xf32>
    %533 = vector.shape_cast %532 : vector<1x8x128xf32> to vector<8x128xf32>
    %534 = arith.truncf %524 : vector<8x32xf32> to vector<8x32xbf16>
    %cst_189 = arith.constant dense<0.000000e+00> : vector<8x128xf32>
    %535 = tpu.matmul %534, %449, %cst_189 {dimension_numbers = #tpu.dot_dimension_numbers<[1], [0], [0], [1], [0, 0, 1, 1], [], []>} : vector<8x32xbf16>, vector<32x128xbf16>, vector<8x128xf32> -> vector<8x128xf32>
    %536 = arith.addf %533, %535 : vector<8x128xf32>
    %537 = vector.extract_strided_slice %536 {offsets = [0, 0], sizes = [8, 96], strides = [1, 1]} : vector<8x128xf32> to vector<8x96xf32>
    %538 = arith.negf %537 : vector<8x96xf32>
    %539 = math.exp %538 : vector<8x96xf32>
    %cst_190 = arith.constant 1.000000e+00 : f32
    %540 = vector.broadcast %cst_190 : f32 to vector<8x96xf32>
    %541 = arith.addf %540, %539 : vector<8x96xf32>
    %542 = arith.divf %540, %541 : vector<8x96xf32>
    %543 = vector.extract_strided_slice %542 {offsets = [0, 0], sizes = [8, 32], strides = [1, 1]} : vector<8x96xf32> to vector<8x32xf32>
    %544 = vector.extract_strided_slice %542 {offsets = [0, 32], sizes = [8, 32], strides = [1, 1]} : vector<8x96xf32> to vector<8x32xf32>
    %545 = vector.extract_strided_slice %542 {offsets = [0, 64], sizes = [8, 32], strides = [1, 1]} : vector<8x96xf32> to vector<8x32xf32>
    %546 = vector.extract_strided_slice %536 {offsets = [0, 96], sizes = [8, 32], strides = [1, 1]} : vector<8x128xf32> to vector<8x32xf32>
    %547 = math.tanh %546 : vector<8x32xf32>
    %548 = arith.mulf %544, %522 : vector<8x32xf32>
    %549 = arith.mulf %543, %547 : vector<8x32xf32>
    %550 = arith.addf %548, %549 : vector<8x32xf32>
    %551 = math.tanh %550 : vector<8x32xf32>
    %552 = arith.mulf %545, %551 : vector<8x32xf32>
    %553 = arith.truncf %552 : vector<8x32xf32> to vector<8x32xbf16>
    %cst_191 = arith.constant dense<0.000000e+00> : vector<8x128xf32>
    %554 = tpu.matmul %553, %451, %cst_191 {dimension_numbers = #tpu.dot_dimension_numbers<[1], [0], [0], [1], [0, 0, 1, 1], [], []>} : vector<8x32xbf16>, vector<32x128xbf16>, vector<8x128xf32> -> vector<8x128xf32>
    %555 = vector.broadcast %453 : vector<1x128xf32> to vector<8x128xf32>
    %556 = arith.addf %554, %555 : vector<8x128xf32>
    %c3_192 = arith.constant 3 : index
    %c0_193 = arith.constant 0 : index
    %c0_194 = arith.constant 0 : index
    %557 = vector.load %arg6[%c3_192, %c0_193, %c0_194] : memref<8x8x128xf32, #tpu.memory_space<vmem>>, vector<1x8x128xf32>
    %558 = vector.shape_cast %557 : vector<1x8x128xf32> to vector<8x128xf32>
    %559 = vector.shape_cast %556 : vector<8x128xf32> to vector<1x8x128xf32>
    tpu.vector_store %arg6[%c3_192, %c0_193, %c0_194], %559 {strides = array<i32>} : memref<8x8x128xf32, #tpu.memory_space<vmem>>, vector<1x8x128xf32>,
    %c4_195 = arith.constant 4 : index
    %c0_196 = arith.constant 0 : index
    %c0_197 = arith.constant 0 : index
    %560 = vector.load %arg6[%c4_195, %c0_196, %c0_197] : memref<8x8x128xf32, #tpu.memory_space<vmem>>, vector<1x8x128xf32>
    %561 = vector.shape_cast %560 : vector<1x8x128xf32> to vector<8x128xf32>
    %562 = arith.truncf %552 : vector<8x32xf32> to vector<8x32xbf16>
    %cst_198 = arith.constant dense<0.000000e+00> : vector<8x128xf32>
    %563 = tpu.matmul %562, %449, %cst_198 {dimension_numbers = #tpu.dot_dimension_numbers<[1], [0], [0], [1], [0, 0, 1, 1], [], []>} : vector<8x32xbf16>, vector<32x128xbf16>, vector<8x128xf32> -> vector<8x128xf32>
    %564 = arith.addf %561, %563 : vector<8x128xf32>
    %565 = vector.extract_strided_slice %564 {offsets = [0, 0], sizes = [8, 96], strides = [1, 1]} : vector<8x128xf32> to vector<8x96xf32>
    %566 = arith.negf %565 : vector<8x96xf32>
    %567 = math.exp %566 : vector<8x96xf32>
    %cst_199 = arith.constant 1.000000e+00 : f32
    %568 = vector.broadcast %cst_199 : f32 to vector<8x96xf32>
    %569 = arith.addf %568, %567 : vector<8x96xf32>
    %570 = arith.divf %568, %569 : vector<8x96xf32>
    %571 = vector.extract_strided_slice %570 {offsets = [0, 0], sizes = [8, 32], strides = [1, 1]} : vector<8x96xf32> to vector<8x32xf32>
    %572 = vector.extract_strided_slice %570 {offsets = [0, 32], sizes = [8, 32], strides = [1, 1]} : vector<8x96xf32> to vector<8x32xf32>
    %573 = vector.extract_strided_slice %570 {offsets = [0, 64], sizes = [8, 32], strides = [1, 1]} : vector<8x96xf32> to vector<8x32xf32>
    %574 = vector.extract_strided_slice %564 {offsets = [0, 96], sizes = [8, 32], strides = [1, 1]} : vector<8x128xf32> to vector<8x32xf32>
    %575 = math.tanh %574 : vector<8x32xf32>
    %576 = arith.mulf %572, %550 : vector<8x32xf32>
    %577 = arith.mulf %571, %575 : vector<8x32xf32>
    %578 = arith.addf %576, %577 : vector<8x32xf32>
    %579 = math.tanh %578 : vector<8x32xf32>
    %580 = arith.mulf %573, %579 : vector<8x32xf32>
    %581 = arith.truncf %580 : vector<8x32xf32> to vector<8x32xbf16>
    %cst_200 = arith.constant dense<0.000000e+00> : vector<8x128xf32>
    %582 = tpu.matmul %581, %451, %cst_200 {dimension_numbers = #tpu.dot_dimension_numbers<[1], [0], [0], [1], [0, 0, 1, 1], [], []>} : vector<8x32xbf16>, vector<32x128xbf16>, vector<8x128xf32> -> vector<8x128xf32>
    %583 = vector.broadcast %453 : vector<1x128xf32> to vector<8x128xf32>
    %584 = arith.addf %582, %583 : vector<8x128xf32>
    %c4_201 = arith.constant 4 : index
    %c0_202 = arith.constant 0 : index
    %c0_203 = arith.constant 0 : index
    %585 = vector.load %arg6[%c4_201, %c0_202, %c0_203] : memref<8x8x128xf32, #tpu.memory_space<vmem>>, vector<1x8x128xf32>
    %586 = vector.shape_cast %585 : vector<1x8x128xf32> to vector<8x128xf32>
    %587 = vector.shape_cast %584 : vector<8x128xf32> to vector<1x8x128xf32>
    tpu.vector_store %arg6[%c4_201, %c0_202, %c0_203], %587 {strides = array<i32>} : memref<8x8x128xf32, #tpu.memory_space<vmem>>, vector<1x8x128xf32>,
    %c5_204 = arith.constant 5 : index
    %c0_205 = arith.constant 0 : index
    %c0_206 = arith.constant 0 : index
    %588 = vector.load %arg6[%c5_204, %c0_205, %c0_206] : memref<8x8x128xf32, #tpu.memory_space<vmem>>, vector<1x8x128xf32>
    %589 = vector.shape_cast %588 : vector<1x8x128xf32> to vector<8x128xf32>
    %590 = arith.truncf %580 : vector<8x32xf32> to vector<8x32xbf16>
    %cst_207 = arith.constant dense<0.000000e+00> : vector<8x128xf32>
    %591 = tpu.matmul %590, %449, %cst_207 {dimension_numbers = #tpu.dot_dimension_numbers<[1], [0], [0], [1], [0, 0, 1, 1], [], []>} : vector<8x32xbf16>, vector<32x128xbf16>, vector<8x128xf32> -> vector<8x128xf32>
    %592 = arith.addf %589, %591 : vector<8x128xf32>
    %593 = vector.extract_strided_slice %592 {offsets = [0, 0], sizes = [8, 96], strides = [1, 1]} : vector<8x128xf32> to vector<8x96xf32>
    %594 = arith.negf %593 : vector<8x96xf32>
    %595 = math.exp %594 : vector<8x96xf32>
    %cst_208 = arith.constant 1.000000e+00 : f32
    %596 = vector.broadcast %cst_208 : f32 to vector<8x96xf32>
    %597 = arith.addf %596, %595 : vector<8x96xf32>
    %598 = arith.divf %596, %597 : vector<8x96xf32>
    %599 = vector.extract_strided_slice %598 {offsets = [0, 0], sizes = [8, 32], strides = [1, 1]} : vector<8x96xf32> to vector<8x32xf32>
    %600 = vector.extract_strided_slice %598 {offsets = [0, 32], sizes = [8, 32], strides = [1, 1]} : vector<8x96xf32> to vector<8x32xf32>
    %601 = vector.extract_strided_slice %598 {offsets = [0, 64], sizes = [8, 32], strides = [1, 1]} : vector<8x96xf32> to vector<8x32xf32>
    %602 = vector.extract_strided_slice %592 {offsets = [0, 96], sizes = [8, 32], strides = [1, 1]} : vector<8x128xf32> to vector<8x32xf32>
    %603 = math.tanh %602 : vector<8x32xf32>
    %604 = arith.mulf %600, %578 : vector<8x32xf32>
    %605 = arith.mulf %599, %603 : vector<8x32xf32>
    %606 = arith.addf %604, %605 : vector<8x32xf32>
    %607 = math.tanh %606 : vector<8x32xf32>
    %608 = arith.mulf %601, %607 : vector<8x32xf32>
    %609 = arith.truncf %608 : vector<8x32xf32> to vector<8x32xbf16>
    %cst_209 = arith.constant dense<0.000000e+00> : vector<8x128xf32>
    %610 = tpu.matmul %609, %451, %cst_209 {dimension_numbers = #tpu.dot_dimension_numbers<[1], [0], [0], [1], [0, 0, 1, 1], [], []>} : vector<8x32xbf16>, vector<32x128xbf16>, vector<8x128xf32> -> vector<8x128xf32>
    %611 = vector.broadcast %453 : vector<1x128xf32> to vector<8x128xf32>
    %612 = arith.addf %610, %611 : vector<8x128xf32>
    %c5_210 = arith.constant 5 : index
    %c0_211 = arith.constant 0 : index
    %c0_212 = arith.constant 0 : index
    %613 = vector.load %arg6[%c5_210, %c0_211, %c0_212] : memref<8x8x128xf32, #tpu.memory_space<vmem>>, vector<1x8x128xf32>
    %614 = vector.shape_cast %613 : vector<1x8x128xf32> to vector<8x128xf32>
    %615 = vector.shape_cast %612 : vector<8x128xf32> to vector<1x8x128xf32>
    tpu.vector_store %arg6[%c5_210, %c0_211, %c0_212], %615 {strides = array<i32>} : memref<8x8x128xf32, #tpu.memory_space<vmem>>, vector<1x8x128xf32>,
    %c6_213 = arith.constant 6 : index
    %c0_214 = arith.constant 0 : index
    %c0_215 = arith.constant 0 : index
    %616 = vector.load %arg6[%c6_213, %c0_214, %c0_215] : memref<8x8x128xf32, #tpu.memory_space<vmem>>, vector<1x8x128xf32>
    %617 = vector.shape_cast %616 : vector<1x8x128xf32> to vector<8x128xf32>
    %618 = arith.truncf %608 : vector<8x32xf32> to vector<8x32xbf16>
    %cst_216 = arith.constant dense<0.000000e+00> : vector<8x128xf32>
    %619 = tpu.matmul %618, %449, %cst_216 {dimension_numbers = #tpu.dot_dimension_numbers<[1], [0], [0], [1], [0, 0, 1, 1], [], []>} : vector<8x32xbf16>, vector<32x128xbf16>, vector<8x128xf32> -> vector<8x128xf32>
    %620 = arith.addf %617, %619 : vector<8x128xf32>
    %621 = vector.extract_strided_slice %620 {offsets = [0, 0], sizes = [8, 96], strides = [1, 1]} : vector<8x128xf32> to vector<8x96xf32>
    %622 = arith.negf %621 : vector<8x96xf32>
    %623 = math.exp %622 : vector<8x96xf32>
    %cst_217 = arith.constant 1.000000e+00 : f32
    %624 = vector.broadcast %cst_217 : f32 to vector<8x96xf32>
    %625 = arith.addf %624, %623 : vector<8x96xf32>
    %626 = arith.divf %624, %625 : vector<8x96xf32>
    %627 = vector.extract_strided_slice %626 {offsets = [0, 0], sizes = [8, 32], strides = [1, 1]} : vector<8x96xf32> to vector<8x32xf32>
    %628 = vector.extract_strided_slice %626 {offsets = [0, 32], sizes = [8, 32], strides = [1, 1]} : vector<8x96xf32> to vector<8x32xf32>
    %629 = vector.extract_strided_slice %626 {offsets = [0, 64], sizes = [8, 32], strides = [1, 1]} : vector<8x96xf32> to vector<8x32xf32>
    %630 = vector.extract_strided_slice %620 {offsets = [0, 96], sizes = [8, 32], strides = [1, 1]} : vector<8x128xf32> to vector<8x32xf32>
    %631 = math.tanh %630 : vector<8x32xf32>
    %632 = arith.mulf %628, %606 : vector<8x32xf32>
    %633 = arith.mulf %627, %631 : vector<8x32xf32>
    %634 = arith.addf %632, %633 : vector<8x32xf32>
    %635 = math.tanh %634 : vector<8x32xf32>
    %636 = arith.mulf %629, %635 : vector<8x32xf32>
    %637 = arith.truncf %636 : vector<8x32xf32> to vector<8x32xbf16>
    %cst_218 = arith.constant dense<0.000000e+00> : vector<8x128xf32>
    %638 = tpu.matmul %637, %451, %cst_218 {dimension_numbers = #tpu.dot_dimension_numbers<[1], [0], [0], [1], [0, 0, 1, 1], [], []>} : vector<8x32xbf16>, vector<32x128xbf16>, vector<8x128xf32> -> vector<8x128xf32>
    %639 = vector.broadcast %453 : vector<1x128xf32> to vector<8x128xf32>
    %640 = arith.addf %638, %639 : vector<8x128xf32>
    %c6_219 = arith.constant 6 : index
    %c0_220 = arith.constant 0 : index
    %c0_221 = arith.constant 0 : index
    %641 = vector.load %arg6[%c6_219, %c0_220, %c0_221] : memref<8x8x128xf32, #tpu.memory_space<vmem>>, vector<1x8x128xf32>
    %642 = vector.shape_cast %641 : vector<1x8x128xf32> to vector<8x128xf32>
    %643 = vector.shape_cast %640 : vector<8x128xf32> to vector<1x8x128xf32>
    tpu.vector_store %arg6[%c6_219, %c0_220, %c0_221], %643 {strides = array<i32>} : memref<8x8x128xf32, #tpu.memory_space<vmem>>, vector<1x8x128xf32>,
    %c7_222 = arith.constant 7 : index
    %c0_223 = arith.constant 0 : index
    %c0_224 = arith.constant 0 : index
    %644 = vector.load %arg6[%c7_222, %c0_223, %c0_224] : memref<8x8x128xf32, #tpu.memory_space<vmem>>, vector<1x8x128xf32>
    %645 = vector.shape_cast %644 : vector<1x8x128xf32> to vector<8x128xf32>
    %646 = arith.truncf %636 : vector<8x32xf32> to vector<8x32xbf16>
    %cst_225 = arith.constant dense<0.000000e+00> : vector<8x128xf32>
    %647 = tpu.matmul %646, %449, %cst_225 {dimension_numbers = #tpu.dot_dimension_numbers<[1], [0], [0], [1], [0, 0, 1, 1], [], []>} : vector<8x32xbf16>, vector<32x128xbf16>, vector<8x128xf32> -> vector<8x128xf32>
    %648 = arith.addf %645, %647 : vector<8x128xf32>
    %649 = vector.extract_strided_slice %648 {offsets = [0, 0], sizes = [8, 96], strides = [1, 1]} : vector<8x128xf32> to vector<8x96xf32>
    %650 = arith.negf %649 : vector<8x96xf32>
    %651 = math.exp %650 : vector<8x96xf32>
    %cst_226 = arith.constant 1.000000e+00 : f32
    %652 = vector.broadcast %cst_226 : f32 to vector<8x96xf32>
    %653 = arith.addf %652, %651 : vector<8x96xf32>
    %654 = arith.divf %652, %653 : vector<8x96xf32>
    %655 = vector.extract_strided_slice %654 {offsets = [0, 0], sizes = [8, 32], strides = [1, 1]} : vector<8x96xf32> to vector<8x32xf32>
    %656 = vector.extract_strided_slice %654 {offsets = [0, 32], sizes = [8, 32], strides = [1, 1]} : vector<8x96xf32> to vector<8x32xf32>
    %657 = vector.extract_strided_slice %654 {offsets = [0, 64], sizes = [8, 32], strides = [1, 1]} : vector<8x96xf32> to vector<8x32xf32>
    %658 = vector.extract_strided_slice %648 {offsets = [0, 96], sizes = [8, 32], strides = [1, 1]} : vector<8x128xf32> to vector<8x32xf32>
    %659 = math.tanh %658 : vector<8x32xf32>
    %660 = arith.mulf %656, %634 : vector<8x32xf32>
    %661 = arith.mulf %655, %659 : vector<8x32xf32>
    %662 = arith.addf %660, %661 : vector<8x32xf32>
    %663 = math.tanh %662 : vector<8x32xf32>
    %664 = arith.mulf %657, %663 : vector<8x32xf32>
    %665 = arith.truncf %664 : vector<8x32xf32> to vector<8x32xbf16>
    %cst_227 = arith.constant dense<0.000000e+00> : vector<8x128xf32>
    %666 = tpu.matmul %665, %451, %cst_227 {dimension_numbers = #tpu.dot_dimension_numbers<[1], [0], [0], [1], [0, 0, 1, 1], [], []>} : vector<8x32xbf16>, vector<32x128xbf16>, vector<8x128xf32> -> vector<8x128xf32>
    %667 = vector.broadcast %453 : vector<1x128xf32> to vector<8x128xf32>
    %668 = arith.addf %666, %667 : vector<8x128xf32>
    %c7_228 = arith.constant 7 : index
    %c0_229 = arith.constant 0 : index
    %c0_230 = arith.constant 0 : index
    %669 = vector.load %arg6[%c7_228, %c0_229, %c0_230] : memref<8x8x128xf32, #tpu.memory_space<vmem>>, vector<1x8x128xf32>
    %670 = vector.shape_cast %669 : vector<1x8x128xf32> to vector<8x128xf32>
    %671 = vector.shape_cast %668 : vector<8x128xf32> to vector<1x8x128xf32>
    tpu.vector_store %arg6[%c7_228, %c0_229, %c0_230], %671 {strides = array<i32>} : memref<8x8x128xf32, #tpu.memory_space<vmem>>, vector<1x8x128xf32>,
    %c3_231 = arith.constant 3 : index
    %c0_232 = arith.constant 0 : index
    %c0_233 = arith.constant 0 : index
    %672 = vector.load %arg3[%c3_231, %c0_232, %c0_233] : memref<7x32x128xbf16, #tpu.memory_space<vmem>>, vector<1x32x128xbf16>
    %673 = vector.shape_cast %672 : vector<1x32x128xbf16> to vector<32x128xbf16>
    %c3_234 = arith.constant 3 : index
    %c0_235 = arith.constant 0 : index
    %c0_236 = arith.constant 0 : index
    %674 = vector.load %arg2[%c3_234, %c0_235, %c0_236] : memref<6x32x128xbf16, #tpu.memory_space<vmem>>, vector<1x32x128xbf16>
    %675 = vector.shape_cast %674 : vector<1x32x128xbf16> to vector<32x128xbf16>
    %c3_237 = arith.constant 3 : index
    %c0_238 = arith.constant 0 : index
    %c0_239 = arith.constant 0 : index
    %676 = vector.load %arg4[%c3_237, %c0_238, %c0_239] : memref<6x1x128xf32, #tpu.memory_space<vmem>>, vector<1x1x128xf32>
    %677 = vector.shape_cast %676 : vector<1x1x128xf32> to vector<1x128xf32>
    %c0_240 = arith.constant 0 : index
    %c0_241 = arith.constant 0 : index
    %c0_242 = arith.constant 0 : index
    %678 = vector.load %arg6[%c0_240, %c0_241, %c0_242] : memref<8x8x128xf32, #tpu.memory_space<vmem>>, vector<1x8x128xf32>
    %679 = vector.shape_cast %678 : vector<1x8x128xf32> to vector<8x128xf32>
    %680 = vector.extract_strided_slice %679 {offsets = [0, 0], sizes = [8, 96], strides = [1, 1]} : vector<8x128xf32> to vector<8x96xf32>
    %681 = arith.negf %680 : vector<8x96xf32>
    %682 = math.exp %681 : vector<8x96xf32>
    %cst_243 = arith.constant 1.000000e+00 : f32
    %683 = vector.broadcast %cst_243 : f32 to vector<8x96xf32>
    %684 = arith.addf %683, %682 : vector<8x96xf32>
    %685 = arith.divf %683, %684 : vector<8x96xf32>
    %686 = vector.extract_strided_slice %685 {offsets = [0, 0], sizes = [8, 32], strides = [1, 1]} : vector<8x96xf32> to vector<8x32xf32>
    %687 = vector.extract_strided_slice %685 {offsets = [0, 64], sizes = [8, 32], strides = [1, 1]} : vector<8x96xf32> to vector<8x32xf32>
    %688 = vector.extract_strided_slice %679 {offsets = [0, 96], sizes = [8, 32], strides = [1, 1]} : vector<8x128xf32> to vector<8x32xf32>
    %689 = math.tanh %688 : vector<8x32xf32>
    %690 = arith.mulf %686, %689 : vector<8x32xf32>
    %691 = math.tanh %690 : vector<8x32xf32>
    %692 = arith.mulf %687, %691 : vector<8x32xf32>
    %693 = arith.truncf %692 : vector<8x32xf32> to vector<8x32xbf16>
    %cst_244 = arith.constant dense<0.000000e+00> : vector<8x128xf32>
    %694 = tpu.matmul %693, %675, %cst_244 {dimension_numbers = #tpu.dot_dimension_numbers<[1], [0], [0], [1], [0, 0, 1, 1], [], []>} : vector<8x32xbf16>, vector<32x128xbf16>, vector<8x128xf32> -> vector<8x128xf32>
    %695 = vector.broadcast %677 : vector<1x128xf32> to vector<8x128xf32>
    %696 = arith.addf %694, %695 : vector<8x128xf32>
    %c0_245 = arith.constant 0 : index
    %c0_246 = arith.constant 0 : index
    %c0_247 = arith.constant 0 : index
    %697 = vector.load %arg6[%c0_245, %c0_246, %c0_247] : memref<8x8x128xf32, #tpu.memory_space<vmem>>, vector<1x8x128xf32>
    %698 = vector.shape_cast %697 : vector<1x8x128xf32> to vector<8x128xf32>
    %699 = vector.shape_cast %696 : vector<8x128xf32> to vector<1x8x128xf32>
    tpu.vector_store %arg6[%c0_245, %c0_246, %c0_247], %699 {strides = array<i32>} : memref<8x8x128xf32, #tpu.memory_space<vmem>>, vector<1x8x128xf32>,
    %c1_248 = arith.constant 1 : index
    %c0_249 = arith.constant 0 : index
    %c0_250 = arith.constant 0 : index
    %700 = vector.load %arg6[%c1_248, %c0_249, %c0_250] : memref<8x8x128xf32, #tpu.memory_space<vmem>>, vector<1x8x128xf32>
    %701 = vector.shape_cast %700 : vector<1x8x128xf32> to vector<8x128xf32>
    %702 = arith.truncf %692 : vector<8x32xf32> to vector<8x32xbf16>
    %cst_251 = arith.constant dense<0.000000e+00> : vector<8x128xf32>
    %703 = tpu.matmul %702, %673, %cst_251 {dimension_numbers = #tpu.dot_dimension_numbers<[1], [0], [0], [1], [0, 0, 1, 1], [], []>} : vector<8x32xbf16>, vector<32x128xbf16>, vector<8x128xf32> -> vector<8x128xf32>
    %704 = arith.addf %701, %703 : vector<8x128xf32>
    %705 = vector.extract_strided_slice %704 {offsets = [0, 0], sizes = [8, 96], strides = [1, 1]} : vector<8x128xf32> to vector<8x96xf32>
    %706 = arith.negf %705 : vector<8x96xf32>
    %707 = math.exp %706 : vector<8x96xf32>
    %cst_252 = arith.constant 1.000000e+00 : f32
    %708 = vector.broadcast %cst_252 : f32 to vector<8x96xf32>
    %709 = arith.addf %708, %707 : vector<8x96xf32>
    %710 = arith.divf %708, %709 : vector<8x96xf32>
    %711 = vector.extract_strided_slice %710 {offsets = [0, 0], sizes = [8, 32], strides = [1, 1]} : vector<8x96xf32> to vector<8x32xf32>
    %712 = vector.extract_strided_slice %710 {offsets = [0, 32], sizes = [8, 32], strides = [1, 1]} : vector<8x96xf32> to vector<8x32xf32>
    %713 = vector.extract_strided_slice %710 {offsets = [0, 64], sizes = [8, 32], strides = [1, 1]} : vector<8x96xf32> to vector<8x32xf32>
    %714 = vector.extract_strided_slice %704 {offsets = [0, 96], sizes = [8, 32], strides = [1, 1]} : vector<8x128xf32> to vector<8x32xf32>
    %715 = math.tanh %714 : vector<8x32xf32>
    %716 = arith.mulf %712, %690 : vector<8x32xf32>
    %717 = arith.mulf %711, %715 : vector<8x32xf32>
    %718 = arith.addf %716, %717 : vector<8x32xf32>
    %719 = math.tanh %718 : vector<8x32xf32>
    %720 = arith.mulf %713, %719 : vector<8x32xf32>
    %721 = arith.truncf %720 : vector<8x32xf32> to vector<8x32xbf16>
    %cst_253 = arith.constant dense<0.000000e+00> : vector<8x128xf32>
    %722 = tpu.matmul %721, %675, %cst_253 {dimension_numbers = #tpu.dot_dimension_numbers<[1], [0], [0], [1], [0, 0, 1, 1], [], []>} : vector<8x32xbf16>, vector<32x128xbf16>, vector<8x128xf32> -> vector<8x128xf32>
    %723 = vector.broadcast %677 : vector<1x128xf32> to vector<8x128xf32>
    %724 = arith.addf %722, %723 : vector<8x128xf32>
    %c1_254 = arith.constant 1 : index
    %c0_255 = arith.constant 0 : index
    %c0_256 = arith.constant 0 : index
    %725 = vector.load %arg6[%c1_254, %c0_255, %c0_256] : memref<8x8x128xf32, #tpu.memory_space<vmem>>, vector<1x8x128xf32>
    %726 = vector.shape_cast %725 : vector<1x8x128xf32> to vector<8x128xf32>
    %727 = vector.shape_cast %724 : vector<8x128xf32> to vector<1x8x128xf32>
    tpu.vector_store %arg6[%c1_254, %c0_255, %c0_256], %727 {strides = array<i32>} : memref<8x8x128xf32, #tpu.memory_space<vmem>>, vector<1x8x128xf32>,
    %c2_257 = arith.constant 2 : index
    %c0_258 = arith.constant 0 : index
    %c0_259 = arith.constant 0 : index
    %728 = vector.load %arg6[%c2_257, %c0_258, %c0_259] : memref<8x8x128xf32, #tpu.memory_space<vmem>>, vector<1x8x128xf32>
    %729 = vector.shape_cast %728 : vector<1x8x128xf32> to vector<8x128xf32>
    %730 = arith.truncf %720 : vector<8x32xf32> to vector<8x32xbf16>
    %cst_260 = arith.constant dense<0.000000e+00> : vector<8x128xf32>
    %731 = tpu.matmul %730, %673, %cst_260 {dimension_numbers = #tpu.dot_dimension_numbers<[1], [0], [0], [1], [0, 0, 1, 1], [], []>} : vector<8x32xbf16>, vector<32x128xbf16>, vector<8x128xf32> -> vector<8x128xf32>
    %732 = arith.addf %729, %731 : vector<8x128xf32>
    %733 = vector.extract_strided_slice %732 {offsets = [0, 0], sizes = [8, 96], strides = [1, 1]} : vector<8x128xf32> to vector<8x96xf32>
    %734 = arith.negf %733 : vector<8x96xf32>
    %735 = math.exp %734 : vector<8x96xf32>
    %cst_261 = arith.constant 1.000000e+00 : f32
    %736 = vector.broadcast %cst_261 : f32 to vector<8x96xf32>
    %737 = arith.addf %736, %735 : vector<8x96xf32>
    %738 = arith.divf %736, %737 : vector<8x96xf32>
    %739 = vector.extract_strided_slice %738 {offsets = [0, 0], sizes = [8, 32], strides = [1, 1]} : vector<8x96xf32> to vector<8x32xf32>
    %740 = vector.extract_strided_slice %738 {offsets = [0, 32], sizes = [8, 32], strides = [1, 1]} : vector<8x96xf32> to vector<8x32xf32>
    %741 = vector.extract_strided_slice %738 {offsets = [0, 64], sizes = [8, 32], strides = [1, 1]} : vector<8x96xf32> to vector<8x32xf32>
    %742 = vector.extract_strided_slice %732 {offsets = [0, 96], sizes = [8, 32], strides = [1, 1]} : vector<8x128xf32> to vector<8x32xf32>
    %743 = math.tanh %742 : vector<8x32xf32>
    %744 = arith.mulf %740, %718 : vector<8x32xf32>
    %745 = arith.mulf %739, %743 : vector<8x32xf32>
    %746 = arith.addf %744, %745 : vector<8x32xf32>
    %747 = math.tanh %746 : vector<8x32xf32>
    %748 = arith.mulf %741, %747 : vector<8x32xf32>
    %749 = arith.truncf %748 : vector<8x32xf32> to vector<8x32xbf16>
    %cst_262 = arith.constant dense<0.000000e+00> : vector<8x128xf32>
    %750 = tpu.matmul %749, %675, %cst_262 {dimension_numbers = #tpu.dot_dimension_numbers<[1], [0], [0], [1], [0, 0, 1, 1], [], []>} : vector<8x32xbf16>, vector<32x128xbf16>, vector<8x128xf32> -> vector<8x128xf32>
    %751 = vector.broadcast %677 : vector<1x128xf32> to vector<8x128xf32>
    %752 = arith.addf %750, %751 : vector<8x128xf32>
    %c2_263 = arith.constant 2 : index
    %c0_264 = arith.constant 0 : index
    %c0_265 = arith.constant 0 : index
    %753 = vector.load %arg6[%c2_263, %c0_264, %c0_265] : memref<8x8x128xf32, #tpu.memory_space<vmem>>, vector<1x8x128xf32>
    %754 = vector.shape_cast %753 : vector<1x8x128xf32> to vector<8x128xf32>
    %755 = vector.shape_cast %752 : vector<8x128xf32> to vector<1x8x128xf32>
    tpu.vector_store %arg6[%c2_263, %c0_264, %c0_265], %755 {strides = array<i32>} : memref<8x8x128xf32, #tpu.memory_space<vmem>>, vector<1x8x128xf32>,
    %c3_266 = arith.constant 3 : index
    %c0_267 = arith.constant 0 : index
    %c0_268 = arith.constant 0 : index
    %756 = vector.load %arg6[%c3_266, %c0_267, %c0_268] : memref<8x8x128xf32, #tpu.memory_space<vmem>>, vector<1x8x128xf32>
    %757 = vector.shape_cast %756 : vector<1x8x128xf32> to vector<8x128xf32>
    %758 = arith.truncf %748 : vector<8x32xf32> to vector<8x32xbf16>
    %cst_269 = arith.constant dense<0.000000e+00> : vector<8x128xf32>
    %759 = tpu.matmul %758, %673, %cst_269 {dimension_numbers = #tpu.dot_dimension_numbers<[1], [0], [0], [1], [0, 0, 1, 1], [], []>} : vector<8x32xbf16>, vector<32x128xbf16>, vector<8x128xf32> -> vector<8x128xf32>
    %760 = arith.addf %757, %759 : vector<8x128xf32>
    %761 = vector.extract_strided_slice %760 {offsets = [0, 0], sizes = [8, 96], strides = [1, 1]} : vector<8x128xf32> to vector<8x96xf32>
    %762 = arith.negf %761 : vector<8x96xf32>
    %763 = math.exp %762 : vector<8x96xf32>
    %cst_270 = arith.constant 1.000000e+00 : f32
    %764 = vector.broadcast %cst_270 : f32 to vector<8x96xf32>
    %765 = arith.addf %764, %763 : vector<8x96xf32>
    %766 = arith.divf %764, %765 : vector<8x96xf32>
    %767 = vector.extract_strided_slice %766 {offsets = [0, 0], sizes = [8, 32], strides = [1, 1]} : vector<8x96xf32> to vector<8x32xf32>
    %768 = vector.extract_strided_slice %766 {offsets = [0, 32], sizes = [8, 32], strides = [1, 1]} : vector<8x96xf32> to vector<8x32xf32>
    %769 = vector.extract_strided_slice %766 {offsets = [0, 64], sizes = [8, 32], strides = [1, 1]} : vector<8x96xf32> to vector<8x32xf32>
    %770 = vector.extract_strided_slice %760 {offsets = [0, 96], sizes = [8, 32], strides = [1, 1]} : vector<8x128xf32> to vector<8x32xf32>
    %771 = math.tanh %770 : vector<8x32xf32>
    %772 = arith.mulf %768, %746 : vector<8x32xf32>
    %773 = arith.mulf %767, %771 : vector<8x32xf32>
    %774 = arith.addf %772, %773 : vector<8x32xf32>
    %775 = math.tanh %774 : vector<8x32xf32>
    %776 = arith.mulf %769, %775 : vector<8x32xf32>
    %777 = arith.truncf %776 : vector<8x32xf32> to vector<8x32xbf16>
    %cst_271 = arith.constant dense<0.000000e+00> : vector<8x128xf32>
    %778 = tpu.matmul %777, %675, %cst_271 {dimension_numbers = #tpu.dot_dimension_numbers<[1], [0], [0], [1], [0, 0, 1, 1], [], []>} : vector<8x32xbf16>, vector<32x128xbf16>, vector<8x128xf32> -> vector<8x128xf32>
    %779 = vector.broadcast %677 : vector<1x128xf32> to vector<8x128xf32>
    %780 = arith.addf %778, %779 : vector<8x128xf32>
    %c3_272 = arith.constant 3 : index
    %c0_273 = arith.constant 0 : index
    %c0_274 = arith.constant 0 : index
    %781 = vector.load %arg6[%c3_272, %c0_273, %c0_274] : memref<8x8x128xf32, #tpu.memory_space<vmem>>, vector<1x8x128xf32>
    %782 = vector.shape_cast %781 : vector<1x8x128xf32> to vector<8x128xf32>
    %783 = vector.shape_cast %780 : vector<8x128xf32> to vector<1x8x128xf32>
    tpu.vector_store %arg6[%c3_272, %c0_273, %c0_274], %783 {strides = array<i32>} : memref<8x8x128xf32, #tpu.memory_space<vmem>>, vector<1x8x128xf32>,
    %c4_275 = arith.constant 4 : index
    %c0_276 = arith.constant 0 : index
    %c0_277 = arith.constant 0 : index
    %784 = vector.load %arg6[%c4_275, %c0_276, %c0_277] : memref<8x8x128xf32, #tpu.memory_space<vmem>>, vector<1x8x128xf32>
    %785 = vector.shape_cast %784 : vector<1x8x128xf32> to vector<8x128xf32>
    %786 = arith.truncf %776 : vector<8x32xf32> to vector<8x32xbf16>
    %cst_278 = arith.constant dense<0.000000e+00> : vector<8x128xf32>
    %787 = tpu.matmul %786, %673, %cst_278 {dimension_numbers = #tpu.dot_dimension_numbers<[1], [0], [0], [1], [0, 0, 1, 1], [], []>} : vector<8x32xbf16>, vector<32x128xbf16>, vector<8x128xf32> -> vector<8x128xf32>
    %788 = arith.addf %785, %787 : vector<8x128xf32>
    %789 = vector.extract_strided_slice %788 {offsets = [0, 0], sizes = [8, 96], strides = [1, 1]} : vector<8x128xf32> to vector<8x96xf32>
    %790 = arith.negf %789 : vector<8x96xf32>
    %791 = math.exp %790 : vector<8x96xf32>
    %cst_279 = arith.constant 1.000000e+00 : f32
    %792 = vector.broadcast %cst_279 : f32 to vector<8x96xf32>
    %793 = arith.addf %792, %791 : vector<8x96xf32>
    %794 = arith.divf %792, %793 : vector<8x96xf32>
    %795 = vector.extract_strided_slice %794 {offsets = [0, 0], sizes = [8, 32], strides = [1, 1]} : vector<8x96xf32> to vector<8x32xf32>
    %796 = vector.extract_strided_slice %794 {offsets = [0, 32], sizes = [8, 32], strides = [1, 1]} : vector<8x96xf32> to vector<8x32xf32>
    %797 = vector.extract_strided_slice %794 {offsets = [0, 64], sizes = [8, 32], strides = [1, 1]} : vector<8x96xf32> to vector<8x32xf32>
    %798 = vector.extract_strided_slice %788 {offsets = [0, 96], sizes = [8, 32], strides = [1, 1]} : vector<8x128xf32> to vector<8x32xf32>
    %799 = math.tanh %798 : vector<8x32xf32>
    %800 = arith.mulf %796, %774 : vector<8x32xf32>
    %801 = arith.mulf %795, %799 : vector<8x32xf32>
    %802 = arith.addf %800, %801 : vector<8x32xf32>
    %803 = math.tanh %802 : vector<8x32xf32>
    %804 = arith.mulf %797, %803 : vector<8x32xf32>
    %805 = arith.truncf %804 : vector<8x32xf32> to vector<8x32xbf16>
    %cst_280 = arith.constant dense<0.000000e+00> : vector<8x128xf32>
    %806 = tpu.matmul %805, %675, %cst_280 {dimension_numbers = #tpu.dot_dimension_numbers<[1], [0], [0], [1], [0, 0, 1, 1], [], []>} : vector<8x32xbf16>, vector<32x128xbf16>, vector<8x128xf32> -> vector<8x128xf32>
    %807 = vector.broadcast %677 : vector<1x128xf32> to vector<8x128xf32>
    %808 = arith.addf %806, %807 : vector<8x128xf32>
    %c4_281 = arith.constant 4 : index
    %c0_282 = arith.constant 0 : index
    %c0_283 = arith.constant 0 : index
    %809 = vector.load %arg6[%c4_281, %c0_282, %c0_283] : memref<8x8x128xf32, #tpu.memory_space<vmem>>, vector<1x8x128xf32>
    %810 = vector.shape_cast %809 : vector<1x8x128xf32> to vector<8x128xf32>
    %811 = vector.shape_cast %808 : vector<8x128xf32> to vector<1x8x128xf32>
    tpu.vector_store %arg6[%c4_281, %c0_282, %c0_283], %811 {strides = array<i32>} : memref<8x8x128xf32, #tpu.memory_space<vmem>>, vector<1x8x128xf32>,
    %c5_284 = arith.constant 5 : index
    %c0_285 = arith.constant 0 : index
    %c0_286 = arith.constant 0 : index
    %812 = vector.load %arg6[%c5_284, %c0_285, %c0_286] : memref<8x8x128xf32, #tpu.memory_space<vmem>>, vector<1x8x128xf32>
    %813 = vector.shape_cast %812 : vector<1x8x128xf32> to vector<8x128xf32>
    %814 = arith.truncf %804 : vector<8x32xf32> to vector<8x32xbf16>
    %cst_287 = arith.constant dense<0.000000e+00> : vector<8x128xf32>
    %815 = tpu.matmul %814, %673, %cst_287 {dimension_numbers = #tpu.dot_dimension_numbers<[1], [0], [0], [1], [0, 0, 1, 1], [], []>} : vector<8x32xbf16>, vector<32x128xbf16>, vector<8x128xf32> -> vector<8x128xf32>
    %816 = arith.addf %813, %815 : vector<8x128xf32>
    %817 = vector.extract_strided_slice %816 {offsets = [0, 0], sizes = [8, 96], strides = [1, 1]} : vector<8x128xf32> to vector<8x96xf32>
    %818 = arith.negf %817 : vector<8x96xf32>
    %819 = math.exp %818 : vector<8x96xf32>
    %cst_288 = arith.constant 1.000000e+00 : f32
    %820 = vector.broadcast %cst_288 : f32 to vector<8x96xf32>
    %821 = arith.addf %820, %819 : vector<8x96xf32>
    %822 = arith.divf %820, %821 : vector<8x96xf32>
    %823 = vector.extract_strided_slice %822 {offsets = [0, 0], sizes = [8, 32], strides = [1, 1]} : vector<8x96xf32> to vector<8x32xf32>
    %824 = vector.extract_strided_slice %822 {offsets = [0, 32], sizes = [8, 32], strides = [1, 1]} : vector<8x96xf32> to vector<8x32xf32>
    %825 = vector.extract_strided_slice %822 {offsets = [0, 64], sizes = [8, 32], strides = [1, 1]} : vector<8x96xf32> to vector<8x32xf32>
    %826 = vector.extract_strided_slice %816 {offsets = [0, 96], sizes = [8, 32], strides = [1, 1]} : vector<8x128xf32> to vector<8x32xf32>
    %827 = math.tanh %826 : vector<8x32xf32>
    %828 = arith.mulf %824, %802 : vector<8x32xf32>
    %829 = arith.mulf %823, %827 : vector<8x32xf32>
    %830 = arith.addf %828, %829 : vector<8x32xf32>
    %831 = math.tanh %830 : vector<8x32xf32>
    %832 = arith.mulf %825, %831 : vector<8x32xf32>
    %833 = arith.truncf %832 : vector<8x32xf32> to vector<8x32xbf16>
    %cst_289 = arith.constant dense<0.000000e+00> : vector<8x128xf32>
    %834 = tpu.matmul %833, %675, %cst_289 {dimension_numbers = #tpu.dot_dimension_numbers<[1], [0], [0], [1], [0, 0, 1, 1], [], []>} : vector<8x32xbf16>, vector<32x128xbf16>, vector<8x128xf32> -> vector<8x128xf32>
    %835 = vector.broadcast %677 : vector<1x128xf32> to vector<8x128xf32>
    %836 = arith.addf %834, %835 : vector<8x128xf32>
    %c5_290 = arith.constant 5 : index
    %c0_291 = arith.constant 0 : index
    %c0_292 = arith.constant 0 : index
    %837 = vector.load %arg6[%c5_290, %c0_291, %c0_292] : memref<8x8x128xf32, #tpu.memory_space<vmem>>, vector<1x8x128xf32>
    %838 = vector.shape_cast %837 : vector<1x8x128xf32> to vector<8x128xf32>
    %839 = vector.shape_cast %836 : vector<8x128xf32> to vector<1x8x128xf32>
    tpu.vector_store %arg6[%c5_290, %c0_291, %c0_292], %839 {strides = array<i32>} : memref<8x8x128xf32, #tpu.memory_space<vmem>>, vector<1x8x128xf32>,
    %c6_293 = arith.constant 6 : index
    %c0_294 = arith.constant 0 : index
    %c0_295 = arith.constant 0 : index
    %840 = vector.load %arg6[%c6_293, %c0_294, %c0_295] : memref<8x8x128xf32, #tpu.memory_space<vmem>>, vector<1x8x128xf32>
    %841 = vector.shape_cast %840 : vector<1x8x128xf32> to vector<8x128xf32>
    %842 = arith.truncf %832 : vector<8x32xf32> to vector<8x32xbf16>
    %cst_296 = arith.constant dense<0.000000e+00> : vector<8x128xf32>
    %843 = tpu.matmul %842, %673, %cst_296 {dimension_numbers = #tpu.dot_dimension_numbers<[1], [0], [0], [1], [0, 0, 1, 1], [], []>} : vector<8x32xbf16>, vector<32x128xbf16>, vector<8x128xf32> -> vector<8x128xf32>
    %844 = arith.addf %841, %843 : vector<8x128xf32>
    %845 = vector.extract_strided_slice %844 {offsets = [0, 0], sizes = [8, 96], strides = [1, 1]} : vector<8x128xf32> to vector<8x96xf32>
    %846 = arith.negf %845 : vector<8x96xf32>
    %847 = math.exp %846 : vector<8x96xf32>
    %cst_297 = arith.constant 1.000000e+00 : f32
    %848 = vector.broadcast %cst_297 : f32 to vector<8x96xf32>
    %849 = arith.addf %848, %847 : vector<8x96xf32>
    %850 = arith.divf %848, %849 : vector<8x96xf32>
    %851 = vector.extract_strided_slice %850 {offsets = [0, 0], sizes = [8, 32], strides = [1, 1]} : vector<8x96xf32> to vector<8x32xf32>
    %852 = vector.extract_strided_slice %850 {offsets = [0, 32], sizes = [8, 32], strides = [1, 1]} : vector<8x96xf32> to vector<8x32xf32>
    %853 = vector.extract_strided_slice %850 {offsets = [0, 64], sizes = [8, 32], strides = [1, 1]} : vector<8x96xf32> to vector<8x32xf32>
    %854 = vector.extract_strided_slice %844 {offsets = [0, 96], sizes = [8, 32], strides = [1, 1]} : vector<8x128xf32> to vector<8x32xf32>
    %855 = math.tanh %854 : vector<8x32xf32>
    %856 = arith.mulf %852, %830 : vector<8x32xf32>
    %857 = arith.mulf %851, %855 : vector<8x32xf32>
    %858 = arith.addf %856, %857 : vector<8x32xf32>
    %859 = math.tanh %858 : vector<8x32xf32>
    %860 = arith.mulf %853, %859 : vector<8x32xf32>
    %861 = arith.truncf %860 : vector<8x32xf32> to vector<8x32xbf16>
    %cst_298 = arith.constant dense<0.000000e+00> : vector<8x128xf32>
    %862 = tpu.matmul %861, %675, %cst_298 {dimension_numbers = #tpu.dot_dimension_numbers<[1], [0], [0], [1], [0, 0, 1, 1], [], []>} : vector<8x32xbf16>, vector<32x128xbf16>, vector<8x128xf32> -> vector<8x128xf32>
    %863 = vector.broadcast %677 : vector<1x128xf32> to vector<8x128xf32>
    %864 = arith.addf %862, %863 : vector<8x128xf32>
    %c6_299 = arith.constant 6 : index
    %c0_300 = arith.constant 0 : index
    %c0_301 = arith.constant 0 : index
    %865 = vector.load %arg6[%c6_299, %c0_300, %c0_301] : memref<8x8x128xf32, #tpu.memory_space<vmem>>, vector<1x8x128xf32>
    %866 = vector.shape_cast %865 : vector<1x8x128xf32> to vector<8x128xf32>
    %867 = vector.shape_cast %864 : vector<8x128xf32> to vector<1x8x128xf32>
    tpu.vector_store %arg6[%c6_299, %c0_300, %c0_301], %867 {strides = array<i32>} : memref<8x8x128xf32, #tpu.memory_space<vmem>>, vector<1x8x128xf32>,
    %c7_302 = arith.constant 7 : index
    %c0_303 = arith.constant 0 : index
    %c0_304 = arith.constant 0 : index
    %868 = vector.load %arg6[%c7_302, %c0_303, %c0_304] : memref<8x8x128xf32, #tpu.memory_space<vmem>>, vector<1x8x128xf32>
    %869 = vector.shape_cast %868 : vector<1x8x128xf32> to vector<8x128xf32>
    %870 = arith.truncf %860 : vector<8x32xf32> to vector<8x32xbf16>
    %cst_305 = arith.constant dense<0.000000e+00> : vector<8x128xf32>
    %871 = tpu.matmul %870, %673, %cst_305 {dimension_numbers = #tpu.dot_dimension_numbers<[1], [0], [0], [1], [0, 0, 1, 1], [], []>} : vector<8x32xbf16>, vector<32x128xbf16>, vector<8x128xf32> -> vector<8x128xf32>
    %872 = arith.addf %869, %871 : vector<8x128xf32>
    %873 = vector.extract_strided_slice %872 {offsets = [0, 0], sizes = [8, 96], strides = [1, 1]} : vector<8x128xf32> to vector<8x96xf32>
    %874 = arith.negf %873 : vector<8x96xf32>
    %875 = math.exp %874 : vector<8x96xf32>
    %cst_306 = arith.constant 1.000000e+00 : f32
    %876 = vector.broadcast %cst_306 : f32 to vector<8x96xf32>
    %877 = arith.addf %876, %875 : vector<8x96xf32>
    %878 = arith.divf %876, %877 : vector<8x96xf32>
    %879 = vector.extract_strided_slice %878 {offsets = [0, 0], sizes = [8, 32], strides = [1, 1]} : vector<8x96xf32> to vector<8x32xf32>
    %880 = vector.extract_strided_slice %878 {offsets = [0, 32], sizes = [8, 32], strides = [1, 1]} : vector<8x96xf32> to vector<8x32xf32>
    %881 = vector.extract_strided_slice %878 {offsets = [0, 64], sizes = [8, 32], strides = [1, 1]} : vector<8x96xf32> to vector<8x32xf32>
    %882 = vector.extract_strided_slice %872 {offsets = [0, 96], sizes = [8, 32], strides = [1, 1]} : vector<8x128xf32> to vector<8x32xf32>
    %883 = math.tanh %882 : vector<8x32xf32>
    %884 = arith.mulf %880, %858 : vector<8x32xf32>
    %885 = arith.mulf %879, %883 : vector<8x32xf32>
    %886 = arith.addf %884, %885 : vector<8x32xf32>
    %887 = math.tanh %886 : vector<8x32xf32>
    %888 = arith.mulf %881, %887 : vector<8x32xf32>
    %889 = arith.truncf %888 : vector<8x32xf32> to vector<8x32xbf16>
    %cst_307 = arith.constant dense<0.000000e+00> : vector<8x128xf32>
    %890 = tpu.matmul %889, %675, %cst_307 {dimension_numbers = #tpu.dot_dimension_numbers<[1], [0], [0], [1], [0, 0, 1, 1], [], []>} : vector<8x32xbf16>, vector<32x128xbf16>, vector<8x128xf32> -> vector<8x128xf32>
    %891 = vector.broadcast %677 : vector<1x128xf32> to vector<8x128xf32>
    %892 = arith.addf %890, %891 : vector<8x128xf32>
    %c7_308 = arith.constant 7 : index
    %c0_309 = arith.constant 0 : index
    %c0_310 = arith.constant 0 : index
    %893 = vector.load %arg6[%c7_308, %c0_309, %c0_310] : memref<8x8x128xf32, #tpu.memory_space<vmem>>, vector<1x8x128xf32>
    %894 = vector.shape_cast %893 : vector<1x8x128xf32> to vector<8x128xf32>
    %895 = vector.shape_cast %892 : vector<8x128xf32> to vector<1x8x128xf32>
    tpu.vector_store %arg6[%c7_308, %c0_309, %c0_310], %895 {strides = array<i32>} : memref<8x8x128xf32, #tpu.memory_space<vmem>>, vector<1x8x128xf32>,
    %c4_311 = arith.constant 4 : index
    %c0_312 = arith.constant 0 : index
    %c0_313 = arith.constant 0 : index
    %896 = vector.load %arg3[%c4_311, %c0_312, %c0_313] : memref<7x32x128xbf16, #tpu.memory_space<vmem>>, vector<1x32x128xbf16>
    %897 = vector.shape_cast %896 : vector<1x32x128xbf16> to vector<32x128xbf16>
    %c4_314 = arith.constant 4 : index
    %c0_315 = arith.constant 0 : index
    %c0_316 = arith.constant 0 : index
    %898 = vector.load %arg2[%c4_314, %c0_315, %c0_316] : memref<6x32x128xbf16, #tpu.memory_space<vmem>>, vector<1x32x128xbf16>
    %899 = vector.shape_cast %898 : vector<1x32x128xbf16> to vector<32x128xbf16>
    %c4_317 = arith.constant 4 : index
    %c0_318 = arith.constant 0 : index
    %c0_319 = arith.constant 0 : index
    %900 = vector.load %arg4[%c4_317, %c0_318, %c0_319] : memref<6x1x128xf32, #tpu.memory_space<vmem>>, vector<1x1x128xf32>
    %901 = vector.shape_cast %900 : vector<1x1x128xf32> to vector<1x128xf32>
    %c0_320 = arith.constant 0 : index
    %c0_321 = arith.constant 0 : index
    %c0_322 = arith.constant 0 : index
    %902 = vector.load %arg6[%c0_320, %c0_321, %c0_322] : memref<8x8x128xf32, #tpu.memory_space<vmem>>, vector<1x8x128xf32>
    %903 = vector.shape_cast %902 : vector<1x8x128xf32> to vector<8x128xf32>
    %904 = vector.extract_strided_slice %903 {offsets = [0, 0], sizes = [8, 96], strides = [1, 1]} : vector<8x128xf32> to vector<8x96xf32>
    %905 = arith.negf %904 : vector<8x96xf32>
    %906 = math.exp %905 : vector<8x96xf32>
    %cst_323 = arith.constant 1.000000e+00 : f32
    %907 = vector.broadcast %cst_323 : f32 to vector<8x96xf32>
    %908 = arith.addf %907, %906 : vector<8x96xf32>
    %909 = arith.divf %907, %908 : vector<8x96xf32>
    %910 = vector.extract_strided_slice %909 {offsets = [0, 0], sizes = [8, 32], strides = [1, 1]} : vector<8x96xf32> to vector<8x32xf32>
    %911 = vector.extract_strided_slice %909 {offsets = [0, 64], sizes = [8, 32], strides = [1, 1]} : vector<8x96xf32> to vector<8x32xf32>
    %912 = vector.extract_strided_slice %903 {offsets = [0, 96], sizes = [8, 32], strides = [1, 1]} : vector<8x128xf32> to vector<8x32xf32>
    %913 = math.tanh %912 : vector<8x32xf32>
    %914 = arith.mulf %910, %913 : vector<8x32xf32>
    %915 = math.tanh %914 : vector<8x32xf32>
    %916 = arith.mulf %911, %915 : vector<8x32xf32>
    %917 = arith.truncf %916 : vector<8x32xf32> to vector<8x32xbf16>
    %cst_324 = arith.constant dense<0.000000e+00> : vector<8x128xf32>
    %918 = tpu.matmul %917, %899, %cst_324 {dimension_numbers = #tpu.dot_dimension_numbers<[1], [0], [0], [1], [0, 0, 1, 1], [], []>} : vector<8x32xbf16>, vector<32x128xbf16>, vector<8x128xf32> -> vector<8x128xf32>
    %919 = vector.broadcast %901 : vector<1x128xf32> to vector<8x128xf32>
    %920 = arith.addf %918, %919 : vector<8x128xf32>
    %c0_325 = arith.constant 0 : index
    %c0_326 = arith.constant 0 : index
    %c0_327 = arith.constant 0 : index
    %921 = vector.load %arg6[%c0_325, %c0_326, %c0_327] : memref<8x8x128xf32, #tpu.memory_space<vmem>>, vector<1x8x128xf32>
    %922 = vector.shape_cast %921 : vector<1x8x128xf32> to vector<8x128xf32>
    %923 = vector.shape_cast %920 : vector<8x128xf32> to vector<1x8x128xf32>
    tpu.vector_store %arg6[%c0_325, %c0_326, %c0_327], %923 {strides = array<i32>} : memref<8x8x128xf32, #tpu.memory_space<vmem>>, vector<1x8x128xf32>,
    %c1_328 = arith.constant 1 : index
    %c0_329 = arith.constant 0 : index
    %c0_330 = arith.constant 0 : index
    %924 = vector.load %arg6[%c1_328, %c0_329, %c0_330] : memref<8x8x128xf32, #tpu.memory_space<vmem>>, vector<1x8x128xf32>
    %925 = vector.shape_cast %924 : vector<1x8x128xf32> to vector<8x128xf32>
    %926 = arith.truncf %916 : vector<8x32xf32> to vector<8x32xbf16>
    %cst_331 = arith.constant dense<0.000000e+00> : vector<8x128xf32>
    %927 = tpu.matmul %926, %897, %cst_331 {dimension_numbers = #tpu.dot_dimension_numbers<[1], [0], [0], [1], [0, 0, 1, 1], [], []>} : vector<8x32xbf16>, vector<32x128xbf16>, vector<8x128xf32> -> vector<8x128xf32>
    %928 = arith.addf %925, %927 : vector<8x128xf32>
    %929 = vector.extract_strided_slice %928 {offsets = [0, 0], sizes = [8, 96], strides = [1, 1]} : vector<8x128xf32> to vector<8x96xf32>
    %930 = arith.negf %929 : vector<8x96xf32>
    %931 = math.exp %930 : vector<8x96xf32>
    %cst_332 = arith.constant 1.000000e+00 : f32
    %932 = vector.broadcast %cst_332 : f32 to vector<8x96xf32>
    %933 = arith.addf %932, %931 : vector<8x96xf32>
    %934 = arith.divf %932, %933 : vector<8x96xf32>
    %935 = vector.extract_strided_slice %934 {offsets = [0, 0], sizes = [8, 32], strides = [1, 1]} : vector<8x96xf32> to vector<8x32xf32>
    %936 = vector.extract_strided_slice %934 {offsets = [0, 32], sizes = [8, 32], strides = [1, 1]} : vector<8x96xf32> to vector<8x32xf32>
    %937 = vector.extract_strided_slice %934 {offsets = [0, 64], sizes = [8, 32], strides = [1, 1]} : vector<8x96xf32> to vector<8x32xf32>
    %938 = vector.extract_strided_slice %928 {offsets = [0, 96], sizes = [8, 32], strides = [1, 1]} : vector<8x128xf32> to vector<8x32xf32>
    %939 = math.tanh %938 : vector<8x32xf32>
    %940 = arith.mulf %936, %914 : vector<8x32xf32>
    %941 = arith.mulf %935, %939 : vector<8x32xf32>
    %942 = arith.addf %940, %941 : vector<8x32xf32>
    %943 = math.tanh %942 : vector<8x32xf32>
    %944 = arith.mulf %937, %943 : vector<8x32xf32>
    %945 = arith.truncf %944 : vector<8x32xf32> to vector<8x32xbf16>
    %cst_333 = arith.constant dense<0.000000e+00> : vector<8x128xf32>
    %946 = tpu.matmul %945, %899, %cst_333 {dimension_numbers = #tpu.dot_dimension_numbers<[1], [0], [0], [1], [0, 0, 1, 1], [], []>} : vector<8x32xbf16>, vector<32x128xbf16>, vector<8x128xf32> -> vector<8x128xf32>
    %947 = vector.broadcast %901 : vector<1x128xf32> to vector<8x128xf32>
    %948 = arith.addf %946, %947 : vector<8x128xf32>
    %c1_334 = arith.constant 1 : index
    %c0_335 = arith.constant 0 : index
    %c0_336 = arith.constant 0 : index
    %949 = vector.load %arg6[%c1_334, %c0_335, %c0_336] : memref<8x8x128xf32, #tpu.memory_space<vmem>>, vector<1x8x128xf32>
    %950 = vector.shape_cast %949 : vector<1x8x128xf32> to vector<8x128xf32>
    %951 = vector.shape_cast %948 : vector<8x128xf32> to vector<1x8x128xf32>
    tpu.vector_store %arg6[%c1_334, %c0_335, %c0_336], %951 {strides = array<i32>} : memref<8x8x128xf32, #tpu.memory_space<vmem>>, vector<1x8x128xf32>,
    %c2_337 = arith.constant 2 : index
    %c0_338 = arith.constant 0 : index
    %c0_339 = arith.constant 0 : index
    %952 = vector.load %arg6[%c2_337, %c0_338, %c0_339] : memref<8x8x128xf32, #tpu.memory_space<vmem>>, vector<1x8x128xf32>
    %953 = vector.shape_cast %952 : vector<1x8x128xf32> to vector<8x128xf32>
    %954 = arith.truncf %944 : vector<8x32xf32> to vector<8x32xbf16>
    %cst_340 = arith.constant dense<0.000000e+00> : vector<8x128xf32>
    %955 = tpu.matmul %954, %897, %cst_340 {dimension_numbers = #tpu.dot_dimension_numbers<[1], [0], [0], [1], [0, 0, 1, 1], [], []>} : vector<8x32xbf16>, vector<32x128xbf16>, vector<8x128xf32> -> vector<8x128xf32>
    %956 = arith.addf %953, %955 : vector<8x128xf32>
    %957 = vector.extract_strided_slice %956 {offsets = [0, 0], sizes = [8, 96], strides = [1, 1]} : vector<8x128xf32> to vector<8x96xf32>
    %958 = arith.negf %957 : vector<8x96xf32>
    %959 = math.exp %958 : vector<8x96xf32>
    %cst_341 = arith.constant 1.000000e+00 : f32
    %960 = vector.broadcast %cst_341 : f32 to vector<8x96xf32>
    %961 = arith.addf %960, %959 : vector<8x96xf32>
    %962 = arith.divf %960, %961 : vector<8x96xf32>
    %963 = vector.extract_strided_slice %962 {offsets = [0, 0], sizes = [8, 32], strides = [1, 1]} : vector<8x96xf32> to vector<8x32xf32>
    %964 = vector.extract_strided_slice %962 {offsets = [0, 32], sizes = [8, 32], strides = [1, 1]} : vector<8x96xf32> to vector<8x32xf32>
    %965 = vector.extract_strided_slice %962 {offsets = [0, 64], sizes = [8, 32], strides = [1, 1]} : vector<8x96xf32> to vector<8x32xf32>
    %966 = vector.extract_strided_slice %956 {offsets = [0, 96], sizes = [8, 32], strides = [1, 1]} : vector<8x128xf32> to vector<8x32xf32>
    %967 = math.tanh %966 : vector<8x32xf32>
    %968 = arith.mulf %964, %942 : vector<8x32xf32>
    %969 = arith.mulf %963, %967 : vector<8x32xf32>
    %970 = arith.addf %968, %969 : vector<8x32xf32>
    %971 = math.tanh %970 : vector<8x32xf32>
    %972 = arith.mulf %965, %971 : vector<8x32xf32>
    %973 = arith.truncf %972 : vector<8x32xf32> to vector<8x32xbf16>
    %cst_342 = arith.constant dense<0.000000e+00> : vector<8x128xf32>
    %974 = tpu.matmul %973, %899, %cst_342 {dimension_numbers = #tpu.dot_dimension_numbers<[1], [0], [0], [1], [0, 0, 1, 1], [], []>} : vector<8x32xbf16>, vector<32x128xbf16>, vector<8x128xf32> -> vector<8x128xf32>
    %975 = vector.broadcast %901 : vector<1x128xf32> to vector<8x128xf32>
    %976 = arith.addf %974, %975 : vector<8x128xf32>
    %c2_343 = arith.constant 2 : index
    %c0_344 = arith.constant 0 : index
    %c0_345 = arith.constant 0 : index
    %977 = vector.load %arg6[%c2_343, %c0_344, %c0_345] : memref<8x8x128xf32, #tpu.memory_space<vmem>>, vector<1x8x128xf32>
    %978 = vector.shape_cast %977 : vector<1x8x128xf32> to vector<8x128xf32>
    %979 = vector.shape_cast %976 : vector<8x128xf32> to vector<1x8x128xf32>
    tpu.vector_store %arg6[%c2_343, %c0_344, %c0_345], %979 {strides = array<i32>} : memref<8x8x128xf32, #tpu.memory_space<vmem>>, vector<1x8x128xf32>,
    %c3_346 = arith.constant 3 : index
    %c0_347 = arith.constant 0 : index
    %c0_348 = arith.constant 0 : index
    %980 = vector.load %arg6[%c3_346, %c0_347, %c0_348] : memref<8x8x128xf32, #tpu.memory_space<vmem>>, vector<1x8x128xf32>
    %981 = vector.shape_cast %980 : vector<1x8x128xf32> to vector<8x128xf32>
    %982 = arith.truncf %972 : vector<8x32xf32> to vector<8x32xbf16>
    %cst_349 = arith.constant dense<0.000000e+00> : vector<8x128xf32>
    %983 = tpu.matmul %982, %897, %cst_349 {dimension_numbers = #tpu.dot_dimension_numbers<[1], [0], [0], [1], [0, 0, 1, 1], [], []>} : vector<8x32xbf16>, vector<32x128xbf16>, vector<8x128xf32> -> vector<8x128xf32>
    %984 = arith.addf %981, %983 : vector<8x128xf32>
    %985 = vector.extract_strided_slice %984 {offsets = [0, 0], sizes = [8, 96], strides = [1, 1]} : vector<8x128xf32> to vector<8x96xf32>
    %986 = arith.negf %985 : vector<8x96xf32>
    %987 = math.exp %986 : vector<8x96xf32>
    %cst_350 = arith.constant 1.000000e+00 : f32
    %988 = vector.broadcast %cst_350 : f32 to vector<8x96xf32>
    %989 = arith.addf %988, %987 : vector<8x96xf32>
    %990 = arith.divf %988, %989 : vector<8x96xf32>
    %991 = vector.extract_strided_slice %990 {offsets = [0, 0], sizes = [8, 32], strides = [1, 1]} : vector<8x96xf32> to vector<8x32xf32>
    %992 = vector.extract_strided_slice %990 {offsets = [0, 32], sizes = [8, 32], strides = [1, 1]} : vector<8x96xf32> to vector<8x32xf32>
    %993 = vector.extract_strided_slice %990 {offsets = [0, 64], sizes = [8, 32], strides = [1, 1]} : vector<8x96xf32> to vector<8x32xf32>
    %994 = vector.extract_strided_slice %984 {offsets = [0, 96], sizes = [8, 32], strides = [1, 1]} : vector<8x128xf32> to vector<8x32xf32>
    %995 = math.tanh %994 : vector<8x32xf32>
    %996 = arith.mulf %992, %970 : vector<8x32xf32>
    %997 = arith.mulf %991, %995 : vector<8x32xf32>
    %998 = arith.addf %996, %997 : vector<8x32xf32>
    %999 = math.tanh %998 : vector<8x32xf32>
    %1000 = arith.mulf %993, %999 : vector<8x32xf32>
    %1001 = arith.truncf %1000 : vector<8x32xf32> to vector<8x32xbf16>
    %cst_351 = arith.constant dense<0.000000e+00> : vector<8x128xf32>
    %1002 = tpu.matmul %1001, %899, %cst_351 {dimension_numbers = #tpu.dot_dimension_numbers<[1], [0], [0], [1], [0, 0, 1, 1], [], []>} : vector<8x32xbf16>, vector<32x128xbf16>, vector<8x128xf32> -> vector<8x128xf32>
    %1003 = vector.broadcast %901 : vector<1x128xf32> to vector<8x128xf32>
    %1004 = arith.addf %1002, %1003 : vector<8x128xf32>
    %c3_352 = arith.constant 3 : index
    %c0_353 = arith.constant 0 : index
    %c0_354 = arith.constant 0 : index
    %1005 = vector.load %arg6[%c3_352, %c0_353, %c0_354] : memref<8x8x128xf32, #tpu.memory_space<vmem>>, vector<1x8x128xf32>
    %1006 = vector.shape_cast %1005 : vector<1x8x128xf32> to vector<8x128xf32>
    %1007 = vector.shape_cast %1004 : vector<8x128xf32> to vector<1x8x128xf32>
    tpu.vector_store %arg6[%c3_352, %c0_353, %c0_354], %1007 {strides = array<i32>} : memref<8x8x128xf32, #tpu.memory_space<vmem>>, vector<1x8x128xf32>,
    %c4_355 = arith.constant 4 : index
    %c0_356 = arith.constant 0 : index
    %c0_357 = arith.constant 0 : index
    %1008 = vector.load %arg6[%c4_355, %c0_356, %c0_357] : memref<8x8x128xf32, #tpu.memory_space<vmem>>, vector<1x8x128xf32>
    %1009 = vector.shape_cast %1008 : vector<1x8x128xf32> to vector<8x128xf32>
    %1010 = arith.truncf %1000 : vector<8x32xf32> to vector<8x32xbf16>
    %cst_358 = arith.constant dense<0.000000e+00> : vector<8x128xf32>
    %1011 = tpu.matmul %1010, %897, %cst_358 {dimension_numbers = #tpu.dot_dimension_numbers<[1], [0], [0], [1], [0, 0, 1, 1], [], []>} : vector<8x32xbf16>, vector<32x128xbf16>, vector<8x128xf32> -> vector<8x128xf32>
    %1012 = arith.addf %1009, %1011 : vector<8x128xf32>
    %1013 = vector.extract_strided_slice %1012 {offsets = [0, 0], sizes = [8, 96], strides = [1, 1]} : vector<8x128xf32> to vector<8x96xf32>
    %1014 = arith.negf %1013 : vector<8x96xf32>
    %1015 = math.exp %1014 : vector<8x96xf32>
    %cst_359 = arith.constant 1.000000e+00 : f32
    %1016 = vector.broadcast %cst_359 : f32 to vector<8x96xf32>
    %1017 = arith.addf %1016, %1015 : vector<8x96xf32>
    %1018 = arith.divf %1016, %1017 : vector<8x96xf32>
    %1019 = vector.extract_strided_slice %1018 {offsets = [0, 0], sizes = [8, 32], strides = [1, 1]} : vector<8x96xf32> to vector<8x32xf32>
    %1020 = vector.extract_strided_slice %1018 {offsets = [0, 32], sizes = [8, 32], strides = [1, 1]} : vector<8x96xf32> to vector<8x32xf32>
    %1021 = vector.extract_strided_slice %1018 {offsets = [0, 64], sizes = [8, 32], strides = [1, 1]} : vector<8x96xf32> to vector<8x32xf32>
    %1022 = vector.extract_strided_slice %1012 {offsets = [0, 96], sizes = [8, 32], strides = [1, 1]} : vector<8x128xf32> to vector<8x32xf32>
    %1023 = math.tanh %1022 : vector<8x32xf32>
    %1024 = arith.mulf %1020, %998 : vector<8x32xf32>
    %1025 = arith.mulf %1019, %1023 : vector<8x32xf32>
    %1026 = arith.addf %1024, %1025 : vector<8x32xf32>
    %1027 = math.tanh %1026 : vector<8x32xf32>
    %1028 = arith.mulf %1021, %1027 : vector<8x32xf32>
    %1029 = arith.truncf %1028 : vector<8x32xf32> to vector<8x32xbf16>
    %cst_360 = arith.constant dense<0.000000e+00> : vector<8x128xf32>
    %1030 = tpu.matmul %1029, %899, %cst_360 {dimension_numbers = #tpu.dot_dimension_numbers<[1], [0], [0], [1], [0, 0, 1, 1], [], []>} : vector<8x32xbf16>, vector<32x128xbf16>, vector<8x128xf32> -> vector<8x128xf32>
    %1031 = vector.broadcast %901 : vector<1x128xf32> to vector<8x128xf32>
    %1032 = arith.addf %1030, %1031 : vector<8x128xf32>
    %c4_361 = arith.constant 4 : index
    %c0_362 = arith.constant 0 : index
    %c0_363 = arith.constant 0 : index
    %1033 = vector.load %arg6[%c4_361, %c0_362, %c0_363] : memref<8x8x128xf32, #tpu.memory_space<vmem>>, vector<1x8x128xf32>
    %1034 = vector.shape_cast %1033 : vector<1x8x128xf32> to vector<8x128xf32>
    %1035 = vector.shape_cast %1032 : vector<8x128xf32> to vector<1x8x128xf32>
    tpu.vector_store %arg6[%c4_361, %c0_362, %c0_363], %1035 {strides = array<i32>} : memref<8x8x128xf32, #tpu.memory_space<vmem>>, vector<1x8x128xf32>,
    %c5_364 = arith.constant 5 : index
    %c0_365 = arith.constant 0 : index
    %c0_366 = arith.constant 0 : index
    %1036 = vector.load %arg6[%c5_364, %c0_365, %c0_366] : memref<8x8x128xf32, #tpu.memory_space<vmem>>, vector<1x8x128xf32>
    %1037 = vector.shape_cast %1036 : vector<1x8x128xf32> to vector<8x128xf32>
    %1038 = arith.truncf %1028 : vector<8x32xf32> to vector<8x32xbf16>
    %cst_367 = arith.constant dense<0.000000e+00> : vector<8x128xf32>
    %1039 = tpu.matmul %1038, %897, %cst_367 {dimension_numbers = #tpu.dot_dimension_numbers<[1], [0], [0], [1], [0, 0, 1, 1], [], []>} : vector<8x32xbf16>, vector<32x128xbf16>, vector<8x128xf32> -> vector<8x128xf32>
    %1040 = arith.addf %1037, %1039 : vector<8x128xf32>
    %1041 = vector.extract_strided_slice %1040 {offsets = [0, 0], sizes = [8, 96], strides = [1, 1]} : vector<8x128xf32> to vector<8x96xf32>
    %1042 = arith.negf %1041 : vector<8x96xf32>
    %1043 = math.exp %1042 : vector<8x96xf32>
    %cst_368 = arith.constant 1.000000e+00 : f32
    %1044 = vector.broadcast %cst_368 : f32 to vector<8x96xf32>
    %1045 = arith.addf %1044, %1043 : vector<8x96xf32>
    %1046 = arith.divf %1044, %1045 : vector<8x96xf32>
    %1047 = vector.extract_strided_slice %1046 {offsets = [0, 0], sizes = [8, 32], strides = [1, 1]} : vector<8x96xf32> to vector<8x32xf32>
    %1048 = vector.extract_strided_slice %1046 {offsets = [0, 32], sizes = [8, 32], strides = [1, 1]} : vector<8x96xf32> to vector<8x32xf32>
    %1049 = vector.extract_strided_slice %1046 {offsets = [0, 64], sizes = [8, 32], strides = [1, 1]} : vector<8x96xf32> to vector<8x32xf32>
    %1050 = vector.extract_strided_slice %1040 {offsets = [0, 96], sizes = [8, 32], strides = [1, 1]} : vector<8x128xf32> to vector<8x32xf32>
    %1051 = math.tanh %1050 : vector<8x32xf32>
    %1052 = arith.mulf %1048, %1026 : vector<8x32xf32>
    %1053 = arith.mulf %1047, %1051 : vector<8x32xf32>
    %1054 = arith.addf %1052, %1053 : vector<8x32xf32>
    %1055 = math.tanh %1054 : vector<8x32xf32>
    %1056 = arith.mulf %1049, %1055 : vector<8x32xf32>
    %1057 = arith.truncf %1056 : vector<8x32xf32> to vector<8x32xbf16>
    %cst_369 = arith.constant dense<0.000000e+00> : vector<8x128xf32>
    %1058 = tpu.matmul %1057, %899, %cst_369 {dimension_numbers = #tpu.dot_dimension_numbers<[1], [0], [0], [1], [0, 0, 1, 1], [], []>} : vector<8x32xbf16>, vector<32x128xbf16>, vector<8x128xf32> -> vector<8x128xf32>
    %1059 = vector.broadcast %901 : vector<1x128xf32> to vector<8x128xf32>
    %1060 = arith.addf %1058, %1059 : vector<8x128xf32>
    %c5_370 = arith.constant 5 : index
    %c0_371 = arith.constant 0 : index
    %c0_372 = arith.constant 0 : index
    %1061 = vector.load %arg6[%c5_370, %c0_371, %c0_372] : memref<8x8x128xf32, #tpu.memory_space<vmem>>, vector<1x8x128xf32>
    %1062 = vector.shape_cast %1061 : vector<1x8x128xf32> to vector<8x128xf32>
    %1063 = vector.shape_cast %1060 : vector<8x128xf32> to vector<1x8x128xf32>
    tpu.vector_store %arg6[%c5_370, %c0_371, %c0_372], %1063 {strides = array<i32>} : memref<8x8x128xf32, #tpu.memory_space<vmem>>, vector<1x8x128xf32>,
    %c6_373 = arith.constant 6 : index
    %c0_374 = arith.constant 0 : index
    %c0_375 = arith.constant 0 : index
    %1064 = vector.load %arg6[%c6_373, %c0_374, %c0_375] : memref<8x8x128xf32, #tpu.memory_space<vmem>>, vector<1x8x128xf32>
    %1065 = vector.shape_cast %1064 : vector<1x8x128xf32> to vector<8x128xf32>
    %1066 = arith.truncf %1056 : vector<8x32xf32> to vector<8x32xbf16>
    %cst_376 = arith.constant dense<0.000000e+00> : vector<8x128xf32>
    %1067 = tpu.matmul %1066, %897, %cst_376 {dimension_numbers = #tpu.dot_dimension_numbers<[1], [0], [0], [1], [0, 0, 1, 1], [], []>} : vector<8x32xbf16>, vector<32x128xbf16>, vector<8x128xf32> -> vector<8x128xf32>
    %1068 = arith.addf %1065, %1067 : vector<8x128xf32>
    %1069 = vector.extract_strided_slice %1068 {offsets = [0, 0], sizes = [8, 96], strides = [1, 1]} : vector<8x128xf32> to vector<8x96xf32>
    %1070 = arith.negf %1069 : vector<8x96xf32>
    %1071 = math.exp %1070 : vector<8x96xf32>
    %cst_377 = arith.constant 1.000000e+00 : f32
    %1072 = vector.broadcast %cst_377 : f32 to vector<8x96xf32>
    %1073 = arith.addf %1072, %1071 : vector<8x96xf32>
    %1074 = arith.divf %1072, %1073 : vector<8x96xf32>
    %1075 = vector.extract_strided_slice %1074 {offsets = [0, 0], sizes = [8, 32], strides = [1, 1]} : vector<8x96xf32> to vector<8x32xf32>
    %1076 = vector.extract_strided_slice %1074 {offsets = [0, 32], sizes = [8, 32], strides = [1, 1]} : vector<8x96xf32> to vector<8x32xf32>
    %1077 = vector.extract_strided_slice %1074 {offsets = [0, 64], sizes = [8, 32], strides = [1, 1]} : vector<8x96xf32> to vector<8x32xf32>
    %1078 = vector.extract_strided_slice %1068 {offsets = [0, 96], sizes = [8, 32], strides = [1, 1]} : vector<8x128xf32> to vector<8x32xf32>
    %1079 = math.tanh %1078 : vector<8x32xf32>
    %1080 = arith.mulf %1076, %1054 : vector<8x32xf32>
    %1081 = arith.mulf %1075, %1079 : vector<8x32xf32>
    %1082 = arith.addf %1080, %1081 : vector<8x32xf32>
    %1083 = math.tanh %1082 : vector<8x32xf32>
    %1084 = arith.mulf %1077, %1083 : vector<8x32xf32>
    %1085 = arith.truncf %1084 : vector<8x32xf32> to vector<8x32xbf16>
    %cst_378 = arith.constant dense<0.000000e+00> : vector<8x128xf32>
    %1086 = tpu.matmul %1085, %899, %cst_378 {dimension_numbers = #tpu.dot_dimension_numbers<[1], [0], [0], [1], [0, 0, 1, 1], [], []>} : vector<8x32xbf16>, vector<32x128xbf16>, vector<8x128xf32> -> vector<8x128xf32>
    %1087 = vector.broadcast %901 : vector<1x128xf32> to vector<8x128xf32>
    %1088 = arith.addf %1086, %1087 : vector<8x128xf32>
    %c6_379 = arith.constant 6 : index
    %c0_380 = arith.constant 0 : index
    %c0_381 = arith.constant 0 : index
    %1089 = vector.load %arg6[%c6_379, %c0_380, %c0_381] : memref<8x8x128xf32, #tpu.memory_space<vmem>>, vector<1x8x128xf32>
    %1090 = vector.shape_cast %1089 : vector<1x8x128xf32> to vector<8x128xf32>
    %1091 = vector.shape_cast %1088 : vector<8x128xf32> to vector<1x8x128xf32>
    tpu.vector_store %arg6[%c6_379, %c0_380, %c0_381], %1091 {strides = array<i32>} : memref<8x8x128xf32, #tpu.memory_space<vmem>>, vector<1x8x128xf32>,
    %c7_382 = arith.constant 7 : index
    %c0_383 = arith.constant 0 : index
    %c0_384 = arith.constant 0 : index
    %1092 = vector.load %arg6[%c7_382, %c0_383, %c0_384] : memref<8x8x128xf32, #tpu.memory_space<vmem>>, vector<1x8x128xf32>
    %1093 = vector.shape_cast %1092 : vector<1x8x128xf32> to vector<8x128xf32>
    %1094 = arith.truncf %1084 : vector<8x32xf32> to vector<8x32xbf16>
    %cst_385 = arith.constant dense<0.000000e+00> : vector<8x128xf32>
    %1095 = tpu.matmul %1094, %897, %cst_385 {dimension_numbers = #tpu.dot_dimension_numbers<[1], [0], [0], [1], [0, 0, 1, 1], [], []>} : vector<8x32xbf16>, vector<32x128xbf16>, vector<8x128xf32> -> vector<8x128xf32>
    %1096 = arith.addf %1093, %1095 : vector<8x128xf32>
    %1097 = vector.extract_strided_slice %1096 {offsets = [0, 0], sizes = [8, 96], strides = [1, 1]} : vector<8x128xf32> to vector<8x96xf32>
    %1098 = arith.negf %1097 : vector<8x96xf32>
    %1099 = math.exp %1098 : vector<8x96xf32>
    %cst_386 = arith.constant 1.000000e+00 : f32
    %1100 = vector.broadcast %cst_386 : f32 to vector<8x96xf32>
    %1101 = arith.addf %1100, %1099 : vector<8x96xf32>
    %1102 = arith.divf %1100, %1101 : vector<8x96xf32>
    %1103 = vector.extract_strided_slice %1102 {offsets = [0, 0], sizes = [8, 32], strides = [1, 1]} : vector<8x96xf32> to vector<8x32xf32>
    %1104 = vector.extract_strided_slice %1102 {offsets = [0, 32], sizes = [8, 32], strides = [1, 1]} : vector<8x96xf32> to vector<8x32xf32>
    %1105 = vector.extract_strided_slice %1102 {offsets = [0, 64], sizes = [8, 32], strides = [1, 1]} : vector<8x96xf32> to vector<8x32xf32>
    %1106 = vector.extract_strided_slice %1096 {offsets = [0, 96], sizes = [8, 32], strides = [1, 1]} : vector<8x128xf32> to vector<8x32xf32>
    %1107 = math.tanh %1106 : vector<8x32xf32>
    %1108 = arith.mulf %1104, %1082 : vector<8x32xf32>
    %1109 = arith.mulf %1103, %1107 : vector<8x32xf32>
    %1110 = arith.addf %1108, %1109 : vector<8x32xf32>
    %1111 = math.tanh %1110 : vector<8x32xf32>
    %1112 = arith.mulf %1105, %1111 : vector<8x32xf32>
    %1113 = arith.truncf %1112 : vector<8x32xf32> to vector<8x32xbf16>
    %cst_387 = arith.constant dense<0.000000e+00> : vector<8x128xf32>
    %1114 = tpu.matmul %1113, %899, %cst_387 {dimension_numbers = #tpu.dot_dimension_numbers<[1], [0], [0], [1], [0, 0, 1, 1], [], []>} : vector<8x32xbf16>, vector<32x128xbf16>, vector<8x128xf32> -> vector<8x128xf32>
    %1115 = vector.broadcast %901 : vector<1x128xf32> to vector<8x128xf32>
    %1116 = arith.addf %1114, %1115 : vector<8x128xf32>
    %c7_388 = arith.constant 7 : index
    %c0_389 = arith.constant 0 : index
    %c0_390 = arith.constant 0 : index
    %1117 = vector.load %arg6[%c7_388, %c0_389, %c0_390] : memref<8x8x128xf32, #tpu.memory_space<vmem>>, vector<1x8x128xf32>
    %1118 = vector.shape_cast %1117 : vector<1x8x128xf32> to vector<8x128xf32>
    %1119 = vector.shape_cast %1116 : vector<8x128xf32> to vector<1x8x128xf32>
    tpu.vector_store %arg6[%c7_388, %c0_389, %c0_390], %1119 {strides = array<i32>} : memref<8x8x128xf32, #tpu.memory_space<vmem>>, vector<1x8x128xf32>,
    %c5_391 = arith.constant 5 : index
    %c0_392 = arith.constant 0 : index
    %c0_393 = arith.constant 0 : index
    %1120 = vector.load %arg3[%c5_391, %c0_392, %c0_393] : memref<7x32x128xbf16, #tpu.memory_space<vmem>>, vector<1x32x128xbf16>
    %1121 = vector.shape_cast %1120 : vector<1x32x128xbf16> to vector<32x128xbf16>
    %c5_394 = arith.constant 5 : index
    %c0_395 = arith.constant 0 : index
    %c0_396 = arith.constant 0 : index
    %1122 = vector.load %arg2[%c5_394, %c0_395, %c0_396] : memref<6x32x128xbf16, #tpu.memory_space<vmem>>, vector<1x32x128xbf16>
    %1123 = vector.shape_cast %1122 : vector<1x32x128xbf16> to vector<32x128xbf16>
    %c5_397 = arith.constant 5 : index
    %c0_398 = arith.constant 0 : index
    %c0_399 = arith.constant 0 : index
    %1124 = vector.load %arg4[%c5_397, %c0_398, %c0_399] : memref<6x1x128xf32, #tpu.memory_space<vmem>>, vector<1x1x128xf32>
    %1125 = vector.shape_cast %1124 : vector<1x1x128xf32> to vector<1x128xf32>
    %c0_400 = arith.constant 0 : index
    %c0_401 = arith.constant 0 : index
    %c0_402 = arith.constant 0 : index
    %1126 = vector.load %arg6[%c0_400, %c0_401, %c0_402] : memref<8x8x128xf32, #tpu.memory_space<vmem>>, vector<1x8x128xf32>
    %1127 = vector.shape_cast %1126 : vector<1x8x128xf32> to vector<8x128xf32>
    %1128 = vector.extract_strided_slice %1127 {offsets = [0, 0], sizes = [8, 96], strides = [1, 1]} : vector<8x128xf32> to vector<8x96xf32>
    %1129 = arith.negf %1128 : vector<8x96xf32>
    %1130 = math.exp %1129 : vector<8x96xf32>
    %cst_403 = arith.constant 1.000000e+00 : f32
    %1131 = vector.broadcast %cst_403 : f32 to vector<8x96xf32>
    %1132 = arith.addf %1131, %1130 : vector<8x96xf32>
    %1133 = arith.divf %1131, %1132 : vector<8x96xf32>
    %1134 = vector.extract_strided_slice %1133 {offsets = [0, 0], sizes = [8, 32], strides = [1, 1]} : vector<8x96xf32> to vector<8x32xf32>
    %1135 = vector.extract_strided_slice %1133 {offsets = [0, 64], sizes = [8, 32], strides = [1, 1]} : vector<8x96xf32> to vector<8x32xf32>
    %1136 = vector.extract_strided_slice %1127 {offsets = [0, 96], sizes = [8, 32], strides = [1, 1]} : vector<8x128xf32> to vector<8x32xf32>
    %1137 = math.tanh %1136 : vector<8x32xf32>
    %1138 = arith.mulf %1134, %1137 : vector<8x32xf32>
    %1139 = math.tanh %1138 : vector<8x32xf32>
    %1140 = arith.mulf %1135, %1139 : vector<8x32xf32>
    %1141 = arith.truncf %1140 : vector<8x32xf32> to vector<8x32xbf16>
    %cst_404 = arith.constant dense<0.000000e+00> : vector<8x128xf32>
    %1142 = tpu.matmul %1141, %1123, %cst_404 {dimension_numbers = #tpu.dot_dimension_numbers<[1], [0], [0], [1], [0, 0, 1, 1], [], []>} : vector<8x32xbf16>, vector<32x128xbf16>, vector<8x128xf32> -> vector<8x128xf32>
    %1143 = vector.broadcast %1125 : vector<1x128xf32> to vector<8x128xf32>
    %1144 = arith.addf %1142, %1143 : vector<8x128xf32>
    %c0_405 = arith.constant 0 : index
    %c0_406 = arith.constant 0 : index
    %c0_407 = arith.constant 0 : index
    %1145 = vector.load %arg6[%c0_405, %c0_406, %c0_407] : memref<8x8x128xf32, #tpu.memory_space<vmem>>, vector<1x8x128xf32>
    %1146 = vector.shape_cast %1145 : vector<1x8x128xf32> to vector<8x128xf32>
    %1147 = vector.shape_cast %1144 : vector<8x128xf32> to vector<1x8x128xf32>
    tpu.vector_store %arg6[%c0_405, %c0_406, %c0_407], %1147 {strides = array<i32>} : memref<8x8x128xf32, #tpu.memory_space<vmem>>, vector<1x8x128xf32>,
    %c1_408 = arith.constant 1 : index
    %c0_409 = arith.constant 0 : index
    %c0_410 = arith.constant 0 : index
    %1148 = vector.load %arg6[%c1_408, %c0_409, %c0_410] : memref<8x8x128xf32, #tpu.memory_space<vmem>>, vector<1x8x128xf32>
    %1149 = vector.shape_cast %1148 : vector<1x8x128xf32> to vector<8x128xf32>
    %1150 = arith.truncf %1140 : vector<8x32xf32> to vector<8x32xbf16>
    %cst_411 = arith.constant dense<0.000000e+00> : vector<8x128xf32>
    %1151 = tpu.matmul %1150, %1121, %cst_411 {dimension_numbers = #tpu.dot_dimension_numbers<[1], [0], [0], [1], [0, 0, 1, 1], [], []>} : vector<8x32xbf16>, vector<32x128xbf16>, vector<8x128xf32> -> vector<8x128xf32>
    %1152 = arith.addf %1149, %1151 : vector<8x128xf32>
    %1153 = vector.extract_strided_slice %1152 {offsets = [0, 0], sizes = [8, 96], strides = [1, 1]} : vector<8x128xf32> to vector<8x96xf32>
    %1154 = arith.negf %1153 : vector<8x96xf32>
    %1155 = math.exp %1154 : vector<8x96xf32>
    %cst_412 = arith.constant 1.000000e+00 : f32
    %1156 = vector.broadcast %cst_412 : f32 to vector<8x96xf32>
    %1157 = arith.addf %1156, %1155 : vector<8x96xf32>
    %1158 = arith.divf %1156, %1157 : vector<8x96xf32>
    %1159 = vector.extract_strided_slice %1158 {offsets = [0, 0], sizes = [8, 32], strides = [1, 1]} : vector<8x96xf32> to vector<8x32xf32>
    %1160 = vector.extract_strided_slice %1158 {offsets = [0, 32], sizes = [8, 32], strides = [1, 1]} : vector<8x96xf32> to vector<8x32xf32>
    %1161 = vector.extract_strided_slice %1158 {offsets = [0, 64], sizes = [8, 32], strides = [1, 1]} : vector<8x96xf32> to vector<8x32xf32>
    %1162 = vector.extract_strided_slice %1152 {offsets = [0, 96], sizes = [8, 32], strides = [1, 1]} : vector<8x128xf32> to vector<8x32xf32>
    %1163 = math.tanh %1162 : vector<8x32xf32>
    %1164 = arith.mulf %1160, %1138 : vector<8x32xf32>
    %1165 = arith.mulf %1159, %1163 : vector<8x32xf32>
    %1166 = arith.addf %1164, %1165 : vector<8x32xf32>
    %1167 = math.tanh %1166 : vector<8x32xf32>
    %1168 = arith.mulf %1161, %1167 : vector<8x32xf32>
    %1169 = arith.truncf %1168 : vector<8x32xf32> to vector<8x32xbf16>
    %cst_413 = arith.constant dense<0.000000e+00> : vector<8x128xf32>
    %1170 = tpu.matmul %1169, %1123, %cst_413 {dimension_numbers = #tpu.dot_dimension_numbers<[1], [0], [0], [1], [0, 0, 1, 1], [], []>} : vector<8x32xbf16>, vector<32x128xbf16>, vector<8x128xf32> -> vector<8x128xf32>
    %1171 = vector.broadcast %1125 : vector<1x128xf32> to vector<8x128xf32>
    %1172 = arith.addf %1170, %1171 : vector<8x128xf32>
    %c1_414 = arith.constant 1 : index
    %c0_415 = arith.constant 0 : index
    %c0_416 = arith.constant 0 : index
    %1173 = vector.load %arg6[%c1_414, %c0_415, %c0_416] : memref<8x8x128xf32, #tpu.memory_space<vmem>>, vector<1x8x128xf32>
    %1174 = vector.shape_cast %1173 : vector<1x8x128xf32> to vector<8x128xf32>
    %1175 = vector.shape_cast %1172 : vector<8x128xf32> to vector<1x8x128xf32>
    tpu.vector_store %arg6[%c1_414, %c0_415, %c0_416], %1175 {strides = array<i32>} : memref<8x8x128xf32, #tpu.memory_space<vmem>>, vector<1x8x128xf32>,
    %c2_417 = arith.constant 2 : index
    %c0_418 = arith.constant 0 : index
    %c0_419 = arith.constant 0 : index
    %1176 = vector.load %arg6[%c2_417, %c0_418, %c0_419] : memref<8x8x128xf32, #tpu.memory_space<vmem>>, vector<1x8x128xf32>
    %1177 = vector.shape_cast %1176 : vector<1x8x128xf32> to vector<8x128xf32>
    %1178 = arith.truncf %1168 : vector<8x32xf32> to vector<8x32xbf16>
    %cst_420 = arith.constant dense<0.000000e+00> : vector<8x128xf32>
    %1179 = tpu.matmul %1178, %1121, %cst_420 {dimension_numbers = #tpu.dot_dimension_numbers<[1], [0], [0], [1], [0, 0, 1, 1], [], []>} : vector<8x32xbf16>, vector<32x128xbf16>, vector<8x128xf32> -> vector<8x128xf32>
    %1180 = arith.addf %1177, %1179 : vector<8x128xf32>
    %1181 = vector.extract_strided_slice %1180 {offsets = [0, 0], sizes = [8, 96], strides = [1, 1]} : vector<8x128xf32> to vector<8x96xf32>
    %1182 = arith.negf %1181 : vector<8x96xf32>
    %1183 = math.exp %1182 : vector<8x96xf32>
    %cst_421 = arith.constant 1.000000e+00 : f32
    %1184 = vector.broadcast %cst_421 : f32 to vector<8x96xf32>
    %1185 = arith.addf %1184, %1183 : vector<8x96xf32>
    %1186 = arith.divf %1184, %1185 : vector<8x96xf32>
    %1187 = vector.extract_strided_slice %1186 {offsets = [0, 0], sizes = [8, 32], strides = [1, 1]} : vector<8x96xf32> to vector<8x32xf32>
    %1188 = vector.extract_strided_slice %1186 {offsets = [0, 32], sizes = [8, 32], strides = [1, 1]} : vector<8x96xf32> to vector<8x32xf32>
    %1189 = vector.extract_strided_slice %1186 {offsets = [0, 64], sizes = [8, 32], strides = [1, 1]} : vector<8x96xf32> to vector<8x32xf32>
    %1190 = vector.extract_strided_slice %1180 {offsets = [0, 96], sizes = [8, 32], strides = [1, 1]} : vector<8x128xf32> to vector<8x32xf32>
    %1191 = math.tanh %1190 : vector<8x32xf32>
    %1192 = arith.mulf %1188, %1166 : vector<8x32xf32>
    %1193 = arith.mulf %1187, %1191 : vector<8x32xf32>
    %1194 = arith.addf %1192, %1193 : vector<8x32xf32>
    %1195 = math.tanh %1194 : vector<8x32xf32>
    %1196 = arith.mulf %1189, %1195 : vector<8x32xf32>
    %1197 = arith.truncf %1196 : vector<8x32xf32> to vector<8x32xbf16>
    %cst_422 = arith.constant dense<0.000000e+00> : vector<8x128xf32>
    %1198 = tpu.matmul %1197, %1123, %cst_422 {dimension_numbers = #tpu.dot_dimension_numbers<[1], [0], [0], [1], [0, 0, 1, 1], [], []>} : vector<8x32xbf16>, vector<32x128xbf16>, vector<8x128xf32> -> vector<8x128xf32>
    %1199 = vector.broadcast %1125 : vector<1x128xf32> to vector<8x128xf32>
    %1200 = arith.addf %1198, %1199 : vector<8x128xf32>
    %c2_423 = arith.constant 2 : index
    %c0_424 = arith.constant 0 : index
    %c0_425 = arith.constant 0 : index
    %1201 = vector.load %arg6[%c2_423, %c0_424, %c0_425] : memref<8x8x128xf32, #tpu.memory_space<vmem>>, vector<1x8x128xf32>
    %1202 = vector.shape_cast %1201 : vector<1x8x128xf32> to vector<8x128xf32>
    %1203 = vector.shape_cast %1200 : vector<8x128xf32> to vector<1x8x128xf32>
    tpu.vector_store %arg6[%c2_423, %c0_424, %c0_425], %1203 {strides = array<i32>} : memref<8x8x128xf32, #tpu.memory_space<vmem>>, vector<1x8x128xf32>,
    %c3_426 = arith.constant 3 : index
    %c0_427 = arith.constant 0 : index
    %c0_428 = arith.constant 0 : index
    %1204 = vector.load %arg6[%c3_426, %c0_427, %c0_428] : memref<8x8x128xf32, #tpu.memory_space<vmem>>, vector<1x8x128xf32>
    %1205 = vector.shape_cast %1204 : vector<1x8x128xf32> to vector<8x128xf32>
    %1206 = arith.truncf %1196 : vector<8x32xf32> to vector<8x32xbf16>
    %cst_429 = arith.constant dense<0.000000e+00> : vector<8x128xf32>
    %1207 = tpu.matmul %1206, %1121, %cst_429 {dimension_numbers = #tpu.dot_dimension_numbers<[1], [0], [0], [1], [0, 0, 1, 1], [], []>} : vector<8x32xbf16>, vector<32x128xbf16>, vector<8x128xf32> -> vector<8x128xf32>
    %1208 = arith.addf %1205, %1207 : vector<8x128xf32>
    %1209 = vector.extract_strided_slice %1208 {offsets = [0, 0], sizes = [8, 96], strides = [1, 1]} : vector<8x128xf32> to vector<8x96xf32>
    %1210 = arith.negf %1209 : vector<8x96xf32>
    %1211 = math.exp %1210 : vector<8x96xf32>
    %cst_430 = arith.constant 1.000000e+00 : f32
    %1212 = vector.broadcast %cst_430 : f32 to vector<8x96xf32>
    %1213 = arith.addf %1212, %1211 : vector<8x96xf32>
    %1214 = arith.divf %1212, %1213 : vector<8x96xf32>
    %1215 = vector.extract_strided_slice %1214 {offsets = [0, 0], sizes = [8, 32], strides = [1, 1]} : vector<8x96xf32> to vector<8x32xf32>
    %1216 = vector.extract_strided_slice %1214 {offsets = [0, 32], sizes = [8, 32], strides = [1, 1]} : vector<8x96xf32> to vector<8x32xf32>
    %1217 = vector.extract_strided_slice %1214 {offsets = [0, 64], sizes = [8, 32], strides = [1, 1]} : vector<8x96xf32> to vector<8x32xf32>
    %1218 = vector.extract_strided_slice %1208 {offsets = [0, 96], sizes = [8, 32], strides = [1, 1]} : vector<8x128xf32> to vector<8x32xf32>
    %1219 = math.tanh %1218 : vector<8x32xf32>
    %1220 = arith.mulf %1216, %1194 : vector<8x32xf32>
    %1221 = arith.mulf %1215, %1219 : vector<8x32xf32>
    %1222 = arith.addf %1220, %1221 : vector<8x32xf32>
    %1223 = math.tanh %1222 : vector<8x32xf32>
    %1224 = arith.mulf %1217, %1223 : vector<8x32xf32>
    %1225 = arith.truncf %1224 : vector<8x32xf32> to vector<8x32xbf16>
    %cst_431 = arith.constant dense<0.000000e+00> : vector<8x128xf32>
    %1226 = tpu.matmul %1225, %1123, %cst_431 {dimension_numbers = #tpu.dot_dimension_numbers<[1], [0], [0], [1], [0, 0, 1, 1], [], []>} : vector<8x32xbf16>, vector<32x128xbf16>, vector<8x128xf32> -> vector<8x128xf32>
    %1227 = vector.broadcast %1125 : vector<1x128xf32> to vector<8x128xf32>
    %1228 = arith.addf %1226, %1227 : vector<8x128xf32>
    %c3_432 = arith.constant 3 : index
    %c0_433 = arith.constant 0 : index
    %c0_434 = arith.constant 0 : index
    %1229 = vector.load %arg6[%c3_432, %c0_433, %c0_434] : memref<8x8x128xf32, #tpu.memory_space<vmem>>, vector<1x8x128xf32>
    %1230 = vector.shape_cast %1229 : vector<1x8x128xf32> to vector<8x128xf32>
    %1231 = vector.shape_cast %1228 : vector<8x128xf32> to vector<1x8x128xf32>
    tpu.vector_store %arg6[%c3_432, %c0_433, %c0_434], %1231 {strides = array<i32>} : memref<8x8x128xf32, #tpu.memory_space<vmem>>, vector<1x8x128xf32>,
    %c4_435 = arith.constant 4 : index
    %c0_436 = arith.constant 0 : index
    %c0_437 = arith.constant 0 : index
    %1232 = vector.load %arg6[%c4_435, %c0_436, %c0_437] : memref<8x8x128xf32, #tpu.memory_space<vmem>>, vector<1x8x128xf32>
    %1233 = vector.shape_cast %1232 : vector<1x8x128xf32> to vector<8x128xf32>
    %1234 = arith.truncf %1224 : vector<8x32xf32> to vector<8x32xbf16>
    %cst_438 = arith.constant dense<0.000000e+00> : vector<8x128xf32>
    %1235 = tpu.matmul %1234, %1121, %cst_438 {dimension_numbers = #tpu.dot_dimension_numbers<[1], [0], [0], [1], [0, 0, 1, 1], [], []>} : vector<8x32xbf16>, vector<32x128xbf16>, vector<8x128xf32> -> vector<8x128xf32>
    %1236 = arith.addf %1233, %1235 : vector<8x128xf32>
    %1237 = vector.extract_strided_slice %1236 {offsets = [0, 0], sizes = [8, 96], strides = [1, 1]} : vector<8x128xf32> to vector<8x96xf32>
    %1238 = arith.negf %1237 : vector<8x96xf32>
    %1239 = math.exp %1238 : vector<8x96xf32>
    %cst_439 = arith.constant 1.000000e+00 : f32
    %1240 = vector.broadcast %cst_439 : f32 to vector<8x96xf32>
    %1241 = arith.addf %1240, %1239 : vector<8x96xf32>
    %1242 = arith.divf %1240, %1241 : vector<8x96xf32>
    %1243 = vector.extract_strided_slice %1242 {offsets = [0, 0], sizes = [8, 32], strides = [1, 1]} : vector<8x96xf32> to vector<8x32xf32>
    %1244 = vector.extract_strided_slice %1242 {offsets = [0, 32], sizes = [8, 32], strides = [1, 1]} : vector<8x96xf32> to vector<8x32xf32>
    %1245 = vector.extract_strided_slice %1242 {offsets = [0, 64], sizes = [8, 32], strides = [1, 1]} : vector<8x96xf32> to vector<8x32xf32>
    %1246 = vector.extract_strided_slice %1236 {offsets = [0, 96], sizes = [8, 32], strides = [1, 1]} : vector<8x128xf32> to vector<8x32xf32>
    %1247 = math.tanh %1246 : vector<8x32xf32>
    %1248 = arith.mulf %1244, %1222 : vector<8x32xf32>
    %1249 = arith.mulf %1243, %1247 : vector<8x32xf32>
    %1250 = arith.addf %1248, %1249 : vector<8x32xf32>
    %1251 = math.tanh %1250 : vector<8x32xf32>
    %1252 = arith.mulf %1245, %1251 : vector<8x32xf32>
    %1253 = arith.truncf %1252 : vector<8x32xf32> to vector<8x32xbf16>
    %cst_440 = arith.constant dense<0.000000e+00> : vector<8x128xf32>
    %1254 = tpu.matmul %1253, %1123, %cst_440 {dimension_numbers = #tpu.dot_dimension_numbers<[1], [0], [0], [1], [0, 0, 1, 1], [], []>} : vector<8x32xbf16>, vector<32x128xbf16>, vector<8x128xf32> -> vector<8x128xf32>
    %1255 = vector.broadcast %1125 : vector<1x128xf32> to vector<8x128xf32>
    %1256 = arith.addf %1254, %1255 : vector<8x128xf32>
    %c4_441 = arith.constant 4 : index
    %c0_442 = arith.constant 0 : index
    %c0_443 = arith.constant 0 : index
    %1257 = vector.load %arg6[%c4_441, %c0_442, %c0_443] : memref<8x8x128xf32, #tpu.memory_space<vmem>>, vector<1x8x128xf32>
    %1258 = vector.shape_cast %1257 : vector<1x8x128xf32> to vector<8x128xf32>
    %1259 = vector.shape_cast %1256 : vector<8x128xf32> to vector<1x8x128xf32>
    tpu.vector_store %arg6[%c4_441, %c0_442, %c0_443], %1259 {strides = array<i32>} : memref<8x8x128xf32, #tpu.memory_space<vmem>>, vector<1x8x128xf32>,
    %c5_444 = arith.constant 5 : index
    %c0_445 = arith.constant 0 : index
    %c0_446 = arith.constant 0 : index
    %1260 = vector.load %arg6[%c5_444, %c0_445, %c0_446] : memref<8x8x128xf32, #tpu.memory_space<vmem>>, vector<1x8x128xf32>
    %1261 = vector.shape_cast %1260 : vector<1x8x128xf32> to vector<8x128xf32>
    %1262 = arith.truncf %1252 : vector<8x32xf32> to vector<8x32xbf16>
    %cst_447 = arith.constant dense<0.000000e+00> : vector<8x128xf32>
    %1263 = tpu.matmul %1262, %1121, %cst_447 {dimension_numbers = #tpu.dot_dimension_numbers<[1], [0], [0], [1], [0, 0, 1, 1], [], []>} : vector<8x32xbf16>, vector<32x128xbf16>, vector<8x128xf32> -> vector<8x128xf32>
    %1264 = arith.addf %1261, %1263 : vector<8x128xf32>
    %1265 = vector.extract_strided_slice %1264 {offsets = [0, 0], sizes = [8, 96], strides = [1, 1]} : vector<8x128xf32> to vector<8x96xf32>
    %1266 = arith.negf %1265 : vector<8x96xf32>
    %1267 = math.exp %1266 : vector<8x96xf32>
    %cst_448 = arith.constant 1.000000e+00 : f32
    %1268 = vector.broadcast %cst_448 : f32 to vector<8x96xf32>
    %1269 = arith.addf %1268, %1267 : vector<8x96xf32>
    %1270 = arith.divf %1268, %1269 : vector<8x96xf32>
    %1271 = vector.extract_strided_slice %1270 {offsets = [0, 0], sizes = [8, 32], strides = [1, 1]} : vector<8x96xf32> to vector<8x32xf32>
    %1272 = vector.extract_strided_slice %1270 {offsets = [0, 32], sizes = [8, 32], strides = [1, 1]} : vector<8x96xf32> to vector<8x32xf32>
    %1273 = vector.extract_strided_slice %1270 {offsets = [0, 64], sizes = [8, 32], strides = [1, 1]} : vector<8x96xf32> to vector<8x32xf32>
    %1274 = vector.extract_strided_slice %1264 {offsets = [0, 96], sizes = [8, 32], strides = [1, 1]} : vector<8x128xf32> to vector<8x32xf32>
    %1275 = math.tanh %1274 : vector<8x32xf32>
    %1276 = arith.mulf %1272, %1250 : vector<8x32xf32>
    %1277 = arith.mulf %1271, %1275 : vector<8x32xf32>
    %1278 = arith.addf %1276, %1277 : vector<8x32xf32>
    %1279 = math.tanh %1278 : vector<8x32xf32>
    %1280 = arith.mulf %1273, %1279 : vector<8x32xf32>
    %1281 = arith.truncf %1280 : vector<8x32xf32> to vector<8x32xbf16>
    %cst_449 = arith.constant dense<0.000000e+00> : vector<8x128xf32>
    %1282 = tpu.matmul %1281, %1123, %cst_449 {dimension_numbers = #tpu.dot_dimension_numbers<[1], [0], [0], [1], [0, 0, 1, 1], [], []>} : vector<8x32xbf16>, vector<32x128xbf16>, vector<8x128xf32> -> vector<8x128xf32>
    %1283 = vector.broadcast %1125 : vector<1x128xf32> to vector<8x128xf32>
    %1284 = arith.addf %1282, %1283 : vector<8x128xf32>
    %c5_450 = arith.constant 5 : index
    %c0_451 = arith.constant 0 : index
    %c0_452 = arith.constant 0 : index
    %1285 = vector.load %arg6[%c5_450, %c0_451, %c0_452] : memref<8x8x128xf32, #tpu.memory_space<vmem>>, vector<1x8x128xf32>
    %1286 = vector.shape_cast %1285 : vector<1x8x128xf32> to vector<8x128xf32>
    %1287 = vector.shape_cast %1284 : vector<8x128xf32> to vector<1x8x128xf32>
    tpu.vector_store %arg6[%c5_450, %c0_451, %c0_452], %1287 {strides = array<i32>} : memref<8x8x128xf32, #tpu.memory_space<vmem>>, vector<1x8x128xf32>,
    %c6_453 = arith.constant 6 : index
    %c0_454 = arith.constant 0 : index
    %c0_455 = arith.constant 0 : index
    %1288 = vector.load %arg6[%c6_453, %c0_454, %c0_455] : memref<8x8x128xf32, #tpu.memory_space<vmem>>, vector<1x8x128xf32>
    %1289 = vector.shape_cast %1288 : vector<1x8x128xf32> to vector<8x128xf32>
    %1290 = arith.truncf %1280 : vector<8x32xf32> to vector<8x32xbf16>
    %cst_456 = arith.constant dense<0.000000e+00> : vector<8x128xf32>
    %1291 = tpu.matmul %1290, %1121, %cst_456 {dimension_numbers = #tpu.dot_dimension_numbers<[1], [0], [0], [1], [0, 0, 1, 1], [], []>} : vector<8x32xbf16>, vector<32x128xbf16>, vector<8x128xf32> -> vector<8x128xf32>
    %1292 = arith.addf %1289, %1291 : vector<8x128xf32>
    %1293 = vector.extract_strided_slice %1292 {offsets = [0, 0], sizes = [8, 96], strides = [1, 1]} : vector<8x128xf32> to vector<8x96xf32>
    %1294 = arith.negf %1293 : vector<8x96xf32>
    %1295 = math.exp %1294 : vector<8x96xf32>
    %cst_457 = arith.constant 1.000000e+00 : f32
    %1296 = vector.broadcast %cst_457 : f32 to vector<8x96xf32>
    %1297 = arith.addf %1296, %1295 : vector<8x96xf32>
    %1298 = arith.divf %1296, %1297 : vector<8x96xf32>
    %1299 = vector.extract_strided_slice %1298 {offsets = [0, 0], sizes = [8, 32], strides = [1, 1]} : vector<8x96xf32> to vector<8x32xf32>
    %1300 = vector.extract_strided_slice %1298 {offsets = [0, 32], sizes = [8, 32], strides = [1, 1]} : vector<8x96xf32> to vector<8x32xf32>
    %1301 = vector.extract_strided_slice %1298 {offsets = [0, 64], sizes = [8, 32], strides = [1, 1]} : vector<8x96xf32> to vector<8x32xf32>
    %1302 = vector.extract_strided_slice %1292 {offsets = [0, 96], sizes = [8, 32], strides = [1, 1]} : vector<8x128xf32> to vector<8x32xf32>
    %1303 = math.tanh %1302 : vector<8x32xf32>
    %1304 = arith.mulf %1300, %1278 : vector<8x32xf32>
    %1305 = arith.mulf %1299, %1303 : vector<8x32xf32>
    %1306 = arith.addf %1304, %1305 : vector<8x32xf32>
    %1307 = math.tanh %1306 : vector<8x32xf32>
    %1308 = arith.mulf %1301, %1307 : vector<8x32xf32>
    %1309 = arith.truncf %1308 : vector<8x32xf32> to vector<8x32xbf16>
    %cst_458 = arith.constant dense<0.000000e+00> : vector<8x128xf32>
    %1310 = tpu.matmul %1309, %1123, %cst_458 {dimension_numbers = #tpu.dot_dimension_numbers<[1], [0], [0], [1], [0, 0, 1, 1], [], []>} : vector<8x32xbf16>, vector<32x128xbf16>, vector<8x128xf32> -> vector<8x128xf32>
    %1311 = vector.broadcast %1125 : vector<1x128xf32> to vector<8x128xf32>
    %1312 = arith.addf %1310, %1311 : vector<8x128xf32>
    %c6_459 = arith.constant 6 : index
    %c0_460 = arith.constant 0 : index
    %c0_461 = arith.constant 0 : index
    %1313 = vector.load %arg6[%c6_459, %c0_460, %c0_461] : memref<8x8x128xf32, #tpu.memory_space<vmem>>, vector<1x8x128xf32>
    %1314 = vector.shape_cast %1313 : vector<1x8x128xf32> to vector<8x128xf32>
    %1315 = vector.shape_cast %1312 : vector<8x128xf32> to vector<1x8x128xf32>
    tpu.vector_store %arg6[%c6_459, %c0_460, %c0_461], %1315 {strides = array<i32>} : memref<8x8x128xf32, #tpu.memory_space<vmem>>, vector<1x8x128xf32>,
    %c7_462 = arith.constant 7 : index
    %c0_463 = arith.constant 0 : index
    %c0_464 = arith.constant 0 : index
    %1316 = vector.load %arg6[%c7_462, %c0_463, %c0_464] : memref<8x8x128xf32, #tpu.memory_space<vmem>>, vector<1x8x128xf32>
    %1317 = vector.shape_cast %1316 : vector<1x8x128xf32> to vector<8x128xf32>
    %1318 = arith.truncf %1308 : vector<8x32xf32> to vector<8x32xbf16>
    %cst_465 = arith.constant dense<0.000000e+00> : vector<8x128xf32>
    %1319 = tpu.matmul %1318, %1121, %cst_465 {dimension_numbers = #tpu.dot_dimension_numbers<[1], [0], [0], [1], [0, 0, 1, 1], [], []>} : vector<8x32xbf16>, vector<32x128xbf16>, vector<8x128xf32> -> vector<8x128xf32>
    %1320 = arith.addf %1317, %1319 : vector<8x128xf32>
    %1321 = vector.extract_strided_slice %1320 {offsets = [0, 0], sizes = [8, 96], strides = [1, 1]} : vector<8x128xf32> to vector<8x96xf32>
    %1322 = arith.negf %1321 : vector<8x96xf32>
    %1323 = math.exp %1322 : vector<8x96xf32>
    %cst_466 = arith.constant 1.000000e+00 : f32
    %1324 = vector.broadcast %cst_466 : f32 to vector<8x96xf32>
    %1325 = arith.addf %1324, %1323 : vector<8x96xf32>
    %1326 = arith.divf %1324, %1325 : vector<8x96xf32>
    %1327 = vector.extract_strided_slice %1326 {offsets = [0, 0], sizes = [8, 32], strides = [1, 1]} : vector<8x96xf32> to vector<8x32xf32>
    %1328 = vector.extract_strided_slice %1326 {offsets = [0, 32], sizes = [8, 32], strides = [1, 1]} : vector<8x96xf32> to vector<8x32xf32>
    %1329 = vector.extract_strided_slice %1326 {offsets = [0, 64], sizes = [8, 32], strides = [1, 1]} : vector<8x96xf32> to vector<8x32xf32>
    %1330 = vector.extract_strided_slice %1320 {offsets = [0, 96], sizes = [8, 32], strides = [1, 1]} : vector<8x128xf32> to vector<8x32xf32>
    %1331 = math.tanh %1330 : vector<8x32xf32>
    %1332 = arith.mulf %1328, %1306 : vector<8x32xf32>
    %1333 = arith.mulf %1327, %1331 : vector<8x32xf32>
    %1334 = arith.addf %1332, %1333 : vector<8x32xf32>
    %1335 = math.tanh %1334 : vector<8x32xf32>
    %1336 = arith.mulf %1329, %1335 : vector<8x32xf32>
    %1337 = arith.truncf %1336 : vector<8x32xf32> to vector<8x32xbf16>
    %cst_467 = arith.constant dense<0.000000e+00> : vector<8x128xf32>
    %1338 = tpu.matmul %1337, %1123, %cst_467 {dimension_numbers = #tpu.dot_dimension_numbers<[1], [0], [0], [1], [0, 0, 1, 1], [], []>} : vector<8x32xbf16>, vector<32x128xbf16>, vector<8x128xf32> -> vector<8x128xf32>
    %1339 = vector.broadcast %1125 : vector<1x128xf32> to vector<8x128xf32>
    %1340 = arith.addf %1338, %1339 : vector<8x128xf32>
    %c7_468 = arith.constant 7 : index
    %c0_469 = arith.constant 0 : index
    %c0_470 = arith.constant 0 : index
    %1341 = vector.load %arg6[%c7_468, %c0_469, %c0_470] : memref<8x8x128xf32, #tpu.memory_space<vmem>>, vector<1x8x128xf32>
    %1342 = vector.shape_cast %1341 : vector<1x8x128xf32> to vector<8x128xf32>
    %1343 = vector.shape_cast %1340 : vector<8x128xf32> to vector<1x8x128xf32>
    tpu.vector_store %arg6[%c7_468, %c0_469, %c0_470], %1343 {strides = array<i32>} : memref<8x8x128xf32, #tpu.memory_space<vmem>>, vector<1x8x128xf32>,
    %c6_471 = arith.constant 6 : index
    %c0_472 = arith.constant 0 : index
    %c0_473 = arith.constant 0 : index
    %1344 = vector.load %arg3[%c6_471, %c0_472, %c0_473] : memref<7x32x128xbf16, #tpu.memory_space<vmem>>, vector<1x32x128xbf16>
    %1345 = vector.shape_cast %1344 : vector<1x32x128xbf16> to vector<32x128xbf16>
    %c0_474 = arith.constant 0 : index
    %c0_475 = arith.constant 0 : index
    %c0_476 = arith.constant 0 : index
    %1346 = vector.load %arg6[%c0_474, %c0_475, %c0_476] : memref<8x8x128xf32, #tpu.memory_space<vmem>>, vector<1x8x128xf32>
    %1347 = vector.shape_cast %1346 : vector<1x8x128xf32> to vector<8x128xf32>
    %1348 = vector.extract_strided_slice %1347 {offsets = [0, 0], sizes = [8, 96], strides = [1, 1]} : vector<8x128xf32> to vector<8x96xf32>
    %1349 = arith.negf %1348 : vector<8x96xf32>
    %1350 = math.exp %1349 : vector<8x96xf32>
    %cst_477 = arith.constant 1.000000e+00 : f32
    %1351 = vector.broadcast %cst_477 : f32 to vector<8x96xf32>
    %1352 = arith.addf %1351, %1350 : vector<8x96xf32>
    %1353 = arith.divf %1351, %1352 : vector<8x96xf32>
    %1354 = vector.extract_strided_slice %1353 {offsets = [0, 0], sizes = [8, 32], strides = [1, 1]} : vector<8x96xf32> to vector<8x32xf32>
    %1355 = vector.extract_strided_slice %1353 {offsets = [0, 64], sizes = [8, 32], strides = [1, 1]} : vector<8x96xf32> to vector<8x32xf32>
    %1356 = vector.extract_strided_slice %1347 {offsets = [0, 96], sizes = [8, 32], strides = [1, 1]} : vector<8x128xf32> to vector<8x32xf32>
    %1357 = math.tanh %1356 : vector<8x32xf32>
    %1358 = arith.mulf %1354, %1357 : vector<8x32xf32>
    %1359 = math.tanh %1358 : vector<8x32xf32>
    %1360 = arith.mulf %1355, %1359 : vector<8x32xf32>
    %c1_478 = arith.constant 1 : index
    %c0_479 = arith.constant 0 : index
    %c0_480 = arith.constant 0 : index
    %1361 = vector.load %arg6[%c1_478, %c0_479, %c0_480] : memref<8x8x128xf32, #tpu.memory_space<vmem>>, vector<1x8x128xf32>
    %1362 = vector.shape_cast %1361 : vector<1x8x128xf32> to vector<8x128xf32>
    %1363 = arith.truncf %1360 : vector<8x32xf32> to vector<8x32xbf16>
    %cst_481 = arith.constant dense<0.000000e+00> : vector<8x128xf32>
    %1364 = tpu.matmul %1363, %1345, %cst_481 {dimension_numbers = #tpu.dot_dimension_numbers<[1], [0], [0], [1], [0, 0, 1, 1], [], []>} : vector<8x32xbf16>, vector<32x128xbf16>, vector<8x128xf32> -> vector<8x128xf32>
    %1365 = arith.addf %1362, %1364 : vector<8x128xf32>
    %1366 = vector.extract_strided_slice %1365 {offsets = [0, 0], sizes = [8, 96], strides = [1, 1]} : vector<8x128xf32> to vector<8x96xf32>
    %1367 = arith.negf %1366 : vector<8x96xf32>
    %1368 = math.exp %1367 : vector<8x96xf32>
    %cst_482 = arith.constant 1.000000e+00 : f32
    %1369 = vector.broadcast %cst_482 : f32 to vector<8x96xf32>
    %1370 = arith.addf %1369, %1368 : vector<8x96xf32>
    %1371 = arith.divf %1369, %1370 : vector<8x96xf32>
    %1372 = vector.extract_strided_slice %1371 {offsets = [0, 0], sizes = [8, 32], strides = [1, 1]} : vector<8x96xf32> to vector<8x32xf32>
    %1373 = vector.extract_strided_slice %1371 {offsets = [0, 32], sizes = [8, 32], strides = [1, 1]} : vector<8x96xf32> to vector<8x32xf32>
    %1374 = vector.extract_strided_slice %1371 {offsets = [0, 64], sizes = [8, 32], strides = [1, 1]} : vector<8x96xf32> to vector<8x32xf32>
    %1375 = vector.extract_strided_slice %1365 {offsets = [0, 96], sizes = [8, 32], strides = [1, 1]} : vector<8x128xf32> to vector<8x32xf32>
    %1376 = math.tanh %1375 : vector<8x32xf32>
    %1377 = arith.mulf %1373, %1358 : vector<8x32xf32>
    %1378 = arith.mulf %1372, %1376 : vector<8x32xf32>
    %1379 = arith.addf %1377, %1378 : vector<8x32xf32>
    %1380 = math.tanh %1379 : vector<8x32xf32>
    %1381 = arith.mulf %1374, %1380 : vector<8x32xf32>
    %c2_483 = arith.constant 2 : index
    %c0_484 = arith.constant 0 : index
    %c0_485 = arith.constant 0 : index
    %1382 = vector.load %arg6[%c2_483, %c0_484, %c0_485] : memref<8x8x128xf32, #tpu.memory_space<vmem>>, vector<1x8x128xf32>
    %1383 = vector.shape_cast %1382 : vector<1x8x128xf32> to vector<8x128xf32>
    %1384 = arith.truncf %1381 : vector<8x32xf32> to vector<8x32xbf16>
    %cst_486 = arith.constant dense<0.000000e+00> : vector<8x128xf32>
    %1385 = tpu.matmul %1384, %1345, %cst_486 {dimension_numbers = #tpu.dot_dimension_numbers<[1], [0], [0], [1], [0, 0, 1, 1], [], []>} : vector<8x32xbf16>, vector<32x128xbf16>, vector<8x128xf32> -> vector<8x128xf32>
    %1386 = arith.addf %1383, %1385 : vector<8x128xf32>
    %1387 = vector.extract_strided_slice %1386 {offsets = [0, 0], sizes = [8, 96], strides = [1, 1]} : vector<8x128xf32> to vector<8x96xf32>
    %1388 = arith.negf %1387 : vector<8x96xf32>
    %1389 = math.exp %1388 : vector<8x96xf32>
    %cst_487 = arith.constant 1.000000e+00 : f32
    %1390 = vector.broadcast %cst_487 : f32 to vector<8x96xf32>
    %1391 = arith.addf %1390, %1389 : vector<8x96xf32>
    %1392 = arith.divf %1390, %1391 : vector<8x96xf32>
    %1393 = vector.extract_strided_slice %1392 {offsets = [0, 0], sizes = [8, 32], strides = [1, 1]} : vector<8x96xf32> to vector<8x32xf32>
    %1394 = vector.extract_strided_slice %1392 {offsets = [0, 32], sizes = [8, 32], strides = [1, 1]} : vector<8x96xf32> to vector<8x32xf32>
    %1395 = vector.extract_strided_slice %1392 {offsets = [0, 64], sizes = [8, 32], strides = [1, 1]} : vector<8x96xf32> to vector<8x32xf32>
    %1396 = vector.extract_strided_slice %1386 {offsets = [0, 96], sizes = [8, 32], strides = [1, 1]} : vector<8x128xf32> to vector<8x32xf32>
    %1397 = math.tanh %1396 : vector<8x32xf32>
    %1398 = arith.mulf %1394, %1379 : vector<8x32xf32>
    %1399 = arith.mulf %1393, %1397 : vector<8x32xf32>
    %1400 = arith.addf %1398, %1399 : vector<8x32xf32>
    %1401 = math.tanh %1400 : vector<8x32xf32>
    %1402 = arith.mulf %1395, %1401 : vector<8x32xf32>
    %c3_488 = arith.constant 3 : index
    %c0_489 = arith.constant 0 : index
    %c0_490 = arith.constant 0 : index
    %1403 = vector.load %arg6[%c3_488, %c0_489, %c0_490] : memref<8x8x128xf32, #tpu.memory_space<vmem>>, vector<1x8x128xf32>
    %1404 = vector.shape_cast %1403 : vector<1x8x128xf32> to vector<8x128xf32>
    %1405 = arith.truncf %1402 : vector<8x32xf32> to vector<8x32xbf16>
    %cst_491 = arith.constant dense<0.000000e+00> : vector<8x128xf32>
    %1406 = tpu.matmul %1405, %1345, %cst_491 {dimension_numbers = #tpu.dot_dimension_numbers<[1], [0], [0], [1], [0, 0, 1, 1], [], []>} : vector<8x32xbf16>, vector<32x128xbf16>, vector<8x128xf32> -> vector<8x128xf32>
    %1407 = arith.addf %1404, %1406 : vector<8x128xf32>
    %1408 = vector.extract_strided_slice %1407 {offsets = [0, 0], sizes = [8, 96], strides = [1, 1]} : vector<8x128xf32> to vector<8x96xf32>
    %1409 = arith.negf %1408 : vector<8x96xf32>
    %1410 = math.exp %1409 : vector<8x96xf32>
    %cst_492 = arith.constant 1.000000e+00 : f32
    %1411 = vector.broadcast %cst_492 : f32 to vector<8x96xf32>
    %1412 = arith.addf %1411, %1410 : vector<8x96xf32>
    %1413 = arith.divf %1411, %1412 : vector<8x96xf32>
    %1414 = vector.extract_strided_slice %1413 {offsets = [0, 0], sizes = [8, 32], strides = [1, 1]} : vector<8x96xf32> to vector<8x32xf32>
    %1415 = vector.extract_strided_slice %1413 {offsets = [0, 32], sizes = [8, 32], strides = [1, 1]} : vector<8x96xf32> to vector<8x32xf32>
    %1416 = vector.extract_strided_slice %1413 {offsets = [0, 64], sizes = [8, 32], strides = [1, 1]} : vector<8x96xf32> to vector<8x32xf32>
    %1417 = vector.extract_strided_slice %1407 {offsets = [0, 96], sizes = [8, 32], strides = [1, 1]} : vector<8x128xf32> to vector<8x32xf32>
    %1418 = math.tanh %1417 : vector<8x32xf32>
    %1419 = arith.mulf %1415, %1400 : vector<8x32xf32>
    %1420 = arith.mulf %1414, %1418 : vector<8x32xf32>
    %1421 = arith.addf %1419, %1420 : vector<8x32xf32>
    %1422 = math.tanh %1421 : vector<8x32xf32>
    %1423 = arith.mulf %1416, %1422 : vector<8x32xf32>
    %c4_493 = arith.constant 4 : index
    %c0_494 = arith.constant 0 : index
    %c0_495 = arith.constant 0 : index
    %1424 = vector.load %arg6[%c4_493, %c0_494, %c0_495] : memref<8x8x128xf32, #tpu.memory_space<vmem>>, vector<1x8x128xf32>
    %1425 = vector.shape_cast %1424 : vector<1x8x128xf32> to vector<8x128xf32>
    %1426 = arith.truncf %1423 : vector<8x32xf32> to vector<8x32xbf16>
    %cst_496 = arith.constant dense<0.000000e+00> : vector<8x128xf32>
    %1427 = tpu.matmul %1426, %1345, %cst_496 {dimension_numbers = #tpu.dot_dimension_numbers<[1], [0], [0], [1], [0, 0, 1, 1], [], []>} : vector<8x32xbf16>, vector<32x128xbf16>, vector<8x128xf32> -> vector<8x128xf32>
    %1428 = arith.addf %1425, %1427 : vector<8x128xf32>
    %1429 = vector.extract_strided_slice %1428 {offsets = [0, 0], sizes = [8, 96], strides = [1, 1]} : vector<8x128xf32> to vector<8x96xf32>
    %1430 = arith.negf %1429 : vector<8x96xf32>
    %1431 = math.exp %1430 : vector<8x96xf32>
    %cst_497 = arith.constant 1.000000e+00 : f32
    %1432 = vector.broadcast %cst_497 : f32 to vector<8x96xf32>
    %1433 = arith.addf %1432, %1431 : vector<8x96xf32>
    %1434 = arith.divf %1432, %1433 : vector<8x96xf32>
    %1435 = vector.extract_strided_slice %1434 {offsets = [0, 0], sizes = [8, 32], strides = [1, 1]} : vector<8x96xf32> to vector<8x32xf32>
    %1436 = vector.extract_strided_slice %1434 {offsets = [0, 32], sizes = [8, 32], strides = [1, 1]} : vector<8x96xf32> to vector<8x32xf32>
    %1437 = vector.extract_strided_slice %1434 {offsets = [0, 64], sizes = [8, 32], strides = [1, 1]} : vector<8x96xf32> to vector<8x32xf32>
    %1438 = vector.extract_strided_slice %1428 {offsets = [0, 96], sizes = [8, 32], strides = [1, 1]} : vector<8x128xf32> to vector<8x32xf32>
    %1439 = math.tanh %1438 : vector<8x32xf32>
    %1440 = arith.mulf %1436, %1421 : vector<8x32xf32>
    %1441 = arith.mulf %1435, %1439 : vector<8x32xf32>
    %1442 = arith.addf %1440, %1441 : vector<8x32xf32>
    %1443 = math.tanh %1442 : vector<8x32xf32>
    %1444 = arith.mulf %1437, %1443 : vector<8x32xf32>
    %c5_498 = arith.constant 5 : index
    %c0_499 = arith.constant 0 : index
    %c0_500 = arith.constant 0 : index
    %1445 = vector.load %arg6[%c5_498, %c0_499, %c0_500] : memref<8x8x128xf32, #tpu.memory_space<vmem>>, vector<1x8x128xf32>
    %1446 = vector.shape_cast %1445 : vector<1x8x128xf32> to vector<8x128xf32>
    %1447 = arith.truncf %1444 : vector<8x32xf32> to vector<8x32xbf16>
    %cst_501 = arith.constant dense<0.000000e+00> : vector<8x128xf32>
    %1448 = tpu.matmul %1447, %1345, %cst_501 {dimension_numbers = #tpu.dot_dimension_numbers<[1], [0], [0], [1], [0, 0, 1, 1], [], []>} : vector<8x32xbf16>, vector<32x128xbf16>, vector<8x128xf32> -> vector<8x128xf32>
    %1449 = arith.addf %1446, %1448 : vector<8x128xf32>
    %1450 = vector.extract_strided_slice %1449 {offsets = [0, 0], sizes = [8, 96], strides = [1, 1]} : vector<8x128xf32> to vector<8x96xf32>
    %1451 = arith.negf %1450 : vector<8x96xf32>
    %1452 = math.exp %1451 : vector<8x96xf32>
    %cst_502 = arith.constant 1.000000e+00 : f32
    %1453 = vector.broadcast %cst_502 : f32 to vector<8x96xf32>
    %1454 = arith.addf %1453, %1452 : vector<8x96xf32>
    %1455 = arith.divf %1453, %1454 : vector<8x96xf32>
    %1456 = vector.extract_strided_slice %1455 {offsets = [0, 0], sizes = [8, 32], strides = [1, 1]} : vector<8x96xf32> to vector<8x32xf32>
    %1457 = vector.extract_strided_slice %1455 {offsets = [0, 32], sizes = [8, 32], strides = [1, 1]} : vector<8x96xf32> to vector<8x32xf32>
    %1458 = vector.extract_strided_slice %1455 {offsets = [0, 64], sizes = [8, 32], strides = [1, 1]} : vector<8x96xf32> to vector<8x32xf32>
    %1459 = vector.extract_strided_slice %1449 {offsets = [0, 96], sizes = [8, 32], strides = [1, 1]} : vector<8x128xf32> to vector<8x32xf32>
    %1460 = math.tanh %1459 : vector<8x32xf32>
    %1461 = arith.mulf %1457, %1442 : vector<8x32xf32>
    %1462 = arith.mulf %1456, %1460 : vector<8x32xf32>
    %1463 = arith.addf %1461, %1462 : vector<8x32xf32>
    %1464 = math.tanh %1463 : vector<8x32xf32>
    %1465 = arith.mulf %1458, %1464 : vector<8x32xf32>
    %c6_503 = arith.constant 6 : index
    %c0_504 = arith.constant 0 : index
    %c0_505 = arith.constant 0 : index
    %1466 = vector.load %arg6[%c6_503, %c0_504, %c0_505] : memref<8x8x128xf32, #tpu.memory_space<vmem>>, vector<1x8x128xf32>
    %1467 = vector.shape_cast %1466 : vector<1x8x128xf32> to vector<8x128xf32>
    %1468 = arith.truncf %1465 : vector<8x32xf32> to vector<8x32xbf16>
    %cst_506 = arith.constant dense<0.000000e+00> : vector<8x128xf32>
    %1469 = tpu.matmul %1468, %1345, %cst_506 {dimension_numbers = #tpu.dot_dimension_numbers<[1], [0], [0], [1], [0, 0, 1, 1], [], []>} : vector<8x32xbf16>, vector<32x128xbf16>, vector<8x128xf32> -> vector<8x128xf32>
    %1470 = arith.addf %1467, %1469 : vector<8x128xf32>
    %1471 = vector.extract_strided_slice %1470 {offsets = [0, 0], sizes = [8, 96], strides = [1, 1]} : vector<8x128xf32> to vector<8x96xf32>
    %1472 = arith.negf %1471 : vector<8x96xf32>
    %1473 = math.exp %1472 : vector<8x96xf32>
    %cst_507 = arith.constant 1.000000e+00 : f32
    %1474 = vector.broadcast %cst_507 : f32 to vector<8x96xf32>
    %1475 = arith.addf %1474, %1473 : vector<8x96xf32>
    %1476 = arith.divf %1474, %1475 : vector<8x96xf32>
    %1477 = vector.extract_strided_slice %1476 {offsets = [0, 0], sizes = [8, 32], strides = [1, 1]} : vector<8x96xf32> to vector<8x32xf32>
    %1478 = vector.extract_strided_slice %1476 {offsets = [0, 32], sizes = [8, 32], strides = [1, 1]} : vector<8x96xf32> to vector<8x32xf32>
    %1479 = vector.extract_strided_slice %1476 {offsets = [0, 64], sizes = [8, 32], strides = [1, 1]} : vector<8x96xf32> to vector<8x32xf32>
    %1480 = vector.extract_strided_slice %1470 {offsets = [0, 96], sizes = [8, 32], strides = [1, 1]} : vector<8x128xf32> to vector<8x32xf32>
    %1481 = math.tanh %1480 : vector<8x32xf32>
    %1482 = arith.mulf %1478, %1463 : vector<8x32xf32>
    %1483 = arith.mulf %1477, %1481 : vector<8x32xf32>
    %1484 = arith.addf %1482, %1483 : vector<8x32xf32>
    %1485 = math.tanh %1484 : vector<8x32xf32>
    %1486 = arith.mulf %1479, %1485 : vector<8x32xf32>
    %c7_508 = arith.constant 7 : index
    %c0_509 = arith.constant 0 : index
    %c0_510 = arith.constant 0 : index
    %1487 = vector.load %arg6[%c7_508, %c0_509, %c0_510] : memref<8x8x128xf32, #tpu.memory_space<vmem>>, vector<1x8x128xf32>
    %1488 = vector.shape_cast %1487 : vector<1x8x128xf32> to vector<8x128xf32>
    %1489 = arith.truncf %1486 : vector<8x32xf32> to vector<8x32xbf16>
    %cst_511 = arith.constant dense<0.000000e+00> : vector<8x128xf32>
    %1490 = tpu.matmul %1489, %1345, %cst_511 {dimension_numbers = #tpu.dot_dimension_numbers<[1], [0], [0], [1], [0, 0, 1, 1], [], []>} : vector<8x32xbf16>, vector<32x128xbf16>, vector<8x128xf32> -> vector<8x128xf32>
    %1491 = arith.addf %1488, %1490 : vector<8x128xf32>
    %1492 = vector.extract_strided_slice %1491 {offsets = [0, 0], sizes = [8, 96], strides = [1, 1]} : vector<8x128xf32> to vector<8x96xf32>
    %1493 = arith.negf %1492 : vector<8x96xf32>
    %1494 = math.exp %1493 : vector<8x96xf32>
    %cst_512 = arith.constant 1.000000e+00 : f32
    %1495 = vector.broadcast %cst_512 : f32 to vector<8x96xf32>
    %1496 = arith.addf %1495, %1494 : vector<8x96xf32>
    %1497 = arith.divf %1495, %1496 : vector<8x96xf32>
    %1498 = vector.extract_strided_slice %1497 {offsets = [0, 0], sizes = [8, 32], strides = [1, 1]} : vector<8x96xf32> to vector<8x32xf32>
    %1499 = vector.extract_strided_slice %1497 {offsets = [0, 32], sizes = [8, 32], strides = [1, 1]} : vector<8x96xf32> to vector<8x32xf32>
    %1500 = vector.extract_strided_slice %1497 {offsets = [0, 64], sizes = [8, 32], strides = [1, 1]} : vector<8x96xf32> to vector<8x32xf32>
    %1501 = vector.extract_strided_slice %1491 {offsets = [0, 96], sizes = [8, 32], strides = [1, 1]} : vector<8x128xf32> to vector<8x32xf32>
    %1502 = math.tanh %1501 : vector<8x32xf32>
    %1503 = arith.mulf %1499, %1484 : vector<8x32xf32>
    %1504 = arith.mulf %1498, %1502 : vector<8x32xf32>
    %1505 = arith.addf %1503, %1504 : vector<8x32xf32>
    %1506 = math.tanh %1505 : vector<8x32xf32>
    %1507 = arith.mulf %1500, %1506 : vector<8x32xf32>
    %c0_513 = arith.constant 0 : index
    %c0_514 = arith.constant 0 : index
    %1508 = vector.load %arg5[%c0_513, %c0_514] : memref<8x32xf32, #tpu.memory_space<vmem>>, vector<8x32xf32>
    tpu.vector_store %arg5[%c0_513, %c0_514], %1507 {strides = array<i32>} : memref<8x32xf32, #tpu.memory_space<vmem>>, vector<8x32xf32>,
    return
  }
  func.func @transform_0(%arg0: i32) -> (i32, i32, i32) {
    %c0_i32 = arith.constant 0 : i32
    %c0_i32_0 = arith.constant 0 : i32
    %c0_i32_1 = arith.constant 0 : i32
    return %c0_i32, %arg0, %c0_i32_0 : i32, i32, i32
  }
  func.func @transform_1(%arg0: i32) -> (i32, i32, i32) {
    %c0_i32 = arith.constant 0 : i32
    %c0_i32_0 = arith.constant 0 : i32
    %c0_i32_1 = arith.constant 0 : i32
    %c0_i32_2 = arith.constant 0 : i32
    return %c0_i32, %c0_i32_0, %c0_i32_1 : i32, i32, i32
  }
  func.func @transform_2(%arg0: i32) -> (i32, i32, i32) {
    %c0_i32 = arith.constant 0 : i32
    %c0_i32_0 = arith.constant 0 : i32
    %c0_i32_1 = arith.constant 0 : i32
    %c0_i32_2 = arith.constant 0 : i32
    return %c0_i32, %c0_i32_0, %c0_i32_1 : i32, i32, i32
  }
  func.func @transform_3(%arg0: i32) -> (i32, i32, i32) {
    %c0_i32 = arith.constant 0 : i32
    %c0_i32_0 = arith.constant 0 : i32
    %c0_i32_1 = arith.constant 0 : i32
    %c0_i32_2 = arith.constant 0 : i32
    return %c0_i32, %c0_i32_0, %c0_i32_1 : i32, i32, i32
  }
  func.func @transform_4(%arg0: i32) -> (i32, i32) {
    %c0_i32 = arith.constant 0 : i32
    %c0_i32_0 = arith.constant 0 : i32
    return %arg0, %c0_i32 : i32, i32
  }
}

</mosaic_0001>

<llo_original>
// kernel: lstm_forward.1
$region0: #{lstm_forward.1}
  #allocation0 [shape = 'u32[]', space=smem, size = 0x4, offset = 0x4, fixed_abs, tag = 'smem constant byte address 0x4 - core index']
  #allocation1 [shape = 'u32[144,128]{1,0:T(1,128)}', space=vmem, size = 0x12000, scoped, tag = 'internal scratch']
  #allocation2 [shape = 'f32[8,8,128]{2,1,0:T(8,128)}', space=vmem, size = 0x8000, scoped, tag = 'scratch operand']
  %s0 = inlined_call_operand.vmem [shape: f32[8,8,128], index: 0, kind: input, shape index: {}]
  %s1 = inlined_call_operand.vmem [shape: bf16[6,32,128], index: 1, kind: input, shape index: {}]
  %s2 = inlined_call_operand.vmem [shape: bf16[7,32,128], index: 2, kind: input, shape index: {}]
  %s3 = inlined_call_operand.vmem [shape: f32[6,1,128], index: 3, kind: input, shape index: {}]
  %s4 = inlined_call_operand.vmem [shape: f32[8,32], index: 4, kind: output, shape index: {}]
  %s5 = sld [smem:[#allocation0]]
  $region26: #{lstm_forward.1} parent=0
    _
  %s7 = ssub.s32 1, %s5
  %s8 = scalar_select 0, %s7, %s5
  // Predicated region
  $region2: #{lstm_forward.1} parent=0 // pred_check
    _
  $region3: #{lstm_forward.1} parent=0 // pred_check_branch
    %10 = sbr.rel (0) target = $region5
  $region4: #{lstm_forward.1} parent=0 // pred_region
    _
  $region5: #{lstm_forward.1} parent=0 // pred_fallthru
    _
  // Predicated region
  $region6: #{lstm_forward.1} parent=0 // pred_check
    _
  $region7: #{lstm_forward.1} parent=0 // pred_check_branch
    %12 = sbr.rel (0) target = $region9
  $region8: #{lstm_forward.1} parent=0 // pred_region
    _
  $region9: #{lstm_forward.1} parent=0 // pred_fallthru
    _
  // Predicated region
  $region10: #{lstm_forward.1} parent=0 // pred_check
    _
  $region11: #{lstm_forward.1} parent=0 // pred_check_branch
    %14 = sbr.rel (0) target = $region13
  $region12: #{lstm_forward.1} parent=0 // pred_region
    _
  $region13: #{lstm_forward.1} parent=0 // pred_fallthru
    _
  // Predicated region
  $region14: #{lstm_forward.1} parent=0 // pred_check
    _
  $region15: #{lstm_forward.1} parent=0 // pred_check_branch
    %16 = sbr.rel (0) target = $region17
  $region16: #{lstm_forward.1} parent=0 // pred_region
    _
  $region17: #{lstm_forward.1} parent=0 // pred_fallthru
    _
  %v18 = vld [vmem:[%s2] sm:$0xf]
  %v19 = vld [vmem:[%s2 + $0x4] sm:$0xf]
  %v20 = vld [vmem:[%s2 + $0x8] sm:$0xf]
  %v21 = vld [vmem:[%s2 + $0xc] sm:$0xf]
  %v22 = vld [vmem:[%s1] sm:$0xf]
  %v23 = vld [vmem:[%s1 + $0x4] sm:$0xf]
  %v24 = vld [vmem:[%s1 + $0x8] sm:$0xf]
  %v25 = vld [vmem:[%s1 + $0xc] sm:$0xf]
  %v26 = vld [vmem:[%s3] sm:$0x1]
  %v27 = vld [vmem:[%s0] sm:$0xff]
  %v28 = vxor.u32 %v27, 2147483648
  %v29 = vmul.f32 %v28, 1.442695
  %v30 = vpow.pop %v29
  %v31 = vadd.f32 %v30, 1.0
  %v32 = vrcp.pop %v31
  %v33 = vmul.f32 1.0, %v32
  %v34 = vtanh.pop %v27
  %36 = vrot.lane.b32.xlu0 %v34, 32
  %v37 = vpop.permute.xlu0 %36
  %v39 = vmul.f32 %v33, %v37
  %v40 = vtanh.pop %v39
  %42 = vrot.lane.b32.xlu0 %v40, 64
  %v43 = vpop.permute.xlu0 %42
  %v45 = vmul.f32 %v33, %v43
  %v46 = vpack.c.bf16 %v45, %v45
  %v48 = vlaneseq
  %v49 = vshrl.u32 %v48, 7
  %v50 = vsub.s32 0, %v49
  %v51 = vrot.slane %v26, %v50
  %54 = vrot.lane.b32.xlu0 %v46, 64
  %v55 = vpop.permute.xlu0 %54
  %v60 = vunpack.c.l.b16 %v22
  %v61 = vunpack.c.l.b16 %v23
  %v62 = vunpack.c.l.b16 %v24
  %v63 = vunpack.c.l.b16 %v25
  %v64 = vpack.c.b16 %v61, %v60
  %v65 = vpack.c.b16 %v63, %v62
  %vm68 = vcmask 261120
  %v70 = vsel %vm68, %v55, 0
  %72 = vmatprep.subr.bf16.mxu0 0
  %73 = vmatpush1.bf16.msra.mxu0 %v64
  %74 = vmatprep.subr.bf16.mxu0 0
  %75 = vmatpush1.bf16.msra.mxu0 %v65
  %76 = vmatprep.subr.bf16.mxu0 0
  %77 = vmatpush1.bf16.msra.mxu0 0
  %78 = vmatprep.subr.bf16.mxu0 0
  %79 = vmatpush1.bf16.msra.mxu0 0
  %80 = vmatprep.subr.bf16.mxu0 0
  %81 = vmatpush1.bf16.msra.mxu0 0
  %82 = vmatprep.subr.bf16.mxu0 0
  %83 = vmatpush1.bf16.msra.mxu0 0
  %84 = vmatprep.subr.bf16.mxu0 0
  %85 = vmatpush1.bf16.msra.mxu0 0
  %86 = vmatprep.subr.bf16.mxu0 0
  %87 = vmatpush1.bf16.msra.mxu0 0
  %88 = vmatprep.subr.bf16.mxu0 0
  %89 = vmatpush1.bf16.msra.mxu0 0
  %90 = vmatprep.subr.bf16.mxu0 0
  %91 = vmatpush1.bf16.msra.mxu0 0
  %92 = vmatprep.subr.bf16.mxu0 0
  %93 = vmatpush1.bf16.msra.mxu0 0
  %94 = vmatprep.subr.bf16.mxu0 0
  %95 = vmatpush1.bf16.msra.mxu0 0
  %96 = vmatprep.subr.bf16.mxu0 0
  %97 = vmatpush1.bf16.msra.mxu0 0
  %98 = vmatprep.subr.bf16.mxu0 0
  %99 = vmatpush1.bf16.msra.mxu0 0
  %100 = vmatprep.subr.bf16.mxu0 0
  %101 = vmatpush1.bf16.msra.mxu0 0
  %102 = vmatprep.subr.bf16.mxu0 0
  %103 = vmatpush1.bf16.msra.mxu0 0
  %104 = vmatprep.mubr.bf16.mxu0 0
  %105 = vmatmul.mubr.bf16.gmra.mrb[0].mxu0 %v70
  %v106 = vpop.f32.mrb[0].mxu0
  %v107 = vadd.f32 %v51, %v106
  %v108 = vpop.f32.mrb[0].mxu0
  %v109 = vpop.f32.mrb[0].mxu0
  %v110 = vpop.f32.mrb[0].mxu0
  %111 = vdwg.mxu0
  %112 = vst [vmem:[#allocation2] sm:$0xff] %v107
  %s113 = scalar_lea.vmem %s0, 8
  %v114 = vld [vmem:[%s113] sm:$0xff]
  %v119 = vunpack.c.l.b16 %v18
  %v120 = vunpack.c.l.b16 %v19
  %v121 = vunpack.c.l.b16 %v20
  %v122 = vunpack.c.l.b16 %v21
  %v123 = vpack.c.b16 %v120, %v119
  %v124 = vpack.c.b16 %v122, %v121
  %127 = vmatprep.subr.bf16.mxu0 0
  %128 = vmatpush1.bf16.msra.mxu0 %v123
  %129 = vmatprep.subr.bf16.mxu0 0
  %130 = vmatpush1.bf16.msra.mxu0 %v124
  %131 = vmatprep.subr.bf16.mxu0 0
  %132 = vmatpush1.bf16.msra.mxu0 0
  %133 = vmatprep.subr.bf16.mxu0 0
  %134 = vmatpush1.bf16.msra.mxu0 0
  %135 = vmatprep.subr.bf16.mxu0 0
  %136 = vmatpush1.bf16.msra.mxu0 0
  %137 = vmatprep.subr.bf16.mxu0 0
  %138 = vmatpush1.bf16.msra.mxu0 0
  %139 = vmatprep.subr.bf16.mxu0 0
  %140 = vmatpush1.bf16.msra.mxu0 0
  %141 = vmatprep.subr.bf16.mxu0 0
  %142 = vmatpush1.bf16.msra.mxu0 0
  %143 = vmatprep.subr.bf16.mxu0 0
  %144 = vmatpush1.bf16.msra.mxu0 0
  %145 = vmatprep.subr.bf16.mxu0 0
  %146 = vmatpush1.bf16.msra.mxu0 0
  %147 = vmatprep.subr.bf16.mxu0 0
  %148 = vmatpush1.bf16.msra.mxu0 0
  %149 = vmatprep.subr.bf16.mxu0 0
  %150 = vmatpush1.bf16.msra.mxu0 0
  %151 = vmatprep.subr.bf16.mxu0 0
  %152 = vmatpush1.bf16.msra.mxu0 0
  %153 = vmatprep.subr.bf16.mxu0 0
  %154 = vmatpush1.bf16.msra.mxu0 0
  %155 = vmatprep.subr.bf16.mxu0 0
  %156 = vmatpush1.bf16.msra.mxu0 0
  %157 = vmatprep.subr.bf16.mxu0 0
  %158 = vmatpush1.bf16.msra.mxu0 0
  %159 = vmatprep.mubr.bf16.mxu0 0
  %160 = vmatmul.mubr.bf16.gmra.mrb[0].mxu0 %v70
  %v161 = vpop.f32.mrb[0].mxu0
  %v162 = vadd.f32 0.0, %v161
  %v163 = vpop.f32.mrb[0].mxu0
  %v164 = vpop.f32.mrb[0].mxu0
  %v165 = vpop.f32.mrb[0].mxu0
  %166 = vdwg.mxu0
  %v167 = vadd.f32 %v114, %v162
  %v168 = vxor.u32 %v167, 2147483648
  %v169 = vmul.f32 %v168, 1.442695
  %v170 = vpow.pop %v169
  %v171 = vadd.f32 %v170, 1.0
  %v172 = vrcp.pop %v171
  %v173 = vmul.f32 1.0, %v172
  %v174 = vtanh.pop %v167
  %176 = vrot.lane.b32.xlu0 %v39, 32
  %v177 = vpop.permute.xlu0 %176
  %v179 = vmul.f32 %v173, %v177
  %181 = vrot.lane.b32.xlu0 %v174, 32
  %v182 = vpop.permute.xlu0 %181
  %v184 = vmul.f32 %v173, %v182
  %186 = vrot.lane.b32.xlu0 %v184, 32
  %v187 = vpop.permute.xlu0 %186
  %v189 = vadd.f32 %v179, %v187
  %v190 = vtanh.pop %v189
  %192 = vrot.lane.b32.xlu0 %v190, 32
  %v193 = vpop.permute.xlu0 %192
  %v195 = vmul.f32 %v173, %v193
  %v196 = vpack.c.bf16 %v195, %v195
  %198 = vrot.lane.b32.xlu0 %v196, 64
  %v199 = vpop.permute.xlu0 %198
  %v201 = vsel %vm68, %v199, 0
  %203 = vmatprep.subr.bf16.mxu0 0
  %204 = vmatpush1.bf16.msra.mxu0 %v64
  %205 = vmatprep.subr.bf16.mxu0 0
  %206 = vmatpush1.bf16.msra.mxu0 %v65
  %207 = vmatprep.subr.bf16.mxu0 0
  %208 = vmatpush1.bf16.msra.mxu0 0
  %209 = vmatprep.subr.bf16.mxu0 0
  %210 = vmatpush1.bf16.msra.mxu0 0
  %211 = vmatprep.subr.bf16.mxu0 0
  %212 = vmatpush1.bf16.msra.mxu0 0
  %213 = vmatprep.subr.bf16.mxu0 0
  %214 = vmatpush1.bf16.msra.mxu0 0
  %215 = vmatprep.subr.bf16.mxu0 0
  %216 = vmatpush1.bf16.msra.mxu0 0
  %217 = vmatprep.subr.bf16.mxu0 0
  %218 = vmatpush1.bf16.msra.mxu0 0
  %219 = vmatprep.subr.bf16.mxu0 0
  %220 = vmatpush1.bf16.msra.mxu0 0
  %221 = vmatprep.subr.bf16.mxu0 0
  %222 = vmatpush1.bf16.msra.mxu0 0
  %223 = vmatprep.subr.bf16.mxu0 0
  %224 = vmatpush1.bf16.msra.mxu0 0
  %225 = vmatprep.subr.bf16.mxu0 0
  %226 = vmatpush1.bf16.msra.mxu0 0
  %227 = vmatprep.subr.bf16.mxu0 0
  %228 = vmatpush1.bf16.msra.mxu0 0
  %229 = vmatprep.subr.bf16.mxu0 0
  %230 = vmatpush1.bf16.msra.mxu0 0
  %231 = vmatprep.subr.bf16.mxu0 0
  %232 = vmatpush1.bf16.msra.mxu0 0
  %233 = vmatprep.subr.bf16.mxu0 0
  %234 = vmatpush1.bf16.msra.mxu0 0
  %235 = vmatprep.mubr.bf16.mxu0 0
  %236 = vmatmul.mubr.bf16.gmra.mrb[0].mxu0 %v201
  %v237 = vpop.f32.mrb[0].mxu0
  %v238 = vadd.f32 %v51, %v237
  %v239 = vpop.f32.mrb[0].mxu0
  %v240 = vpop.f32.mrb[0].mxu0
  %v241 = vpop.f32.mrb[0].mxu0
  %242 = vdwg.mxu0
  %s243 = scalar_lea.vmem [#allocation2], 8
  %244 = vst [vmem:[%s243] sm:$0xff] %v238
  %s245 = scalar_lea.vmem %s0, 16
  %v246 = vld [vmem:[%s245] sm:$0xff]
  %247 = vmatprep.subr.bf16.mxu0 0
  %248 = vmatpush1.bf16.msra.mxu0 %v123
  %249 = vmatprep.subr.bf16.mxu0 0
  %250 = vmatpush1.bf16.msra.mxu0 %v124
  %251 = vmatprep.subr.bf16.mxu0 0
  %252 = vmatpush1.bf16.msra.mxu0 0
  %253 = vmatprep.subr.bf16.mxu0 0
  %254 = vmatpush1.bf16.msra.mxu0 0
  %255 = vmatprep.subr.bf16.mxu0 0
  %256 = vmatpush1.bf16.msra.mxu0 0
  %257 = vmatprep.subr.bf16.mxu0 0
  %258 = vmatpush1.bf16.msra.mxu0 0
  %259 = vmatprep.subr.bf16.mxu0 0
  %260 = vmatpush1.bf16.msra.mxu0 0
  %261 = vmatprep.subr.bf16.mxu0 0
  %262 = vmatpush1.bf16.msra.mxu0 0
  %263 = vmatprep.subr.bf16.mxu0 0
  %264 = vmatpush1.bf16.msra.mxu0 0
  %265 = vmatprep.subr.bf16.mxu0 0
  %266 = vmatpush1.bf16.msra.mxu0 0
  %267 = vmatprep.subr.bf16.mxu0 0
  %268 = vmatpush1.bf16.msra.mxu0 0
  %269 = vmatprep.subr.bf16.mxu0 0
  %270 = vmatpush1.bf16.msra.mxu0 0
  %271 = vmatprep.subr.bf16.mxu0 0
  %272 = vmatpush1.bf16.msra.mxu0 0
  %273 = vmatprep.subr.bf16.mxu0 0
  %274 = vmatpush1.bf16.msra.mxu0 0
  %275 = vmatprep.subr.bf16.mxu0 0
  %276 = vmatpush1.bf16.msra.mxu0 0
  %277 = vmatprep.subr.bf16.mxu0 0
  %278 = vmatpush1.bf16.msra.mxu0 0
  %279 = vmatprep.mubr.bf16.mxu0 0
  %280 = vmatmul.mubr.bf16.gmra.mrb[0].mxu0 %v201
  %v281 = vpop.f32.mrb[0].mxu0
  %v282 = vadd.f32 0.0, %v281
  %v283 = vpop.f32.mrb[0].mxu0
  %v284 = vpop.f32.mrb[0].mxu0
  %v285 = vpop.f32.mrb[0].mxu0
  %286 = vdwg.mxu0
  %v287 = vadd.f32 %v246, %v282
  %v288 = vxor.u32 %v287, 2147483648
  %v289 = vmul.f32 %v288, 1.442695
  %v290 = vpow.pop %v289
  %v291 = vadd.f32 %v290, 1.0
  %v292 = vrcp.pop %v291
  %v293 = vmul.f32 1.0, %v292
  %v294 = vtanh.pop %v287
  %v295 = vmul.f32 %v293, %v189
  %297 = vrot.lane.b32.xlu0 %v294, 32
  %v298 = vpop.permute.xlu0 %297
  %v300 = vmul.f32 %v293, %v298
  %302 = vrot.lane.b32.xlu0 %v300, 32
  %v303 = vpop.permute.xlu0 %302
  %v305 = vadd.f32 %v295, %v303
  %v306 = vtanh.pop %v305
  %308 = vrot.lane.b32.xlu0 %v306, 32
  %v309 = vpop.permute.xlu0 %308
  %v311 = vmul.f32 %v293, %v309
  %v312 = vpack.c.bf16 %v311, %v311
  %314 = vrot.lane.b32.xlu0 %v312, 64
  %v315 = vpop.permute.xlu0 %314
  %v317 = vsel %vm68, %v315, 0
  %319 = vmatprep.subr.bf16.mxu0 0
  %320 = vmatpush1.bf16.msra.mxu0 %v64
  %321 = vmatprep.subr.bf16.mxu0 0
  %322 = vmatpush1.bf16.msra.mxu0 %v65
  %323 = vmatprep.subr.bf16.mxu0 0
  %324 = vmatpush1.bf16.msra.mxu0 0
  %325 = vmatprep.subr.bf16.mxu0 0
  %326 = vmatpush1.bf16.msra.mxu0 0
  %327 = vmatprep.subr.bf16.mxu0 0
  %328 = vmatpush1.bf16.msra.mxu0 0
  %329 = vmatprep.subr.bf16.mxu0 0
  %330 = vmatpush1.bf16.msra.mxu0 0
  %331 = vmatprep.subr.bf16.mxu0 0
  %332 = vmatpush1.bf16.msra.mxu0 0
  %333 = vmatprep.subr.bf16.mxu0 0
  %334 = vmatpush1.bf16.msra.mxu0 0
  %335 = vmatprep.subr.bf16.mxu0 0
  %336 = vmatpush1.bf16.msra.mxu0 0
  %337 = vmatprep.subr.bf16.mxu0 0
  %338 = vmatpush1.bf16.msra.mxu0 0
  %339 = vmatprep.subr.bf16.mxu0 0
  %340 = vmatpush1.bf16.msra.mxu0 0
  %341 = vmatprep.subr.bf16.mxu0 0
  %342 = vmatpush1.bf16.msra.mxu0 0
  %343 = vmatprep.subr.bf16.mxu0 0
  %344 = vmatpush1.bf16.msra.mxu0 0
  %345 = vmatprep.subr.bf16.mxu0 0
  %346 = vmatpush1.bf16.msra.mxu0 0
  %347 = vmatprep.subr.bf16.mxu0 0
  %348 = vmatpush1.bf16.msra.mxu0 0
  %349 = vmatprep.subr.bf16.mxu0 0
  %350 = vmatpush1.bf16.msra.mxu0 0
  %351 = vmatprep.mubr.bf16.mxu0 0
  %352 = vmatmul.mubr.bf16.gmra.mrb[0].mxu0 %v317
  %v353 = vpop.f32.mrb[0].mxu0
  %v354 = vadd.f32 %v51, %v353
  %v355 = vpop.f32.mrb[0].mxu0
  %v356 = vpop.f32.mrb[0].mxu0
  %v357 = vpop.f32.mrb[0].mxu0
  %358 = vdwg.mxu0
  %s359 = scalar_lea.vmem [#allocation2], 16
  %360 = vst [vmem:[%s359] sm:$0xff] %v354
  %s361 = scalar_lea.vmem %s0, 24
  %v362 = vld [vmem:[%s361] sm:$0xff]
  %363 = vmatprep.subr.bf16.mxu0 0
  %364 = vmatpush1.bf16.msra.mxu0 %v123
  %365 = vmatprep.subr.bf16.mxu0 0
  %366 = vmatpush1.bf16.msra.mxu0 %v124
  %367 = vmatprep.subr.bf16.mxu0 0
  %368 = vmatpush1.bf16.msra.mxu0 0
  %369 = vmatprep.subr.bf16.mxu0 0
  %370 = vmatpush1.bf16.msra.mxu0 0
  %371 = vmatprep.subr.bf16.mxu0 0
  %372 = vmatpush1.bf16.msra.mxu0 0
  %373 = vmatprep.subr.bf16.mxu0 0
  %374 = vmatpush1.bf16.msra.mxu0 0
  %375 = vmatprep.subr.bf16.mxu0 0
  %376 = vmatpush1.bf16.msra.mxu0 0
  %377 = vmatprep.subr.bf16.mxu0 0
  %378 = vmatpush1.bf16.msra.mxu0 0
  %379 = vmatprep.subr.bf16.mxu0 0
  %380 = vmatpush1.bf16.msra.mxu0 0
  %381 = vmatprep.subr.bf16.mxu0 0
  %382 = vmatpush1.bf16.msra.mxu0 0
  %383 = vmatprep.subr.bf16.mxu0 0
  %384 = vmatpush1.bf16.msra.mxu0 0
  %385 = vmatprep.subr.bf16.mxu0 0
  %386 = vmatpush1.bf16.msra.mxu0 0
  %387 = vmatprep.subr.bf16.mxu0 0
  %388 = vmatpush1.bf16.msra.mxu0 0
  %389 = vmatprep.subr.bf16.mxu0 0
  %390 = vmatpush1.bf16.msra.mxu0 0
  %391 = vmatprep.subr.bf16.mxu0 0
  %392 = vmatpush1.bf16.msra.mxu0 0
  %393 = vmatprep.subr.bf16.mxu0 0
  %394 = vmatpush1.bf16.msra.mxu0 0
  %395 = vmatprep.mubr.bf16.mxu0 0
  %396 = vmatmul.mubr.bf16.gmra.mrb[0].mxu0 %v317
  %v397 = vpop.f32.mrb[0].mxu0
  %v398 = vadd.f32 0.0, %v397
  %v399 = vpop.f32.mrb[0].mxu0
  %v400 = vpop.f32.mrb[0].mxu0
  %v401 = vpop.f32.mrb[0].mxu0
  %402 = vdwg.mxu0
  %v403 = vadd.f32 %v362, %v398
  %v404 = vxor.u32 %v403, 2147483648
  %v405 = vmul.f32 %v404, 1.442695
  %v406 = vpow.pop %v405
  %v407 = vadd.f32 %v406, 1.0
  %v408 = vrcp.pop %v407
  %v409 = vmul.f32 1.0, %v408
  %v410 = vtanh.pop %v403
  %v411 = vmul.f32 %v409, %v305
  %413 = vrot.lane.b32.xlu0 %v410, 32
  %v414 = vpop.permute.xlu0 %413
  %v416 = vmul.f32 %v409, %v414
  %418 = vrot.lane.b32.xlu0 %v416, 32
  %v419 = vpop.permute.xlu0 %418
  %v421 = vadd.f32 %v411, %v419
  %v422 = vtanh.pop %v421
  %424 = vrot.lane.b32.xlu0 %v422, 32
  %v425 = vpop.permute.xlu0 %424
  %v427 = vmul.f32 %v409, %v425
  %v428 = vpack.c.bf16 %v427, %v427
  %430 = vrot.lane.b32.xlu0 %v428, 64
  %v431 = vpop.permute.xlu0 %430
  %v433 = vsel %vm68, %v431, 0
  %435 = vmatprep.subr.bf16.mxu0 0
  %436 = vmatpush1.bf16.msra.mxu0 %v64
  %437 = vmatprep.subr.bf16.mxu0 0
  %438 = vmatpush1.bf16.msra.mxu0 %v65
  %439 = vmatprep.subr.bf16.mxu0 0
  %440 = vmatpush1.bf16.msra.mxu0 0
  %441 = vmatprep.subr.bf16.mxu0 0
  %442 = vmatpush1.bf16.msra.mxu0 0
  %443 = vmatprep.subr.bf16.mxu0 0
  %444 = vmatpush1.bf16.msra.mxu0 0
  %445 = vmatprep.subr.bf16.mxu0 0
  %446 = vmatpush1.bf16.msra.mxu0 0
  %447 = vmatprep.subr.bf16.mxu0 0
  %448 = vmatpush1.bf16.msra.mxu0 0
  %449 = vmatprep.subr.bf16.mxu0 0
  %450 = vmatpush1.bf16.msra.mxu0 0
  %451 = vmatprep.subr.bf16.mxu0 0
  %452 = vmatpush1.bf16.msra.mxu0 0
  %453 = vmatprep.subr.bf16.mxu0 0
  %454 = vmatpush1.bf16.msra.mxu0 0
  %455 = vmatprep.subr.bf16.mxu0 0
  %456 = vmatpush1.bf16.msra.mxu0 0
  %457 = vmatprep.subr.bf16.mxu0 0
  %458 = vmatpush1.bf16.msra.mxu0 0
  %459 = vmatprep.subr.bf16.mxu0 0
  %460 = vmatpush1.bf16.msra.mxu0 0
  %461 = vmatprep.subr.bf16.mxu0 0
  %462 = vmatpush1.bf16.msra.mxu0 0
  %463 = vmatprep.subr.bf16.mxu0 0
  %464 = vmatpush1.bf16.msra.mxu0 0
  %465 = vmatprep.subr.bf16.mxu0 0
  %466 = vmatpush1.bf16.msra.mxu0 0
  %467 = vmatprep.mubr.bf16.mxu0 0
  %468 = vmatmul.mubr.bf16.gmra.mrb[0].mxu0 %v433
  %v469 = vpop.f32.mrb[0].mxu0
  %v470 = vadd.f32 %v51, %v469
  %v471 = vpop.f32.mrb[0].mxu0
  %v472 = vpop.f32.mrb[0].mxu0
  %v473 = vpop.f32.mrb[0].mxu0
  %474 = vdwg.mxu0
  %s475 = scalar_lea.vmem [#allocation2], 24
  %476 = vst [vmem:[%s475] sm:$0xff] %v470
  %s477 = scalar_lea.vmem %s0, 32
  %v478 = vld [vmem:[%s477] sm:$0xff]
  %479 = vmatprep.subr.bf16.mxu0 0
  %480 = vmatpush1.bf16.msra.mxu0 %v123
  %481 = vmatprep.subr.bf16.mxu0 0
  %482 = vmatpush1.bf16.msra.mxu0 %v124
  %483 = vmatprep.subr.bf16.mxu0 0
  %484 = vmatpush1.bf16.msra.mxu0 0
  %485 = vmatprep.subr.bf16.mxu0 0
  %486 = vmatpush1.bf16.msra.mxu0 0
  %487 = vmatprep.subr.bf16.mxu0 0
  %488 = vmatpush1.bf16.msra.mxu0 0
  %489 = vmatprep.subr.bf16.mxu0 0
  %490 = vmatpush1.bf16.msra.mxu0 0
  %491 = vmatprep.subr.bf16.mxu0 0
  %492 = vmatpush1.bf16.msra.mxu0 0
  %493 = vmatprep.subr.bf16.mxu0 0
  %494 = vmatpush1.bf16.msra.mxu0 0
  %495 = vmatprep.subr.bf16.mxu0 0
  %496 = vmatpush1.bf16.msra.mxu0 0
  %497 = vmatprep.subr.bf16.mxu0 0
  %498 = vmatpush1.bf16.msra.mxu0 0
  %499 = vmatprep.subr.bf16.mxu0 0
  %500 = vmatpush1.bf16.msra.mxu0 0
  %501 = vmatprep.subr.bf16.mxu0 0
  %502 = vmatpush1.bf16.msra.mxu0 0
  %503 = vmatprep.subr.bf16.mxu0 0
  %504 = vmatpush1.bf16.msra.mxu0 0
  %505 = vmatprep.subr.bf16.mxu0 0
  %506 = vmatpush1.bf16.msra.mxu0 0
  %507 = vmatprep.subr.bf16.mxu0 0
  %508 = vmatpush1.bf16.msra.mxu0 0
  %509 = vmatprep.subr.bf16.mxu0 0
  %510 = vmatpush1.bf16.msra.mxu0 0
  %511 = vmatprep.mubr.bf16.mxu0 0
  %512 = vmatmul.mubr.bf16.gmra.mrb[0].mxu0 %v433
  %v513 = vpop.f32.mrb[0].mxu0
  %v514 = vadd.f32 0.0, %v513
  %v515 = vpop.f32.mrb[0].mxu0
  %v516 = vpop.f32.mrb[0].mxu0
  %v517 = vpop.f32.mrb[0].mxu0
  %518 = vdwg.mxu0
  %v519 = vadd.f32 %v478, %v514
  %v520 = vxor.u32 %v519, 2147483648
  %v521 = vmul.f32 %v520, 1.442695
  %v522 = vpow.pop %v521
  %v523 = vadd.f32 %v522, 1.0
  %v524 = vrcp.pop %v523
  %v525 = vmul.f32 1.0, %v524
  %v526 = vtanh.pop %v519
  %v527 = vmul.f32 %v525, %v421
  %529 = vrot.lane.b32.xlu0 %v526, 32
  %v530 = vpop.permute.xlu0 %529
  %v532 = vmul.f32 %v525, %v530
  %534 = vrot.lane.b32.xlu0 %v532, 32
  %v535 = vpop.permute.xlu0 %534
  %v537 = vadd.f32 %v527, %v535
  %v538 = vtanh.pop %v537
  %540 = vrot.lane.b32.xlu0 %v538, 32
  %v541 = vpop.permute.xlu0 %540
  %v543 = vmul.f32 %v525, %v541
  %v544 = vpack.c.bf16 %v543, %v543
  %546 = vrot.lane.b32.xlu0 %v544, 64
  %v547 = vpop.permute.xlu0 %546
  %v549 = vsel %vm68, %v547, 0
  %551 = vmatprep.subr.bf16.mxu0 0
  %552 = vmatpush1.bf16.msra.mxu0 %v64
  %553 = vmatprep.subr.bf16.mxu0 0
  %554 = vmatpush1.bf16.msra.mxu0 %v65
  %555 = vmatprep.subr.bf16.mxu0 0
  %556 = vmatpush1.bf16.msra.mxu0 0
  %557 = vmatprep.subr.bf16.mxu0 0
  %558 = vmatpush1.bf16.msra.mxu0 0
  %559 = vmatprep.subr.bf16.mxu0 0
  %560 = vmatpush1.bf16.msra.mxu0 0
  %561 = vmatprep.subr.bf16.mxu0 0
  %562 = vmatpush1.bf16.msra.mxu0 0
  %563 = vmatprep.subr.bf16.mxu0 0
  %564 = vmatpush1.bf16.msra.mxu0 0
  %565 = vmatprep.subr.bf16.mxu0 0
  %566 = vmatpush1.bf16.msra.mxu0 0
  %567 = vmatprep.subr.bf16.mxu0 0
  %568 = vmatpush1.bf16.msra.mxu0 0
  %569 = vmatprep.subr.bf16.mxu0 0
  %570 = vmatpush1.bf16.msra.mxu0 0
  %571 = vmatprep.subr.bf16.mxu0 0
  %572 = vmatpush1.bf16.msra.mxu0 0
  %573 = vmatprep.subr.bf16.mxu0 0
  %574 = vmatpush1.bf16.msra.mxu0 0
  %575 = vmatprep.subr.bf16.mxu0 0
  %576 = vmatpush1.bf16.msra.mxu0 0
  %577 = vmatprep.subr.bf16.mxu0 0
  %578 = vmatpush1.bf16.msra.mxu0 0
  %579 = vmatprep.subr.bf16.mxu0 0
  %580 = vmatpush1.bf16.msra.mxu0 0
  %581 = vmatprep.subr.bf16.mxu0 0
  %582 = vmatpush1.bf16.msra.mxu0 0
  %583 = vmatprep.mubr.bf16.mxu0 0
  %584 = vmatmul.mubr.bf16.gmra.mrb[0].mxu0 %v549
  %v585 = vpop.f32.mrb[0].mxu0
  %v586 = vadd.f32 %v51, %v585
  %v587 = vpop.f32.mrb[0].mxu0
  %v588 = vpop.f32.mrb[0].mxu0
  %v589 = vpop.f32.mrb[0].mxu0
  %590 = vdwg.mxu0
  %s591 = scalar_lea.vmem [#allocation2], 32
  %592 = vst [vmem:[%s591] sm:$0xff] %v586
  %s593 = scalar_lea.vmem %s0, 40
  %v594 = vld [vmem:[%s593] sm:$0xff]
  %595 = vmatprep.subr.bf16.mxu0 0
  %596 = vmatpush1.bf16.msra.mxu0 %v123
  %597 = vmatprep.subr.bf16.mxu0 0
  %598 = vmatpush1.bf16.msra.mxu0 %v124
  %599 = vmatprep.subr.bf16.mxu0 0
  %600 = vmatpush1.bf16.msra.mxu0 0
  %601 = vmatprep.subr.bf16.mxu0 0
  %602 = vmatpush1.bf16.msra.mxu0 0
  %603 = vmatprep.subr.bf16.mxu0 0
  %604 = vmatpush1.bf16.msra.mxu0 0
  %605 = vmatprep.subr.bf16.mxu0 0
  %606 = vmatpush1.bf16.msra.mxu0 0
  %607 = vmatprep.subr.bf16.mxu0 0
  %608 = vmatpush1.bf16.msra.mxu0 0
  %609 = vmatprep.subr.bf16.mxu0 0
  %610 = vmatpush1.bf16.msra.mxu0 0
  %611 = vmatprep.subr.bf16.mxu0 0
  %612 = vmatpush1.bf16.msra.mxu0 0
  %613 = vmatprep.subr.bf16.mxu0 0
  %614 = vmatpush1.bf16.msra.mxu0 0
  %615 = vmatprep.subr.bf16.mxu0 0
  %616 = vmatpush1.bf16.msra.mxu0 0
  %617 = vmatprep.subr.bf16.mxu0 0
  %618 = vmatpush1.bf16.msra.mxu0 0
  %619 = vmatprep.subr.bf16.mxu0 0
  %620 = vmatpush1.bf16.msra.mxu0 0
  %621 = vmatprep.subr.bf16.mxu0 0
  %622 = vmatpush1.bf16.msra.mxu0 0
  %623 = vmatprep.subr.bf16.mxu0 0
  %624 = vmatpush1.bf16.msra.mxu0 0
  %625 = vmatprep.subr.bf16.mxu0 0
  %626 = vmatpush1.bf16.msra.mxu0 0
  %627 = vmatprep.mubr.bf16.mxu0 0
  %628 = vmatmul.mubr.bf16.gmra.mrb[0].mxu0 %v549
  %v629 = vpop.f32.mrb[0].mxu0
  %v630 = vadd.f32 0.0, %v629
  %v631 = vpop.f32.mrb[0].mxu0
  %v632 = vpop.f32.mrb[0].mxu0
  %v633 = vpop.f32.mrb[0].mxu0
  %634 = vdwg.mxu0
  %v635 = vadd.f32 %v594, %v630
  %v636 = vxor.u32 %v635, 2147483648
  %v637 = vmul.f32 %v636, 1.442695
  %v638 = vpow.pop %v637
  %v639 = vadd.f32 %v638, 1.0
  %v640 = vrcp.pop %v639
  %v641 = vmul.f32 1.0, %v640
  %v642 = vtanh.pop %v635
  %v643 = vmul.f32 %v641, %v537
  %645 = vrot.lane.b32.xlu0 %v642, 32
  %v646 = vpop.permute.xlu0 %645
  %v648 = vmul.f32 %v641, %v646
  %650 = vrot.lane.b32.xlu0 %v648, 32
  %v651 = vpop.permute.xlu0 %650
  %v653 = vadd.f32 %v643, %v651
  %v654 = vtanh.pop %v653
  %656 = vrot.lane.b32.xlu0 %v654, 32
  %v657 = vpop.permute.xlu0 %656
  %v659 = vmul.f32 %v641, %v657
  %v660 = vpack.c.bf16 %v659, %v659
  %662 = vrot.lane.b32.xlu0 %v660, 64
  %v663 = vpop.permute.xlu0 %662
  %v665 = vsel %vm68, %v663, 0
  %667 = vmatprep.subr.bf16.mxu0 0
  %668 = vmatpush1.bf16.msra.mxu0 %v64
  %669 = vmatprep.subr.bf16.mxu0 0
  %670 = vmatpush1.bf16.msra.mxu0 %v65
  %671 = vmatprep.subr.bf16.mxu0 0
  %672 = vmatpush1.bf16.msra.mxu0 0
  %673 = vmatprep.subr.bf16.mxu0 0
  %674 = vmatpush1.bf16.msra.mxu0 0
  %675 = vmatprep.subr.bf16.mxu0 0
  %676 = vmatpush1.bf16.msra.mxu0 0
  %677 = vmatprep.subr.bf16.mxu0 0
  %678 = vmatpush1.bf16.msra.mxu0 0
  %679 = vmatprep.subr.bf16.mxu0 0
  %680 = vmatpush1.bf16.msra.mxu0 0
  %681 = vmatprep.subr.bf16.mxu0 0
  %682 = vmatpush1.bf16.msra.mxu0 0
  %683 = vmatprep.subr.bf16.mxu0 0
  %684 = vmatpush1.bf16.msra.mxu0 0
  %685 = vmatprep.subr.bf16.mxu0 0
  %686 = vmatpush1.bf16.msra.mxu0 0
  %687 = vmatprep.subr.bf16.mxu0 0
  %688 = vmatpush1.bf16.msra.mxu0 0
  %689 = vmatprep.subr.bf16.mxu0 0
  %690 = vmatpush1.bf16.msra.mxu0 0
  %691 = vmatprep.subr.bf16.mxu0 0
  %692 = vmatpush1.bf16.msra.mxu0 0
  %693 = vmatprep.subr.bf16.mxu0 0
  %694 = vmatpush1.bf16.msra.mxu0 0
  %695 = vmatprep.subr.bf16.mxu0 0
  %696 = vmatpush1.bf16.msra.mxu0 0
  %697 = vmatprep.subr.bf16.mxu0 0
  %698 = vmatpush1.bf16.msra.mxu0 0
  %699 = vmatprep.mubr.bf16.mxu0 0
  %700 = vmatmul.mubr.bf16.gmra.mrb[0].mxu0 %v665
  %v701 = vpop.f32.mrb[0].mxu0
  %v702 = vadd.f32 %v51, %v701
  %v703 = vpop.f32.mrb[0].mxu0
  %v704 = vpop.f32.mrb[0].mxu0
  %v705 = vpop.f32.mrb[0].mxu0
  %706 = vdwg.mxu0
  %s707 = scalar_lea.vmem [#allocation2], 40
  %708 = vst [vmem:[%s707] sm:$0xff] %v702
  %s709 = scalar_lea.vmem %s0, 48
  %v710 = vld [vmem:[%s709] sm:$0xff]
  %711 = vmatprep.subr.bf16.mxu0 0
  %712 = vmatpush1.bf16.msra.mxu0 %v123
  %713 = vmatprep.subr.bf16.mxu0 0
  %714 = vmatpush1.bf16.msra.mxu0 %v124
  %715 = vmatprep.subr.bf16.mxu0 0
  %716 = vmatpush1.bf16.msra.mxu0 0
  %717 = vmatprep.subr.bf16.mxu0 0
  %718 = vmatpush1.bf16.msra.mxu0 0
  %719 = vmatprep.subr.bf16.mxu0 0
  %720 = vmatpush1.bf16.msra.mxu0 0
  %721 = vmatprep.subr.bf16.mxu0 0
  %722 = vmatpush1.bf16.msra.mxu0 0
  %723 = vmatprep.subr.bf16.mxu0 0
  %724 = vmatpush1.bf16.msra.mxu0 0
  %725 = vmatprep.subr.bf16.mxu0 0
  %726 = vmatpush1.bf16.msra.mxu0 0
  %727 = vmatprep.subr.bf16.mxu0 0
  %728 = vmatpush1.bf16.msra.mxu0 0
  %729 = vmatprep.subr.bf16.mxu0 0
  %730 = vmatpush1.bf16.msra.mxu0 0
  %731 = vmatprep.subr.bf16.mxu0 0
  %732 = vmatpush1.bf16.msra.mxu0 0
  %733 = vmatprep.subr.bf16.mxu0 0
  %734 = vmatpush1.bf16.msra.mxu0 0
  %735 = vmatprep.subr.bf16.mxu0 0
  %736 = vmatpush1.bf16.msra.mxu0 0
  %737 = vmatprep.subr.bf16.mxu0 0
  %738 = vmatpush1.bf16.msra.mxu0 0
  %739 = vmatprep.subr.bf16.mxu0 0
  %740 = vmatpush1.bf16.msra.mxu0 0
  %741 = vmatprep.subr.bf16.mxu0 0
  %742 = vmatpush1.bf16.msra.mxu0 0
  %743 = vmatprep.mubr.bf16.mxu0 0
  %744 = vmatmul.mubr.bf16.gmra.mrb[0].mxu0 %v665
  %v745 = vpop.f32.mrb[0].mxu0
  %v746 = vadd.f32 0.0, %v745
  %v747 = vpop.f32.mrb[0].mxu0
  %v748 = vpop.f32.mrb[0].mxu0
  %v749 = vpop.f32.mrb[0].mxu0
  %750 = vdwg.mxu0
  %v751 = vadd.f32 %v710, %v746
  %v752 = vxor.u32 %v751, 2147483648
  %v753 = vmul.f32 %v752, 1.442695
  %v754 = vpow.pop %v753
  %v755 = vadd.f32 %v754, 1.0
  %v756 = vrcp.pop %v755
  %v757 = vmul.f32 1.0, %v756
  %v758 = vtanh.pop %v751
  %v759 = vmul.f32 %v757, %v653
  %761 = vrot.lane.b32.xlu0 %v758, 32
  %v762 = vpop.permute.xlu0 %761
  %v764 = vmul.f32 %v757, %v762
  %766 = vrot.lane.b32.xlu0 %v764, 32
  %v767 = vpop.permute.xlu0 %766
  %v769 = vadd.f32 %v759, %v767
  %v770 = vtanh.pop %v769
  %772 = vrot.lane.b32.xlu0 %v770, 32
  %v773 = vpop.permute.xlu0 %772
  %v775 = vmul.f32 %v757, %v773
  %v776 = vpack.c.bf16 %v775, %v775
  %778 = vrot.lane.b32.xlu0 %v776, 64
  %v779 = vpop.permute.xlu0 %778
  %v781 = vsel %vm68, %v779, 0
  %783 = vmatprep.subr.bf16.mxu0 0
  %784 = vmatpush1.bf16.msra.mxu0 %v64
  %785 = vmatprep.subr.bf16.mxu0 0
  %786 = vmatpush1.bf16.msra.mxu0 %v65
  %787 = vmatprep.subr.bf16.mxu0 0
  %788 = vmatpush1.bf16.msra.mxu0 0
  %789 = vmatprep.subr.bf16.mxu0 0
  %790 = vmatpush1.bf16.msra.mxu0 0
  %791 = vmatprep.subr.bf16.mxu0 0
  %792 = vmatpush1.bf16.msra.mxu0 0
  %793 = vmatprep.subr.bf16.mxu0 0
  %794 = vmatpush1.bf16.msra.mxu0 0
  %795 = vmatprep.subr.bf16.mxu0 0
  %796 = vmatpush1.bf16.msra.mxu0 0
  %797 = vmatprep.subr.bf16.mxu0 0
  %798 = vmatpush1.bf16.msra.mxu0 0
  %799 = vmatprep.subr.bf16.mxu0 0
  %800 = vmatpush1.bf16.msra.mxu0 0
  %801 = vmatprep.subr.bf16.mxu0 0
  %802 = vmatpush1.bf16.msra.mxu0 0
  %803 = vmatprep.subr.bf16.mxu0 0
  %804 = vmatpush1.bf16.msra.mxu0 0
  %805 = vmatprep.subr.bf16.mxu0 0
  %806 = vmatpush1.bf16.msra.mxu0 0
  %807 = vmatprep.subr.bf16.mxu0 0
  %808 = vmatpush1.bf16.msra.mxu0 0
  %809 = vmatprep.subr.bf16.mxu0 0
  %810 = vmatpush1.bf16.msra.mxu0 0
  %811 = vmatprep.subr.bf16.mxu0 0
  %812 = vmatpush1.bf16.msra.mxu0 0
  %813 = vmatprep.subr.bf16.mxu0 0
  %814 = vmatpush1.bf16.msra.mxu0 0
  %815 = vmatprep.mubr.bf16.mxu0 0
  %816 = vmatmul.mubr.bf16.gmra.mrb[0].mxu0 %v781
  %v817 = vpop.f32.mrb[0].mxu0
  %v818 = vadd.f32 %v51, %v817
  %v819 = vpop.f32.mrb[0].mxu0
  %v820 = vpop.f32.mrb[0].mxu0
  %v821 = vpop.f32.mrb[0].mxu0
  %822 = vdwg.mxu0
  %s823 = scalar_lea.vmem [#allocation2], 48
  %824 = vst [vmem:[%s823] sm:$0xff] %v818
  %s825 = scalar_lea.vmem %s0, 56
  %v826 = vld [vmem:[%s825] sm:$0xff]
  %827 = vmatprep.subr.bf16.mxu0 0
  %828 = vmatpush1.bf16.msra.mxu0 %v123
  %829 = vmatprep.subr.bf16.mxu0 0
  %830 = vmatpush1.bf16.msra.mxu0 %v124
  %831 = vmatprep.subr.bf16.mxu0 0
  %832 = vmatpush1.bf16.msra.mxu0 0
  %833 = vmatprep.subr.bf16.mxu0 0
  %834 = vmatpush1.bf16.msra.mxu0 0
  %835 = vmatprep.subr.bf16.mxu0 0
  %836 = vmatpush1.bf16.msra.mxu0 0
  %837 = vmatprep.subr.bf16.mxu0 0
  %838 = vmatpush1.bf16.msra.mxu0 0
  %839 = vmatprep.subr.bf16.mxu0 0
  %840 = vmatpush1.bf16.msra.mxu0 0
  %841 = vmatprep.subr.bf16.mxu0 0
  %842 = vmatpush1.bf16.msra.mxu0 0
  %843 = vmatprep.subr.bf16.mxu0 0
  %844 = vmatpush1.bf16.msra.mxu0 0
  %845 = vmatprep.subr.bf16.mxu0 0
  %846 = vmatpush1.bf16.msra.mxu0 0
  %847 = vmatprep.subr.bf16.mxu0 0
  %848 = vmatpush1.bf16.msra.mxu0 0
  %849 = vmatprep.subr.bf16.mxu0 0
  %850 = vmatpush1.bf16.msra.mxu0 0
  %851 = vmatprep.subr.bf16.mxu0 0
  %852 = vmatpush1.bf16.msra.mxu0 0
  %853 = vmatprep.subr.bf16.mxu0 0
  %854 = vmatpush1.bf16.msra.mxu0 0
  %855 = vmatprep.subr.bf16.mxu0 0
  %856 = vmatpush1.bf16.msra.mxu0 0
  %857 = vmatprep.subr.bf16.mxu0 0
  %858 = vmatpush1.bf16.msra.mxu0 0
  %859 = vmatprep.mubr.bf16.mxu0 0
  %860 = vmatmul.mubr.bf16.gmra.mrb[0].mxu0 %v781
  %v861 = vpop.f32.mrb[0].mxu0
  %v862 = vadd.f32 0.0, %v861
  %v863 = vpop.f32.mrb[0].mxu0
  %v864 = vpop.f32.mrb[0].mxu0
  %v865 = vpop.f32.mrb[0].mxu0
  %866 = vdwg.mxu0
  %v867 = vadd.f32 %v826, %v862
  %v868 = vxor.u32 %v867, 2147483648
  %v869 = vmul.f32 %v868, 1.442695
  %v870 = vpow.pop %v869
  %v871 = vadd.f32 %v870, 1.0
  %v872 = vrcp.pop %v871
  %v873 = vmul.f32 1.0, %v872
  %v874 = vtanh.pop %v867
  %v875 = vmul.f32 %v873, %v769
  %877 = vrot.lane.b32.xlu0 %v874, 32
  %v878 = vpop.permute.xlu0 %877
  %v880 = vmul.f32 %v873, %v878
  %882 = vrot.lane.b32.xlu0 %v880, 32
  %v883 = vpop.permute.xlu0 %882
  %v885 = vadd.f32 %v875, %v883
  %v886 = vtanh.pop %v885
  %888 = vrot.lane.b32.xlu0 %v886, 32
  %v889 = vpop.permute.xlu0 %888
  %v891 = vmul.f32 %v873, %v889
  %v892 = vpack.c.bf16 %v891, %v891
  %894 = vrot.lane.b32.xlu0 %v892, 64
  %v895 = vpop.permute.xlu0 %894
  %v897 = vsel %vm68, %v895, 0
  %899 = vmatprep.subr.bf16.mxu0 0
  %900 = vmatpush1.bf16.msra.mxu0 %v64
  %901 = vmatprep.subr.bf16.mxu0 0
  %902 = vmatpush1.bf16.msra.mxu0 %v65
  %903 = vmatprep.subr.bf16.mxu0 0
  %904 = vmatpush1.bf16.msra.mxu0 0
  %905 = vmatprep.subr.bf16.mxu0 0
  %906 = vmatpush1.bf16.msra.mxu0 0
  %907 = vmatprep.subr.bf16.mxu0 0
  %908 = vmatpush1.bf16.msra.mxu0 0
  %909 = vmatprep.subr.bf16.mxu0 0
  %910 = vmatpush1.bf16.msra.mxu0 0
  %911 = vmatprep.subr.bf16.mxu0 0
  %912 = vmatpush1.bf16.msra.mxu0 0
  %913 = vmatprep.subr.bf16.mxu0 0
  %914 = vmatpush1.bf16.msra.mxu0 0
  %915 = vmatprep.subr.bf16.mxu0 0
  %916 = vmatpush1.bf16.msra.mxu0 0
  %917 = vmatprep.subr.bf16.mxu0 0
  %918 = vmatpush1.bf16.msra.mxu0 0
  %919 = vmatprep.subr.bf16.mxu0 0
  %920 = vmatpush1.bf16.msra.mxu0 0
  %921 = vmatprep.subr.bf16.mxu0 0
  %922 = vmatpush1.bf16.msra.mxu0 0
  %923 = vmatprep.subr.bf16.mxu0 0
  %924 = vmatpush1.bf16.msra.mxu0 0
  %925 = vmatprep.subr.bf16.mxu0 0
  %926 = vmatpush1.bf16.msra.mxu0 0
  %927 = vmatprep.subr.bf16.mxu0 0
  %928 = vmatpush1.bf16.msra.mxu0 0
  %929 = vmatprep.subr.bf16.mxu0 0
  %930 = vmatpush1.bf16.msra.mxu0 0
  %931 = vmatprep.mubr.bf16.mxu0 0
  %932 = vmatmul.mubr.bf16.gmra.mrb[0].mxu0 %v897
  %v933 = vpop.f32.mrb[0].mxu0
  %v934 = vadd.f32 %v51, %v933
  %v935 = vpop.f32.mrb[0].mxu0
  %v936 = vpop.f32.mrb[0].mxu0
  %v937 = vpop.f32.mrb[0].mxu0
  %938 = vdwg.mxu0
  %s939 = scalar_lea.vmem [#allocation2], 56
  %940 = vst [vmem:[%s939] sm:$0xff] %v934
  %s941 = scalar_lea.vmem %s2, 16
  %v942 = vld [vmem:[%s941] sm:$0xf]
  %v943 = vld [vmem:[%s941 + $0x4] sm:$0xf]
  %v944 = vld [vmem:[%s941 + $0x8] sm:$0xf]
  %v945 = vld [vmem:[%s941 + $0xc] sm:$0xf]
  %s946 = scalar_lea.vmem %s1, 16
  %v947 = vld [vmem:[%s946] sm:$0xf]
  %v948 = vld [vmem:[%s946 + $0x4] sm:$0xf]
  %v949 = vld [vmem:[%s946 + $0x8] sm:$0xf]
  %v950 = vld [vmem:[%s946 + $0xc] sm:$0xf]
  %s951 = scalar_lea.vmem %s3, 1
  %v952 = vld [vmem:[%s951] sm:$0x1]
  %v953 = vld [vmem:[#allocation2] sm:$0xff]
  %v954 = vxor.u32 %v953, 2147483648
  %v955 = vmul.f32 %v954, 1.442695
  %v956 = vpow.pop %v955
  %v957 = vadd.f32 %v956, 1.0
  %v958 = vrcp.pop %v957
  %v959 = vmul.f32 1.0, %v958
  %v960 = vtanh.pop %v953
  %962 = vrot.lane.b32.xlu0 %v960, 32
  %v963 = vpop.permute.xlu0 %962
  %v965 = vmul.f32 %v959, %v963
  %v966 = vtanh.pop %v965
  %968 = vrot.lane.b32.xlu0 %v966, 64
  %v969 = vpop.permute.xlu0 %968
  %v971 = vmul.f32 %v959, %v969
  %v972 = vpack.c.bf16 %v971, %v971
  %v974 = vlaneseq
  %v975 = vshrl.u32 %v974, 7
  %v976 = vsub.s32 0, %v975
  %v977 = vrot.slane %v952, %v976
  %980 = vrot.lane.b32.xlu0 %v972, 64
  %v981 = vpop.permute.xlu0 %980
  %v986 = vunpack.c.l.b16 %v947
  %v987 = vunpack.c.l.b16 %v948
  %v988 = vunpack.c.l.b16 %v949
  %v989 = vunpack.c.l.b16 %v950
  %v990 = vpack.c.b16 %v987, %v986
  %v991 = vpack.c.b16 %v989, %v988
  %v995 = vsel %vm68, %v981, 0
  %997 = vmatprep.subr.bf16.mxu0 0
  %998 = vmatpush1.bf16.msra.mxu0 %v990
  %999 = vmatprep.subr.bf16.mxu0 0
  %1000 = vmatpush1.bf16.msra.mxu0 %v991
  %1001 = vmatprep.subr.bf16.mxu0 0
  %1002 = vmatpush1.bf16.msra.mxu0 0
  %1003 = vmatprep.subr.bf16.mxu0 0
  %1004 = vmatpush1.bf16.msra.mxu0 0
  %1005 = vmatprep.subr.bf16.mxu0 0
  %1006 = vmatpush1.bf16.msra.mxu0 0
  %1007 = vmatprep.subr.bf16.mxu0 0
  %1008 = vmatpush1.bf16.msra.mxu0 0
  %1009 = vmatprep.subr.bf16.mxu0 0
  %1010 = vmatpush1.bf16.msra.mxu0 0
  %1011 = vmatprep.subr.bf16.mxu0 0
  %1012 = vmatpush1.bf16.msra.mxu0 0
  %1013 = vmatprep.subr.bf16.mxu0 0
  %1014 = vmatpush1.bf16.msra.mxu0 0
  %1015 = vmatprep.subr.bf16.mxu0 0
  %1016 = vmatpush1.bf16.msra.mxu0 0
  %1017 = vmatprep.subr.bf16.mxu0 0
  %1018 = vmatpush1.bf16.msra.mxu0 0
  %1019 = vmatprep.subr.bf16.mxu0 0
  %1020 = vmatpush1.bf16.msra.mxu0 0
  %1021 = vmatprep.subr.bf16.mxu0 0
  %1022 = vmatpush1.bf16.msra.mxu0 0
  %1023 = vmatprep.subr.bf16.mxu0 0
  %1024 = vmatpush1.bf16.msra.mxu0 0
  %1025 = vmatprep.subr.bf16.mxu0 0
  %1026 = vmatpush1.bf16.msra.mxu0 0
  %1027 = vmatprep.subr.bf16.mxu0 0
  %1028 = vmatpush1.bf16.msra.mxu0 0
  %1029 = vmatprep.mubr.bf16.mxu0 0
  %1030 = vmatmul.mubr.bf16.gmra.mrb[0].mxu0 %v995
  %v1031 = vpop.f32.mrb[0].mxu0
  %v1032 = vadd.f32 %v977, %v1031
  %v1033 = vpop.f32.mrb[0].mxu0
  %v1034 = vpop.f32.mrb[0].mxu0
  %v1035 = vpop.f32.mrb[0].mxu0
  %1036 = vdwg.mxu0
  %1037 = vst [vmem:[#allocation2] sm:$0xff] %v1032
  %v1038 = vld [vmem:[%s243] sm:$0xff]
  %v1043 = vunpack.c.l.b16 %v942
  %v1044 = vunpack.c.l.b16 %v943
  %v1045 = vunpack.c.l.b16 %v944
  %v1046 = vunpack.c.l.b16 %v945
  %v1047 = vpack.c.b16 %v1044, %v1043
  %v1048 = vpack.c.b16 %v1046, %v1045
  %1051 = vmatprep.subr.bf16.mxu0 0
  %1052 = vmatpush1.bf16.msra.mxu0 %v1047
  %1053 = vmatprep.subr.bf16.mxu0 0
  %1054 = vmatpush1.bf16.msra.mxu0 %v1048
  %1055 = vmatprep.subr.bf16.mxu0 0
  %1056 = vmatpush1.bf16.msra.mxu0 0
  %1057 = vmatprep.subr.bf16.mxu0 0
  %1058 = vmatpush1.bf16.msra.mxu0 0
  %1059 = vmatprep.subr.bf16.mxu0 0
  %1060 = vmatpush1.bf16.msra.mxu0 0
  %1061 = vmatprep.subr.bf16.mxu0 0
  %1062 = vmatpush1.bf16.msra.mxu0 0
  %1063 = vmatprep.subr.bf16.mxu0 0
  %1064 = vmatpush1.bf16.msra.mxu0 0
  %1065 = vmatprep.subr.bf16.mxu0 0
  %1066 = vmatpush1.bf16.msra.mxu0 0
  %1067 = vmatprep.subr.bf16.mxu0 0
  %1068 = vmatpush1.bf16.msra.mxu0 0
  %1069 = vmatprep.subr.bf16.mxu0 0
  %1070 = vmatpush1.bf16.msra.mxu0 0
  %1071 = vmatprep.subr.bf16.mxu0 0
  %1072 = vmatpush1.bf16.msra.mxu0 0
  %1073 = vmatprep.subr.bf16.mxu0 0
  %1074 = vmatpush1.bf16.msra.mxu0 0
  %1075 = vmatprep.subr.bf16.mxu0 0
  %1076 = vmatpush1.bf16.msra.mxu0 0
  %1077 = vmatprep.subr.bf16.mxu0 0
  %1078 = vmatpush1.bf16.msra.mxu0 0
  %1079 = vmatprep.subr.bf16.mxu0 0
  %1080 = vmatpush1.bf16.msra.mxu0 0
  %1081 = vmatprep.subr.bf16.mxu0 0
  %1082 = vmatpush1.bf16.msra.mxu0 0
  %1083 = vmatprep.mubr.bf16.mxu0 0
  %1084 = vmatmul.mubr.bf16.gmra.mrb[0].mxu0 %v995
  %v1085 = vpop.f32.mrb[0].mxu0
  %v1086 = vadd.f32 0.0, %v1085
  %v1087 = vpop.f32.mrb[0].mxu0
  %v1088 = vpop.f32.mrb[0].mxu0
  %v1089 = vpop.f32.mrb[0].mxu0
  %1090 = vdwg.mxu0
  %v1091 = vadd.f32 %v1038, %v1086
  %v1092 = vxor.u32 %v1091, 2147483648
  %v1093 = vmul.f32 %v1092, 1.442695
  %v1094 = vpow.pop %v1093
  %v1095 = vadd.f32 %v1094, 1.0
  %v1096 = vrcp.pop %v1095
  %v1097 = vmul.f32 1.0, %v1096
  %v1098 = vtanh.pop %v1091
  %1100 = vrot.lane.b32.xlu0 %v965, 32
  %v1101 = vpop.permute.xlu0 %1100
  %v1103 = vmul.f32 %v1097, %v1101
  %1105 = vrot.lane.b32.xlu0 %v1098, 32
  %v1106 = vpop.permute.xlu0 %1105
  %v1108 = vmul.f32 %v1097, %v1106
  %1110 = vrot.lane.b32.xlu0 %v1108, 32
  %v1111 = vpop.permute.xlu0 %1110
  %v1113 = vadd.f32 %v1103, %v1111
  %v1114 = vtanh.pop %v1113
  %1116 = vrot.lane.b32.xlu0 %v1114, 32
  %v1117 = vpop.permute.xlu0 %1116
  %v1119 = vmul.f32 %v1097, %v1117
  %v1120 = vpack.c.bf16 %v1119, %v1119
  %1122 = vrot.lane.b32.xlu0 %v1120, 64
  %v1123 = vpop.permute.xlu0 %1122
  %v1125 = vsel %vm68, %v1123, 0
  %1127 = vmatprep.subr.bf16.mxu0 0
  %1128 = vmatpush1.bf16.msra.mxu0 %v990
  %1129 = vmatprep.subr.bf16.mxu0 0
  %1130 = vmatpush1.bf16.msra.mxu0 %v991
  %1131 = vmatprep.subr.bf16.mxu0 0
  %1132 = vmatpush1.bf16.msra.mxu0 0
  %1133 = vmatprep.subr.bf16.mxu0 0
  %1134 = vmatpush1.bf16.msra.mxu0 0
  %1135 = vmatprep.subr.bf16.mxu0 0
  %1136 = vmatpush1.bf16.msra.mxu0 0
  %1137 = vmatprep.subr.bf16.mxu0 0
  %1138 = vmatpush1.bf16.msra.mxu0 0
  %1139 = vmatprep.subr.bf16.mxu0 0
  %1140 = vmatpush1.bf16.msra.mxu0 0
  %1141 = vmatprep.subr.bf16.mxu0 0
  %1142 = vmatpush1.bf16.msra.mxu0 0
  %1143 = vmatprep.subr.bf16.mxu0 0
  %1144 = vmatpush1.bf16.msra.mxu0 0
  %1145 = vmatprep.subr.bf16.mxu0 0
  %1146 = vmatpush1.bf16.msra.mxu0 0
  %1147 = vmatprep.subr.bf16.mxu0 0
  %1148 = vmatpush1.bf16.msra.mxu0 0
  %1149 = vmatprep.subr.bf16.mxu0 0
  %1150 = vmatpush1.bf16.msra.mxu0 0
  %1151 = vmatprep.subr.bf16.mxu0 0
  %1152 = vmatpush1.bf16.msra.mxu0 0
  %1153 = vmatprep.subr.bf16.mxu0 0
  %1154 = vmatpush1.bf16.msra.mxu0 0
  %1155 = vmatprep.subr.bf16.mxu0 0
  %1156 = vmatpush1.bf16.msra.mxu0 0
  %1157 = vmatprep.subr.bf16.mxu0 0
  %1158 = vmatpush1.bf16.msra.mxu0 0
  %1159 = vmatprep.mubr.bf16.mxu0 0
  %1160 = vmatmul.mubr.bf16.gmra.mrb[0].mxu0 %v1125
  %v1161 = vpop.f32.mrb[0].mxu0
  %v1162 = vadd.f32 %v977, %v1161
  %v1163 = vpop.f32.mrb[0].mxu0
  %v1164 = vpop.f32.mrb[0].mxu0
  %v1165 = vpop.f32.mrb[0].mxu0
  %1166 = vdwg.mxu0
  %1167 = vst [vmem:[%s243] sm:$0xff] %v1162
  %v1168 = vld [vmem:[%s359] sm:$0xff]
  %1169 = vmatprep.subr.bf16.mxu0 0
  %1170 = vmatpush1.bf16.msra.mxu0 %v1047
  %1171 = vmatprep.subr.bf16.mxu0 0
  %1172 = vmatpush1.bf16.msra.mxu0 %v1048
  %1173 = vmatprep.subr.bf16.mxu0 0
  %1174 = vmatpush1.bf16.msra.mxu0 0
  %1175 = vmatprep.subr.bf16.mxu0 0
  %1176 = vmatpush1.bf16.msra.mxu0 0
  %1177 = vmatprep.subr.bf16.mxu0 0
  %1178 = vmatpush1.bf16.msra.mxu0 0
  %1179 = vmatprep.subr.bf16.mxu0 0
  %1180 = vmatpush1.bf16.msra.mxu0 0
  %1181 = vmatprep.subr.bf16.mxu0 0
  %1182 = vmatpush1.bf16.msra.mxu0 0
  %1183 = vmatprep.subr.bf16.mxu0 0
  %1184 = vmatpush1.bf16.msra.mxu0 0
  %1185 = vmatprep.subr.bf16.mxu0 0
  %1186 = vmatpush1.bf16.msra.mxu0 0
  %1187 = vmatprep.subr.bf16.mxu0 0
  %1188 = vmatpush1.bf16.msra.mxu0 0
  %1189 = vmatprep.subr.bf16.mxu0 0
  %1190 = vmatpush1.bf16.msra.mxu0 0
  %1191 = vmatprep.subr.bf16.mxu0 0
  %1192 = vmatpush1.bf16.msra.mxu0 0
  %1193 = vmatprep.subr.bf16.mxu0 0
  %1194 = vmatpush1.bf16.msra.mxu0 0
  %1195 = vmatprep.subr.bf16.mxu0 0
  %1196 = vmatpush1.bf16.msra.mxu0 0
  %1197 = vmatprep.subr.bf16.mxu0 0
  %1198 = vmatpush1.bf16.msra.mxu0 0
  %1199 = vmatprep.subr.bf16.mxu0 0
  %1200 = vmatpush1.bf16.msra.mxu0 0
  %1201 = vmatprep.mubr.bf16.mxu0 0
  %1202 = vmatmul.mubr.bf16.gmra.mrb[0].mxu0 %v1125
  %v1203 = vpop.f32.mrb[0].mxu0
  %v1204 = vadd.f32 0.0, %v1203
  %v1205 = vpop.f32.mrb[0].mxu0
  %v1206 = vpop.f32.mrb[0].mxu0
  %v1207 = vpop.f32.mrb[0].mxu0
  %1208 = vdwg.mxu0
  %v1209 = vadd.f32 %v1168, %v1204
  %v1210 = vxor.u32 %v1209, 2147483648
  %v1211 = vmul.f32 %v1210, 1.442695
  %v1212 = vpow.pop %v1211
  %v1213 = vadd.f32 %v1212, 1.0
  %v1214 = vrcp.pop %v1213
  %v1215 = vmul.f32 1.0, %v1214
  %v1216 = vtanh.pop %v1209
  %v1217 = vmul.f32 %v1215, %v1113
  %1219 = vrot.lane.b32.xlu0 %v1216, 32
  %v1220 = vpop.permute.xlu0 %1219
  %v1222 = vmul.f32 %v1215, %v1220
  %1224 = vrot.lane.b32.xlu0 %v1222, 32
  %v1225 = vpop.permute.xlu0 %1224
  %v1227 = vadd.f32 %v1217, %v1225
  %v1228 = vtanh.pop %v1227
  %1230 = vrot.lane.b32.xlu0 %v1228, 32
  %v1231 = vpop.permute.xlu0 %1230
  %v1233 = vmul.f32 %v1215, %v1231
  %v1234 = vpack.c.bf16 %v1233, %v1233
  %1236 = vrot.lane.b32.xlu0 %v1234, 64
  %v1237 = vpop.permute.xlu0 %1236
  %v1239 = vsel %vm68, %v1237, 0
  %1241 = vmatprep.subr.bf16.mxu0 0
  %1242 = vmatpush1.bf16.msra.mxu0 %v990
  %1243 = vmatprep.subr.bf16.mxu0 0
  %1244 = vmatpush1.bf16.msra.mxu0 %v991
  %1245 = vmatprep.subr.bf16.mxu0 0
  %1246 = vmatpush1.bf16.msra.mxu0 0
  %1247 = vmatprep.subr.bf16.mxu0 0
  %1248 = vmatpush1.bf16.msra.mxu0 0
  %1249 = vmatprep.subr.bf16.mxu0 0
  %1250 = vmatpush1.bf16.msra.mxu0 0
  %1251 = vmatprep.subr.bf16.mxu0 0
  %1252 = vmatpush1.bf16.msra.mxu0 0
  %1253 = vmatprep.subr.bf16.mxu0 0
  %1254 = vmatpush1.bf16.msra.mxu0 0
  %1255 = vmatprep.subr.bf16.mxu0 0
  %1256 = vmatpush1.bf16.msra.mxu0 0
  %1257 = vmatprep.subr.bf16.mxu0 0
  %1258 = vmatpush1.bf16.msra.mxu0 0
  %1259 = vmatprep.subr.bf16.mxu0 0
  %1260 = vmatpush1.bf16.msra.mxu0 0
  %1261 = vmatprep.subr.bf16.mxu0 0
  %1262 = vmatpush1.bf16.msra.mxu0 0
  %1263 = vmatprep.subr.bf16.mxu0 0
  %1264 = vmatpush1.bf16.msra.mxu0 0
  %1265 = vmatprep.subr.bf16.mxu0 0
  %1266 = vmatpush1.bf16.msra.mxu0 0
  %1267 = vmatprep.subr.bf16.mxu0 0
  %1268 = vmatpush1.bf16.msra.mxu0 0
  %1269 = vmatprep.subr.bf16.mxu0 0
  %1270 = vmatpush1.bf16.msra.mxu0 0
  %1271 = vmatprep.subr.bf16.mxu0 0
  %1272 = vmatpush1.bf16.msra.mxu0 0
  %1273 = vmatprep.mubr.bf16.mxu0 0
  %1274 = vmatmul.mubr.bf16.gmra.mrb[0].mxu0 %v1239
  %v1275 = vpop.f32.mrb[0].mxu0
  %v1276 = vadd.f32 %v977, %v1275
  %v1277 = vpop.f32.mrb[0].mxu0
  %v1278 = vpop.f32.mrb[0].mxu0
  %v1279 = vpop.f32.mrb[0].mxu0
  %1280 = vdwg.mxu0
  %1281 = vst [vmem:[%s359] sm:$0xff] %v1276
  %v1282 = vld [vmem:[%s475] sm:$0xff]
  %1283 = vmatprep.subr.bf16.mxu0 0
  %1284 = vmatpush1.bf16.msra.mxu0 %v1047
  %1285 = vmatprep.subr.bf16.mxu0 0
  %1286 = vmatpush1.bf16.msra.mxu0 %v1048
  %1287 = vmatprep.subr.bf16.mxu0 0
  %1288 = vmatpush1.bf16.msra.mxu0 0
  %1289 = vmatprep.subr.bf16.mxu0 0
  %1290 = vmatpush1.bf16.msra.mxu0 0
  %1291 = vmatprep.subr.bf16.mxu0 0
  %1292 = vmatpush1.bf16.msra.mxu0 0
  %1293 = vmatprep.subr.bf16.mxu0 0
  %1294 = vmatpush1.bf16.msra.mxu0 0
  %1295 = vmatprep.subr.bf16.mxu0 0
  %1296 = vmatpush1.bf16.msra.mxu0 0
  %1297 = vmatprep.subr.bf16.mxu0 0
  %1298 = vmatpush1.bf16.msra.mxu0 0
  %1299 = vmatprep.subr.bf16.mxu0 0
  %1300 = vmatpush1.bf16.msra.mxu0 0
  %1301 = vmatprep.subr.bf16.mxu0 0
  %1302 = vmatpush1.bf16.msra.mxu0 0
  %1303 = vmatprep.subr.bf16.mxu0 0
  %1304 = vmatpush1.bf16.msra.mxu0 0
  %1305 = vmatprep.subr.bf16.mxu0 0
  %1306 = vmatpush1.bf16.msra.mxu0 0
  %1307 = vmatprep.subr.bf16.mxu0 0
  %1308 = vmatpush1.bf16.msra.mxu0 0
  %1309 = vmatprep.subr.bf16.mxu0 0
  %1310 = vmatpush1.bf16.msra.mxu0 0
  %1311 = vmatprep.subr.bf16.mxu0 0
  %1312 = vmatpush1.bf16.msra.mxu0 0
  %1313 = vmatprep.subr.bf16.mxu0 0
  %1314 = vmatpush1.bf16.msra.mxu0 0
  %1315 = vmatprep.mubr.bf16.mxu0 0
  %1316 = vmatmul.mubr.bf16.gmra.mrb[0].mxu0 %v1239
  %v1317 = vpop.f32.mrb[0].mxu0
  %v1318 = vadd.f32 0.0, %v1317
  %v1319 = vpop.f32.mrb[0].mxu0
  %v1320 = vpop.f32.mrb[0].mxu0
  %v1321 = vpop.f32.mrb[0].mxu0
  %1322 = vdwg.mxu0
  %v1323 = vadd.f32 %v1282, %v1318
  %v1324 = vxor.u32 %v1323, 2147483648
  %v1325 = vmul.f32 %v1324, 1.442695
  %v1326 = vpow.pop %v1325
  %v1327 = vadd.f32 %v1326, 1.0
  %v1328 = vrcp.pop %v1327
  %v1329 = vmul.f32 1.0, %v1328
  %v1330 = vtanh.pop %v1323
  %v1331 = vmul.f32 %v1329, %v1227
  %1333 = vrot.lane.b32.xlu0 %v1330, 32
  %v1334 = vpop.permute.xlu0 %1333
  %v1336 = vmul.f32 %v1329, %v1334
  %1338 = vrot.lane.b32.xlu0 %v1336, 32
  %v1339 = vpop.permute.xlu0 %1338
  %v1341 = vadd.f32 %v1331, %v1339
  %v1342 = vtanh.pop %v1341
  %1344 = vrot.lane.b32.xlu0 %v1342, 32
  %v1345 = vpop.permute.xlu0 %1344
  %v1347 = vmul.f32 %v1329, %v1345
  %v1348 = vpack.c.bf16 %v1347, %v1347
  %1350 = vrot.lane.b32.xlu0 %v1348, 64
  %v1351 = vpop.permute.xlu0 %1350
  %v1353 = vsel %vm68, %v1351, 0
  %1355 = vmatprep.subr.bf16.mxu0 0
  %1356 = vmatpush1.bf16.msra.mxu0 %v990
  %1357 = vmatprep.subr.bf16.mxu0 0
  %1358 = vmatpush1.bf16.msra.mxu0 %v991
  %1359 = vmatprep.subr.bf16.mxu0 0
  %1360 = vmatpush1.bf16.msra.mxu0 0
  %1361 = vmatprep.subr.bf16.mxu0 0
  %1362 = vmatpush1.bf16.msra.mxu0 0
  %1363 = vmatprep.subr.bf16.mxu0 0
  %1364 = vmatpush1.bf16.msra.mxu0 0
  %1365 = vmatprep.subr.bf16.mxu0 0
  %1366 = vmatpush1.bf16.msra.mxu0 0
  %1367 = vmatprep.subr.bf16.mxu0 0
  %1368 = vmatpush1.bf16.msra.mxu0 0
  %1369 = vmatprep.subr.bf16.mxu0 0
  %1370 = vmatpush1.bf16.msra.mxu0 0
  %1371 = vmatprep.subr.bf16.mxu0 0
  %1372 = vmatpush1.bf16.msra.mxu0 0
  %1373 = vmatprep.subr.bf16.mxu0 0
  %1374 = vmatpush1.bf16.msra.mxu0 0
  %1375 = vmatprep.subr.bf16.mxu0 0
  %1376 = vmatpush1.bf16.msra.mxu0 0
  %1377 = vmatprep.subr.bf16.mxu0 0
  %1378 = vmatpush1.bf16.msra.mxu0 0
  %1379 = vmatprep.subr.bf16.mxu0 0
  %1380 = vmatpush1.bf16.msra.mxu0 0
  %1381 = vmatprep.subr.bf16.mxu0 0
  %1382 = vmatpush1.bf16.msra.mxu0 0
  %1383 = vmatprep.subr.bf16.mxu0 0
  %1384 = vmatpush1.bf16.msra.mxu0 0
  %1385 = vmatprep.subr.bf16.mxu0 0
  %1386 = vmatpush1.bf16.msra.mxu0 0
  %1387 = vmatprep.mubr.bf16.mxu0 0
  %1388 = vmatmul.mubr.bf16.gmra.mrb[0].mxu0 %v1353
  %v1389 = vpop.f32.mrb[0].mxu0
  %v1390 = vadd.f32 %v977, %v1389
  %v1391 = vpop.f32.mrb[0].mxu0
  %v1392 = vpop.f32.mrb[0].mxu0
  %v1393 = vpop.f32.mrb[0].mxu0
  %1394 = vdwg.mxu0
  %1395 = vst [vmem:[%s475] sm:$0xff] %v1390
  %v1396 = vld [vmem:[%s591] sm:$0xff]
  %1397 = vmatprep.subr.bf16.mxu0 0
  %1398 = vmatpush1.bf16.msra.mxu0 %v1047
  %1399 = vmatprep.subr.bf16.mxu0 0
  %1400 = vmatpush1.bf16.msra.mxu0 %v1048
  %1401 = vmatprep.subr.bf16.mxu0 0
  %1402 = vmatpush1.bf16.msra.mxu0 0
  %1403 = vmatprep.subr.bf16.mxu0 0
  %1404 = vmatpush1.bf16.msra.mxu0 0
  %1405 = vmatprep.subr.bf16.mxu0 0
  %1406 = vmatpush1.bf16.msra.mxu0 0
  %1407 = vmatprep.subr.bf16.mxu0 0
  %1408 = vmatpush1.bf16.msra.mxu0 0
  %1409 = vmatprep.subr.bf16.mxu0 0
  %1410 = vmatpush1.bf16.msra.mxu0 0
  %1411 = vmatprep.subr.bf16.mxu0 0
  %1412 = vmatpush1.bf16.msra.mxu0 0
  %1413 = vmatprep.subr.bf16.mxu0 0
  %1414 = vmatpush1.bf16.msra.mxu0 0
  %1415 = vmatprep.subr.bf16.mxu0 0
  %1416 = vmatpush1.bf16.msra.mxu0 0
  %1417 = vmatprep.subr.bf16.mxu0 0
  %1418 = vmatpush1.bf16.msra.mxu0 0
  %1419 = vmatprep.subr.bf16.mxu0 0
  %1420 = vmatpush1.bf16.msra.mxu0 0
  %1421 = vmatprep.subr.bf16.mxu0 0
  %1422 = vmatpush1.bf16.msra.mxu0 0
  %1423 = vmatprep.subr.bf16.mxu0 0
  %1424 = vmatpush1.bf16.msra.mxu0 0
  %1425 = vmatprep.subr.bf16.mxu0 0
  %1426 = vmatpush1.bf16.msra.mxu0 0
  %1427 = vmatprep.subr.bf16.mxu0 0
  %1428 = vmatpush1.bf16.msra.mxu0 0
  %1429 = vmatprep.mubr.bf16.mxu0 0
  %1430 = vmatmul.mubr.bf16.gmra.mrb[0].mxu0 %v1353
  %v1431 = vpop.f32.mrb[0].mxu0
  %v1432 = vadd.f32 0.0, %v1431
  %v1433 = vpop.f32.mrb[0].mxu0
  %v1434 = vpop.f32.mrb[0].mxu0
  %v1435 = vpop.f32.mrb[0].mxu0
  %1436 = vdwg.mxu0
  %v1437 = vadd.f32 %v1396, %v1432
  %v1438 = vxor.u32 %v1437, 2147483648
  %v1439 = vmul.f32 %v1438, 1.442695
  %v1440 = vpow.pop %v1439
  %v1441 = vadd.f32 %v1440, 1.0
  %v1442 = vrcp.pop %v1441
  %v1443 = vmul.f32 1.0, %v1442
  %v1444 = vtanh.pop %v1437
  %v1445 = vmul.f32 %v1443, %v1341
  %1447 = vrot.lane.b32.xlu0 %v1444, 32
  %v1448 = vpop.permute.xlu0 %1447
  %v1450 = vmul.f32 %v1443, %v1448
  %1452 = vrot.lane.b32.xlu0 %v1450, 32
  %v1453 = vpop.permute.xlu0 %1452
  %v1455 = vadd.f32 %v1445, %v1453
  %v1456 = vtanh.pop %v1455
  %1458 = vrot.lane.b32.xlu0 %v1456, 32
  %v1459 = vpop.permute.xlu0 %1458
  %v1461 = vmul.f32 %v1443, %v1459
  %v1462 = vpack.c.bf16 %v1461, %v1461
  %1464 = vrot.lane.b32.xlu0 %v1462, 64
  %v1465 = vpop.permute.xlu0 %1464
  %v1467 = vsel %vm68, %v1465, 0
  %1469 = vmatprep.subr.bf16.mxu0 0
  %1470 = vmatpush1.bf16.msra.mxu0 %v990
  %1471 = vmatprep.subr.bf16.mxu0 0
  %1472 = vmatpush1.bf16.msra.mxu0 %v991
  %1473 = vmatprep.subr.bf16.mxu0 0
  %1474 = vmatpush1.bf16.msra.mxu0 0
  %1475 = vmatprep.subr.bf16.mxu0 0
  %1476 = vmatpush1.bf16.msra.mxu0 0
  %1477 = vmatprep.subr.bf16.mxu0 0
  %1478 = vmatpush1.bf16.msra.mxu0 0
  %1479 = vmatprep.subr.bf16.mxu0 0
  %1480 = vmatpush1.bf16.msra.mxu0 0
  %1481 = vmatprep.subr.bf16.mxu0 0
  %1482 = vmatpush1.bf16.msra.mxu0 0
  %1483 = vmatprep.subr.bf16.mxu0 0
  %1484 = vmatpush1.bf16.msra.mxu0 0
  %1485 = vmatprep.subr.bf16.mxu0 0
  %1486 = vmatpush1.bf16.msra.mxu0 0
  %1487 = vmatprep.subr.bf16.mxu0 0
  %1488 = vmatpush1.bf16.msra.mxu0 0
  %1489 = vmatprep.subr.bf16.mxu0 0
  %1490 = vmatpush1.bf16.msra.mxu0 0
  %1491 = vmatprep.subr.bf16.mxu0 0
  %1492 = vmatpush1.bf16.msra.mxu0 0
  %1493 = vmatprep.subr.bf16.mxu0 0
  %1494 = vmatpush1.bf16.msra.mxu0 0
  %1495 = vmatprep.subr.bf16.mxu0 0
  %1496 = vmatpush1.bf16.msra.mxu0 0
  %1497 = vmatprep.subr.bf16.mxu0 0
  %1498 = vmatpush1.bf16.msra.mxu0 0
  %1499 = vmatprep.subr.bf16.mxu0 0
  %1500 = vmatpush1.bf16.msra.mxu0 0
  %1501 = vmatprep.mubr.bf16.mxu0 0
  %1502 = vmatmul.mubr.bf16.gmra.mrb[0].mxu0 %v1467
  %v1503 = vpop.f32.mrb[0].mxu0
  %v1504 = vadd.f32 %v977, %v1503
  %v1505 = vpop.f32.mrb[0].mxu0
  %v1506 = vpop.f32.mrb[0].mxu0
  %v1507 = vpop.f32.mrb[0].mxu0
  %1508 = vdwg.mxu0
  %1509 = vst [vmem:[%s591] sm:$0xff] %v1504
  %v1510 = vld [vmem:[%s707] sm:$0xff]
  %1511 = vmatprep.subr.bf16.mxu0 0
  %1512 = vmatpush1.bf16.msra.mxu0 %v1047
  %1513 = vmatprep.subr.bf16.mxu0 0
  %1514 = vmatpush1.bf16.msra.mxu0 %v1048
  %1515 = vmatprep.subr.bf16.mxu0 0
  %1516 = vmatpush1.bf16.msra.mxu0 0
  %1517 = vmatprep.subr.bf16.mxu0 0
  %1518 = vmatpush1.bf16.msra.mxu0 0
  %1519 = vmatprep.subr.bf16.mxu0 0
  %1520 = vmatpush1.bf16.msra.mxu0 0
  %1521 = vmatprep.subr.bf16.mxu0 0
  %1522 = vmatpush1.bf16.msra.mxu0 0
  %1523 = vmatprep.subr.bf16.mxu0 0
  %1524 = vmatpush1.bf16.msra.mxu0 0
  %1525 = vmatprep.subr.bf16.mxu0 0
  %1526 = vmatpush1.bf16.msra.mxu0 0
  %1527 = vmatprep.subr.bf16.mxu0 0
  %1528 = vmatpush1.bf16.msra.mxu0 0
  %1529 = vmatprep.subr.bf16.mxu0 0
  %1530 = vmatpush1.bf16.msra.mxu0 0
  %1531 = vmatprep.subr.bf16.mxu0 0
  %1532 = vmatpush1.bf16.msra.mxu0 0
  %1533 = vmatprep.subr.bf16.mxu0 0
  %1534 = vmatpush1.bf16.msra.mxu0 0
  %1535 = vmatprep.subr.bf16.mxu0 0
  %1536 = vmatpush1.bf16.msra.mxu0 0
  %1537 = vmatprep.subr.bf16.mxu0 0
  %1538 = vmatpush1.bf16.msra.mxu0 0
  %1539 = vmatprep.subr.bf16.mxu0 0
  %1540 = vmatpush1.bf16.msra.mxu0 0
  %1541 = vmatprep.subr.bf16.mxu0 0
  %1542 = vmatpush1.bf16.msra.mxu0 0
  %1543 = vmatprep.mubr.bf16.mxu0 0
  %1544 = vmatmul.mubr.bf16.gmra.mrb[0].mxu0 %v1467
  %v1545 = vpop.f32.mrb[0].mxu0
  %v1546 = vadd.f32 0.0, %v1545
  %v1547 = vpop.f32.mrb[0].mxu0
  %v1548 = vpop.f32.mrb[0].mxu0
  %v1549 = vpop.f32.mrb[0].mxu0
  %1550 = vdwg.mxu0
  %v1551 = vadd.f32 %v1510, %v1546
  %v1552 = vxor.u32 %v1551, 2147483648
  %v1553 = vmul.f32 %v1552, 1.442695
  %v1554 = vpow.pop %v1553
  %v1555 = vadd.f32 %v1554, 1.0
  %v1556 = vrcp.pop %v1555
  %v1557 = vmul.f32 1.0, %v1556
  %v1558 = vtanh.pop %v1551
  %v1559 = vmul.f32 %v1557, %v1455
  %1561 = vrot.lane.b32.xlu0 %v1558, 32
  %v1562 = vpop.permute.xlu0 %1561
  %v1564 = vmul.f32 %v1557, %v1562
  %1566 = vrot.lane.b32.xlu0 %v1564, 32
  %v1567 = vpop.permute.xlu0 %1566
  %v1569 = vadd.f32 %v1559, %v1567
  %v1570 = vtanh.pop %v1569
  %1572 = vrot.lane.b32.xlu0 %v1570, 32
  %v1573 = vpop.permute.xlu0 %1572
  %v1575 = vmul.f32 %v1557, %v1573
  %v1576 = vpack.c.bf16 %v1575, %v1575
  %1578 = vrot.lane.b32.xlu0 %v1576, 64
  %v1579 = vpop.permute.xlu0 %1578
  %v1581 = vsel %vm68, %v1579, 0
  %1583 = vmatprep.subr.bf16.mxu0 0
  %1584 = vmatpush1.bf16.msra.mxu0 %v990
  %1585 = vmatprep.subr.bf16.mxu0 0
  %1586 = vmatpush1.bf16.msra.mxu0 %v991
  %1587 = vmatprep.subr.bf16.mxu0 0
  %1588 = vmatpush1.bf16.msra.mxu0 0
  %1589 = vmatprep.subr.bf16.mxu0 0
  %1590 = vmatpush1.bf16.msra.mxu0 0
  %1591 = vmatprep.subr.bf16.mxu0 0
  %1592 = vmatpush1.bf16.msra.mxu0 0
  %1593 = vmatprep.subr.bf16.mxu0 0
  %1594 = vmatpush1.bf16.msra.mxu0 0
  %1595 = vmatprep.subr.bf16.mxu0 0
  %1596 = vmatpush1.bf16.msra.mxu0 0
  %1597 = vmatprep.subr.bf16.mxu0 0
  %1598 = vmatpush1.bf16.msra.mxu0 0
  %1599 = vmatprep.subr.bf16.mxu0 0
  %1600 = vmatpush1.bf16.msra.mxu0 0
  %1601 = vmatprep.subr.bf16.mxu0 0
  %1602 = vmatpush1.bf16.msra.mxu0 0
  %1603 = vmatprep.subr.bf16.mxu0 0
  %1604 = vmatpush1.bf16.msra.mxu0 0
  %1605 = vmatprep.subr.bf16.mxu0 0
  %1606 = vmatpush1.bf16.msra.mxu0 0
  %1607 = vmatprep.subr.bf16.mxu0 0
  %1608 = vmatpush1.bf16.msra.mxu0 0
  %1609 = vmatprep.subr.bf16.mxu0 0
  %1610 = vmatpush1.bf16.msra.mxu0 0
  %1611 = vmatprep.subr.bf16.mxu0 0
  %1612 = vmatpush1.bf16.msra.mxu0 0
  %1613 = vmatprep.subr.bf16.mxu0 0
  %1614 = vmatpush1.bf16.msra.mxu0 0
  %1615 = vmatprep.mubr.bf16.mxu0 0
  %1616 = vmatmul.mubr.bf16.gmra.mrb[0].mxu0 %v1581
  %v1617 = vpop.f32.mrb[0].mxu0
  %v1618 = vadd.f32 %v977, %v1617
  %v1619 = vpop.f32.mrb[0].mxu0
  %v1620 = vpop.f32.mrb[0].mxu0
  %v1621 = vpop.f32.mrb[0].mxu0
  %1622 = vdwg.mxu0
  %1623 = vst [vmem:[%s707] sm:$0xff] %v1618
  %v1624 = vld [vmem:[%s823] sm:$0xff]
  %1625 = vmatprep.subr.bf16.mxu0 0
  %1626 = vmatpush1.bf16.msra.mxu0 %v1047
  %1627 = vmatprep.subr.bf16.mxu0 0
  %1628 = vmatpush1.bf16.msra.mxu0 %v1048
  %1629 = vmatprep.subr.bf16.mxu0 0
  %1630 = vmatpush1.bf16.msra.mxu0 0
  %1631 = vmatprep.subr.bf16.mxu0 0
  %1632 = vmatpush1.bf16.msra.mxu0 0
  %1633 = vmatprep.subr.bf16.mxu0 0
  %1634 = vmatpush1.bf16.msra.mxu0 0
  %1635 = vmatprep.subr.bf16.mxu0 0
  %1636 = vmatpush1.bf16.msra.mxu0 0
  %1637 = vmatprep.subr.bf16.mxu0 0
  %1638 = vmatpush1.bf16.msra.mxu0 0
  %1639 = vmatprep.subr.bf16.mxu0 0
  %1640 = vmatpush1.bf16.msra.mxu0 0
  %1641 = vmatprep.subr.bf16.mxu0 0
  %1642 = vmatpush1.bf16.msra.mxu0 0
  %1643 = vmatprep.subr.bf16.mxu0 0
  %1644 = vmatpush1.bf16.msra.mxu0 0
  %1645 = vmatprep.subr.bf16.mxu0 0
  %1646 = vmatpush1.bf16.msra.mxu0 0
  %1647 = vmatprep.subr.bf16.mxu0 0
  %1648 = vmatpush1.bf16.msra.mxu0 0
  %1649 = vmatprep.subr.bf16.mxu0 0
  %1650 = vmatpush1.bf16.msra.mxu0 0
  %1651 = vmatprep.subr.bf16.mxu0 0
  %1652 = vmatpush1.bf16.msra.mxu0 0
  %1653 = vmatprep.subr.bf16.mxu0 0
  %1654 = vmatpush1.bf16.msra.mxu0 0
  %1655 = vmatprep.subr.bf16.mxu0 0
  %1656 = vmatpush1.bf16.msra.mxu0 0
  %1657 = vmatprep.mubr.bf16.mxu0 0
  %1658 = vmatmul.mubr.bf16.gmra.mrb[0].mxu0 %v1581
  %v1659 = vpop.f32.mrb[0].mxu0
  %v1660 = vadd.f32 0.0, %v1659
  %v1661 = vpop.f32.mrb[0].mxu0
  %v1662 = vpop.f32.mrb[0].mxu0
  %v1663 = vpop.f32.mrb[0].mxu0
  %1664 = vdwg.mxu0
  %v1665 = vadd.f32 %v1624, %v1660
  %v1666 = vxor.u32 %v1665, 2147483648
  %v1667 = vmul.f32 %v1666, 1.442695
  %v1668 = vpow.pop %v1667
  %v1669 = vadd.f32 %v1668, 1.0
  %v1670 = vrcp.pop %v1669
  %v1671 = vmul.f32 1.0, %v1670
  %v1672 = vtanh.pop %v1665
  %v1673 = vmul.f32 %v1671, %v1569
  %1675 = vrot.lane.b32.xlu0 %v1672, 32
  %v1676 = vpop.permute.xlu0 %1675
  %v1678 = vmul.f32 %v1671, %v1676
  %1680 = vrot.lane.b32.xlu0 %v1678, 32
  %v1681 = vpop.permute.xlu0 %1680
  %v1683 = vadd.f32 %v1673, %v1681
  %v1684 = vtanh.pop %v1683
  %1686 = vrot.lane.b32.xlu0 %v1684, 32
  %v1687 = vpop.permute.xlu0 %1686
  %v1689 = vmul.f32 %v1671, %v1687
  %v1690 = vpack.c.bf16 %v1689, %v1689
  %1692 = vrot.lane.b32.xlu0 %v1690, 64
  %v1693 = vpop.permute.xlu0 %1692
  %v1695 = vsel %vm68, %v1693, 0
  %1697 = vmatprep.subr.bf16.mxu0 0
  %1698 = vmatpush1.bf16.msra.mxu0 %v990
  %1699 = vmatprep.subr.bf16.mxu0 0
  %1700 = vmatpush1.bf16.msra.mxu0 %v991
  %1701 = vmatprep.subr.bf16.mxu0 0
  %1702 = vmatpush1.bf16.msra.mxu0 0
  %1703 = vmatprep.subr.bf16.mxu0 0
  %1704 = vmatpush1.bf16.msra.mxu0 0
  %1705 = vmatprep.subr.bf16.mxu0 0
  %1706 = vmatpush1.bf16.msra.mxu0 0
  %1707 = vmatprep.subr.bf16.mxu0 0
  %1708 = vmatpush1.bf16.msra.mxu0 0
  %1709 = vmatprep.subr.bf16.mxu0 0
  %1710 = vmatpush1.bf16.msra.mxu0 0
  %1711 = vmatprep.subr.bf16.mxu0 0
  %1712 = vmatpush1.bf16.msra.mxu0 0
  %1713 = vmatprep.subr.bf16.mxu0 0
  %1714 = vmatpush1.bf16.msra.mxu0 0
  %1715 = vmatprep.subr.bf16.mxu0 0
  %1716 = vmatpush1.bf16.msra.mxu0 0
  %1717 = vmatprep.subr.bf16.mxu0 0
  %1718 = vmatpush1.bf16.msra.mxu0 0
  %1719 = vmatprep.subr.bf16.mxu0 0
  %1720 = vmatpush1.bf16.msra.mxu0 0
  %1721 = vmatprep.subr.bf16.mxu0 0
  %1722 = vmatpush1.bf16.msra.mxu0 0
  %1723 = vmatprep.subr.bf16.mxu0 0
  %1724 = vmatpush1.bf16.msra.mxu0 0
  %1725 = vmatprep.subr.bf16.mxu0 0
  %1726 = vmatpush1.bf16.msra.mxu0 0
  %1727 = vmatprep.subr.bf16.mxu0 0
  %1728 = vmatpush1.bf16.msra.mxu0 0
  %1729 = vmatprep.mubr.bf16.mxu0 0
  %1730 = vmatmul.mubr.bf16.gmra.mrb[0].mxu0 %v1695
  %v1731 = vpop.f32.mrb[0].mxu0
  %v1732 = vadd.f32 %v977, %v1731
  %v1733 = vpop.f32.mrb[0].mxu0
  %v1734 = vpop.f32.mrb[0].mxu0
  %v1735 = vpop.f32.mrb[0].mxu0
  %1736 = vdwg.mxu0
  %1737 = vst [vmem:[%s823] sm:$0xff] %v1732
  %v1738 = vld [vmem:[%s939] sm:$0xff]
  %1739 = vmatprep.subr.bf16.mxu0 0
  %1740 = vmatpush1.bf16.msra.mxu0 %v1047
  %1741 = vmatprep.subr.bf16.mxu0 0
  %1742 = vmatpush1.bf16.msra.mxu0 %v1048
  %1743 = vmatprep.subr.bf16.mxu0 0
  %1744 = vmatpush1.bf16.msra.mxu0 0
  %1745 = vmatprep.subr.bf16.mxu0 0
  %1746 = vmatpush1.bf16.msra.mxu0 0
  %1747 = vmatprep.subr.bf16.mxu0 0
  %1748 = vmatpush1.bf16.msra.mxu0 0
  %1749 = vmatprep.subr.bf16.mxu0 0
  %1750 = vmatpush1.bf16.msra.mxu0 0
  %1751 = vmatprep.subr.bf16.mxu0 0
  %1752 = vmatpush1.bf16.msra.mxu0 0
  %1753 = vmatprep.subr.bf16.mxu0 0
  %1754 = vmatpush1.bf16.msra.mxu0 0
  %1755 = vmatprep.subr.bf16.mxu0 0
  %1756 = vmatpush1.bf16.msra.mxu0 0
  %1757 = vmatprep.subr.bf16.mxu0 0
  %1758 = vmatpush1.bf16.msra.mxu0 0
  %1759 = vmatprep.subr.bf16.mxu0 0
  %1760 = vmatpush1.bf16.msra.mxu0 0
  %1761 = vmatprep.subr.bf16.mxu0 0
  %1762 = vmatpush1.bf16.msra.mxu0 0
  %1763 = vmatprep.subr.bf16.mxu0 0
  %1764 = vmatpush1.bf16.msra.mxu0 0
  %1765 = vmatprep.subr.bf16.mxu0 0
  %1766 = vmatpush1.bf16.msra.mxu0 0
  %1767 = vmatprep.subr.bf16.mxu0 0
  %1768 = vmatpush1.bf16.msra.mxu0 0
  %1769 = vmatprep.subr.bf16.mxu0 0
  %1770 = vmatpush1.bf16.msra.mxu0 0
  %1771 = vmatprep.mubr.bf16.mxu0 0
  %1772 = vmatmul.mubr.bf16.gmra.mrb[0].mxu0 %v1695
  %v1773 = vpop.f32.mrb[0].mxu0
  %v1774 = vadd.f32 0.0, %v1773
  %v1775 = vpop.f32.mrb[0].mxu0
  %v1776 = vpop.f32.mrb[0].mxu0
  %v1777 = vpop.f32.mrb[0].mxu0
  %1778 = vdwg.mxu0
  %v1779 = vadd.f32 %v1738, %v1774
  %v1780 = vxor.u32 %v1779, 2147483648
  %v1781 = vmul.f32 %v1780, 1.442695
  %v1782 = vpow.pop %v1781
  %v1783 = vadd.f32 %v1782, 1.0
  %v1784 = vrcp.pop %v1783
  %v1785 = vmul.f32 1.0, %v1784
  %v1786 = vtanh.pop %v1779
  %v1787 = vmul.f32 %v1785, %v1683
  %1789 = vrot.lane.b32.xlu0 %v1786, 32
  %v1790 = vpop.permute.xlu0 %1789
  %v1792 = vmul.f32 %v1785, %v1790
  %1794 = vrot.lane.b32.xlu0 %v1792, 32
  %v1795 = vpop.permute.xlu0 %1794
  %v1797 = vadd.f32 %v1787, %v1795
  %v1798 = vtanh.pop %v1797
  %1800 = vrot.lane.b32.xlu0 %v1798, 32
  %v1801 = vpop.permute.xlu0 %1800
  %v1803 = vmul.f32 %v1785, %v1801
  %v1804 = vpack.c.bf16 %v1803, %v1803
  %1806 = vrot.lane.b32.xlu0 %v1804, 64
  %v1807 = vpop.permute.xlu0 %1806
  %v1809 = vsel %vm68, %v1807, 0
  %1811 = vmatprep.subr.bf16.mxu0 0
  %1812 = vmatpush1.bf16.msra.mxu0 %v990
  %1813 = vmatprep.subr.bf16.mxu0 0
  %1814 = vmatpush1.bf16.msra.mxu0 %v991
  %1815 = vmatprep.subr.bf16.mxu0 0
  %1816 = vmatpush1.bf16.msra.mxu0 0
  %1817 = vmatprep.subr.bf16.mxu0 0
  %1818 = vmatpush1.bf16.msra.mxu0 0
  %1819 = vmatprep.subr.bf16.mxu0 0
  %1820 = vmatpush1.bf16.msra.mxu0 0
  %1821 = vmatprep.subr.bf16.mxu0 0
  %1822 = vmatpush1.bf16.msra.mxu0 0
  %1823 = vmatprep.subr.bf16.mxu0 0
  %1824 = vmatpush1.bf16.msra.mxu0 0
  %1825 = vmatprep.subr.bf16.mxu0 0
  %1826 = vmatpush1.bf16.msra.mxu0 0
  %1827 = vmatprep.subr.bf16.mxu0 0
  %1828 = vmatpush1.bf16.msra.mxu0 0
  %1829 = vmatprep.subr.bf16.mxu0 0
  %1830 = vmatpush1.bf16.msra.mxu0 0
  %1831 = vmatprep.subr.bf16.mxu0 0
  %1832 = vmatpush1.bf16.msra.mxu0 0
  %1833 = vmatprep.subr.bf16.mxu0 0
  %1834 = vmatpush1.bf16.msra.mxu0 0
  %1835 = vmatprep.subr.bf16.mxu0 0
  %1836 = vmatpush1.bf16.msra.mxu0 0
  %1837 = vmatprep.subr.bf16.mxu0 0
  %1838 = vmatpush1.bf16.msra.mxu0 0
  %1839 = vmatprep.subr.bf16.mxu0 0
  %1840 = vmatpush1.bf16.msra.mxu0 0
  %1841 = vmatprep.subr.bf16.mxu0 0
  %1842 = vmatpush1.bf16.msra.mxu0 0
  %1843 = vmatprep.mubr.bf16.mxu0 0
  %1844 = vmatmul.mubr.bf16.gmra.mrb[0].mxu0 %v1809
  %v1845 = vpop.f32.mrb[0].mxu0
  %v1846 = vadd.f32 %v977, %v1845
  %v1847 = vpop.f32.mrb[0].mxu0
  %v1848 = vpop.f32.mrb[0].mxu0
  %v1849 = vpop.f32.mrb[0].mxu0
  %1850 = vdwg.mxu0
  %1851 = vst [vmem:[%s939] sm:$0xff] %v1846
  %s1852 = scalar_lea.vmem %s2, 32
  %v1853 = vld [vmem:[%s1852] sm:$0xf]
  %v1854 = vld [vmem:[%s1852 + $0x4] sm:$0xf]
  %v1855 = vld [vmem:[%s1852 + $0x8] sm:$0xf]
  %v1856 = vld [vmem:[%s1852 + $0xc] sm:$0xf]
  %s1857 = scalar_lea.vmem %s1, 32
  %v1858 = vld [vmem:[%s1857] sm:$0xf]
  %v1859 = vld [vmem:[%s1857 + $0x4] sm:$0xf]
  %v1860 = vld [vmem:[%s1857 + $0x8] sm:$0xf]
  %v1861 = vld [vmem:[%s1857 + $0xc] sm:$0xf]
  %s1862 = scalar_lea.vmem %s3, 2
  %v1863 = vld [vmem:[%s1862] sm:$0x1]
  %v1864 = vld [vmem:[#allocation2] sm:$0xff]
  %v1865 = vxor.u32 %v1864, 2147483648
  %v1866 = vmul.f32 %v1865, 1.442695
  %v1867 = vpow.pop %v1866
  %v1868 = vadd.f32 %v1867, 1.0
  %v1869 = vrcp.pop %v1868
  %v1870 = vmul.f32 1.0, %v1869
  %v1871 = vtanh.pop %v1864
  %1873 = vrot.lane.b32.xlu0 %v1871, 32
  %v1874 = vpop.permute.xlu0 %1873
  %v1876 = vmul.f32 %v1870, %v1874
  %v1877 = vtanh.pop %v1876
  %1879 = vrot.lane.b32.xlu0 %v1877, 64
  %v1880 = vpop.permute.xlu0 %1879
  %v1882 = vmul.f32 %v1870, %v1880
  %v1883 = vpack.c.bf16 %v1882, %v1882
  %v1885 = vlaneseq
  %v1886 = vshrl.u32 %v1885, 7
  %v1887 = vsub.s32 0, %v1886
  %v1888 = vrot.slane %v1863, %v1887
  %1891 = vrot.lane.b32.xlu0 %v1883, 64
  %v1892 = vpop.permute.xlu0 %1891
  %v1897 = vunpack.c.l.b16 %v1858
  %v1898 = vunpack.c.l.b16 %v1859
  %v1899 = vunpack.c.l.b16 %v1860
  %v1900 = vunpack.c.l.b16 %v1861
  %v1901 = vpack.c.b16 %v1898, %v1897
  %v1902 = vpack.c.b16 %v1900, %v1899
  %v1906 = vsel %vm68, %v1892, 0
  %1908 = vmatprep.subr.bf16.mxu0 0
  %1909 = vmatpush1.bf16.msra.mxu0 %v1901
  %1910 = vmatprep.subr.bf16.mxu0 0
  %1911 = vmatpush1.bf16.msra.mxu0 %v1902
  %1912 = vmatprep.subr.bf16.mxu0 0
  %1913 = vmatpush1.bf16.msra.mxu0 0
  %1914 = vmatprep.subr.bf16.mxu0 0
  %1915 = vmatpush1.bf16.msra.mxu0 0
  %1916 = vmatprep.subr.bf16.mxu0 0
  %1917 = vmatpush1.bf16.msra.mxu0 0
  %1918 = vmatprep.subr.bf16.mxu0 0
  %1919 = vmatpush1.bf16.msra.mxu0 0
  %1920 = vmatprep.subr.bf16.mxu0 0
  %1921 = vmatpush1.bf16.msra.mxu0 0
  %1922 = vmatprep.subr.bf16.mxu0 0
  %1923 = vmatpush1.bf16.msra.mxu0 0
  %1924 = vmatprep.subr.bf16.mxu0 0
  %1925 = vmatpush1.bf16.msra.mxu0 0
  %1926 = vmatprep.subr.bf16.mxu0 0
  %1927 = vmatpush1.bf16.msra.mxu0 0
  %1928 = vmatprep.subr.bf16.mxu0 0
  %1929 = vmatpush1.bf16.msra.mxu0 0
  %1930 = vmatprep.subr.bf16.mxu0 0
  %1931 = vmatpush1.bf16.msra.mxu0 0
  %1932 = vmatprep.subr.bf16.mxu0 0
  %1933 = vmatpush1.bf16.msra.mxu0 0
  %1934 = vmatprep.subr.bf16.mxu0 0
  %1935 = vmatpush1.bf16.msra.mxu0 0
  %1936 = vmatprep.subr.bf16.mxu0 0
  %1937 = vmatpush1.bf16.msra.mxu0 0
  %1938 = vmatprep.subr.bf16.mxu0 0
  %1939 = vmatpush1.bf16.msra.mxu0 0
  %1940 = vmatprep.mubr.bf16.mxu0 0
  %1941 = vmatmul.mubr.bf16.gmra.mrb[0].mxu0 %v1906
  %v1942 = vpop.f32.mrb[0].mxu0
  %v1943 = vadd.f32 %v1888, %v1942
  %v1944 = vpop.f32.mrb[0].mxu0
  %v1945 = vpop.f32.mrb[0].mxu0
  %v1946 = vpop.f32.mrb[0].mxu0
  %1947 = vdwg.mxu0
  %1948 = vst [vmem:[#allocation2] sm:$0xff] %v1943
  %v1949 = vld [vmem:[%s243] sm:$0xff]
  %v1954 = vunpack.c.l.b16 %v1853
  %v1955 = vunpack.c.l.b16 %v1854
  %v1956 = vunpack.c.l.b16 %v1855
  %v1957 = vunpack.c.l.b16 %v1856
  %v1958 = vpack.c.b16 %v1955, %v1954
  %v1959 = vpack.c.b16 %v1957, %v1956
  %1962 = vmatprep.subr.bf16.mxu0 0
  %1963 = vmatpush1.bf16.msra.mxu0 %v1958
  %1964 = vmatprep.subr.bf16.mxu0 0
  %1965 = vmatpush1.bf16.msra.mxu0 %v1959
  %1966 = vmatprep.subr.bf16.mxu0 0
  %1967 = vmatpush1.bf16.msra.mxu0 0
  %1968 = vmatprep.subr.bf16.mxu0 0
  %1969 = vmatpush1.bf16.msra.mxu0 0
  %1970 = vmatprep.subr.bf16.mxu0 0
  %1971 = vmatpush1.bf16.msra.mxu0 0
  %1972 = vmatprep.subr.bf16.mxu0 0
  %1973 = vmatpush1.bf16.msra.mxu0 0
  %1974 = vmatprep.subr.bf16.mxu0 0
  %1975 = vmatpush1.bf16.msra.mxu0 0
  %1976 = vmatprep.subr.bf16.mxu0 0
  %1977 = vmatpush1.bf16.msra.mxu0 0
  %1978 = vmatprep.subr.bf16.mxu0 0
  %1979 = vmatpush1.bf16.msra.mxu0 0
  %1980 = vmatprep.subr.bf16.mxu0 0
  %1981 = vmatpush1.bf16.msra.mxu0 0
  %1982 = vmatprep.subr.bf16.mxu0 0
  %1983 = vmatpush1.bf16.msra.mxu0 0
  %1984 = vmatprep.subr.bf16.mxu0 0
  %1985 = vmatpush1.bf16.msra.mxu0 0
  %1986 = vmatprep.subr.bf16.mxu0 0
  %1987 = vmatpush1.bf16.msra.mxu0 0
  %1988 = vmatprep.subr.bf16.mxu0 0
  %1989 = vmatpush1.bf16.msra.mxu0 0
  %1990 = vmatprep.subr.bf16.mxu0 0
  %1991 = vmatpush1.bf16.msra.mxu0 0
  %1992 = vmatprep.subr.bf16.mxu0 0
  %1993 = vmatpush1.bf16.msra.mxu0 0
  %1994 = vmatprep.mubr.bf16.mxu0 0
  %1995 = vmatmul.mubr.bf16.gmra.mrb[0].mxu0 %v1906
  %v1996 = vpop.f32.mrb[0].mxu0
  %v1997 = vadd.f32 0.0, %v1996
  %v1998 = vpop.f32.mrb[0].mxu0
  %v1999 = vpop.f32.mrb[0].mxu0
  %v2000 = vpop.f32.mrb[0].mxu0
  %2001 = vdwg.mxu0
  %v2002 = vadd.f32 %v1949, %v1997
  %v2003 = vxor.u32 %v2002, 2147483648
  %v2004 = vmul.f32 %v2003, 1.442695
  %v2005 = vpow.pop %v2004
  %v2006 = vadd.f32 %v2005, 1.0
  %v2007 = vrcp.pop %v2006
  %v2008 = vmul.f32 1.0, %v2007
  %v2009 = vtanh.pop %v2002
  %2011 = vrot.lane.b32.xlu0 %v1876, 32
  %v2012 = vpop.permute.xlu0 %2011
  %v2014 = vmul.f32 %v2008, %v2012
  %2016 = vrot.lane.b32.xlu0 %v2009, 32
  %v2017 = vpop.permute.xlu0 %2016
  %v2019 = vmul.f32 %v2008, %v2017
  %2021 = vrot.lane.b32.xlu0 %v2019, 32
  %v2022 = vpop.permute.xlu0 %2021
  %v2024 = vadd.f32 %v2014, %v2022
  %v2025 = vtanh.pop %v2024
  %2027 = vrot.lane.b32.xlu0 %v2025, 32
  %v2028 = vpop.permute.xlu0 %2027
  %v2030 = vmul.f32 %v2008, %v2028
  %v2031 = vpack.c.bf16 %v2030, %v2030
  %2033 = vrot.lane.b32.xlu0 %v2031, 64
  %v2034 = vpop.permute.xlu0 %2033
  %v2036 = vsel %vm68, %v2034, 0
  %2038 = vmatprep.subr.bf16.mxu0 0
  %2039 = vmatpush1.bf16.msra.mxu0 %v1901
  %2040 = vmatprep.subr.bf16.mxu0 0
  %2041 = vmatpush1.bf16.msra.mxu0 %v1902
  %2042 = vmatprep.subr.bf16.mxu0 0
  %2043 = vmatpush1.bf16.msra.mxu0 0
  %2044 = vmatprep.subr.bf16.mxu0 0
  %2045 = vmatpush1.bf16.msra.mxu0 0
  %2046 = vmatprep.subr.bf16.mxu0 0
  %2047 = vmatpush1.bf16.msra.mxu0 0
  %2048 = vmatprep.subr.bf16.mxu0 0
  %2049 = vmatpush1.bf16.msra.mxu0 0
  %2050 = vmatprep.subr.bf16.mxu0 0
  %2051 = vmatpush1.bf16.msra.mxu0 0
  %2052 = vmatprep.subr.bf16.mxu0 0
  %2053 = vmatpush1.bf16.msra.mxu0 0
  %2054 = vmatprep.subr.bf16.mxu0 0
  %2055 = vmatpush1.bf16.msra.mxu0 0
  %2056 = vmatprep.subr.bf16.mxu0 0
  %2057 = vmatpush1.bf16.msra.mxu0 0
  %2058 = vmatprep.subr.bf16.mxu0 0
  %2059 = vmatpush1.bf16.msra.mxu0 0
  %2060 = vmatprep.subr.bf16.mxu0 0
  %2061 = vmatpush1.bf16.msra.mxu0 0
  %2062 = vmatprep.subr.bf16.mxu0 0
  %2063 = vmatpush1.bf16.msra.mxu0 0
  %2064 = vmatprep.subr.bf16.mxu0 0
  %2065 = vmatpush1.bf16.msra.mxu0 0
  %2066 = vmatprep.subr.bf16.mxu0 0
  %2067 = vmatpush1.bf16.msra.mxu0 0
  %2068 = vmatprep.subr.bf16.mxu0 0
  %2069 = vmatpush1.bf16.msra.mxu0 0
  %2070 = vmatprep.mubr.bf16.mxu0 0
  %2071 = vmatmul.mubr.bf16.gmra.mrb[0].mxu0 %v2036
  %v2072 = vpop.f32.mrb[0].mxu0
  %v2073 = vadd.f32 %v1888, %v2072
  %v2074 = vpop.f32.mrb[0].mxu0
  %v2075 = vpop.f32.mrb[0].mxu0
  %v2076 = vpop.f32.mrb[0].mxu0
  %2077 = vdwg.mxu0
  %2078 = vst [vmem:[%s243] sm:$0xff] %v2073
  %v2079 = vld [vmem:[%s359] sm:$0xff]
  %2080 = vmatprep.subr.bf16.mxu0 0
  %2081 = vmatpush1.bf16.msra.mxu0 %v1958
  %2082 = vmatprep.subr.bf16.mxu0 0
  %2083 = vmatpush1.bf16.msra.mxu0 %v1959
  %2084 = vmatprep.subr.bf16.mxu0 0
  %2085 = vmatpush1.bf16.msra.mxu0 0
  %2086 = vmatprep.subr.bf16.mxu0 0
  %2087 = vmatpush1.bf16.msra.mxu0 0
  %2088 = vmatprep.subr.bf16.mxu0 0
  %2089 = vmatpush1.bf16.msra.mxu0 0
  %2090 = vmatprep.subr.bf16.mxu0 0
  %2091 = vmatpush1.bf16.msra.mxu0 0
  %2092 = vmatprep.subr.bf16.mxu0 0
  %2093 = vmatpush1.bf16.msra.mxu0 0
  %2094 = vmatprep.subr.bf16.mxu0 0
  %2095 = vmatpush1.bf16.msra.mxu0 0
  %2096 = vmatprep.subr.bf16.mxu0 0
  %2097 = vmatpush1.bf16.msra.mxu0 0
  %2098 = vmatprep.subr.bf16.mxu0 0
  %2099 = vmatpush1.bf16.msra.mxu0 0
  %2100 = vmatprep.subr.bf16.mxu0 0
  %2101 = vmatpush1.bf16.msra.mxu0 0
  %2102 = vmatprep.subr.bf16.mxu0 0
  %2103 = vmatpush1.bf16.msra.mxu0 0
  %2104 = vmatprep.subr.bf16.mxu0 0
  %2105 = vmatpush1.bf16.msra.mxu0 0
  %2106 = vmatprep.subr.bf16.mxu0 0
  %2107 = vmatpush1.bf16.msra.mxu0 0
  %2108 = vmatprep.subr.bf16.mxu0 0
  %2109 = vmatpush1.bf16.msra.mxu0 0
  %2110 = vmatprep.subr.bf16.mxu0 0
  %2111 = vmatpush1.bf16.msra.mxu0 0
  %2112 = vmatprep.mubr.bf16.mxu0 0
  %2113 = vmatmul.mubr.bf16.gmra.mrb[0].mxu0 %v2036
  %v2114 = vpop.f32.mrb[0].mxu0
  %v2115 = vadd.f32 0.0, %v2114
  %v2116 = vpop.f32.mrb[0].mxu0
  %v2117 = vpop.f32.mrb[0].mxu0
  %v2118 = vpop.f32.mrb[0].mxu0
  %2119 = vdwg.mxu0
  %v2120 = vadd.f32 %v2079, %v2115
  %v2121 = vxor.u32 %v2120, 2147483648
  %v2122 = vmul.f32 %v2121, 1.442695
  %v2123 = vpow.pop %v2122
  %v2124 = vadd.f32 %v2123, 1.0
  %v2125 = vrcp.pop %v2124
  %v2126 = vmul.f32 1.0, %v2125
  %v2127 = vtanh.pop %v2120
  %v2128 = vmul.f32 %v2126, %v2024
  %2130 = vrot.lane.b32.xlu0 %v2127, 32
  %v2131 = vpop.permute.xlu0 %2130
  %v2133 = vmul.f32 %v2126, %v2131
  %2135 = vrot.lane.b32.xlu0 %v2133, 32
  %v2136 = vpop.permute.xlu0 %2135
  %v2138 = vadd.f32 %v2128, %v2136
  %v2139 = vtanh.pop %v2138
  %2141 = vrot.lane.b32.xlu0 %v2139, 32
  %v2142 = vpop.permute.xlu0 %2141
  %v2144 = vmul.f32 %v2126, %v2142
  %v2145 = vpack.c.bf16 %v2144, %v2144
  %2147 = vrot.lane.b32.xlu0 %v2145, 64
  %v2148 = vpop.permute.xlu0 %2147
  %v2150 = vsel %vm68, %v2148, 0
  %2152 = vmatprep.subr.bf16.mxu0 0
  %2153 = vmatpush1.bf16.msra.mxu0 %v1901
  %2154 = vmatprep.subr.bf16.mxu0 0
  %2155 = vmatpush1.bf16.msra.mxu0 %v1902
  %2156 = vmatprep.subr.bf16.mxu0 0
  %2157 = vmatpush1.bf16.msra.mxu0 0
  %2158 = vmatprep.subr.bf16.mxu0 0
  %2159 = vmatpush1.bf16.msra.mxu0 0
  %2160 = vmatprep.subr.bf16.mxu0 0
  %2161 = vmatpush1.bf16.msra.mxu0 0
  %2162 = vmatprep.subr.bf16.mxu0 0
  %2163 = vmatpush1.bf16.msra.mxu0 0
  %2164 = vmatprep.subr.bf16.mxu0 0
  %2165 = vmatpush1.bf16.msra.mxu0 0
  %2166 = vmatprep.subr.bf16.mxu0 0
  %2167 = vmatpush1.bf16.msra.mxu0 0
  %2168 = vmatprep.subr.bf16.mxu0 0
  %2169 = vmatpush1.bf16.msra.mxu0 0
  %2170 = vmatprep.subr.bf16.mxu0 0
  %2171 = vmatpush1.bf16.msra.mxu0 0
  %2172 = vmatprep.subr.bf16.mxu0 0
  %2173 = vmatpush1.bf16.msra.mxu0 0
  %2174 = vmatprep.subr.bf16.mxu0 0
  %2175 = vmatpush1.bf16.msra.mxu0 0
  %2176 = vmatprep.subr.bf16.mxu0 0
  %2177 = vmatpush1.bf16.msra.mxu0 0
  %2178 = vmatprep.subr.bf16.mxu0 0
  %2179 = vmatpush1.bf16.msra.mxu0 0
  %2180 = vmatprep.subr.bf16.mxu0 0
  %2181 = vmatpush1.bf16.msra.mxu0 0
  %2182 = vmatprep.subr.bf16.mxu0 0
  %2183 = vmatpush1.bf16.msra.mxu0 0
  %2184 = vmatprep.mubr.bf16.mxu0 0
  %2185 = vmatmul.mubr.bf16.gmra.mrb[0].mxu0 %v2150
  %v2186 = vpop.f32.mrb[0].mxu0
  %v2187 = vadd.f32 %v1888, %v2186
  %v2188 = vpop.f32.mrb[0].mxu0
  %v2189 = vpop.f32.mrb[0].mxu0
  %v2190 = vpop.f32.mrb[0].mxu0
  %2191 = vdwg.mxu0
  %2192 = vst [vmem:[%s359] sm:$0xff] %v2187
  %v2193 = vld [vmem:[%s475] sm:$0xff]
  %2194 = vmatprep.subr.bf16.mxu0 0
  %2195 = vmatpush1.bf16.msra.mxu0 %v1958
  %2196 = vmatprep.subr.bf16.mxu0 0
  %2197 = vmatpush1.bf16.msra.mxu0 %v1959
  %2198 = vmatprep.subr.bf16.mxu0 0
  %2199 = vmatpush1.bf16.msra.mxu0 0
  %2200 = vmatprep.subr.bf16.mxu0 0
  %2201 = vmatpush1.bf16.msra.mxu0 0
  %2202 = vmatprep.subr.bf16.mxu0 0
  %2203 = vmatpush1.bf16.msra.mxu0 0
  %2204 = vmatprep.subr.bf16.mxu0 0
  %2205 = vmatpush1.bf16.msra.mxu0 0
  %2206 = vmatprep.subr.bf16.mxu0 0
  %2207 = vmatpush1.bf16.msra.mxu0 0
  %2208 = vmatprep.subr.bf16.mxu0 0
  %2209 = vmatpush1.bf16.msra.mxu0 0
  %2210 = vmatprep.subr.bf16.mxu0 0
  %2211 = vmatpush1.bf16.msra.mxu0 0
  %2212 = vmatprep.subr.bf16.mxu0 0
  %2213 = vmatpush1.bf16.msra.mxu0 0
  %2214 = vmatprep.subr.bf16.mxu0 0
  %2215 = vmatpush1.bf16.msra.mxu0 0
  %2216 = vmatprep.subr.bf16.mxu0 0
  %2217 = vmatpush1.bf16.msra.mxu0 0
  %2218 = vmatprep.subr.bf16.mxu0 0
  %2219 = vmatpush1.bf16.msra.mxu0 0
  %2220 = vmatprep.subr.bf16.mxu0 0
  %2221 = vmatpush1.bf16.msra.mxu0 0
  %2222 = vmatprep.subr.bf16.mxu0 0
  %2223 = vmatpush1.bf16.msra.mxu0 0
  %2224 = vmatprep.subr.bf16.mxu0 0
  %2225 = vmatpush1.bf16.msra.mxu0 0
  %2226 = vmatprep.mubr.bf16.mxu0 0
  %2227 = vmatmul.mubr.bf16.gmra.mrb[0].mxu0 %v2150
  %v2228 = vpop.f32.mrb[0].mxu0
  %v2229 = vadd.f32 0.0, %v2228
  %v2230 = vpop.f32.mrb[0].mxu0
  %v2231 = vpop.f32.mrb[0].mxu0
  %v2232 = vpop.f32.mrb[0].mxu0
  %2233 = vdwg.mxu0
  %v2234 = vadd.f32 %v2193, %v2229
  %v2235 = vxor.u32 %v2234, 2147483648
  %v2236 = vmul.f32 %v2235, 1.442695
  %v2237 = vpow.pop %v2236
  %v2238 = vadd.f32 %v2237, 1.0
  %v2239 = vrcp.pop %v2238
  %v2240 = vmul.f32 1.0, %v2239
  %v2241 = vtanh.pop %v2234
  %v2242 = vmul.f32 %v2240, %v2138
  %2244 = vrot.lane.b32.xlu0 %v2241, 32
  %v2245 = vpop.permute.xlu0 %2244
  %v2247 = vmul.f32 %v2240, %v2245
  %2249 = vrot.lane.b32.xlu0 %v2247, 32
  %v2250 = vpop.permute.xlu0 %2249
  %v2252 = vadd.f32 %v2242, %v2250
  %v2253 = vtanh.pop %v2252
  %2255 = vrot.lane.b32.xlu0 %v2253, 32
  %v2256 = vpop.permute.xlu0 %2255
  %v2258 = vmul.f32 %v2240, %v2256
  %v2259 = vpack.c.bf16 %v2258, %v2258
  %2261 = vrot.lane.b32.xlu0 %v2259, 64
  %v2262 = vpop.permute.xlu0 %2261
  %v2264 = vsel %vm68, %v2262, 0
  %2266 = vmatprep.subr.bf16.mxu0 0
  %2267 = vmatpush1.bf16.msra.mxu0 %v1901
  %2268 = vmatprep.subr.bf16.mxu0 0
  %2269 = vmatpush1.bf16.msra.mxu0 %v1902
  %2270 = vmatprep.subr.bf16.mxu0 0
  %2271 = vmatpush1.bf16.msra.mxu0 0
  %2272 = vmatprep.subr.bf16.mxu0 0
  %2273 = vmatpush1.bf16.msra.mxu0 0
  %2274 = vmatprep.subr.bf16.mxu0 0
  %2275 = vmatpush1.bf16.msra.mxu0 0
  %2276 = vmatprep.subr.bf16.mxu0 0
  %2277 = vmatpush1.bf16.msra.mxu0 0
  %2278 = vmatprep.subr.bf16.mxu0 0
  %2279 = vmatpush1.bf16.msra.mxu0 0
  %2280 = vmatprep.subr.bf16.mxu0 0
  %2281 = vmatpush1.bf16.msra.mxu0 0
  %2282 = vmatprep.subr.bf16.mxu0 0
  %2283 = vmatpush1.bf16.msra.mxu0 0
  %2284 = vmatprep.subr.bf16.mxu0 0
  %2285 = vmatpush1.bf16.msra.mxu0 0
  %2286 = vmatprep.subr.bf16.mxu0 0
  %2287 = vmatpush1.bf16.msra.mxu0 0
  %2288 = vmatprep.subr.bf16.mxu0 0
  %2289 = vmatpush1.bf16.msra.mxu0 0
  %2290 = vmatprep.subr.bf16.mxu0 0
  %2291 = vmatpush1.bf16.msra.mxu0 0
  %2292 = vmatprep.subr.bf16.mxu0 0
  %2293 = vmatpush1.bf16.msra.mxu0 0
  %2294 = vmatprep.subr.bf16.mxu0 0
  %2295 = vmatpush1.bf16.msra.mxu0 0
  %2296 = vmatprep.subr.bf16.mxu0 0
  %2297 = vmatpush1.bf16.msra.mxu0 0
  %2298 = vmatprep.mubr.bf16.mxu0 0
  %2299 = vmatmul.mubr.bf16.gmra.mrb[0].mxu0 %v2264
  %v2300 = vpop.f32.mrb[0].mxu0
  %v2301 = vadd.f32 %v1888, %v2300
  %v2302 = vpop.f32.mrb[0].mxu0
  %v2303 = vpop.f32.mrb[0].mxu0
  %v2304 = vpop.f32.mrb[0].mxu0
  %2305 = vdwg.mxu0
  %2306 = vst [vmem:[%s475] sm:$0xff] %v2301
  %v2307 = vld [vmem:[%s591] sm:$0xff]
  %2308 = vmatprep.subr.bf16.mxu0 0
  %2309 = vmatpush1.bf16.msra.mxu0 %v1958
  %2310 = vmatprep.subr.bf16.mxu0 0
  %2311 = vmatpush1.bf16.msra.mxu0 %v1959
  %2312 = vmatprep.subr.bf16.mxu0 0
  %2313 = vmatpush1.bf16.msra.mxu0 0
  %2314 = vmatprep.subr.bf16.mxu0 0
  %2315 = vmatpush1.bf16.msra.mxu0 0
  %2316 = vmatprep.subr.bf16.mxu0 0
  %2317 = vmatpush1.bf16.msra.mxu0 0
  %2318 = vmatprep.subr.bf16.mxu0 0
  %2319 = vmatpush1.bf16.msra.mxu0 0
  %2320 = vmatprep.subr.bf16.mxu0 0
  %2321 = vmatpush1.bf16.msra.mxu0 0
  %2322 = vmatprep.subr.bf16.mxu0 0
  %2323 = vmatpush1.bf16.msra.mxu0 0
  %2324 = vmatprep.subr.bf16.mxu0 0
  %2325 = vmatpush1.bf16.msra.mxu0 0
  %2326 = vmatprep.subr.bf16.mxu0 0
  %2327 = vmatpush1.bf16.msra.mxu0 0
  %2328 = vmatprep.subr.bf16.mxu0 0
  %2329 = vmatpush1.bf16.msra.mxu0 0
  %2330 = vmatprep.subr.bf16.mxu0 0
  %2331 = vmatpush1.bf16.msra.mxu0 0
  %2332 = vmatprep.subr.bf16.mxu0 0
  %2333 = vmatpush1.bf16.msra.mxu0 0
  %2334 = vmatprep.subr.bf16.mxu0 0
  %2335 = vmatpush1.bf16.msra.mxu0 0
  %2336 = vmatprep.subr.bf16.mxu0 0
  %2337 = vmatpush1.bf16.msra.mxu0 0
  %2338 = vmatprep.subr.bf16.mxu0 0
  %2339 = vmatpush1.bf16.msra.mxu0 0
  %2340 = vmatprep.mubr.bf16.mxu0 0
  %2341 = vmatmul.mubr.bf16.gmra.mrb[0].mxu0 %v2264
  %v2342 = vpop.f32.mrb[0].mxu0
  %v2343 = vadd.f32 0.0, %v2342
  %v2344 = vpop.f32.mrb[0].mxu0
  %v2345 = vpop.f32.mrb[0].mxu0
  %v2346 = vpop.f32.mrb[0].mxu0
  %2347 = vdwg.mxu0
  %v2348 = vadd.f32 %v2307, %v2343
  %v2349 = vxor.u32 %v2348, 2147483648
  %v2350 = vmul.f32 %v2349, 1.442695
  %v2351 = vpow.pop %v2350
  %v2352 = vadd.f32 %v2351, 1.0
  %v2353 = vrcp.pop %v2352
  %v2354 = vmul.f32 1.0, %v2353
  %v2355 = vtanh.pop %v2348
  %v2356 = vmul.f32 %v2354, %v2252
  %2358 = vrot.lane.b32.xlu0 %v2355, 32
  %v2359 = vpop.permute.xlu0 %2358
  %v2361 = vmul.f32 %v2354, %v2359
  %2363 = vrot.lane.b32.xlu0 %v2361, 32
  %v2364 = vpop.permute.xlu0 %2363
  %v2366 = vadd.f32 %v2356, %v2364
  %v2367 = vtanh.pop %v2366
  %2369 = vrot.lane.b32.xlu0 %v2367, 32
  %v2370 = vpop.permute.xlu0 %2369
  %v2372 = vmul.f32 %v2354, %v2370
  %v2373 = vpack.c.bf16 %v2372, %v2372
  %2375 = vrot.lane.b32.xlu0 %v2373, 64
  %v2376 = vpop.permute.xlu0 %2375
  %v2378 = vsel %vm68, %v2376, 0
  %2380 = vmatprep.subr.bf16.mxu0 0
  %2381 = vmatpush1.bf16.msra.mxu0 %v1901
  %2382 = vmatprep.subr.bf16.mxu0 0
  %2383 = vmatpush1.bf16.msra.mxu0 %v1902
  %2384 = vmatprep.subr.bf16.mxu0 0
  %2385 = vmatpush1.bf16.msra.mxu0 0
  %2386 = vmatprep.subr.bf16.mxu0 0
  %2387 = vmatpush1.bf16.msra.mxu0 0
  %2388 = vmatprep.subr.bf16.mxu0 0
  %2389 = vmatpush1.bf16.msra.mxu0 0
  %2390 = vmatprep.subr.bf16.mxu0 0
  %2391 = vmatpush1.bf16.msra.mxu0 0
  %2392 = vmatprep.subr.bf16.mxu0 0
  %2393 = vmatpush1.bf16.msra.mxu0 0
  %2394 = vmatprep.subr.bf16.mxu0 0
  %2395 = vmatpush1.bf16.msra.mxu0 0
  %2396 = vmatprep.subr.bf16.mxu0 0
  %2397 = vmatpush1.bf16.msra.mxu0 0
  %2398 = vmatprep.subr.bf16.mxu0 0
  %2399 = vmatpush1.bf16.msra.mxu0 0
  %2400 = vmatprep.subr.bf16.mxu0 0
  %2401 = vmatpush1.bf16.msra.mxu0 0
  %2402 = vmatprep.subr.bf16.mxu0 0
  %2403 = vmatpush1.bf16.msra.mxu0 0
  %2404 = vmatprep.subr.bf16.mxu0 0
  %2405 = vmatpush1.bf16.msra.mxu0 0
  %2406 = vmatprep.subr.bf16.mxu0 0
  %2407 = vmatpush1.bf16.msra.mxu0 0
  %2408 = vmatprep.subr.bf16.mxu0 0
  %2409 = vmatpush1.bf16.msra.mxu0 0
  %2410 = vmatprep.subr.bf16.mxu0 0
  %2411 = vmatpush1.bf16.msra.mxu0 0
  %2412 = vmatprep.mubr.bf16.mxu0 0
  %2413 = vmatmul.mubr.bf16.gmra.mrb[0].mxu0 %v2378
  %v2414 = vpop.f32.mrb[0].mxu0
  %v2415 = vadd.f32 %v1888, %v2414
  %v2416 = vpop.f32.mrb[0].mxu0
  %v2417 = vpop.f32.mrb[0].mxu0
  %v2418 = vpop.f32.mrb[0].mxu0
  %2419 = vdwg.mxu0
  %2420 = vst [vmem:[%s591] sm:$0xff] %v2415
  %v2421 = vld [vmem:[%s707] sm:$0xff]
  %2422 = vmatprep.subr.bf16.mxu0 0
  %2423 = vmatpush1.bf16.msra.mxu0 %v1958
  %2424 = vmatprep.subr.bf16.mxu0 0
  %2425 = vmatpush1.bf16.msra.mxu0 %v1959
  %2426 = vmatprep.subr.bf16.mxu0 0
  %2427 = vmatpush1.bf16.msra.mxu0 0
  %2428 = vmatprep.subr.bf16.mxu0 0
  %2429 = vmatpush1.bf16.msra.mxu0 0
  %2430 = vmatprep.subr.bf16.mxu0 0
  %2431 = vmatpush1.bf16.msra.mxu0 0
  %2432 = vmatprep.subr.bf16.mxu0 0
  %2433 = vmatpush1.bf16.msra.mxu0 0
  %2434 = vmatprep.subr.bf16.mxu0 0
  %2435 = vmatpush1.bf16.msra.mxu0 0
  %2436 = vmatprep.subr.bf16.mxu0 0
  %2437 = vmatpush1.bf16.msra.mxu0 0
  %2438 = vmatprep.subr.bf16.mxu0 0
  %2439 = vmatpush1.bf16.msra.mxu0 0
  %2440 = vmatprep.subr.bf16.mxu0 0
  %2441 = vmatpush1.bf16.msra.mxu0 0
  %2442 = vmatprep.subr.bf16.mxu0 0
  %2443 = vmatpush1.bf16.msra.mxu0 0
  %2444 = vmatprep.subr.bf16.mxu0 0
  %2445 = vmatpush1.bf16.msra.mxu0 0
  %2446 = vmatprep.subr.bf16.mxu0 0
  %2447 = vmatpush1.bf16.msra.mxu0 0
  %2448 = vmatprep.subr.bf16.mxu0 0
  %2449 = vmatpush1.bf16.msra.mxu0 0
  %2450 = vmatprep.subr.bf16.mxu0 0
  %2451 = vmatpush1.bf16.msra.mxu0 0
  %2452 = vmatprep.subr.bf16.mxu0 0
  %2453 = vmatpush1.bf16.msra.mxu0 0
  %2454 = vmatprep.mubr.bf16.mxu0 0
  %2455 = vmatmul.mubr.bf16.gmra.mrb[0].mxu0 %v2378
  %v2456 = vpop.f32.mrb[0].mxu0
  %v2457 = vadd.f32 0.0, %v2456
  %v2458 = vpop.f32.mrb[0].mxu0
  %v2459 = vpop.f32.mrb[0].mxu0
  %v2460 = vpop.f32.mrb[0].mxu0
  %2461 = vdwg.mxu0
  %v2462 = vadd.f32 %v2421, %v2457
  %v2463 = vxor.u32 %v2462, 2147483648
  %v2464 = vmul.f32 %v2463, 1.442695
  %v2465 = vpow.pop %v2464
  %v2466 = vadd.f32 %v2465, 1.0
  %v2467 = vrcp.pop %v2466
  %v2468 = vmul.f32 1.0, %v2467
  %v2469 = vtanh.pop %v2462
  %v2470 = vmul.f32 %v2468, %v2366
  %2472 = vrot.lane.b32.xlu0 %v2469, 32
  %v2473 = vpop.permute.xlu0 %2472
  %v2475 = vmul.f32 %v2468, %v2473
  %2477 = vrot.lane.b32.xlu0 %v2475, 32
  %v2478 = vpop.permute.xlu0 %2477
  %v2480 = vadd.f32 %v2470, %v2478
  %v2481 = vtanh.pop %v2480
  %2483 = vrot.lane.b32.xlu0 %v2481, 32
  %v2484 = vpop.permute.xlu0 %2483
  %v2486 = vmul.f32 %v2468, %v2484
  %v2487 = vpack.c.bf16 %v2486, %v2486
  %2489 = vrot.lane.b32.xlu0 %v2487, 64
  %v2490 = vpop.permute.xlu0 %2489
  %v2492 = vsel %vm68, %v2490, 0
  %2494 = vmatprep.subr.bf16.mxu0 0
  %2495 = vmatpush1.bf16.msra.mxu0 %v1901
  %2496 = vmatprep.subr.bf16.mxu0 0
  %2497 = vmatpush1.bf16.msra.mxu0 %v1902
  %2498 = vmatprep.subr.bf16.mxu0 0
  %2499 = vmatpush1.bf16.msra.mxu0 0
  %2500 = vmatprep.subr.bf16.mxu0 0
  %2501 = vmatpush1.bf16.msra.mxu0 0
  %2502 = vmatprep.subr.bf16.mxu0 0
  %2503 = vmatpush1.bf16.msra.mxu0 0
  %2504 = vmatprep.subr.bf16.mxu0 0
  %2505 = vmatpush1.bf16.msra.mxu0 0
  %2506 = vmatprep.subr.bf16.mxu0 0
  %2507 = vmatpush1.bf16.msra.mxu0 0
  %2508 = vmatprep.subr.bf16.mxu0 0
  %2509 = vmatpush1.bf16.msra.mxu0 0
  %2510 = vmatprep.subr.bf16.mxu0 0
  %2511 = vmatpush1.bf16.msra.mxu0 0
  %2512 = vmatprep.subr.bf16.mxu0 0
  %2513 = vmatpush1.bf16.msra.mxu0 0
  %2514 = vmatprep.subr.bf16.mxu0 0
  %2515 = vmatpush1.bf16.msra.mxu0 0
  %2516 = vmatprep.subr.bf16.mxu0 0
  %2517 = vmatpush1.bf16.msra.mxu0 0
  %2518 = vmatprep.subr.bf16.mxu0 0
  %2519 = vmatpush1.bf16.msra.mxu0 0
  %2520 = vmatprep.subr.bf16.mxu0 0
  %2521 = vmatpush1.bf16.msra.mxu0 0
  %2522 = vmatprep.subr.bf16.mxu0 0
  %2523 = vmatpush1.bf16.msra.mxu0 0
  %2524 = vmatprep.subr.bf16.mxu0 0
  %2525 = vmatpush1.bf16.msra.mxu0 0
  %2526 = vmatprep.mubr.bf16.mxu0 0
  %2527 = vmatmul.mubr.bf16.gmra.mrb[0].mxu0 %v2492
  %v2528 = vpop.f32.mrb[0].mxu0
  %v2529 = vadd.f32 %v1888, %v2528
  %v2530 = vpop.f32.mrb[0].mxu0
  %v2531 = vpop.f32.mrb[0].mxu0
  %v2532 = vpop.f32.mrb[0].mxu0
  %2533 = vdwg.mxu0
  %2534 = vst [vmem:[%s707] sm:$0xff] %v2529
  %v2535 = vld [vmem:[%s823] sm:$0xff]
  %2536 = vmatprep.subr.bf16.mxu0 0
  %2537 = vmatpush1.bf16.msra.mxu0 %v1958
  %2538 = vmatprep.subr.bf16.mxu0 0
  %2539 = vmatpush1.bf16.msra.mxu0 %v1959
  %2540 = vmatprep.subr.bf16.mxu0 0
  %2541 = vmatpush1.bf16.msra.mxu0 0
  %2542 = vmatprep.subr.bf16.mxu0 0
  %2543 = vmatpush1.bf16.msra.mxu0 0
  %2544 = vmatprep.subr.bf16.mxu0 0
  %2545 = vmatpush1.bf16.msra.mxu0 0
  %2546 = vmatprep.subr.bf16.mxu0 0
  %2547 = vmatpush1.bf16.msra.mxu0 0
  %2548 = vmatprep.subr.bf16.mxu0 0
  %2549 = vmatpush1.bf16.msra.mxu0 0
  %2550 = vmatprep.subr.bf16.mxu0 0
  %2551 = vmatpush1.bf16.msra.mxu0 0
  %2552 = vmatprep.subr.bf16.mxu0 0
  %2553 = vmatpush1.bf16.msra.mxu0 0
  %2554 = vmatprep.subr.bf16.mxu0 0
  %2555 = vmatpush1.bf16.msra.mxu0 0
  %2556 = vmatprep.subr.bf16.mxu0 0
  %2557 = vmatpush1.bf16.msra.mxu0 0
  %2558 = vmatprep.subr.bf16.mxu0 0
  %2559 = vmatpush1.bf16.msra.mxu0 0
  %2560 = vmatprep.subr.bf16.mxu0 0
  %2561 = vmatpush1.bf16.msra.mxu0 0
  %2562 = vmatprep.subr.bf16.mxu0 0
  %2563 = vmatpush1.bf16.msra.mxu0 0
  %2564 = vmatprep.subr.bf16.mxu0 0
  %2565 = vmatpush1.bf16.msra.mxu0 0
  %2566 = vmatprep.subr.bf16.mxu0 0
  %2567 = vmatpush1.bf16.msra.mxu0 0
  %2568 = vmatprep.mubr.bf16.mxu0 0
  %2569 = vmatmul.mubr.bf16.gmra.mrb[0].mxu0 %v2492
  %v2570 = vpop.f32.mrb[0].mxu0
  %v2571 = vadd.f32 0.0, %v2570
  %v2572 = vpop.f32.mrb[0].mxu0
  %v2573 = vpop.f32.mrb[0].mxu0
  %v2574 = vpop.f32.mrb[0].mxu0
  %2575 = vdwg.mxu0
  %v2576 = vadd.f32 %v2535, %v2571
  %v2577 = vxor.u32 %v2576, 2147483648
  %v2578 = vmul.f32 %v2577, 1.442695
  %v2579 = vpow.pop %v2578
  %v2580 = vadd.f32 %v2579, 1.0
  %v2581 = vrcp.pop %v2580
  %v2582 = vmul.f32 1.0, %v2581
  %v2583 = vtanh.pop %v2576
  %v2584 = vmul.f32 %v2582, %v2480
  %2586 = vrot.lane.b32.xlu0 %v2583, 32
  %v2587 = vpop.permute.xlu0 %2586
  %v2589 = vmul.f32 %v2582, %v2587
  %2591 = vrot.lane.b32.xlu0 %v2589, 32
  %v2592 = vpop.permute.xlu0 %2591
  %v2594 = vadd.f32 %v2584, %v2592
  %v2595 = vtanh.pop %v2594
  %2597 = vrot.lane.b32.xlu0 %v2595, 32
  %v2598 = vpop.permute.xlu0 %2597
  %v2600 = vmul.f32 %v2582, %v2598
  %v2601 = vpack.c.bf16 %v2600, %v2600
  %2603 = vrot.lane.b32.xlu0 %v2601, 64
  %v2604 = vpop.permute.xlu0 %2603
  %v2606 = vsel %vm68, %v2604, 0
  %2608 = vmatprep.subr.bf16.mxu0 0
  %2609 = vmatpush1.bf16.msra.mxu0 %v1901
  %2610 = vmatprep.subr.bf16.mxu0 0
  %2611 = vmatpush1.bf16.msra.mxu0 %v1902
  %2612 = vmatprep.subr.bf16.mxu0 0
  %2613 = vmatpush1.bf16.msra.mxu0 0
  %2614 = vmatprep.subr.bf16.mxu0 0
  %2615 = vmatpush1.bf16.msra.mxu0 0
  %2616 = vmatprep.subr.bf16.mxu0 0
  %2617 = vmatpush1.bf16.msra.mxu0 0
  %2618 = vmatprep.subr.bf16.mxu0 0
  %2619 = vmatpush1.bf16.msra.mxu0 0
  %2620 = vmatprep.subr.bf16.mxu0 0
  %2621 = vmatpush1.bf16.msra.mxu0 0
  %2622 = vmatprep.subr.bf16.mxu0 0
  %2623 = vmatpush1.bf16.msra.mxu0 0
  %2624 = vmatprep.subr.bf16.mxu0 0
  %2625 = vmatpush1.bf16.msra.mxu0 0
  %2626 = vmatprep.subr.bf16.mxu0 0
  %2627 = vmatpush1.bf16.msra.mxu0 0
  %2628 = vmatprep.subr.bf16.mxu0 0
  %2629 = vmatpush1.bf16.msra.mxu0 0
  %2630 = vmatprep.subr.bf16.mxu0 0
  %2631 = vmatpush1.bf16.msra.mxu0 0
  %2632 = vmatprep.subr.bf16.mxu0 0
  %2633 = vmatpush1.bf16.msra.mxu0 0
  %2634 = vmatprep.subr.bf16.mxu0 0
  %2635 = vmatpush1.bf16.msra.mxu0 0
  %2636 = vmatprep.subr.bf16.mxu0 0
  %2637 = vmatpush1.bf16.msra.mxu0 0
  %2638 = vmatprep.subr.bf16.mxu0 0
  %2639 = vmatpush1.bf16.msra.mxu0 0
  %2640 = vmatprep.mubr.bf16.mxu0 0
  %2641 = vmatmul.mubr.bf16.gmra.mrb[0].mxu0 %v2606
  %v2642 = vpop.f32.mrb[0].mxu0
  %v2643 = vadd.f32 %v1888, %v2642
  %v2644 = vpop.f32.mrb[0].mxu0
  %v2645 = vpop.f32.mrb[0].mxu0
  %v2646 = vpop.f32.mrb[0].mxu0
  %2647 = vdwg.mxu0
  %2648 = vst [vmem:[%s823] sm:$0xff] %v2643
  %v2649 = vld [vmem:[%s939] sm:$0xff]
  %2650 = vmatprep.subr.bf16.mxu0 0
  %2651 = vmatpush1.bf16.msra.mxu0 %v1958
  %2652 = vmatprep.subr.bf16.mxu0 0
  %2653 = vmatpush1.bf16.msra.mxu0 %v1959
  %2654 = vmatprep.subr.bf16.mxu0 0
  %2655 = vmatpush1.bf16.msra.mxu0 0
  %2656 = vmatprep.subr.bf16.mxu0 0
  %2657 = vmatpush1.bf16.msra.mxu0 0
  %2658 = vmatprep.subr.bf16.mxu0 0
  %2659 = vmatpush1.bf16.msra.mxu0 0
  %2660 = vmatprep.subr.bf16.mxu0 0
  %2661 = vmatpush1.bf16.msra.mxu0 0
  %2662 = vmatprep.subr.bf16.mxu0 0
  %2663 = vmatpush1.bf16.msra.mxu0 0
  %2664 = vmatprep.subr.bf16.mxu0 0
  %2665 = vmatpush1.bf16.msra.mxu0 0
  %2666 = vmatprep.subr.bf16.mxu0 0
  %2667 = vmatpush1.bf16.msra.mxu0 0
  %2668 = vmatprep.subr.bf16.mxu0 0
  %2669 = vmatpush1.bf16.msra.mxu0 0
  %2670 = vmatprep.subr.bf16.mxu0 0
  %2671 = vmatpush1.bf16.msra.mxu0 0
  %2672 = vmatprep.subr.bf16.mxu0 0
  %2673 = vmatpush1.bf16.msra.mxu0 0
  %2674 = vmatprep.subr.bf16.mxu0 0
  %2675 = vmatpush1.bf16.msra.mxu0 0
  %2676 = vmatprep.subr.bf16.mxu0 0
  %2677 = vmatpush1.bf16.msra.mxu0 0
  %2678 = vmatprep.subr.bf16.mxu0 0
  %2679 = vmatpush1.bf16.msra.mxu0 0
  %2680 = vmatprep.subr.bf16.mxu0 0
  %2681 = vmatpush1.bf16.msra.mxu0 0
  %2682 = vmatprep.mubr.bf16.mxu0 0
  %2683 = vmatmul.mubr.bf16.gmra.mrb[0].mxu0 %v2606
  %v2684 = vpop.f32.mrb[0].mxu0
  %v2685 = vadd.f32 0.0, %v2684
  %v2686 = vpop.f32.mrb[0].mxu0
  %v2687 = vpop.f32.mrb[0].mxu0
  %v2688 = vpop.f32.mrb[0].mxu0
  %2689 = vdwg.mxu0
  %v2690 = vadd.f32 %v2649, %v2685
  %v2691 = vxor.u32 %v2690, 2147483648
  %v2692 = vmul.f32 %v2691, 1.442695
  %v2693 = vpow.pop %v2692
  %v2694 = vadd.f32 %v2693, 1.0
  %v2695 = vrcp.pop %v2694
  %v2696 = vmul.f32 1.0, %v2695
  %v2697 = vtanh.pop %v2690
  %v2698 = vmul.f32 %v2696, %v2594
  %2700 = vrot.lane.b32.xlu0 %v2697, 32
  %v2701 = vpop.permute.xlu0 %2700
  %v2703 = vmul.f32 %v2696, %v2701
  %2705 = vrot.lane.b32.xlu0 %v2703, 32
  %v2706 = vpop.permute.xlu0 %2705
  %v2708 = vadd.f32 %v2698, %v2706
  %v2709 = vtanh.pop %v2708
  %2711 = vrot.lane.b32.xlu0 %v2709, 32
  %v2712 = vpop.permute.xlu0 %2711
  %v2714 = vmul.f32 %v2696, %v2712
  %v2715 = vpack.c.bf16 %v2714, %v2714
  %2717 = vrot.lane.b32.xlu0 %v2715, 64
  %v2718 = vpop.permute.xlu0 %2717
  %v2720 = vsel %vm68, %v2718, 0
  %2722 = vmatprep.subr.bf16.mxu0 0
  %2723 = vmatpush1.bf16.msra.mxu0 %v1901
  %2724 = vmatprep.subr.bf16.mxu0 0
  %2725 = vmatpush1.bf16.msra.mxu0 %v1902
  %2726 = vmatprep.subr.bf16.mxu0 0
  %2727 = vmatpush1.bf16.msra.mxu0 0
  %2728 = vmatprep.subr.bf16.mxu0 0
  %2729 = vmatpush1.bf16.msra.mxu0 0
  %2730 = vmatprep.subr.bf16.mxu0 0
  %2731 = vmatpush1.bf16.msra.mxu0 0
  %2732 = vmatprep.subr.bf16.mxu0 0
  %2733 = vmatpush1.bf16.msra.mxu0 0
  %2734 = vmatprep.subr.bf16.mxu0 0
  %2735 = vmatpush1.bf16.msra.mxu0 0
  %2736 = vmatprep.subr.bf16.mxu0 0
  %2737 = vmatpush1.bf16.msra.mxu0 0
  %2738 = vmatprep.subr.bf16.mxu0 0
  %2739 = vmatpush1.bf16.msra.mxu0 0
  %2740 = vmatprep.subr.bf16.mxu0 0
  %2741 = vmatpush1.bf16.msra.mxu0 0
  %2742 = vmatprep.subr.bf16.mxu0 0
  %2743 = vmatpush1.bf16.msra.mxu0 0
  %2744 = vmatprep.subr.bf16.mxu0 0
  %2745 = vmatpush1.bf16.msra.mxu0 0
  %2746 = vmatprep.subr.bf16.mxu0 0
  %2747 = vmatpush1.bf16.msra.mxu0 0
  %2748 = vmatprep.subr.bf16.mxu0 0
  %2749 = vmatpush1.bf16.msra.mxu0 0
  %2750 = vmatprep.subr.bf16.mxu0 0
  %2751 = vmatpush1.bf16.msra.mxu0 0
  %2752 = vmatprep.subr.bf16.mxu0 0
  %2753 = vmatpush1.bf16.msra.mxu0 0
  %2754 = vmatprep.mubr.bf16.mxu0 0
  %2755 = vmatmul.mubr.bf16.gmra.mrb[0].mxu0 %v2720
  %v2756 = vpop.f32.mrb[0].mxu0
  %v2757 = vadd.f32 %v1888, %v2756
  %v2758 = vpop.f32.mrb[0].mxu0
  %v2759 = vpop.f32.mrb[0].mxu0
  %v2760 = vpop.f32.mrb[0].mxu0
  %2761 = vdwg.mxu0
  %2762 = vst [vmem:[%s939] sm:$0xff] %v2757
  %s2763 = scalar_lea.vmem %s2, 48
  %v2764 = vld [vmem:[%s2763] sm:$0xf]
  %v2765 = vld [vmem:[%s2763 + $0x4] sm:$0xf]
  %v2766 = vld [vmem:[%s2763 + $0x8] sm:$0xf]
  %v2767 = vld [vmem:[%s2763 + $0xc] sm:$0xf]
  %s2768 = scalar_lea.vmem %s1, 48
  %v2769 = vld [vmem:[%s2768] sm:$0xf]
  %v2770 = vld [vmem:[%s2768 + $0x4] sm:$0xf]
  %v2771 = vld [vmem:[%s2768 + $0x8] sm:$0xf]
  %v2772 = vld [vmem:[%s2768 + $0xc] sm:$0xf]
  %s2773 = scalar_lea.vmem %s3, 3
  %v2774 = vld [vmem:[%s2773] sm:$0x1]
  %v2775 = vld [vmem:[#allocation2] sm:$0xff]
  %v2776 = vxor.u32 %v2775, 2147483648
  %v2777 = vmul.f32 %v2776, 1.442695
  %v2778 = vpow.pop %v2777
  %v2779 = vadd.f32 %v2778, 1.0
  %v2780 = vrcp.pop %v2779
  %v2781 = vmul.f32 1.0, %v2780
  %v2782 = vtanh.pop %v2775
  %2784 = vrot.lane.b32.xlu0 %v2782, 32
  %v2785 = vpop.permute.xlu0 %2784
  %v2787 = vmul.f32 %v2781, %v2785
  %v2788 = vtanh.pop %v2787
  %2790 = vrot.lane.b32.xlu0 %v2788, 64
  %v2791 = vpop.permute.xlu0 %2790
  %v2793 = vmul.f32 %v2781, %v2791
  %v2794 = vpack.c.bf16 %v2793, %v2793
  %v2796 = vlaneseq
  %v2797 = vshrl.u32 %v2796, 7
  %v2798 = vsub.s32 0, %v2797
  %v2799 = vrot.slane %v2774, %v2798
  %2802 = vrot.lane.b32.xlu0 %v2794, 64
  %v2803 = vpop.permute.xlu0 %2802
  %v2808 = vunpack.c.l.b16 %v2769
  %v2809 = vunpack.c.l.b16 %v2770
  %v2810 = vunpack.c.l.b16 %v2771
  %v2811 = vunpack.c.l.b16 %v2772
  %v2812 = vpack.c.b16 %v2809, %v2808
  %v2813 = vpack.c.b16 %v2811, %v2810
  %v2817 = vsel %vm68, %v2803, 0
  %2819 = vmatprep.subr.bf16.mxu0 0
  %2820 = vmatpush1.bf16.msra.mxu0 %v2812
  %2821 = vmatprep.subr.bf16.mxu0 0
  %2822 = vmatpush1.bf16.msra.mxu0 %v2813
  %2823 = vmatprep.subr.bf16.mxu0 0
  %2824 = vmatpush1.bf16.msra.mxu0 0
  %2825 = vmatprep.subr.bf16.mxu0 0
  %2826 = vmatpush1.bf16.msra.mxu0 0
  %2827 = vmatprep.subr.bf16.mxu0 0
  %2828 = vmatpush1.bf16.msra.mxu0 0
  %2829 = vmatprep.subr.bf16.mxu0 0
  %2830 = vmatpush1.bf16.msra.mxu0 0
  %2831 = vmatprep.subr.bf16.mxu0 0
  %2832 = vmatpush1.bf16.msra.mxu0 0
  %2833 = vmatprep.subr.bf16.mxu0 0
  %2834 = vmatpush1.bf16.msra.mxu0 0
  %2835 = vmatprep.subr.bf16.mxu0 0
  %2836 = vmatpush1.bf16.msra.mxu0 0
  %2837 = vmatprep.subr.bf16.mxu0 0
  %2838 = vmatpush1.bf16.msra.mxu0 0
  %2839 = vmatprep.subr.bf16.mxu0 0
  %2840 = vmatpush1.bf16.msra.mxu0 0
  %2841 = vmatprep.subr.bf16.mxu0 0
  %2842 = vmatpush1.bf16.msra.mxu0 0
  %2843 = vmatprep.subr.bf16.mxu0 0
  %2844 = vmatpush1.bf16.msra.mxu0 0
  %2845 = vmatprep.subr.bf16.mxu0 0
  %2846 = vmatpush1.bf16.msra.mxu0 0
  %2847 = vmatprep.subr.bf16.mxu0 0
  %2848 = vmatpush1.bf16.msra.mxu0 0
  %2849 = vmatprep.subr.bf16.mxu0 0
  %2850 = vmatpush1.bf16.msra.mxu0 0
  %2851 = vmatprep.mubr.bf16.mxu0 0
  %2852 = vmatmul.mubr.bf16.gmra.mrb[0].mxu0 %v2817
  %v2853 = vpop.f32.mrb[0].mxu0
  %v2854 = vadd.f32 %v2799, %v2853
  %v2855 = vpop.f32.mrb[0].mxu0
  %v2856 = vpop.f32.mrb[0].mxu0
  %v2857 = vpop.f32.mrb[0].mxu0
  %2858 = vdwg.mxu0
  %2859 = vst [vmem:[#allocation2] sm:$0xff] %v2854
  %v2860 = vld [vmem:[%s243] sm:$0xff]
  %v2865 = vunpack.c.l.b16 %v2764
  %v2866 = vunpack.c.l.b16 %v2765
  %v2867 = vunpack.c.l.b16 %v2766
  %v2868 = vunpack.c.l.b16 %v2767
  %v2869 = vpack.c.b16 %v2866, %v2865
  %v2870 = vpack.c.b16 %v2868, %v2867
  %2873 = vmatprep.subr.bf16.mxu0 0
  %2874 = vmatpush1.bf16.msra.mxu0 %v2869
  %2875 = vmatprep.subr.bf16.mxu0 0
  %2876 = vmatpush1.bf16.msra.mxu0 %v2870
  %2877 = vmatprep.subr.bf16.mxu0 0
  %2878 = vmatpush1.bf16.msra.mxu0 0
  %2879 = vmatprep.subr.bf16.mxu0 0
  %2880 = vmatpush1.bf16.msra.mxu0 0
  %2881 = vmatprep.subr.bf16.mxu0 0
  %2882 = vmatpush1.bf16.msra.mxu0 0
  %2883 = vmatprep.subr.bf16.mxu0 0
  %2884 = vmatpush1.bf16.msra.mxu0 0
  %2885 = vmatprep.subr.bf16.mxu0 0
  %2886 = vmatpush1.bf16.msra.mxu0 0
  %2887 = vmatprep.subr.bf16.mxu0 0
  %2888 = vmatpush1.bf16.msra.mxu0 0
  %2889 = vmatprep.subr.bf16.mxu0 0
  %2890 = vmatpush1.bf16.msra.mxu0 0
  %2891 = vmatprep.subr.bf16.mxu0 0
  %2892 = vmatpush1.bf16.msra.mxu0 0
  %2893 = vmatprep.subr.bf16.mxu0 0
  %2894 = vmatpush1.bf16.msra.mxu0 0
  %2895 = vmatprep.subr.bf16.mxu0 0
  %2896 = vmatpush1.bf16.msra.mxu0 0
  %2897 = vmatprep.subr.bf16.mxu0 0
  %2898 = vmatpush1.bf16.msra.mxu0 0
  %2899 = vmatprep.subr.bf16.mxu0 0
  %2900 = vmatpush1.bf16.msra.mxu0 0
  %2901 = vmatprep.subr.bf16.mxu0 0
  %2902 = vmatpush1.bf16.msra.mxu0 0
  %2903 = vmatprep.subr.bf16.mxu0 0
  %2904 = vmatpush1.bf16.msra.mxu0 0
  %2905 = vmatprep.mubr.bf16.mxu0 0
  %2906 = vmatmul.mubr.bf16.gmra.mrb[0].mxu0 %v2817
  %v2907 = vpop.f32.mrb[0].mxu0
  %v2908 = vadd.f32 0.0, %v2907
  %v2909 = vpop.f32.mrb[0].mxu0
  %v2910 = vpop.f32.mrb[0].mxu0
  %v2911 = vpop.f32.mrb[0].mxu0
  %2912 = vdwg.mxu0
  %v2913 = vadd.f32 %v2860, %v2908
  %v2914 = vxor.u32 %v2913, 2147483648
  %v2915 = vmul.f32 %v2914, 1.442695
  %v2916 = vpow.pop %v2915
  %v2917 = vadd.f32 %v2916, 1.0
  %v2918 = vrcp.pop %v2917
  %v2919 = vmul.f32 1.0, %v2918
  %v2920 = vtanh.pop %v2913
  %2922 = vrot.lane.b32.xlu0 %v2787, 32
  %v2923 = vpop.permute.xlu0 %2922
  %v2925 = vmul.f32 %v2919, %v2923
  %2927 = vrot.lane.b32.xlu0 %v2920, 32
  %v2928 = vpop.permute.xlu0 %2927
  %v2930 = vmul.f32 %v2919, %v2928
  %2932 = vrot.lane.b32.xlu0 %v2930, 32
  %v2933 = vpop.permute.xlu0 %2932
  %v2935 = vadd.f32 %v2925, %v2933
  %v2936 = vtanh.pop %v2935
  %2938 = vrot.lane.b32.xlu0 %v2936, 32
  %v2939 = vpop.permute.xlu0 %2938
  %v2941 = vmul.f32 %v2919, %v2939
  %v2942 = vpack.c.bf16 %v2941, %v2941
  %2944 = vrot.lane.b32.xlu0 %v2942, 64
  %v2945 = vpop.permute.xlu0 %2944
  %v2947 = vsel %vm68, %v2945, 0
  %2949 = vmatprep.subr.bf16.mxu0 0
  %2950 = vmatpush1.bf16.msra.mxu0 %v2812
  %2951 = vmatprep.subr.bf16.mxu0 0
  %2952 = vmatpush1.bf16.msra.mxu0 %v2813
  %2953 = vmatprep.subr.bf16.mxu0 0
  %2954 = vmatpush1.bf16.msra.mxu0 0
  %2955 = vmatprep.subr.bf16.mxu0 0
  %2956 = vmatpush1.bf16.msra.mxu0 0
  %2957 = vmatprep.subr.bf16.mxu0 0
  %2958 = vmatpush1.bf16.msra.mxu0 0
  %2959 = vmatprep.subr.bf16.mxu0 0
  %2960 = vmatpush1.bf16.msra.mxu0 0
  %2961 = vmatprep.subr.bf16.mxu0 0
  %2962 = vmatpush1.bf16.msra.mxu0 0
  %2963 = vmatprep.subr.bf16.mxu0 0
  %2964 = vmatpush1.bf16.msra.mxu0 0
  %2965 = vmatprep.subr.bf16.mxu0 0
  %2966 = vmatpush1.bf16.msra.mxu0 0
  %2967 = vmatprep.subr.bf16.mxu0 0
  %2968 = vmatpush1.bf16.msra.mxu0 0
  %2969 = vmatprep.subr.bf16.mxu0 0
  %2970 = vmatpush1.bf16.msra.mxu0 0
  %2971 = vmatprep.subr.bf16.mxu0 0
  %2972 = vmatpush1.bf16.msra.mxu0 0
  %2973 = vmatprep.subr.bf16.mxu0 0
  %2974 = vmatpush1.bf16.msra.mxu0 0
  %2975 = vmatprep.subr.bf16.mxu0 0
  %2976 = vmatpush1.bf16.msra.mxu0 0
  %2977 = vmatprep.subr.bf16.mxu0 0
  %2978 = vmatpush1.bf16.msra.mxu0 0
  %2979 = vmatprep.subr.bf16.mxu0 0
  %2980 = vmatpush1.bf16.msra.mxu0 0
  %2981 = vmatprep.mubr.bf16.mxu0 0
  %2982 = vmatmul.mubr.bf16.gmra.mrb[0].mxu0 %v2947
  %v2983 = vpop.f32.mrb[0].mxu0
  %v2984 = vadd.f32 %v2799, %v2983
  %v2985 = vpop.f32.mrb[0].mxu0
  %v2986 = vpop.f32.mrb[0].mxu0
  %v2987 = vpop.f32.mrb[0].mxu0
  %2988 = vdwg.mxu0
  %2989 = vst [vmem:[%s243] sm:$0xff] %v2984
  %v2990 = vld [vmem:[%s359] sm:$0xff]
  %2991 = vmatprep.subr.bf16.mxu0 0
  %2992 = vmatpush1.bf16.msra.mxu0 %v2869
  %2993 = vmatprep.subr.bf16.mxu0 0
  %2994 = vmatpush1.bf16.msra.mxu0 %v2870
  %2995 = vmatprep.subr.bf16.mxu0 0
  %2996 = vmatpush1.bf16.msra.mxu0 0
  %2997 = vmatprep.subr.bf16.mxu0 0
  %2998 = vmatpush1.bf16.msra.mxu0 0
  %2999 = vmatprep.subr.bf16.mxu0 0
  %3000 = vmatpush1.bf16.msra.mxu0 0
  %3001 = vmatprep.subr.bf16.mxu0 0
  %3002 = vmatpush1.bf16.msra.mxu0 0
  %3003 = vmatprep.subr.bf16.mxu0 0
  %3004 = vmatpush1.bf16.msra.mxu0 0
  %3005 = vmatprep.subr.bf16.mxu0 0
  %3006 = vmatpush1.bf16.msra.mxu0 0
  %3007 = vmatprep.subr.bf16.mxu0 0
  %3008 = vmatpush1.bf16.msra.mxu0 0
  %3009 = vmatprep.subr.bf16.mxu0 0
  %3010 = vmatpush1.bf16.msra.mxu0 0
  %3011 = vmatprep.subr.bf16.mxu0 0
  %3012 = vmatpush1.bf16.msra.mxu0 0
  %3013 = vmatprep.subr.bf16.mxu0 0
  %3014 = vmatpush1.bf16.msra.mxu0 0
  %3015 = vmatprep.subr.bf16.mxu0 0
  %3016 = vmatpush1.bf16.msra.mxu0 0
  %3017 = vmatprep.subr.bf16.mxu0 0
  %3018 = vmatpush1.bf16.msra.mxu0 0
  %3019 = vmatprep.subr.bf16.mxu0 0
  %3020 = vmatpush1.bf16.msra.mxu0 0
  %3021 = vmatprep.subr.bf16.mxu0 0
  %3022 = vmatpush1.bf16.msra.mxu0 0
  %3023 = vmatprep.mubr.bf16.mxu0 0
  %3024 = vmatmul.mubr.bf16.gmra.mrb[0].mxu0 %v2947
  %v3025 = vpop.f32.mrb[0].mxu0
  %v3026 = vadd.f32 0.0, %v3025
  %v3027 = vpop.f32.mrb[0].mxu0
  %v3028 = vpop.f32.mrb[0].mxu0
  %v3029 = vpop.f32.mrb[0].mxu0
  %3030 = vdwg.mxu0
  %v3031 = vadd.f32 %v2990, %v3026
  %v3032 = vxor.u32 %v3031, 2147483648
  %v3033 = vmul.f32 %v3032, 1.442695
  %v3034 = vpow.pop %v3033
  %v3035 = vadd.f32 %v3034, 1.0
  %v3036 = vrcp.pop %v3035
  %v3037 = vmul.f32 1.0, %v3036
  %v3038 = vtanh.pop %v3031
  %v3039 = vmul.f32 %v3037, %v2935
  %3041 = vrot.lane.b32.xlu0 %v3038, 32
  %v3042 = vpop.permute.xlu0 %3041
  %v3044 = vmul.f32 %v3037, %v3042
  %3046 = vrot.lane.b32.xlu0 %v3044, 32
  %v3047 = vpop.permute.xlu0 %3046
  %v3049 = vadd.f32 %v3039, %v3047
  %v3050 = vtanh.pop %v3049
  %3052 = vrot.lane.b32.xlu0 %v3050, 32
  %v3053 = vpop.permute.xlu0 %3052
  %v3055 = vmul.f32 %v3037, %v3053
  %v3056 = vpack.c.bf16 %v3055, %v3055
  %3058 = vrot.lane.b32.xlu0 %v3056, 64
  %v3059 = vpop.permute.xlu0 %3058
  %v3061 = vsel %vm68, %v3059, 0
  %3063 = vmatprep.subr.bf16.mxu0 0
  %3064 = vmatpush1.bf16.msra.mxu0 %v2812
  %3065 = vmatprep.subr.bf16.mxu0 0
  %3066 = vmatpush1.bf16.msra.mxu0 %v2813
  %3067 = vmatprep.subr.bf16.mxu0 0
  %3068 = vmatpush1.bf16.msra.mxu0 0
  %3069 = vmatprep.subr.bf16.mxu0 0
  %3070 = vmatpush1.bf16.msra.mxu0 0
  %3071 = vmatprep.subr.bf16.mxu0 0
  %3072 = vmatpush1.bf16.msra.mxu0 0
  %3073 = vmatprep.subr.bf16.mxu0 0
  %3074 = vmatpush1.bf16.msra.mxu0 0
  %3075 = vmatprep.subr.bf16.mxu0 0
  %3076 = vmatpush1.bf16.msra.mxu0 0
  %3077 = vmatprep.subr.bf16.mxu0 0
  %3078 = vmatpush1.bf16.msra.mxu0 0
  %3079 = vmatprep.subr.bf16.mxu0 0
  %3080 = vmatpush1.bf16.msra.mxu0 0
  %3081 = vmatprep.subr.bf16.mxu0 0
  %3082 = vmatpush1.bf16.msra.mxu0 0
  %3083 = vmatprep.subr.bf16.mxu0 0
  %3084 = vmatpush1.bf16.msra.mxu0 0
  %3085 = vmatprep.subr.bf16.mxu0 0
  %3086 = vmatpush1.bf16.msra.mxu0 0
  %3087 = vmatprep.subr.bf16.mxu0 0
  %3088 = vmatpush1.bf16.msra.mxu0 0
  %3089 = vmatprep.subr.bf16.mxu0 0
  %3090 = vmatpush1.bf16.msra.mxu0 0
  %3091 = vmatprep.subr.bf16.mxu0 0
  %3092 = vmatpush1.bf16.msra.mxu0 0
  %3093 = vmatprep.subr.bf16.mxu0 0
  %3094 = vmatpush1.bf16.msra.mxu0 0
  %3095 = vmatprep.mubr.bf16.mxu0 0
  %3096 = vmatmul.mubr.bf16.gmra.mrb[0].mxu0 %v3061
  %v3097 = vpop.f32.mrb[0].mxu0
  %v3098 = vadd.f32 %v2799, %v3097
  %v3099 = vpop.f32.mrb[0].mxu0
  %v3100 = vpop.f32.mrb[0].mxu0
  %v3101 = vpop.f32.mrb[0].mxu0
  %3102 = vdwg.mxu0
  %3103 = vst [vmem:[%s359] sm:$0xff] %v3098
  %v3104 = vld [vmem:[%s475] sm:$0xff]
  %3105 = vmatprep.subr.bf16.mxu0 0
  %3106 = vmatpush1.bf16.msra.mxu0 %v2869
  %3107 = vmatprep.subr.bf16.mxu0 0
  %3108 = vmatpush1.bf16.msra.mxu0 %v2870
  %3109 = vmatprep.subr.bf16.mxu0 0
  %3110 = vmatpush1.bf16.msra.mxu0 0
  %3111 = vmatprep.subr.bf16.mxu0 0
  %3112 = vmatpush1.bf16.msra.mxu0 0
  %3113 = vmatprep.subr.bf16.mxu0 0
  %3114 = vmatpush1.bf16.msra.mxu0 0
  %3115 = vmatprep.subr.bf16.mxu0 0
  %3116 = vmatpush1.bf16.msra.mxu0 0
  %3117 = vmatprep.subr.bf16.mxu0 0
  %3118 = vmatpush1.bf16.msra.mxu0 0
  %3119 = vmatprep.subr.bf16.mxu0 0
  %3120 = vmatpush1.bf16.msra.mxu0 0
  %3121 = vmatprep.subr.bf16.mxu0 0
  %3122 = vmatpush1.bf16.msra.mxu0 0
  %3123 = vmatprep.subr.bf16.mxu0 0
  %3124 = vmatpush1.bf16.msra.mxu0 0
  %3125 = vmatprep.subr.bf16.mxu0 0
  %3126 = vmatpush1.bf16.msra.mxu0 0
  %3127 = vmatprep.subr.bf16.mxu0 0
  %3128 = vmatpush1.bf16.msra.mxu0 0
  %3129 = vmatprep.subr.bf16.mxu0 0
  %3130 = vmatpush1.bf16.msra.mxu0 0
  %3131 = vmatprep.subr.bf16.mxu0 0
  %3132 = vmatpush1.bf16.msra.mxu0 0
  %3133 = vmatprep.subr.bf16.mxu0 0
  %3134 = vmatpush1.bf16.msra.mxu0 0
  %3135 = vmatprep.subr.bf16.mxu0 0
  %3136 = vmatpush1.bf16.msra.mxu0 0
  %3137 = vmatprep.mubr.bf16.mxu0 0
  %3138 = vmatmul.mubr.bf16.gmra.mrb[0].mxu0 %v3061
  %v3139 = vpop.f32.mrb[0].mxu0
  %v3140 = vadd.f32 0.0, %v3139
  %v3141 = vpop.f32.mrb[0].mxu0
  %v3142 = vpop.f32.mrb[0].mxu0
  %v3143 = vpop.f32.mrb[0].mxu0
  %3144 = vdwg.mxu0
  %v3145 = vadd.f32 %v3104, %v3140
  %v3146 = vxor.u32 %v3145, 2147483648
  %v3147 = vmul.f32 %v3146, 1.442695
  %v3148 = vpow.pop %v3147
  %v3149 = vadd.f32 %v3148, 1.0
  %v3150 = vrcp.pop %v3149
  %v3151 = vmul.f32 1.0, %v3150
  %v3152 = vtanh.pop %v3145
  %v3153 = vmul.f32 %v3151, %v3049
  %3155 = vrot.lane.b32.xlu0 %v3152, 32
  %v3156 = vpop.permute.xlu0 %3155
  %v3158 = vmul.f32 %v3151, %v3156
  %3160 = vrot.lane.b32.xlu0 %v3158, 32
  %v3161 = vpop.permute.xlu0 %3160
  %v3163 = vadd.f32 %v3153, %v3161
  %v3164 = vtanh.pop %v3163
  %3166 = vrot.lane.b32.xlu0 %v3164, 32
  %v3167 = vpop.permute.xlu0 %3166
  %v3169 = vmul.f32 %v3151, %v3167
  %v3170 = vpack.c.bf16 %v3169, %v3169
  %3172 = vrot.lane.b32.xlu0 %v3170, 64
  %v3173 = vpop.permute.xlu0 %3172
  %v3175 = vsel %vm68, %v3173, 0
  %3177 = vmatprep.subr.bf16.mxu0 0
  %3178 = vmatpush1.bf16.msra.mxu0 %v2812
  %3179 = vmatprep.subr.bf16.mxu0 0
  %3180 = vmatpush1.bf16.msra.mxu0 %v2813
  %3181 = vmatprep.subr.bf16.mxu0 0
  %3182 = vmatpush1.bf16.msra.mxu0 0
  %3183 = vmatprep.subr.bf16.mxu0 0
  %3184 = vmatpush1.bf16.msra.mxu0 0
  %3185 = vmatprep.subr.bf16.mxu0 0
  %3186 = vmatpush1.bf16.msra.mxu0 0
  %3187 = vmatprep.subr.bf16.mxu0 0
  %3188 = vmatpush1.bf16.msra.mxu0 0
  %3189 = vmatprep.subr.bf16.mxu0 0
  %3190 = vmatpush1.bf16.msra.mxu0 0
  %3191 = vmatprep.subr.bf16.mxu0 0
  %3192 = vmatpush1.bf16.msra.mxu0 0
  %3193 = vmatprep.subr.bf16.mxu0 0
  %3194 = vmatpush1.bf16.msra.mxu0 0
  %3195 = vmatprep.subr.bf16.mxu0 0
  %3196 = vmatpush1.bf16.msra.mxu0 0
  %3197 = vmatprep.subr.bf16.mxu0 0
  %3198 = vmatpush1.bf16.msra.mxu0 0
  %3199 = vmatprep.subr.bf16.mxu0 0
  %3200 = vmatpush1.bf16.msra.mxu0 0
  %3201 = vmatprep.subr.bf16.mxu0 0
  %3202 = vmatpush1.bf16.msra.mxu0 0
  %3203 = vmatprep.subr.bf16.mxu0 0
  %3204 = vmatpush1.bf16.msra.mxu0 0
  %3205 = vmatprep.subr.bf16.mxu0 0
  %3206 = vmatpush1.bf16.msra.mxu0 0
  %3207 = vmatprep.subr.bf16.mxu0 0
  %3208 = vmatpush1.bf16.msra.mxu0 0
  %3209 = vmatprep.mubr.bf16.mxu0 0
  %3210 = vmatmul.mubr.bf16.gmra.mrb[0].mxu0 %v3175
  %v3211 = vpop.f32.mrb[0].mxu0
  %v3212 = vadd.f32 %v2799, %v3211
  %v3213 = vpop.f32.mrb[0].mxu0
  %v3214 = vpop.f32.mrb[0].mxu0
  %v3215 = vpop.f32.mrb[0].mxu0
  %3216 = vdwg.mxu0
  %3217 = vst [vmem:[%s475] sm:$0xff] %v3212
  %v3218 = vld [vmem:[%s591] sm:$0xff]
  %3219 = vmatprep.subr.bf16.mxu0 0
  %3220 = vmatpush1.bf16.msra.mxu0 %v2869
  %3221 = vmatprep.subr.bf16.mxu0 0
  %3222 = vmatpush1.bf16.msra.mxu0 %v2870
  %3223 = vmatprep.subr.bf16.mxu0 0
  %3224 = vmatpush1.bf16.msra.mxu0 0
  %3225 = vmatprep.subr.bf16.mxu0 0
  %3226 = vmatpush1.bf16.msra.mxu0 0
  %3227 = vmatprep.subr.bf16.mxu0 0
  %3228 = vmatpush1.bf16.msra.mxu0 0
  %3229 = vmatprep.subr.bf16.mxu0 0
  %3230 = vmatpush1.bf16.msra.mxu0 0
  %3231 = vmatprep.subr.bf16.mxu0 0
  %3232 = vmatpush1.bf16.msra.mxu0 0
  %3233 = vmatprep.subr.bf16.mxu0 0
  %3234 = vmatpush1.bf16.msra.mxu0 0
  %3235 = vmatprep.subr.bf16.mxu0 0
  %3236 = vmatpush1.bf16.msra.mxu0 0
  %3237 = vmatprep.subr.bf16.mxu0 0
  %3238 = vmatpush1.bf16.msra.mxu0 0
  %3239 = vmatprep.subr.bf16.mxu0 0
  %3240 = vmatpush1.bf16.msra.mxu0 0
  %3241 = vmatprep.subr.bf16.mxu0 0
  %3242 = vmatpush1.bf16.msra.mxu0 0
  %3243 = vmatprep.subr.bf16.mxu0 0
  %3244 = vmatpush1.bf16.msra.mxu0 0
  %3245 = vmatprep.subr.bf16.mxu0 0
  %3246 = vmatpush1.bf16.msra.mxu0 0
  %3247 = vmatprep.subr.bf16.mxu0 0
  %3248 = vmatpush1.bf16.msra.mxu0 0
  %3249 = vmatprep.subr.bf16.mxu0 0
  %3250 = vmatpush1.bf16.msra.mxu0 0
  %3251 = vmatprep.mubr.bf16.mxu0 0
  %3252 = vmatmul.mubr.bf16.gmra.mrb[0].mxu0 %v3175
  %v3253 = vpop.f32.mrb[0].mxu0
  %v3254 = vadd.f32 0.0, %v3253
  %v3255 = vpop.f32.mrb[0].mxu0
  %v3256 = vpop.f32.mrb[0].mxu0
  %v3257 = vpop.f32.mrb[0].mxu0
  %3258 = vdwg.mxu0
  %v3259 = vadd.f32 %v3218, %v3254
  %v3260 = vxor.u32 %v3259, 2147483648
  %v3261 = vmul.f32 %v3260, 1.442695
  %v3262 = vpow.pop %v3261
  %v3263 = vadd.f32 %v3262, 1.0
  %v3264 = vrcp.pop %v3263
  %v3265 = vmul.f32 1.0, %v3264
  %v3266 = vtanh.pop %v3259
  %v3267 = vmul.f32 %v3265, %v3163
  %3269 = vrot.lane.b32.xlu0 %v3266, 32
  %v3270 = vpop.permute.xlu0 %3269
  %v3272 = vmul.f32 %v3265, %v3270
  %3274 = vrot.lane.b32.xlu0 %v3272, 32
  %v3275 = vpop.permute.xlu0 %3274
  %v3277 = vadd.f32 %v3267, %v3275
  %v3278 = vtanh.pop %v3277
  %3280 = vrot.lane.b32.xlu0 %v3278, 32
  %v3281 = vpop.permute.xlu0 %3280
  %v3283 = vmul.f32 %v3265, %v3281
  %v3284 = vpack.c.bf16 %v3283, %v3283
  %3286 = vrot.lane.b32.xlu0 %v3284, 64
  %v3287 = vpop.permute.xlu0 %3286
  %v3289 = vsel %vm68, %v3287, 0
  %3291 = vmatprep.subr.bf16.mxu0 0
  %3292 = vmatpush1.bf16.msra.mxu0 %v2812
  %3293 = vmatprep.subr.bf16.mxu0 0
  %3294 = vmatpush1.bf16.msra.mxu0 %v2813
  %3295 = vmatprep.subr.bf16.mxu0 0
  %3296 = vmatpush1.bf16.msra.mxu0 0
  %3297 = vmatprep.subr.bf16.mxu0 0
  %3298 = vmatpush1.bf16.msra.mxu0 0
  %3299 = vmatprep.subr.bf16.mxu0 0
  %3300 = vmatpush1.bf16.msra.mxu0 0
  %3301 = vmatprep.subr.bf16.mxu0 0
  %3302 = vmatpush1.bf16.msra.mxu0 0
  %3303 = vmatprep.subr.bf16.mxu0 0
  %3304 = vmatpush1.bf16.msra.mxu0 0
  %3305 = vmatprep.subr.bf16.mxu0 0
  %3306 = vmatpush1.bf16.msra.mxu0 0
  %3307 = vmatprep.subr.bf16.mxu0 0
  %3308 = vmatpush1.bf16.msra.mxu0 0
  %3309 = vmatprep.subr.bf16.mxu0 0
  %3310 = vmatpush1.bf16.msra.mxu0 0
  %3311 = vmatprep.subr.bf16.mxu0 0
  %3312 = vmatpush1.bf16.msra.mxu0 0
  %3313 = vmatprep.subr.bf16.mxu0 0
  %3314 = vmatpush1.bf16.msra.mxu0 0
  %3315 = vmatprep.subr.bf16.mxu0 0
  %3316 = vmatpush1.bf16.msra.mxu0 0
  %3317 = vmatprep.subr.bf16.mxu0 0
  %3318 = vmatpush1.bf16.msra.mxu0 0
  %3319 = vmatprep.subr.bf16.mxu0 0
  %3320 = vmatpush1.bf16.msra.mxu0 0
  %3321 = vmatprep.subr.bf16.mxu0 0
  %3322 = vmatpush1.bf16.msra.mxu0 0
  %3323 = vmatprep.mubr.bf16.mxu0 0
  %3324 = vmatmul.mubr.bf16.gmra.mrb[0].mxu0 %v3289
  %v3325 = vpop.f32.mrb[0].mxu0
  %v3326 = vadd.f32 %v2799, %v3325
  %v3327 = vpop.f32.mrb[0].mxu0
  %v3328 = vpop.f32.mrb[0].mxu0
  %v3329 = vpop.f32.mrb[0].mxu0
  %3330 = vdwg.mxu0
  %3331 = vst [vmem:[%s591] sm:$0xff] %v3326
  %v3332 = vld [vmem:[%s707] sm:$0xff]
  %3333 = vmatprep.subr.bf16.mxu0 0
  %3334 = vmatpush1.bf16.msra.mxu0 %v2869
  %3335 = vmatprep.subr.bf16.mxu0 0
  %3336 = vmatpush1.bf16.msra.mxu0 %v2870
  %3337 = vmatprep.subr.bf16.mxu0 0
  %3338 = vmatpush1.bf16.msra.mxu0 0
  %3339 = vmatprep.subr.bf16.mxu0 0
  %3340 = vmatpush1.bf16.msra.mxu0 0
  %3341 = vmatprep.subr.bf16.mxu0 0
  %3342 = vmatpush1.bf16.msra.mxu0 0
  %3343 = vmatprep.subr.bf16.mxu0 0
  %3344 = vmatpush1.bf16.msra.mxu0 0
  %3345 = vmatprep.subr.bf16.mxu0 0
  %3346 = vmatpush1.bf16.msra.mxu0 0
  %3347 = vmatprep.subr.bf16.mxu0 0
  %3348 = vmatpush1.bf16.msra.mxu0 0
  %3349 = vmatprep.subr.bf16.mxu0 0
  %3350 = vmatpush1.bf16.msra.mxu0 0
  %3351 = vmatprep.subr.bf16.mxu0 0
  %3352 = vmatpush1.bf16.msra.mxu0 0
  %3353 = vmatprep.subr.bf16.mxu0 0
  %3354 = vmatpush1.bf16.msra.mxu0 0
  %3355 = vmatprep.subr.bf16.mxu0 0
  %3356 = vmatpush1.bf16.msra.mxu0 0
  %3357 = vmatprep.subr.bf16.mxu0 0
  %3358 = vmatpush1.bf16.msra.mxu0 0
  %3359 = vmatprep.subr.bf16.mxu0 0
  %3360 = vmatpush1.bf16.msra.mxu0 0
  %3361 = vmatprep.subr.bf16.mxu0 0
  %3362 = vmatpush1.bf16.msra.mxu0 0
  %3363 = vmatprep.subr.bf16.mxu0 0
  %3364 = vmatpush1.bf16.msra.mxu0 0
  %3365 = vmatprep.mubr.bf16.mxu0 0
  %3366 = vmatmul.mubr.bf16.gmra.mrb[0].mxu0 %v3289
  %v3367 = vpop.f32.mrb[0].mxu0
  %v3368 = vadd.f32 0.0, %v3367
  %v3369 = vpop.f32.mrb[0].mxu0
  %v3370 = vpop.f32.mrb[0].mxu0
  %v3371 = vpop.f32.mrb[0].mxu0
  %3372 = vdwg.mxu0
  %v3373 = vadd.f32 %v3332, %v3368
  %v3374 = vxor.u32 %v3373, 2147483648
  %v3375 = vmul.f32 %v3374, 1.442695
  %v3376 = vpow.pop %v3375
  %v3377 = vadd.f32 %v3376, 1.0
  %v3378 = vrcp.pop %v3377
  %v3379 = vmul.f32 1.0, %v3378
  %v3380 = vtanh.pop %v3373
  %v3381 = vmul.f32 %v3379, %v3277
  %3383 = vrot.lane.b32.xlu0 %v3380, 32
  %v3384 = vpop.permute.xlu0 %3383
  %v3386 = vmul.f32 %v3379, %v3384
  %3388 = vrot.lane.b32.xlu0 %v3386, 32
  %v3389 = vpop.permute.xlu0 %3388
  %v3391 = vadd.f32 %v3381, %v3389
  %v3392 = vtanh.pop %v3391
  %3394 = vrot.lane.b32.xlu0 %v3392, 32
  %v3395 = vpop.permute.xlu0 %3394
  %v3397 = vmul.f32 %v3379, %v3395
  %v3398 = vpack.c.bf16 %v3397, %v3397
  %3400 = vrot.lane.b32.xlu0 %v3398, 64
  %v3401 = vpop.permute.xlu0 %3400
  %v3403 = vsel %vm68, %v3401, 0
  %3405 = vmatprep.subr.bf16.mxu0 0
  %3406 = vmatpush1.bf16.msra.mxu0 %v2812
  %3407 = vmatprep.subr.bf16.mxu0 0
  %3408 = vmatpush1.bf16.msra.mxu0 %v2813
  %3409 = vmatprep.subr.bf16.mxu0 0
  %3410 = vmatpush1.bf16.msra.mxu0 0
  %3411 = vmatprep.subr.bf16.mxu0 0
  %3412 = vmatpush1.bf16.msra.mxu0 0
  %3413 = vmatprep.subr.bf16.mxu0 0
  %3414 = vmatpush1.bf16.msra.mxu0 0
  %3415 = vmatprep.subr.bf16.mxu0 0
  %3416 = vmatpush1.bf16.msra.mxu0 0
  %3417 = vmatprep.subr.bf16.mxu0 0
  %3418 = vmatpush1.bf16.msra.mxu0 0
  %3419 = vmatprep.subr.bf16.mxu0 0
  %3420 = vmatpush1.bf16.msra.mxu0 0
  %3421 = vmatprep.subr.bf16.mxu0 0
  %3422 = vmatpush1.bf16.msra.mxu0 0
  %3423 = vmatprep.subr.bf16.mxu0 0
  %3424 = vmatpush1.bf16.msra.mxu0 0
  %3425 = vmatprep.subr.bf16.mxu0 0
  %3426 = vmatpush1.bf16.msra.mxu0 0
  %3427 = vmatprep.subr.bf16.mxu0 0
  %3428 = vmatpush1.bf16.msra.mxu0 0
  %3429 = vmatprep.subr.bf16.mxu0 0
  %3430 = vmatpush1.bf16.msra.mxu0 0
  %3431 = vmatprep.subr.bf16.mxu0 0
  %3432 = vmatpush1.bf16.msra.mxu0 0
  %3433 = vmatprep.subr.bf16.mxu0 0
  %3434 = vmatpush1.bf16.msra.mxu0 0
  %3435 = vmatprep.subr.bf16.mxu0 0
  %3436 = vmatpush1.bf16.msra.mxu0 0
  %3437 = vmatprep.mubr.bf16.mxu0 0
  %3438 = vmatmul.mubr.bf16.gmra.mrb[0].mxu0 %v3403
  %v3439 = vpop.f32.mrb[0].mxu0
  %v3440 = vadd.f32 %v2799, %v3439
  %v3441 = vpop.f32.mrb[0].mxu0
  %v3442 = vpop.f32.mrb[0].mxu0
  %v3443 = vpop.f32.mrb[0].mxu0
  %3444 = vdwg.mxu0
  %3445 = vst [vmem:[%s707] sm:$0xff] %v3440
  %v3446 = vld [vmem:[%s823] sm:$0xff]
  %3447 = vmatprep.subr.bf16.mxu0 0
  %3448 = vmatpush1.bf16.msra.mxu0 %v2869
  %3449 = vmatprep.subr.bf16.mxu0 0
  %3450 = vmatpush1.bf16.msra.mxu0 %v2870
  %3451 = vmatprep.subr.bf16.mxu0 0
  %3452 = vmatpush1.bf16.msra.mxu0 0
  %3453 = vmatprep.subr.bf16.mxu0 0
  %3454 = vmatpush1.bf16.msra.mxu0 0
  %3455 = vmatprep.subr.bf16.mxu0 0
  %3456 = vmatpush1.bf16.msra.mxu0 0
  %3457 = vmatprep.subr.bf16.mxu0 0
  %3458 = vmatpush1.bf16.msra.mxu0 0
  %3459 = vmatprep.subr.bf16.mxu0 0
  %3460 = vmatpush1.bf16.msra.mxu0 0
  %3461 = vmatprep.subr.bf16.mxu0 0
  %3462 = vmatpush1.bf16.msra.mxu0 0
  %3463 = vmatprep.subr.bf16.mxu0 0
  %3464 = vmatpush1.bf16.msra.mxu0 0
  %3465 = vmatprep.subr.bf16.mxu0 0
  %3466 = vmatpush1.bf16.msra.mxu0 0
  %3467 = vmatprep.subr.bf16.mxu0 0
  %3468 = vmatpush1.bf16.msra.mxu0 0
  %3469 = vmatprep.subr.bf16.mxu0 0
  %3470 = vmatpush1.bf16.msra.mxu0 0
  %3471 = vmatprep.subr.bf16.mxu0 0
  %3472 = vmatpush1.bf16.msra.mxu0 0
  %3473 = vmatprep.subr.bf16.mxu0 0
  %3474 = vmatpush1.bf16.msra.mxu0 0
  %3475 = vmatprep.subr.bf16.mxu0 0
  %3476 = vmatpush1.bf16.msra.mxu0 0
  %3477 = vmatprep.subr.bf16.mxu0 0
  %3478 = vmatpush1.bf16.msra.mxu0 0
  %3479 = vmatprep.mubr.bf16.mxu0 0
  %3480 = vmatmul.mubr.bf16.gmra.mrb[0].mxu0 %v3403
  %v3481 = vpop.f32.mrb[0].mxu0
  %v3482 = vadd.f32 0.0, %v3481
  %v3483 = vpop.f32.mrb[0].mxu0
  %v3484 = vpop.f32.mrb[0].mxu0
  %v3485 = vpop.f32.mrb[0].mxu0
  %3486 = vdwg.mxu0
  %v3487 = vadd.f32 %v3446, %v3482
  %v3488 = vxor.u32 %v3487, 2147483648
  %v3489 = vmul.f32 %v3488, 1.442695
  %v3490 = vpow.pop %v3489
  %v3491 = vadd.f32 %v3490, 1.0
  %v3492 = vrcp.pop %v3491
  %v3493 = vmul.f32 1.0, %v3492
  %v3494 = vtanh.pop %v3487
  %v3495 = vmul.f32 %v3493, %v3391
  %3497 = vrot.lane.b32.xlu0 %v3494, 32
  %v3498 = vpop.permute.xlu0 %3497
  %v3500 = vmul.f32 %v3493, %v3498
  %3502 = vrot.lane.b32.xlu0 %v3500, 32
  %v3503 = vpop.permute.xlu0 %3502
  %v3505 = vadd.f32 %v3495, %v3503
  %v3506 = vtanh.pop %v3505
  %3508 = vrot.lane.b32.xlu0 %v3506, 32
  %v3509 = vpop.permute.xlu0 %3508
  %v3511 = vmul.f32 %v3493, %v3509
  %v3512 = vpack.c.bf16 %v3511, %v3511
  %3514 = vrot.lane.b32.xlu0 %v3512, 64
  %v3515 = vpop.permute.xlu0 %3514
  %v3517 = vsel %vm68, %v3515, 0
  %3519 = vmatprep.subr.bf16.mxu0 0
  %3520 = vmatpush1.bf16.msra.mxu0 %v2812
  %3521 = vmatprep.subr.bf16.mxu0 0
  %3522 = vmatpush1.bf16.msra.mxu0 %v2813
  %3523 = vmatprep.subr.bf16.mxu0 0
  %3524 = vmatpush1.bf16.msra.mxu0 0
  %3525 = vmatprep.subr.bf16.mxu0 0
  %3526 = vmatpush1.bf16.msra.mxu0 0
  %3527 = vmatprep.subr.bf16.mxu0 0
  %3528 = vmatpush1.bf16.msra.mxu0 0
  %3529 = vmatprep.subr.bf16.mxu0 0
  %3530 = vmatpush1.bf16.msra.mxu0 0
  %3531 = vmatprep.subr.bf16.mxu0 0
  %3532 = vmatpush1.bf16.msra.mxu0 0
  %3533 = vmatprep.subr.bf16.mxu0 0
  %3534 = vmatpush1.bf16.msra.mxu0 0
  %3535 = vmatprep.subr.bf16.mxu0 0
  %3536 = vmatpush1.bf16.msra.mxu0 0
  %3537 = vmatprep.subr.bf16.mxu0 0
  %3538 = vmatpush1.bf16.msra.mxu0 0
  %3539 = vmatprep.subr.bf16.mxu0 0
  %3540 = vmatpush1.bf16.msra.mxu0 0
  %3541 = vmatprep.subr.bf16.mxu0 0
  %3542 = vmatpush1.bf16.msra.mxu0 0
  %3543 = vmatprep.subr.bf16.mxu0 0
  %3544 = vmatpush1.bf16.msra.mxu0 0
  %3545 = vmatprep.subr.bf16.mxu0 0
  %3546 = vmatpush1.bf16.msra.mxu0 0
  %3547 = vmatprep.subr.bf16.mxu0 0
  %3548 = vmatpush1.bf16.msra.mxu0 0
  %3549 = vmatprep.subr.bf16.mxu0 0
  %3550 = vmatpush1.bf16.msra.mxu0 0
  %3551 = vmatprep.mubr.bf16.mxu0 0
  %3552 = vmatmul.mubr.bf16.gmra.mrb[0].mxu0 %v3517
  %v3553 = vpop.f32.mrb[0].mxu0
  %v3554 = vadd.f32 %v2799, %v3553
  %v3555 = vpop.f32.mrb[0].mxu0
  %v3556 = vpop.f32.mrb[0].mxu0
  %v3557 = vpop.f32.mrb[0].mxu0
  %3558 = vdwg.mxu0
  %3559 = vst [vmem:[%s823] sm:$0xff] %v3554
  %v3560 = vld [vmem:[%s939] sm:$0xff]
  %3561 = vmatprep.subr.bf16.mxu0 0
  %3562 = vmatpush1.bf16.msra.mxu0 %v2869
  %3563 = vmatprep.subr.bf16.mxu0 0
  %3564 = vmatpush1.bf16.msra.mxu0 %v2870
  %3565 = vmatprep.subr.bf16.mxu0 0
  %3566 = vmatpush1.bf16.msra.mxu0 0
  %3567 = vmatprep.subr.bf16.mxu0 0
  %3568 = vmatpush1.bf16.msra.mxu0 0
  %3569 = vmatprep.subr.bf16.mxu0 0
  %3570 = vmatpush1.bf16.msra.mxu0 0
  %3571 = vmatprep.subr.bf16.mxu0 0
  %3572 = vmatpush1.bf16.msra.mxu0 0
  %3573 = vmatprep.subr.bf16.mxu0 0
  %3574 = vmatpush1.bf16.msra.mxu0 0
  %3575 = vmatprep.subr.bf16.mxu0 0
  %3576 = vmatpush1.bf16.msra.mxu0 0
  %3577 = vmatprep.subr.bf16.mxu0 0
  %3578 = vmatpush1.bf16.msra.mxu0 0
  %3579 = vmatprep.subr.bf16.mxu0 0
  %3580 = vmatpush1.bf16.msra.mxu0 0
  %3581 = vmatprep.subr.bf16.mxu0 0
  %3582 = vmatpush1.bf16.msra.mxu0 0
  %3583 = vmatprep.subr.bf16.mxu0 0
  %3584 = vmatpush1.bf16.msra.mxu0 0
  %3585 = vmatprep.subr.bf16.mxu0 0
  %3586 = vmatpush1.bf16.msra.mxu0 0
  %3587 = vmatprep.subr.bf16.mxu0 0
  %3588 = vmatpush1.bf16.msra.mxu0 0
  %3589 = vmatprep.subr.bf16.mxu0 0
  %3590 = vmatpush1.bf16.msra.mxu0 0
  %3591 = vmatprep.subr.bf16.mxu0 0
  %3592 = vmatpush1.bf16.msra.mxu0 0
  %3593 = vmatprep.mubr.bf16.mxu0 0
  %3594 = vmatmul.mubr.bf16.gmra.mrb[0].mxu0 %v3517
  %v3595 = vpop.f32.mrb[0].mxu0
  %v3596 = vadd.f32 0.0, %v3595
  %v3597 = vpop.f32.mrb[0].mxu0
  %v3598 = vpop.f32.mrb[0].mxu0
  %v3599 = vpop.f32.mrb[0].mxu0
  %3600 = vdwg.mxu0
  %v3601 = vadd.f32 %v3560, %v3596
  %v3602 = vxor.u32 %v3601, 2147483648
  %v3603 = vmul.f32 %v3602, 1.442695
  %v3604 = vpow.pop %v3603
  %v3605 = vadd.f32 %v3604, 1.0
  %v3606 = vrcp.pop %v3605
  %v3607 = vmul.f32 1.0, %v3606
  %v3608 = vtanh.pop %v3601
  %v3609 = vmul.f32 %v3607, %v3505
  %3611 = vrot.lane.b32.xlu0 %v3608, 32
  %v3612 = vpop.permute.xlu0 %3611
  %v3614 = vmul.f32 %v3607, %v3612
  %3616 = vrot.lane.b32.xlu0 %v3614, 32
  %v3617 = vpop.permute.xlu0 %3616
  %v3619 = vadd.f32 %v3609, %v3617
  %v3620 = vtanh.pop %v3619
  %3622 = vrot.lane.b32.xlu0 %v3620, 32
  %v3623 = vpop.permute.xlu0 %3622
  %v3625 = vmul.f32 %v3607, %v3623
  %v3626 = vpack.c.bf16 %v3625, %v3625
  %3628 = vrot.lane.b32.xlu0 %v3626, 64
  %v3629 = vpop.permute.xlu0 %3628
  %v3631 = vsel %vm68, %v3629, 0
  %3633 = vmatprep.subr.bf16.mxu0 0
  %3634 = vmatpush1.bf16.msra.mxu0 %v2812
  %3635 = vmatprep.subr.bf16.mxu0 0
  %3636 = vmatpush1.bf16.msra.mxu0 %v2813
  %3637 = vmatprep.subr.bf16.mxu0 0
  %3638 = vmatpush1.bf16.msra.mxu0 0
  %3639 = vmatprep.subr.bf16.mxu0 0
  %3640 = vmatpush1.bf16.msra.mxu0 0
  %3641 = vmatprep.subr.bf16.mxu0 0
  %3642 = vmatpush1.bf16.msra.mxu0 0
  %3643 = vmatprep.subr.bf16.mxu0 0
  %3644 = vmatpush1.bf16.msra.mxu0 0
  %3645 = vmatprep.subr.bf16.mxu0 0
  %3646 = vmatpush1.bf16.msra.mxu0 0
  %3647 = vmatprep.subr.bf16.mxu0 0
  %3648 = vmatpush1.bf16.msra.mxu0 0
  %3649 = vmatprep.subr.bf16.mxu0 0
  %3650 = vmatpush1.bf16.msra.mxu0 0
  %3651 = vmatprep.subr.bf16.mxu0 0
  %3652 = vmatpush1.bf16.msra.mxu0 0
  %3653 = vmatprep.subr.bf16.mxu0 0
  %3654 = vmatpush1.bf16.msra.mxu0 0
  %3655 = vmatprep.subr.bf16.mxu0 0
  %3656 = vmatpush1.bf16.msra.mxu0 0
  %3657 = vmatprep.subr.bf16.mxu0 0
  %3658 = vmatpush1.bf16.msra.mxu0 0
  %3659 = vmatprep.subr.bf16.mxu0 0
  %3660 = vmatpush1.bf16.msra.mxu0 0
  %3661 = vmatprep.subr.bf16.mxu0 0
  %3662 = vmatpush1.bf16.msra.mxu0 0
  %3663 = vmatprep.subr.bf16.mxu0 0
  %3664 = vmatpush1.bf16.msra.mxu0 0
  %3665 = vmatprep.mubr.bf16.mxu0 0
  %3666 = vmatmul.mubr.bf16.gmra.mrb[0].mxu0 %v3631
  %v3667 = vpop.f32.mrb[0].mxu0
  %v3668 = vadd.f32 %v2799, %v3667
  %v3669 = vpop.f32.mrb[0].mxu0
  %v3670 = vpop.f32.mrb[0].mxu0
  %v3671 = vpop.f32.mrb[0].mxu0
  %3672 = vdwg.mxu0
  %3673 = vst [vmem:[%s939] sm:$0xff] %v3668
  %s3674 = scalar_lea.vmem %s2, 64
  %v3675 = vld [vmem:[%s3674] sm:$0xf]
  %v3676 = vld [vmem:[%s3674 + $0x4] sm:$0xf]
  %v3677 = vld [vmem:[%s3674 + $0x8] sm:$0xf]
  %v3678 = vld [vmem:[%s3674 + $0xc] sm:$0xf]
  %s3679 = scalar_lea.vmem %s1, 64
  %v3680 = vld [vmem:[%s3679] sm:$0xf]
  %v3681 = vld [vmem:[%s3679 + $0x4] sm:$0xf]
  %v3682 = vld [vmem:[%s3679 + $0x8] sm:$0xf]
  %v3683 = vld [vmem:[%s3679 + $0xc] sm:$0xf]
  %s3684 = scalar_lea.vmem %s3, 4
  %v3685 = vld [vmem:[%s3684] sm:$0x1]
  %v3686 = vld [vmem:[#allocation2] sm:$0xff]
  %v3687 = vxor.u32 %v3686, 2147483648
  %v3688 = vmul.f32 %v3687, 1.442695
  %v3689 = vpow.pop %v3688
  %v3690 = vadd.f32 %v3689, 1.0
  %v3691 = vrcp.pop %v3690
  %v3692 = vmul.f32 1.0, %v3691
  %v3693 = vtanh.pop %v3686
  %3695 = vrot.lane.b32.xlu0 %v3693, 32
  %v3696 = vpop.permute.xlu0 %3695
  %v3698 = vmul.f32 %v3692, %v3696
  %v3699 = vtanh.pop %v3698
  %3701 = vrot.lane.b32.xlu0 %v3699, 64
  %v3702 = vpop.permute.xlu0 %3701
  %v3704 = vmul.f32 %v3692, %v3702
  %v3705 = vpack.c.bf16 %v3704, %v3704
  %v3707 = vlaneseq
  %v3708 = vshrl.u32 %v3707, 7
  %v3709 = vsub.s32 0, %v3708
  %v3710 = vrot.slane %v3685, %v3709
  %3713 = vrot.lane.b32.xlu0 %v3705, 64
  %v3714 = vpop.permute.xlu0 %3713
  %v3719 = vunpack.c.l.b16 %v3680
  %v3720 = vunpack.c.l.b16 %v3681
  %v3721 = vunpack.c.l.b16 %v3682
  %v3722 = vunpack.c.l.b16 %v3683
  %v3723 = vpack.c.b16 %v3720, %v3719
  %v3724 = vpack.c.b16 %v3722, %v3721
  %v3728 = vsel %vm68, %v3714, 0
  %3730 = vmatprep.subr.bf16.mxu0 0
  %3731 = vmatpush1.bf16.msra.mxu0 %v3723
  %3732 = vmatprep.subr.bf16.mxu0 0
  %3733 = vmatpush1.bf16.msra.mxu0 %v3724
  %3734 = vmatprep.subr.bf16.mxu0 0
  %3735 = vmatpush1.bf16.msra.mxu0 0
  %3736 = vmatprep.subr.bf16.mxu0 0
  %3737 = vmatpush1.bf16.msra.mxu0 0
  %3738 = vmatprep.subr.bf16.mxu0 0
  %3739 = vmatpush1.bf16.msra.mxu0 0
  %3740 = vmatprep.subr.bf16.mxu0 0
  %3741 = vmatpush1.bf16.msra.mxu0 0
  %3742 = vmatprep.subr.bf16.mxu0 0
  %3743 = vmatpush1.bf16.msra.mxu0 0
  %3744 = vmatprep.subr.bf16.mxu0 0
  %3745 = vmatpush1.bf16.msra.mxu0 0
  %3746 = vmatprep.subr.bf16.mxu0 0
  %3747 = vmatpush1.bf16.msra.mxu0 0
  %3748 = vmatprep.subr.bf16.mxu0 0
  %3749 = vmatpush1.bf16.msra.mxu0 0
  %3750 = vmatprep.subr.bf16.mxu0 0
  %3751 = vmatpush1.bf16.msra.mxu0 0
  %3752 = vmatprep.subr.bf16.mxu0 0
  %3753 = vmatpush1.bf16.msra.mxu0 0
  %3754 = vmatprep.subr.bf16.mxu0 0
  %3755 = vmatpush1.bf16.msra.mxu0 0
  %3756 = vmatprep.subr.bf16.mxu0 0
  %3757 = vmatpush1.bf16.msra.mxu0 0
  %3758 = vmatprep.subr.bf16.mxu0 0
  %3759 = vmatpush1.bf16.msra.mxu0 0
  %3760 = vmatprep.subr.bf16.mxu0 0
  %3761 = vmatpush1.bf16.msra.mxu0 0
  %3762 = vmatprep.mubr.bf16.mxu0 0
  %3763 = vmatmul.mubr.bf16.gmra.mrb[0].mxu0 %v3728
  %v3764 = vpop.f32.mrb[0].mxu0
  %v3765 = vadd.f32 %v3710, %v3764
  %v3766 = vpop.f32.mrb[0].mxu0
  %v3767 = vpop.f32.mrb[0].mxu0
  %v3768 = vpop.f32.mrb[0].mxu0
  %3769 = vdwg.mxu0
  %3770 = vst [vmem:[#allocation2] sm:$0xff] %v3765
  %v3771 = vld [vmem:[%s243] sm:$0xff]
  %v3776 = vunpack.c.l.b16 %v3675
  %v3777 = vunpack.c.l.b16 %v3676
  %v3778 = vunpack.c.l.b16 %v3677
  %v3779 = vunpack.c.l.b16 %v3678
  %v3780 = vpack.c.b16 %v3777, %v3776
  %v3781 = vpack.c.b16 %v3779, %v3778
  %3784 = vmatprep.subr.bf16.mxu0 0
  %3785 = vmatpush1.bf16.msra.mxu0 %v3780
  %3786 = vmatprep.subr.bf16.mxu0 0
  %3787 = vmatpush1.bf16.msra.mxu0 %v3781
  %3788 = vmatprep.subr.bf16.mxu0 0
  %3789 = vmatpush1.bf16.msra.mxu0 0
  %3790 = vmatprep.subr.bf16.mxu0 0
  %3791 = vmatpush1.bf16.msra.mxu0 0
  %3792 = vmatprep.subr.bf16.mxu0 0
  %3793 = vmatpush1.bf16.msra.mxu0 0
  %3794 = vmatprep.subr.bf16.mxu0 0
  %3795 = vmatpush1.bf16.msra.mxu0 0
  %3796 = vmatprep.subr.bf16.mxu0 0
  %3797 = vmatpush1.bf16.msra.mxu0 0
  %3798 = vmatprep.subr.bf16.mxu0 0
  %3799 = vmatpush1.bf16.msra.mxu0 0
  %3800 = vmatprep.subr.bf16.mxu0 0
  %3801 = vmatpush1.bf16.msra.mxu0 0
  %3802 = vmatprep.subr.bf16.mxu0 0
  %3803 = vmatpush1.bf16.msra.mxu0 0
  %3804 = vmatprep.subr.bf16.mxu0 0
  %3805 = vmatpush1.bf16.msra.mxu0 0
  %3806 = vmatprep.subr.bf16.mxu0 0
  %3807 = vmatpush1.bf16.msra.mxu0 0
  %3808 = vmatprep.subr.bf16.mxu0 0
  %3809 = vmatpush1.bf16.msra.mxu0 0
  %3810 = vmatprep.subr.bf16.mxu0 0
  %3811 = vmatpush1.bf16.msra.mxu0 0
  %3812 = vmatprep.subr.bf16.mxu0 0
  %3813 = vmatpush1.bf16.msra.mxu0 0
  %3814 = vmatprep.subr.bf16.mxu0 0
  %3815 = vmatpush1.bf16.msra.mxu0 0
  %3816 = vmatprep.mubr.bf16.mxu0 0
  %3817 = vmatmul.mubr.bf16.gmra.mrb[0].mxu0 %v3728
  %v3818 = vpop.f32.mrb[0].mxu0
  %v3819 = vadd.f32 0.0, %v3818
  %v3820 = vpop.f32.mrb[0].mxu0
  %v3821 = vpop.f32.mrb[0].mxu0
  %v3822 = vpop.f32.mrb[0].mxu0
  %3823 = vdwg.mxu0
  %v3824 = vadd.f32 %v3771, %v3819
  %v3825 = vxor.u32 %v3824, 2147483648
  %v3826 = vmul.f32 %v3825, 1.442695
  %v3827 = vpow.pop %v3826
  %v3828 = vadd.f32 %v3827, 1.0
  %v3829 = vrcp.pop %v3828
  %v3830 = vmul.f32 1.0, %v3829
  %v3831 = vtanh.pop %v3824
  %3833 = vrot.lane.b32.xlu0 %v3698, 32
  %v3834 = vpop.permute.xlu0 %3833
  %v3836 = vmul.f32 %v3830, %v3834
  %3838 = vrot.lane.b32.xlu0 %v3831, 32
  %v3839 = vpop.permute.xlu0 %3838
  %v3841 = vmul.f32 %v3830, %v3839
  %3843 = vrot.lane.b32.xlu0 %v3841, 32
  %v3844 = vpop.permute.xlu0 %3843
  %v3846 = vadd.f32 %v3836, %v3844
  %v3847 = vtanh.pop %v3846
  %3849 = vrot.lane.b32.xlu0 %v3847, 32
  %v3850 = vpop.permute.xlu0 %3849
  %v3852 = vmul.f32 %v3830, %v3850
  %v3853 = vpack.c.bf16 %v3852, %v3852
  %3855 = vrot.lane.b32.xlu0 %v3853, 64
  %v3856 = vpop.permute.xlu0 %3855
  %v3858 = vsel %vm68, %v3856, 0
  %3860 = vmatprep.subr.bf16.mxu0 0
  %3861 = vmatpush1.bf16.msra.mxu0 %v3723
  %3862 = vmatprep.subr.bf16.mxu0 0
  %3863 = vmatpush1.bf16.msra.mxu0 %v3724
  %3864 = vmatprep.subr.bf16.mxu0 0
  %3865 = vmatpush1.bf16.msra.mxu0 0
  %3866 = vmatprep.subr.bf16.mxu0 0
  %3867 = vmatpush1.bf16.msra.mxu0 0
  %3868 = vmatprep.subr.bf16.mxu0 0
  %3869 = vmatpush1.bf16.msra.mxu0 0
  %3870 = vmatprep.subr.bf16.mxu0 0
  %3871 = vmatpush1.bf16.msra.mxu0 0
  %3872 = vmatprep.subr.bf16.mxu0 0
  %3873 = vmatpush1.bf16.msra.mxu0 0
  %3874 = vmatprep.subr.bf16.mxu0 0
  %3875 = vmatpush1.bf16.msra.mxu0 0
  %3876 = vmatprep.subr.bf16.mxu0 0
  %3877 = vmatpush1.bf16.msra.mxu0 0
  %3878 = vmatprep.subr.bf16.mxu0 0
  %3879 = vmatpush1.bf16.msra.mxu0 0
  %3880 = vmatprep.subr.bf16.mxu0 0
  %3881 = vmatpush1.bf16.msra.mxu0 0
  %3882 = vmatprep.subr.bf16.mxu0 0
  %3883 = vmatpush1.bf16.msra.mxu0 0
  %3884 = vmatprep.subr.bf16.mxu0 0
  %3885 = vmatpush1.bf16.msra.mxu0 0
  %3886 = vmatprep.subr.bf16.mxu0 0
  %3887 = vmatpush1.bf16.msra.mxu0 0
  %3888 = vmatprep.subr.bf16.mxu0 0
  %3889 = vmatpush1.bf16.msra.mxu0 0
  %3890 = vmatprep.subr.bf16.mxu0 0
  %3891 = vmatpush1.bf16.msra.mxu0 0
  %3892 = vmatprep.mubr.bf16.mxu0 0
  %3893 = vmatmul.mubr.bf16.gmra.mrb[0].mxu0 %v3858
  %v3894 = vpop.f32.mrb[0].mxu0
  %v3895 = vadd.f32 %v3710, %v3894
  %v3896 = vpop.f32.mrb[0].mxu0
  %v3897 = vpop.f32.mrb[0].mxu0
  %v3898 = vpop.f32.mrb[0].mxu0
  %3899 = vdwg.mxu0
  %3900 = vst [vmem:[%s243] sm:$0xff] %v3895
  %v3901 = vld [vmem:[%s359] sm:$0xff]
  %3902 = vmatprep.subr.bf16.mxu0 0
  %3903 = vmatpush1.bf16.msra.mxu0 %v3780
  %3904 = vmatprep.subr.bf16.mxu0 0
  %3905 = vmatpush1.bf16.msra.mxu0 %v3781
  %3906 = vmatprep.subr.bf16.mxu0 0
  %3907 = vmatpush1.bf16.msra.mxu0 0
  %3908 = vmatprep.subr.bf16.mxu0 0
  %3909 = vmatpush1.bf16.msra.mxu0 0
  %3910 = vmatprep.subr.bf16.mxu0 0
  %3911 = vmatpush1.bf16.msra.mxu0 0
  %3912 = vmatprep.subr.bf16.mxu0 0
  %3913 = vmatpush1.bf16.msra.mxu0 0
  %3914 = vmatprep.subr.bf16.mxu0 0
  %3915 = vmatpush1.bf16.msra.mxu0 0
  %3916 = vmatprep.subr.bf16.mxu0 0
  %3917 = vmatpush1.bf16.msra.mxu0 0
  %3918 = vmatprep.subr.bf16.mxu0 0
  %3919 = vmatpush1.bf16.msra.mxu0 0
  %3920 = vmatprep.subr.bf16.mxu0 0
  %3921 = vmatpush1.bf16.msra.mxu0 0
  %3922 = vmatprep.subr.bf16.mxu0 0
  %3923 = vmatpush1.bf16.msra.mxu0 0
  %3924 = vmatprep.subr.bf16.mxu0 0
  %3925 = vmatpush1.bf16.msra.mxu0 0
  %3926 = vmatprep.subr.bf16.mxu0 0
  %3927 = vmatpush1.bf16.msra.mxu0 0
  %3928 = vmatprep.subr.bf16.mxu0 0
  %3929 = vmatpush1.bf16.msra.mxu0 0
  %3930 = vmatprep.subr.bf16.mxu0 0
  %3931 = vmatpush1.bf16.msra.mxu0 0
  %3932 = vmatprep.subr.bf16.mxu0 0
  %3933 = vmatpush1.bf16.msra.mxu0 0
  %3934 = vmatprep.mubr.bf16.mxu0 0
  %3935 = vmatmul.mubr.bf16.gmra.mrb[0].mxu0 %v3858
  %v3936 = vpop.f32.mrb[0].mxu0
  %v3937 = vadd.f32 0.0, %v3936
  %v3938 = vpop.f32.mrb[0].mxu0
  %v3939 = vpop.f32.mrb[0].mxu0
  %v3940 = vpop.f32.mrb[0].mxu0
  %3941 = vdwg.mxu0
  %v3942 = vadd.f32 %v3901, %v3937
  %v3943 = vxor.u32 %v3942, 2147483648
  %v3944 = vmul.f32 %v3943, 1.442695
  %v3945 = vpow.pop %v3944
  %v3946 = vadd.f32 %v3945, 1.0
  %v3947 = vrcp.pop %v3946
  %v3948 = vmul.f32 1.0, %v3947
  %v3949 = vtanh.pop %v3942
  %v3950 = vmul.f32 %v3948, %v3846
  %3952 = vrot.lane.b32.xlu0 %v3949, 32
  %v3953 = vpop.permute.xlu0 %3952
  %v3955 = vmul.f32 %v3948, %v3953
  %3957 = vrot.lane.b32.xlu0 %v3955, 32
  %v3958 = vpop.permute.xlu0 %3957
  %v3960 = vadd.f32 %v3950, %v3958
  %v3961 = vtanh.pop %v3960
  %3963 = vrot.lane.b32.xlu0 %v3961, 32
  %v3964 = vpop.permute.xlu0 %3963
  %v3966 = vmul.f32 %v3948, %v3964
  %v3967 = vpack.c.bf16 %v3966, %v3966
  %3969 = vrot.lane.b32.xlu0 %v3967, 64
  %v3970 = vpop.permute.xlu0 %3969
  %v3972 = vsel %vm68, %v3970, 0
  %3974 = vmatprep.subr.bf16.mxu0 0
  %3975 = vmatpush1.bf16.msra.mxu0 %v3723
  %3976 = vmatprep.subr.bf16.mxu0 0
  %3977 = vmatpush1.bf16.msra.mxu0 %v3724
  %3978 = vmatprep.subr.bf16.mxu0 0
  %3979 = vmatpush1.bf16.msra.mxu0 0
  %3980 = vmatprep.subr.bf16.mxu0 0
  %3981 = vmatpush1.bf16.msra.mxu0 0
  %3982 = vmatprep.subr.bf16.mxu0 0
  %3983 = vmatpush1.bf16.msra.mxu0 0
  %3984 = vmatprep.subr.bf16.mxu0 0
  %3985 = vmatpush1.bf16.msra.mxu0 0
  %3986 = vmatprep.subr.bf16.mxu0 0
  %3987 = vmatpush1.bf16.msra.mxu0 0
  %3988 = vmatprep.subr.bf16.mxu0 0
  %3989 = vmatpush1.bf16.msra.mxu0 0
  %3990 = vmatprep.subr.bf16.mxu0 0
  %3991 = vmatpush1.bf16.msra.mxu0 0
  %3992 = vmatprep.subr.bf16.mxu0 0
  %3993 = vmatpush1.bf16.msra.mxu0 0
  %3994 = vmatprep.subr.bf16.mxu0 0
  %3995 = vmatpush1.bf16.msra.mxu0 0
  %3996 = vmatprep.subr.bf16.mxu0 0
  %3997 = vmatpush1.bf16.msra.mxu0 0
  %3998 = vmatprep.subr.bf16.mxu0 0
  %3999 = vmatpush1.bf16.msra.mxu0 0
  %4000 = vmatprep.subr.bf16.mxu0 0
  %4001 = vmatpush1.bf16.msra.mxu0 0
  %4002 = vmatprep.subr.bf16.mxu0 0
  %4003 = vmatpush1.bf16.msra.mxu0 0
  %4004 = vmatprep.subr.bf16.mxu0 0
  %4005 = vmatpush1.bf16.msra.mxu0 0
  %4006 = vmatprep.mubr.bf16.mxu0 0
  %4007 = vmatmul.mubr.bf16.gmra.mrb[0].mxu0 %v3972
  %v4008 = vpop.f32.mrb[0].mxu0
  %v4009 = vadd.f32 %v3710, %v4008
  %v4010 = vpop.f32.mrb[0].mxu0
  %v4011 = vpop.f32.mrb[0].mxu0
  %v4012 = vpop.f32.mrb[0].mxu0
  %4013 = vdwg.mxu0
  %4014 = vst [vmem:[%s359] sm:$0xff] %v4009
  %v4015 = vld [vmem:[%s475] sm:$0xff]
  %4016 = vmatprep.subr.bf16.mxu0 0
  %4017 = vmatpush1.bf16.msra.mxu0 %v3780
  %4018 = vmatprep.subr.bf16.mxu0 0
  %4019 = vmatpush1.bf16.msra.mxu0 %v3781
  %4020 = vmatprep.subr.bf16.mxu0 0
  %4021 = vmatpush1.bf16.msra.mxu0 0
  %4022 = vmatprep.subr.bf16.mxu0 0
  %4023 = vmatpush1.bf16.msra.mxu0 0
  %4024 = vmatprep.subr.bf16.mxu0 0
  %4025 = vmatpush1.bf16.msra.mxu0 0
  %4026 = vmatprep.subr.bf16.mxu0 0
  %4027 = vmatpush1.bf16.msra.mxu0 0
  %4028 = vmatprep.subr.bf16.mxu0 0
  %4029 = vmatpush1.bf16.msra.mxu0 0
  %4030 = vmatprep.subr.bf16.mxu0 0
  %4031 = vmatpush1.bf16.msra.mxu0 0
  %4032 = vmatprep.subr.bf16.mxu0 0
  %4033 = vmatpush1.bf16.msra.mxu0 0
  %4034 = vmatprep.subr.bf16.mxu0 0
  %4035 = vmatpush1.bf16.msra.mxu0 0
  %4036 = vmatprep.subr.bf16.mxu0 0
  %4037 = vmatpush1.bf16.msra.mxu0 0
  %4038 = vmatprep.subr.bf16.mxu0 0
  %4039 = vmatpush1.bf16.msra.mxu0 0
  %4040 = vmatprep.subr.bf16.mxu0 0
  %4041 = vmatpush1.bf16.msra.mxu0 0
  %4042 = vmatprep.subr.bf16.mxu0 0
  %4043 = vmatpush1.bf16.msra.mxu0 0
  %4044 = vmatprep.subr.bf16.mxu0 0
  %4045 = vmatpush1.bf16.msra.mxu0 0
  %4046 = vmatprep.subr.bf16.mxu0 0
  %4047 = vmatpush1.bf16.msra.mxu0 0
  %4048 = vmatprep.mubr.bf16.mxu0 0
  %4049 = vmatmul.mubr.bf16.gmra.mrb[0].mxu0 %v3972
  %v4050 = vpop.f32.mrb[0].mxu0
  %v4051 = vadd.f32 0.0, %v4050
  %v4052 = vpop.f32.mrb[0].mxu0
  %v4053 = vpop.f32.mrb[0].mxu0
  %v4054 = vpop.f32.mrb[0].mxu0
  %4055 = vdwg.mxu0
  %v4056 = vadd.f32 %v4015, %v4051
  %v4057 = vxor.u32 %v4056, 2147483648
  %v4058 = vmul.f32 %v4057, 1.442695
  %v4059 = vpow.pop %v4058
  %v4060 = vadd.f32 %v4059, 1.0
  %v4061 = vrcp.pop %v4060
  %v4062 = vmul.f32 1.0, %v4061
  %v4063 = vtanh.pop %v4056
  %v4064 = vmul.f32 %v4062, %v3960
  %4066 = vrot.lane.b32.xlu0 %v4063, 32
  %v4067 = vpop.permute.xlu0 %4066
  %v4069 = vmul.f32 %v4062, %v4067
  %4071 = vrot.lane.b32.xlu0 %v4069, 32
  %v4072 = vpop.permute.xlu0 %4071
  %v4074 = vadd.f32 %v4064, %v4072
  %v4075 = vtanh.pop %v4074
  %4077 = vrot.lane.b32.xlu0 %v4075, 32
  %v4078 = vpop.permute.xlu0 %4077
  %v4080 = vmul.f32 %v4062, %v4078
  %v4081 = vpack.c.bf16 %v4080, %v4080
  %4083 = vrot.lane.b32.xlu0 %v4081, 64
  %v4084 = vpop.permute.xlu0 %4083
  %v4086 = vsel %vm68, %v4084, 0
  %4088 = vmatprep.subr.bf16.mxu0 0
  %4089 = vmatpush1.bf16.msra.mxu0 %v3723
  %4090 = vmatprep.subr.bf16.mxu0 0
  %4091 = vmatpush1.bf16.msra.mxu0 %v3724
  %4092 = vmatprep.subr.bf16.mxu0 0
  %4093 = vmatpush1.bf16.msra.mxu0 0
  %4094 = vmatprep.subr.bf16.mxu0 0
  %4095 = vmatpush1.bf16.msra.mxu0 0
  %4096 = vmatprep.subr.bf16.mxu0 0
  %4097 = vmatpush1.bf16.msra.mxu0 0
  %4098 = vmatprep.subr.bf16.mxu0 0
  %4099 = vmatpush1.bf16.msra.mxu0 0
  %4100 = vmatprep.subr.bf16.mxu0 0
  %4101 = vmatpush1.bf16.msra.mxu0 0
  %4102 = vmatprep.subr.bf16.mxu0 0
  %4103 = vmatpush1.bf16.msra.mxu0 0
  %4104 = vmatprep.subr.bf16.mxu0 0
  %4105 = vmatpush1.bf16.msra.mxu0 0
  %4106 = vmatprep.subr.bf16.mxu0 0
  %4107 = vmatpush1.bf16.msra.mxu0 0
  %4108 = vmatprep.subr.bf16.mxu0 0
  %4109 = vmatpush1.bf16.msra.mxu0 0
  %4110 = vmatprep.subr.bf16.mxu0 0
  %4111 = vmatpush1.bf16.msra.mxu0 0
  %4112 = vmatprep.subr.bf16.mxu0 0
  %4113 = vmatpush1.bf16.msra.mxu0 0
  %4114 = vmatprep.subr.bf16.mxu0 0
  %4115 = vmatpush1.bf16.msra.mxu0 0
  %4116 = vmatprep.subr.bf16.mxu0 0
  %4117 = vmatpush1.bf16.msra.mxu0 0
  %4118 = vmatprep.subr.bf16.mxu0 0
  %4119 = vmatpush1.bf16.msra.mxu0 0
  %4120 = vmatprep.mubr.bf16.mxu0 0
  %4121 = vmatmul.mubr.bf16.gmra.mrb[0].mxu0 %v4086
  %v4122 = vpop.f32.mrb[0].mxu0
  %v4123 = vadd.f32 %v3710, %v4122
  %v4124 = vpop.f32.mrb[0].mxu0
  %v4125 = vpop.f32.mrb[0].mxu0
  %v4126 = vpop.f32.mrb[0].mxu0
  %4127 = vdwg.mxu0
  %4128 = vst [vmem:[%s475] sm:$0xff] %v4123
  %v4129 = vld [vmem:[%s591] sm:$0xff]
  %4130 = vmatprep.subr.bf16.mxu0 0
  %4131 = vmatpush1.bf16.msra.mxu0 %v3780
  %4132 = vmatprep.subr.bf16.mxu0 0
  %4133 = vmatpush1.bf16.msra.mxu0 %v3781
  %4134 = vmatprep.subr.bf16.mxu0 0
  %4135 = vmatpush1.bf16.msra.mxu0 0
  %4136 = vmatprep.subr.bf16.mxu0 0
  %4137 = vmatpush1.bf16.msra.mxu0 0
  %4138 = vmatprep.subr.bf16.mxu0 0
  %4139 = vmatpush1.bf16.msra.mxu0 0
  %4140 = vmatprep.subr.bf16.mxu0 0
  %4141 = vmatpush1.bf16.msra.mxu0 0
  %4142 = vmatprep.subr.bf16.mxu0 0
  %4143 = vmatpush1.bf16.msra.mxu0 0
  %4144 = vmatprep.subr.bf16.mxu0 0
  %4145 = vmatpush1.bf16.msra.mxu0 0
  %4146 = vmatprep.subr.bf16.mxu0 0
  %4147 = vmatpush1.bf16.msra.mxu0 0
  %4148 = vmatprep.subr.bf16.mxu0 0
  %4149 = vmatpush1.bf16.msra.mxu0 0
  %4150 = vmatprep.subr.bf16.mxu0 0
  %4151 = vmatpush1.bf16.msra.mxu0 0
  %4152 = vmatprep.subr.bf16.mxu0 0
  %4153 = vmatpush1.bf16.msra.mxu0 0
  %4154 = vmatprep.subr.bf16.mxu0 0
  %4155 = vmatpush1.bf16.msra.mxu0 0
  %4156 = vmatprep.subr.bf16.mxu0 0
  %4157 = vmatpush1.bf16.msra.mxu0 0
  %4158 = vmatprep.subr.bf16.mxu0 0
  %4159 = vmatpush1.bf16.msra.mxu0 0
  %4160 = vmatprep.subr.bf16.mxu0 0
  %4161 = vmatpush1.bf16.msra.mxu0 0
  %4162 = vmatprep.mubr.bf16.mxu0 0
  %4163 = vmatmul.mubr.bf16.gmra.mrb[0].mxu0 %v4086
  %v4164 = vpop.f32.mrb[0].mxu0
  %v4165 = vadd.f32 0.0, %v4164
  %v4166 = vpop.f32.mrb[0].mxu0
  %v4167 = vpop.f32.mrb[0].mxu0
  %v4168 = vpop.f32.mrb[0].mxu0
  %4169 = vdwg.mxu0
  %v4170 = vadd.f32 %v4129, %v4165
  %v4171 = vxor.u32 %v4170, 2147483648
  %v4172 = vmul.f32 %v4171, 1.442695
  %v4173 = vpow.pop %v4172
  %v4174 = vadd.f32 %v4173, 1.0
  %v4175 = vrcp.pop %v4174
  %v4176 = vmul.f32 1.0, %v4175
  %v4177 = vtanh.pop %v4170
  %v4178 = vmul.f32 %v4176, %v4074
  %4180 = vrot.lane.b32.xlu0 %v4177, 32
  %v4181 = vpop.permute.xlu0 %4180
  %v4183 = vmul.f32 %v4176, %v4181
  %4185 = vrot.lane.b32.xlu0 %v4183, 32
  %v4186 = vpop.permute.xlu0 %4185
  %v4188 = vadd.f32 %v4178, %v4186
  %v4189 = vtanh.pop %v4188
  %4191 = vrot.lane.b32.xlu0 %v4189, 32
  %v4192 = vpop.permute.xlu0 %4191
  %v4194 = vmul.f32 %v4176, %v4192
  %v4195 = vpack.c.bf16 %v4194, %v4194
  %4197 = vrot.lane.b32.xlu0 %v4195, 64
  %v4198 = vpop.permute.xlu0 %4197
  %v4200 = vsel %vm68, %v4198, 0
  %4202 = vmatprep.subr.bf16.mxu0 0
  %4203 = vmatpush1.bf16.msra.mxu0 %v3723
  %4204 = vmatprep.subr.bf16.mxu0 0
  %4205 = vmatpush1.bf16.msra.mxu0 %v3724
  %4206 = vmatprep.subr.bf16.mxu0 0
  %4207 = vmatpush1.bf16.msra.mxu0 0
  %4208 = vmatprep.subr.bf16.mxu0 0
  %4209 = vmatpush1.bf16.msra.mxu0 0
  %4210 = vmatprep.subr.bf16.mxu0 0
  %4211 = vmatpush1.bf16.msra.mxu0 0
  %4212 = vmatprep.subr.bf16.mxu0 0
  %4213 = vmatpush1.bf16.msra.mxu0 0
  %4214 = vmatprep.subr.bf16.mxu0 0
  %4215 = vmatpush1.bf16.msra.mxu0 0
  %4216 = vmatprep.subr.bf16.mxu0 0
  %4217 = vmatpush1.bf16.msra.mxu0 0
  %4218 = vmatprep.subr.bf16.mxu0 0
  %4219 = vmatpush1.bf16.msra.mxu0 0
  %4220 = vmatprep.subr.bf16.mxu0 0
  %4221 = vmatpush1.bf16.msra.mxu0 0
  %4222 = vmatprep.subr.bf16.mxu0 0
  %4223 = vmatpush1.bf16.msra.mxu0 0
  %4224 = vmatprep.subr.bf16.mxu0 0
  %4225 = vmatpush1.bf16.msra.mxu0 0
  %4226 = vmatprep.subr.bf16.mxu0 0
  %4227 = vmatpush1.bf16.msra.mxu0 0
  %4228 = vmatprep.subr.bf16.mxu0 0
  %4229 = vmatpush1.bf16.msra.mxu0 0
  %4230 = vmatprep.subr.bf16.mxu0 0
  %4231 = vmatpush1.bf16.msra.mxu0 0
  %4232 = vmatprep.subr.bf16.mxu0 0
  %4233 = vmatpush1.bf16.msra.mxu0 0
  %4234 = vmatprep.mubr.bf16.mxu0 0
  %4235 = vmatmul.mubr.bf16.gmra.mrb[0].mxu0 %v4200
  %v4236 = vpop.f32.mrb[0].mxu0
  %v4237 = vadd.f32 %v3710, %v4236
  %v4238 = vpop.f32.mrb[0].mxu0
  %v4239 = vpop.f32.mrb[0].mxu0
  %v4240 = vpop.f32.mrb[0].mxu0
  %4241 = vdwg.mxu0
  %4242 = vst [vmem:[%s591] sm:$0xff] %v4237
  %v4243 = vld [vmem:[%s707] sm:$0xff]
  %4244 = vmatprep.subr.bf16.mxu0 0
  %4245 = vmatpush1.bf16.msra.mxu0 %v3780
  %4246 = vmatprep.subr.bf16.mxu0 0
  %4247 = vmatpush1.bf16.msra.mxu0 %v3781
  %4248 = vmatprep.subr.bf16.mxu0 0
  %4249 = vmatpush1.bf16.msra.mxu0 0
  %4250 = vmatprep.subr.bf16.mxu0 0
  %4251 = vmatpush1.bf16.msra.mxu0 0
  %4252 = vmatprep.subr.bf16.mxu0 0
  %4253 = vmatpush1.bf16.msra.mxu0 0
  %4254 = vmatprep.subr.bf16.mxu0 0
  %4255 = vmatpush1.bf16.msra.mxu0 0
  %4256 = vmatprep.subr.bf16.mxu0 0
  %4257 = vmatpush1.bf16.msra.mxu0 0
  %4258 = vmatprep.subr.bf16.mxu0 0
  %4259 = vmatpush1.bf16.msra.mxu0 0
  %4260 = vmatprep.subr.bf16.mxu0 0
  %4261 = vmatpush1.bf16.msra.mxu0 0
  %4262 = vmatprep.subr.bf16.mxu0 0
  %4263 = vmatpush1.bf16.msra.mxu0 0
  %4264 = vmatprep.subr.bf16.mxu0 0
  %4265 = vmatpush1.bf16.msra.mxu0 0
  %4266 = vmatprep.subr.bf16.mxu0 0
  %4267 = vmatpush1.bf16.msra.mxu0 0
  %4268 = vmatprep.subr.bf16.mxu0 0
  %4269 = vmatpush1.bf16.msra.mxu0 0
  %4270 = vmatprep.subr.bf16.mxu0 0
  %4271 = vmatpush1.bf16.msra.mxu0 0
  %4272 = vmatprep.subr.bf16.mxu0 0
  %4273 = vmatpush1.bf16.msra.mxu0 0
  %4274 = vmatprep.subr.bf16.mxu0 0
  %4275 = vmatpush1.bf16.msra.mxu0 0
  %4276 = vmatprep.mubr.bf16.mxu0 0
  %4277 = vmatmul.mubr.bf16.gmra.mrb[0].mxu0 %v4200
  %v4278 = vpop.f32.mrb[0].mxu0
  %v4279 = vadd.f32 0.0, %v4278
  %v4280 = vpop.f32.mrb[0].mxu0
  %v4281 = vpop.f32.mrb[0].mxu0
  %v4282 = vpop.f32.mrb[0].mxu0
  %4283 = vdwg.mxu0
  %v4284 = vadd.f32 %v4243, %v4279
  %v4285 = vxor.u32 %v4284, 2147483648
  %v4286 = vmul.f32 %v4285, 1.442695
  %v4287 = vpow.pop %v4286
  %v4288 = vadd.f32 %v4287, 1.0
  %v4289 = vrcp.pop %v4288
  %v4290 = vmul.f32 1.0, %v4289
  %v4291 = vtanh.pop %v4284
  %v4292 = vmul.f32 %v4290, %v4188
  %4294 = vrot.lane.b32.xlu0 %v4291, 32
  %v4295 = vpop.permute.xlu0 %4294
  %v4297 = vmul.f32 %v4290, %v4295
  %4299 = vrot.lane.b32.xlu0 %v4297, 32
  %v4300 = vpop.permute.xlu0 %4299
  %v4302 = vadd.f32 %v4292, %v4300
  %v4303 = vtanh.pop %v4302
  %4305 = vrot.lane.b32.xlu0 %v4303, 32
  %v4306 = vpop.permute.xlu0 %4305
  %v4308 = vmul.f32 %v4290, %v4306
  %v4309 = vpack.c.bf16 %v4308, %v4308
  %4311 = vrot.lane.b32.xlu0 %v4309, 64
  %v4312 = vpop.permute.xlu0 %4311
  %v4314 = vsel %vm68, %v4312, 0
  %4316 = vmatprep.subr.bf16.mxu0 0
  %4317 = vmatpush1.bf16.msra.mxu0 %v3723
  %4318 = vmatprep.subr.bf16.mxu0 0
  %4319 = vmatpush1.bf16.msra.mxu0 %v3724
  %4320 = vmatprep.subr.bf16.mxu0 0
  %4321 = vmatpush1.bf16.msra.mxu0 0
  %4322 = vmatprep.subr.bf16.mxu0 0
  %4323 = vmatpush1.bf16.msra.mxu0 0
  %4324 = vmatprep.subr.bf16.mxu0 0
  %4325 = vmatpush1.bf16.msra.mxu0 0
  %4326 = vmatprep.subr.bf16.mxu0 0
  %4327 = vmatpush1.bf16.msra.mxu0 0
  %4328 = vmatprep.subr.bf16.mxu0 0
  %4329 = vmatpush1.bf16.msra.mxu0 0
  %4330 = vmatprep.subr.bf16.mxu0 0
  %4331 = vmatpush1.bf16.msra.mxu0 0
  %4332 = vmatprep.subr.bf16.mxu0 0
  %4333 = vmatpush1.bf16.msra.mxu0 0
  %4334 = vmatprep.subr.bf16.mxu0 0
  %4335 = vmatpush1.bf16.msra.mxu0 0
  %4336 = vmatprep.subr.bf16.mxu0 0
  %4337 = vmatpush1.bf16.msra.mxu0 0
  %4338 = vmatprep.subr.bf16.mxu0 0
  %4339 = vmatpush1.bf16.msra.mxu0 0
  %4340 = vmatprep.subr.bf16.mxu0 0
  %4341 = vmatpush1.bf16.msra.mxu0 0
  %4342 = vmatprep.subr.bf16.mxu0 0
  %4343 = vmatpush1.bf16.msra.mxu0 0
  %4344 = vmatprep.subr.bf16.mxu0 0
  %4345 = vmatpush1.bf16.msra.mxu0 0
  %4346 = vmatprep.subr.bf16.mxu0 0
  %4347 = vmatpush1.bf16.msra.mxu0 0
  %4348 = vmatprep.mubr.bf16.mxu0 0
  %4349 = vmatmul.mubr.bf16.gmra.mrb[0].mxu0 %v4314
  %v4350 = vpop.f32.mrb[0].mxu0
  %v4351 = vadd.f32 %v3710, %v4350
  %v4352 = vpop.f32.mrb[0].mxu0
  %v4353 = vpop.f32.mrb[0].mxu0
  %v4354 = vpop.f32.mrb[0].mxu0
  %4355 = vdwg.mxu0
  %4356 = vst [vmem:[%s707] sm:$0xff] %v4351
  %v4357 = vld [vmem:[%s823] sm:$0xff]
  %4358 = vmatprep.subr.bf16.mxu0 0
  %4359 = vmatpush1.bf16.msra.mxu0 %v3780
  %4360 = vmatprep.subr.bf16.mxu0 0
  %4361 = vmatpush1.bf16.msra.mxu0 %v3781
  %4362 = vmatprep.subr.bf16.mxu0 0
  %4363 = vmatpush1.bf16.msra.mxu0 0
  %4364 = vmatprep.subr.bf16.mxu0 0
  %4365 = vmatpush1.bf16.msra.mxu0 0
  %4366 = vmatprep.subr.bf16.mxu0 0
  %4367 = vmatpush1.bf16.msra.mxu0 0
  %4368 = vmatprep.subr.bf16.mxu0 0
  %4369 = vmatpush1.bf16.msra.mxu0 0
  %4370 = vmatprep.subr.bf16.mxu0 0
  %4371 = vmatpush1.bf16.msra.mxu0 0
  %4372 = vmatprep.subr.bf16.mxu0 0
  %4373 = vmatpush1.bf16.msra.mxu0 0
  %4374 = vmatprep.subr.bf16.mxu0 0
  %4375 = vmatpush1.bf16.msra.mxu0 0
  %4376 = vmatprep.subr.bf16.mxu0 0
  %4377 = vmatpush1.bf16.msra.mxu0 0
  %4378 = vmatprep.subr.bf16.mxu0 0
  %4379 = vmatpush1.bf16.msra.mxu0 0
  %4380 = vmatprep.subr.bf16.mxu0 0
  %4381 = vmatpush1.bf16.msra.mxu0 0
  %4382 = vmatprep.subr.bf16.mxu0 0
  %4383 = vmatpush1.bf16.msra.mxu0 0
  %4384 = vmatprep.subr.bf16.mxu0 0
  %4385 = vmatpush1.bf16.msra.mxu0 0
  %4386 = vmatprep.subr.bf16.mxu0 0
  %4387 = vmatpush1.bf16.msra.mxu0 0
  %4388 = vmatprep.subr.bf16.mxu0 0
  %4389 = vmatpush1.bf16.msra.mxu0 0
  %4390 = vmatprep.mubr.bf16.mxu0 0
  %4391 = vmatmul.mubr.bf16.gmra.mrb[0].mxu0 %v4314
  %v4392 = vpop.f32.mrb[0].mxu0
  %v4393 = vadd.f32 0.0, %v4392
  %v4394 = vpop.f32.mrb[0].mxu0
  %v4395 = vpop.f32.mrb[0].mxu0
  %v4396 = vpop.f32.mrb[0].mxu0
  %4397 = vdwg.mxu0
  %v4398 = vadd.f32 %v4357, %v4393
  %v4399 = vxor.u32 %v4398, 2147483648
  %v4400 = vmul.f32 %v4399, 1.442695
  %v4401 = vpow.pop %v4400
  %v4402 = vadd.f32 %v4401, 1.0
  %v4403 = vrcp.pop %v4402
  %v4404 = vmul.f32 1.0, %v4403
  %v4405 = vtanh.pop %v4398
  %v4406 = vmul.f32 %v4404, %v4302
  %4408 = vrot.lane.b32.xlu0 %v4405, 32
  %v4409 = vpop.permute.xlu0 %4408
  %v4411 = vmul.f32 %v4404, %v4409
  %4413 = vrot.lane.b32.xlu0 %v4411, 32
  %v4414 = vpop.permute.xlu0 %4413
  %v4416 = vadd.f32 %v4406, %v4414
  %v4417 = vtanh.pop %v4416
  %4419 = vrot.lane.b32.xlu0 %v4417, 32
  %v4420 = vpop.permute.xlu0 %4419
  %v4422 = vmul.f32 %v4404, %v4420
  %v4423 = vpack.c.bf16 %v4422, %v4422
  %4425 = vrot.lane.b32.xlu0 %v4423, 64
  %v4426 = vpop.permute.xlu0 %4425
  %v4428 = vsel %vm68, %v4426, 0
  %4430 = vmatprep.subr.bf16.mxu0 0
  %4431 = vmatpush1.bf16.msra.mxu0 %v3723
  %4432 = vmatprep.subr.bf16.mxu0 0
  %4433 = vmatpush1.bf16.msra.mxu0 %v3724
  %4434 = vmatprep.subr.bf16.mxu0 0
  %4435 = vmatpush1.bf16.msra.mxu0 0
  %4436 = vmatprep.subr.bf16.mxu0 0
  %4437 = vmatpush1.bf16.msra.mxu0 0
  %4438 = vmatprep.subr.bf16.mxu0 0
  %4439 = vmatpush1.bf16.msra.mxu0 0
  %4440 = vmatprep.subr.bf16.mxu0 0
  %4441 = vmatpush1.bf16.msra.mxu0 0
  %4442 = vmatprep.subr.bf16.mxu0 0
  %4443 = vmatpush1.bf16.msra.mxu0 0
  %4444 = vmatprep.subr.bf16.mxu0 0
  %4445 = vmatpush1.bf16.msra.mxu0 0
  %4446 = vmatprep.subr.bf16.mxu0 0
  %4447 = vmatpush1.bf16.msra.mxu0 0
  %4448 = vmatprep.subr.bf16.mxu0 0
  %4449 = vmatpush1.bf16.msra.mxu0 0
  %4450 = vmatprep.subr.bf16.mxu0 0
  %4451 = vmatpush1.bf16.msra.mxu0 0
  %4452 = vmatprep.subr.bf16.mxu0 0
  %4453 = vmatpush1.bf16.msra.mxu0 0
  %4454 = vmatprep.subr.bf16.mxu0 0
  %4455 = vmatpush1.bf16.msra.mxu0 0
  %4456 = vmatprep.subr.bf16.mxu0 0
  %4457 = vmatpush1.bf16.msra.mxu0 0
  %4458 = vmatprep.subr.bf16.mxu0 0
  %4459 = vmatpush1.bf16.msra.mxu0 0
  %4460 = vmatprep.subr.bf16.mxu0 0
  %4461 = vmatpush1.bf16.msra.mxu0 0
  %4462 = vmatprep.mubr.bf16.mxu0 0
  %4463 = vmatmul.mubr.bf16.gmra.mrb[0].mxu0 %v4428
  %v4464 = vpop.f32.mrb[0].mxu0
  %v4465 = vadd.f32 %v3710, %v4464
  %v4466 = vpop.f32.mrb[0].mxu0
  %v4467 = vpop.f32.mrb[0].mxu0
  %v4468 = vpop.f32.mrb[0].mxu0
  %4469 = vdwg.mxu0
  %4470 = vst [vmem:[%s823] sm:$0xff] %v4465
  %v4471 = vld [vmem:[%s939] sm:$0xff]
  %4472 = vmatprep.subr.bf16.mxu0 0
  %4473 = vmatpush1.bf16.msra.mxu0 %v3780
  %4474 = vmatprep.subr.bf16.mxu0 0
  %4475 = vmatpush1.bf16.msra.mxu0 %v3781
  %4476 = vmatprep.subr.bf16.mxu0 0
  %4477 = vmatpush1.bf16.msra.mxu0 0
  %4478 = vmatprep.subr.bf16.mxu0 0
  %4479 = vmatpush1.bf16.msra.mxu0 0
  %4480 = vmatprep.subr.bf16.mxu0 0
  %4481 = vmatpush1.bf16.msra.mxu0 0
  %4482 = vmatprep.subr.bf16.mxu0 0
  %4483 = vmatpush1.bf16.msra.mxu0 0
  %4484 = vmatprep.subr.bf16.mxu0 0
  %4485 = vmatpush1.bf16.msra.mxu0 0
  %4486 = vmatprep.subr.bf16.mxu0 0
  %4487 = vmatpush1.bf16.msra.mxu0 0
  %4488 = vmatprep.subr.bf16.mxu0 0
  %4489 = vmatpush1.bf16.msra.mxu0 0
  %4490 = vmatprep.subr.bf16.mxu0 0
  %4491 = vmatpush1.bf16.msra.mxu0 0
  %4492 = vmatprep.subr.bf16.mxu0 0
  %4493 = vmatpush1.bf16.msra.mxu0 0
  %4494 = vmatprep.subr.bf16.mxu0 0
  %4495 = vmatpush1.bf16.msra.mxu0 0
  %4496 = vmatprep.subr.bf16.mxu0 0
  %4497 = vmatpush1.bf16.msra.mxu0 0
  %4498 = vmatprep.subr.bf16.mxu0 0
  %4499 = vmatpush1.bf16.msra.mxu0 0
  %4500 = vmatprep.subr.bf16.mxu0 0
  %4501 = vmatpush1.bf16.msra.mxu0 0
  %4502 = vmatprep.subr.bf16.mxu0 0
  %4503 = vmatpush1.bf16.msra.mxu0 0
  %4504 = vmatprep.mubr.bf16.mxu0 0
  %4505 = vmatmul.mubr.bf16.gmra.mrb[0].mxu0 %v4428
  %v4506 = vpop.f32.mrb[0].mxu0
  %v4507 = vadd.f32 0.0, %v4506
  %v4508 = vpop.f32.mrb[0].mxu0
  %v4509 = vpop.f32.mrb[0].mxu0
  %v4510 = vpop.f32.mrb[0].mxu0
  %4511 = vdwg.mxu0
  %v4512 = vadd.f32 %v4471, %v4507
  %v4513 = vxor.u32 %v4512, 2147483648
  %v4514 = vmul.f32 %v4513, 1.442695
  %v4515 = vpow.pop %v4514
  %v4516 = vadd.f32 %v4515, 1.0
  %v4517 = vrcp.pop %v4516
  %v4518 = vmul.f32 1.0, %v4517
  %v4519 = vtanh.pop %v4512
  %v4520 = vmul.f32 %v4518, %v4416
  %4522 = vrot.lane.b32.xlu0 %v4519, 32
  %v4523 = vpop.permute.xlu0 %4522
  %v4525 = vmul.f32 %v4518, %v4523
  %4527 = vrot.lane.b32.xlu0 %v4525, 32
  %v4528 = vpop.permute.xlu0 %4527
  %v4530 = vadd.f32 %v4520, %v4528
  %v4531 = vtanh.pop %v4530
  %4533 = vrot.lane.b32.xlu0 %v4531, 32
  %v4534 = vpop.permute.xlu0 %4533
  %v4536 = vmul.f32 %v4518, %v4534
  %v4537 = vpack.c.bf16 %v4536, %v4536
  %4539 = vrot.lane.b32.xlu0 %v4537, 64
  %v4540 = vpop.permute.xlu0 %4539
  %v4542 = vsel %vm68, %v4540, 0
  %4544 = vmatprep.subr.bf16.mxu0 0
  %4545 = vmatpush1.bf16.msra.mxu0 %v3723
  %4546 = vmatprep.subr.bf16.mxu0 0
  %4547 = vmatpush1.bf16.msra.mxu0 %v3724
  %4548 = vmatprep.subr.bf16.mxu0 0
  %4549 = vmatpush1.bf16.msra.mxu0 0
  %4550 = vmatprep.subr.bf16.mxu0 0
  %4551 = vmatpush1.bf16.msra.mxu0 0
  %4552 = vmatprep.subr.bf16.mxu0 0
  %4553 = vmatpush1.bf16.msra.mxu0 0
  %4554 = vmatprep.subr.bf16.mxu0 0
  %4555 = vmatpush1.bf16.msra.mxu0 0
  %4556 = vmatprep.subr.bf16.mxu0 0
  %4557 = vmatpush1.bf16.msra.mxu0 0
  %4558 = vmatprep.subr.bf16.mxu0 0
  %4559 = vmatpush1.bf16.msra.mxu0 0
  %4560 = vmatprep.subr.bf16.mxu0 0
  %4561 = vmatpush1.bf16.msra.mxu0 0
  %4562 = vmatprep.subr.bf16.mxu0 0
  %4563 = vmatpush1.bf16.msra.mxu0 0
  %4564 = vmatprep.subr.bf16.mxu0 0
  %4565 = vmatpush1.bf16.msra.mxu0 0
  %4566 = vmatprep.subr.bf16.mxu0 0
  %4567 = vmatpush1.bf16.msra.mxu0 0
  %4568 = vmatprep.subr.bf16.mxu0 0
  %4569 = vmatpush1.bf16.msra.mxu0 0
  %4570 = vmatprep.subr.bf16.mxu0 0
  %4571 = vmatpush1.bf16.msra.mxu0 0
  %4572 = vmatprep.subr.bf16.mxu0 0
  %4573 = vmatpush1.bf16.msra.mxu0 0
  %4574 = vmatprep.subr.bf16.mxu0 0
  %4575 = vmatpush1.bf16.msra.mxu0 0
  %4576 = vmatprep.mubr.bf16.mxu0 0
  %4577 = vmatmul.mubr.bf16.gmra.mrb[0].mxu0 %v4542
  %v4578 = vpop.f32.mrb[0].mxu0
  %v4579 = vadd.f32 %v3710, %v4578
  %v4580 = vpop.f32.mrb[0].mxu0
  %v4581 = vpop.f32.mrb[0].mxu0
  %v4582 = vpop.f32.mrb[0].mxu0
  %4583 = vdwg.mxu0
  %4584 = vst [vmem:[%s939] sm:$0xff] %v4579
  %s4585 = scalar_lea.vmem %s2, 80
  %v4586 = vld [vmem:[%s4585] sm:$0xf]
  %v4587 = vld [vmem:[%s4585 + $0x4] sm:$0xf]
  %v4588 = vld [vmem:[%s4585 + $0x8] sm:$0xf]
  %v4589 = vld [vmem:[%s4585 + $0xc] sm:$0xf]
  %s4590 = scalar_lea.vmem %s1, 80
  %v4591 = vld [vmem:[%s4590] sm:$0xf]
  %v4592 = vld [vmem:[%s4590 + $0x4] sm:$0xf]
  %v4593 = vld [vmem:[%s4590 + $0x8] sm:$0xf]
  %v4594 = vld [vmem:[%s4590 + $0xc] sm:$0xf]
  %s4595 = scalar_lea.vmem %s3, 5
  %v4596 = vld [vmem:[%s4595] sm:$0x1]
  %v4597 = vld [vmem:[#allocation2] sm:$0xff]
  %v4598 = vxor.u32 %v4597, 2147483648
  %v4599 = vmul.f32 %v4598, 1.442695
  %v4600 = vpow.pop %v4599
  %v4601 = vadd.f32 %v4600, 1.0
  %v4602 = vrcp.pop %v4601
  %v4603 = vmul.f32 1.0, %v4602
  %v4604 = vtanh.pop %v4597
  %4606 = vrot.lane.b32.xlu0 %v4604, 32
  %v4607 = vpop.permute.xlu0 %4606
  %v4609 = vmul.f32 %v4603, %v4607
  %v4610 = vtanh.pop %v4609
  %4612 = vrot.lane.b32.xlu0 %v4610, 64
  %v4613 = vpop.permute.xlu0 %4612
  %v4615 = vmul.f32 %v4603, %v4613
  %v4616 = vpack.c.bf16 %v4615, %v4615
  %v4618 = vlaneseq
  %v4619 = vshrl.u32 %v4618, 7
  %v4620 = vsub.s32 0, %v4619
  %v4621 = vrot.slane %v4596, %v4620
  %4624 = vrot.lane.b32.xlu0 %v4616, 64
  %v4625 = vpop.permute.xlu0 %4624
  %v4630 = vunpack.c.l.b16 %v4591
  %v4631 = vunpack.c.l.b16 %v4592
  %v4632 = vunpack.c.l.b16 %v4593
  %v4633 = vunpack.c.l.b16 %v4594
  %v4634 = vpack.c.b16 %v4631, %v4630
  %v4635 = vpack.c.b16 %v4633, %v4632
  %v4639 = vsel %vm68, %v4625, 0
  %4641 = vmatprep.subr.bf16.mxu0 0
  %4642 = vmatpush1.bf16.msra.mxu0 %v4634
  %4643 = vmatprep.subr.bf16.mxu0 0
  %4644 = vmatpush1.bf16.msra.mxu0 %v4635
  %4645 = vmatprep.subr.bf16.mxu0 0
  %4646 = vmatpush1.bf16.msra.mxu0 0
  %4647 = vmatprep.subr.bf16.mxu0 0
  %4648 = vmatpush1.bf16.msra.mxu0 0
  %4649 = vmatprep.subr.bf16.mxu0 0
  %4650 = vmatpush1.bf16.msra.mxu0 0
  %4651 = vmatprep.subr.bf16.mxu0 0
  %4652 = vmatpush1.bf16.msra.mxu0 0
  %4653 = vmatprep.subr.bf16.mxu0 0
  %4654 = vmatpush1.bf16.msra.mxu0 0
  %4655 = vmatprep.subr.bf16.mxu0 0
  %4656 = vmatpush1.bf16.msra.mxu0 0
  %4657 = vmatprep.subr.bf16.mxu0 0
  %4658 = vmatpush1.bf16.msra.mxu0 0
  %4659 = vmatprep.subr.bf16.mxu0 0
  %4660 = vmatpush1.bf16.msra.mxu0 0
  %4661 = vmatprep.subr.bf16.mxu0 0
  %4662 = vmatpush1.bf16.msra.mxu0 0
  %4663 = vmatprep.subr.bf16.mxu0 0
  %4664 = vmatpush1.bf16.msra.mxu0 0
  %4665 = vmatprep.subr.bf16.mxu0 0
  %4666 = vmatpush1.bf16.msra.mxu0 0
  %4667 = vmatprep.subr.bf16.mxu0 0
  %4668 = vmatpush1.bf16.msra.mxu0 0
  %4669 = vmatprep.subr.bf16.mxu0 0
  %4670 = vmatpush1.bf16.msra.mxu0 0
  %4671 = vmatprep.subr.bf16.mxu0 0
  %4672 = vmatpush1.bf16.msra.mxu0 0
  %4673 = vmatprep.mubr.bf16.mxu0 0
  %4674 = vmatmul.mubr.bf16.gmra.mrb[0].mxu0 %v4639
  %v4675 = vpop.f32.mrb[0].mxu0
  %v4676 = vadd.f32 %v4621, %v4675
  %v4677 = vpop.f32.mrb[0].mxu0
  %v4678 = vpop.f32.mrb[0].mxu0
  %v4679 = vpop.f32.mrb[0].mxu0
  %4680 = vdwg.mxu0
  %4681 = vst [vmem:[#allocation2] sm:$0xff] %v4676
  %v4682 = vld [vmem:[%s243] sm:$0xff]
  %v4687 = vunpack.c.l.b16 %v4586
  %v4688 = vunpack.c.l.b16 %v4587
  %v4689 = vunpack.c.l.b16 %v4588
  %v4690 = vunpack.c.l.b16 %v4589
  %v4691 = vpack.c.b16 %v4688, %v4687
  %v4692 = vpack.c.b16 %v4690, %v4689
  %4695 = vmatprep.subr.bf16.mxu0 0
  %4696 = vmatpush1.bf16.msra.mxu0 %v4691
  %4697 = vmatprep.subr.bf16.mxu0 0
  %4698 = vmatpush1.bf16.msra.mxu0 %v4692
  %4699 = vmatprep.subr.bf16.mxu0 0
  %4700 = vmatpush1.bf16.msra.mxu0 0
  %4701 = vmatprep.subr.bf16.mxu0 0
  %4702 = vmatpush1.bf16.msra.mxu0 0
  %4703 = vmatprep.subr.bf16.mxu0 0
  %4704 = vmatpush1.bf16.msra.mxu0 0
  %4705 = vmatprep.subr.bf16.mxu0 0
  %4706 = vmatpush1.bf16.msra.mxu0 0
  %4707 = vmatprep.subr.bf16.mxu0 0
  %4708 = vmatpush1.bf16.msra.mxu0 0
  %4709 = vmatprep.subr.bf16.mxu0 0
  %4710 = vmatpush1.bf16.msra.mxu0 0
  %4711 = vmatprep.subr.bf16.mxu0 0
  %4712 = vmatpush1.bf16.msra.mxu0 0
  %4713 = vmatprep.subr.bf16.mxu0 0
  %4714 = vmatpush1.bf16.msra.mxu0 0
  %4715 = vmatprep.subr.bf16.mxu0 0
  %4716 = vmatpush1.bf16.msra.mxu0 0
  %4717 = vmatprep.subr.bf16.mxu0 0
  %4718 = vmatpush1.bf16.msra.mxu0 0
  %4719 = vmatprep.subr.bf16.mxu0 0
  %4720 = vmatpush1.bf16.msra.mxu0 0
  %4721 = vmatprep.subr.bf16.mxu0 0
  %4722 = vmatpush1.bf16.msra.mxu0 0
  %4723 = vmatprep.subr.bf16.mxu0 0
  %4724 = vmatpush1.bf16.msra.mxu0 0
  %4725 = vmatprep.subr.bf16.mxu0 0
  %4726 = vmatpush1.bf16.msra.mxu0 0
  %4727 = vmatprep.mubr.bf16.mxu0 0
  %4728 = vmatmul.mubr.bf16.gmra.mrb[0].mxu0 %v4639
  %v4729 = vpop.f32.mrb[0].mxu0
  %v4730 = vadd.f32 0.0, %v4729
  %v4731 = vpop.f32.mrb[0].mxu0
  %v4732 = vpop.f32.mrb[0].mxu0
  %v4733 = vpop.f32.mrb[0].mxu0
  %4734 = vdwg.mxu0
  %v4735 = vadd.f32 %v4682, %v4730
  %v4736 = vxor.u32 %v4735, 2147483648
  %v4737 = vmul.f32 %v4736, 1.442695
  %v4738 = vpow.pop %v4737
  %v4739 = vadd.f32 %v4738, 1.0
  %v4740 = vrcp.pop %v4739
  %v4741 = vmul.f32 1.0, %v4740
  %v4742 = vtanh.pop %v4735
  %4744 = vrot.lane.b32.xlu0 %v4609, 32
  %v4745 = vpop.permute.xlu0 %4744
  %v4747 = vmul.f32 %v4741, %v4745
  %4749 = vrot.lane.b32.xlu0 %v4742, 32
  %v4750 = vpop.permute.xlu0 %4749
  %v4752 = vmul.f32 %v4741, %v4750
  %4754 = vrot.lane.b32.xlu0 %v4752, 32
  %v4755 = vpop.permute.xlu0 %4754
  %v4757 = vadd.f32 %v4747, %v4755
  %v4758 = vtanh.pop %v4757
  %4760 = vrot.lane.b32.xlu0 %v4758, 32
  %v4761 = vpop.permute.xlu0 %4760
  %v4763 = vmul.f32 %v4741, %v4761
  %v4764 = vpack.c.bf16 %v4763, %v4763
  %4766 = vrot.lane.b32.xlu0 %v4764, 64
  %v4767 = vpop.permute.xlu0 %4766
  %v4769 = vsel %vm68, %v4767, 0
  %4771 = vmatprep.subr.bf16.mxu0 0
  %4772 = vmatpush1.bf16.msra.mxu0 %v4634
  %4773 = vmatprep.subr.bf16.mxu0 0
  %4774 = vmatpush1.bf16.msra.mxu0 %v4635
  %4775 = vmatprep.subr.bf16.mxu0 0
  %4776 = vmatpush1.bf16.msra.mxu0 0
  %4777 = vmatprep.subr.bf16.mxu0 0
  %4778 = vmatpush1.bf16.msra.mxu0 0
  %4779 = vmatprep.subr.bf16.mxu0 0
  %4780 = vmatpush1.bf16.msra.mxu0 0
  %4781 = vmatprep.subr.bf16.mxu0 0
  %4782 = vmatpush1.bf16.msra.mxu0 0
  %4783 = vmatprep.subr.bf16.mxu0 0
  %4784 = vmatpush1.bf16.msra.mxu0 0
  %4785 = vmatprep.subr.bf16.mxu0 0
  %4786 = vmatpush1.bf16.msra.mxu0 0
  %4787 = vmatprep.subr.bf16.mxu0 0
  %4788 = vmatpush1.bf16.msra.mxu0 0
  %4789 = vmatprep.subr.bf16.mxu0 0
  %4790 = vmatpush1.bf16.msra.mxu0 0
  %4791 = vmatprep.subr.bf16.mxu0 0
  %4792 = vmatpush1.bf16.msra.mxu0 0
  %4793 = vmatprep.subr.bf16.mxu0 0
  %4794 = vmatpush1.bf16.msra.mxu0 0
  %4795 = vmatprep.subr.bf16.mxu0 0
  %4796 = vmatpush1.bf16.msra.mxu0 0
  %4797 = vmatprep.subr.bf16.mxu0 0
  %4798 = vmatpush1.bf16.msra.mxu0 0
  %4799 = vmatprep.subr.bf16.mxu0 0
  %4800 = vmatpush1.bf16.msra.mxu0 0
  %4801 = vmatprep.subr.bf16.mxu0 0
  %4802 = vmatpush1.bf16.msra.mxu0 0
  %4803 = vmatprep.mubr.bf16.mxu0 0
  %4804 = vmatmul.mubr.bf16.gmra.mrb[0].mxu0 %v4769
  %v4805 = vpop.f32.mrb[0].mxu0
  %v4806 = vadd.f32 %v4621, %v4805
  %v4807 = vpop.f32.mrb[0].mxu0
  %v4808 = vpop.f32.mrb[0].mxu0
  %v4809 = vpop.f32.mrb[0].mxu0
  %4810 = vdwg.mxu0
  %4811 = vst [vmem:[%s243] sm:$0xff] %v4806
  %v4812 = vld [vmem:[%s359] sm:$0xff]
  %4813 = vmatprep.subr.bf16.mxu0 0
  %4814 = vmatpush1.bf16.msra.mxu0 %v4691
  %4815 = vmatprep.subr.bf16.mxu0 0
  %4816 = vmatpush1.bf16.msra.mxu0 %v4692
  %4817 = vmatprep.subr.bf16.mxu0 0
  %4818 = vmatpush1.bf16.msra.mxu0 0
  %4819 = vmatprep.subr.bf16.mxu0 0
  %4820 = vmatpush1.bf16.msra.mxu0 0
  %4821 = vmatprep.subr.bf16.mxu0 0
  %4822 = vmatpush1.bf16.msra.mxu0 0
  %4823 = vmatprep.subr.bf16.mxu0 0
  %4824 = vmatpush1.bf16.msra.mxu0 0
  %4825 = vmatprep.subr.bf16.mxu0 0
  %4826 = vmatpush1.bf16.msra.mxu0 0
  %4827 = vmatprep.subr.bf16.mxu0 0
  %4828 = vmatpush1.bf16.msra.mxu0 0
  %4829 = vmatprep.subr.bf16.mxu0 0
  %4830 = vmatpush1.bf16.msra.mxu0 0
  %4831 = vmatprep.subr.bf16.mxu0 0
  %4832 = vmatpush1.bf16.msra.mxu0 0
  %4833 = vmatprep.subr.bf16.mxu0 0
  %4834 = vmatpush1.bf16.msra.mxu0 0
  %4835 = vmatprep.subr.bf16.mxu0 0
  %4836 = vmatpush1.bf16.msra.mxu0 0
  %4837 = vmatprep.subr.bf16.mxu0 0
  %4838 = vmatpush1.bf16.msra.mxu0 0
  %4839 = vmatprep.subr.bf16.mxu0 0
  %4840 = vmatpush1.bf16.msra.mxu0 0
  %4841 = vmatprep.subr.bf16.mxu0 0
  %4842 = vmatpush1.bf16.msra.mxu0 0
  %4843 = vmatprep.subr.bf16.mxu0 0
  %4844 = vmatpush1.bf16.msra.mxu0 0
  %4845 = vmatprep.mubr.bf16.mxu0 0
  %4846 = vmatmul.mubr.bf16.gmra.mrb[0].mxu0 %v4769
  %v4847 = vpop.f32.mrb[0].mxu0
  %v4848 = vadd.f32 0.0, %v4847
  %v4849 = vpop.f32.mrb[0].mxu0
  %v4850 = vpop.f32.mrb[0].mxu0
  %v4851 = vpop.f32.mrb[0].mxu0
  %4852 = vdwg.mxu0
  %v4853 = vadd.f32 %v4812, %v4848
  %v4854 = vxor.u32 %v4853, 2147483648
  %v4855 = vmul.f32 %v4854, 1.442695
  %v4856 = vpow.pop %v4855
  %v4857 = vadd.f32 %v4856, 1.0
  %v4858 = vrcp.pop %v4857
  %v4859 = vmul.f32 1.0, %v4858
  %v4860 = vtanh.pop %v4853
  %v4861 = vmul.f32 %v4859, %v4757
  %4863 = vrot.lane.b32.xlu0 %v4860, 32
  %v4864 = vpop.permute.xlu0 %4863
  %v4866 = vmul.f32 %v4859, %v4864
  %4868 = vrot.lane.b32.xlu0 %v4866, 32
  %v4869 = vpop.permute.xlu0 %4868
  %v4871 = vadd.f32 %v4861, %v4869
  %v4872 = vtanh.pop %v4871
  %4874 = vrot.lane.b32.xlu0 %v4872, 32
  %v4875 = vpop.permute.xlu0 %4874
  %v4877 = vmul.f32 %v4859, %v4875
  %v4878 = vpack.c.bf16 %v4877, %v4877
  %4880 = vrot.lane.b32.xlu0 %v4878, 64
  %v4881 = vpop.permute.xlu0 %4880
  %v4883 = vsel %vm68, %v4881, 0
  %4885 = vmatprep.subr.bf16.mxu0 0
  %4886 = vmatpush1.bf16.msra.mxu0 %v4634
  %4887 = vmatprep.subr.bf16.mxu0 0
  %4888 = vmatpush1.bf16.msra.mxu0 %v4635
  %4889 = vmatprep.subr.bf16.mxu0 0
  %4890 = vmatpush1.bf16.msra.mxu0 0
  %4891 = vmatprep.subr.bf16.mxu0 0
  %4892 = vmatpush1.bf16.msra.mxu0 0
  %4893 = vmatprep.subr.bf16.mxu0 0
  %4894 = vmatpush1.bf16.msra.mxu0 0
  %4895 = vmatprep.subr.bf16.mxu0 0
  %4896 = vmatpush1.bf16.msra.mxu0 0
  %4897 = vmatprep.subr.bf16.mxu0 0
  %4898 = vmatpush1.bf16.msra.mxu0 0
  %4899 = vmatprep.subr.bf16.mxu0 0
  %4900 = vmatpush1.bf16.msra.mxu0 0
  %4901 = vmatprep.subr.bf16.mxu0 0
  %4902 = vmatpush1.bf16.msra.mxu0 0
  %4903 = vmatprep.subr.bf16.mxu0 0
  %4904 = vmatpush1.bf16.msra.mxu0 0
  %4905 = vmatprep.subr.bf16.mxu0 0
  %4906 = vmatpush1.bf16.msra.mxu0 0
  %4907 = vmatprep.subr.bf16.mxu0 0
  %4908 = vmatpush1.bf16.msra.mxu0 0
  %4909 = vmatprep.subr.bf16.mxu0 0
  %4910 = vmatpush1.bf16.msra.mxu0 0
  %4911 = vmatprep.subr.bf16.mxu0 0
  %4912 = vmatpush1.bf16.msra.mxu0 0
  %4913 = vmatprep.subr.bf16.mxu0 0
  %4914 = vmatpush1.bf16.msra.mxu0 0
  %4915 = vmatprep.subr.bf16.mxu0 0
  %4916 = vmatpush1.bf16.msra.mxu0 0
  %4917 = vmatprep.mubr.bf16.mxu0 0
  %4918 = vmatmul.mubr.bf16.gmra.mrb[0].mxu0 %v4883
  %v4919 = vpop.f32.mrb[0].mxu0
  %v4920 = vadd.f32 %v4621, %v4919
  %v4921 = vpop.f32.mrb[0].mxu0
  %v4922 = vpop.f32.mrb[0].mxu0
  %v4923 = vpop.f32.mrb[0].mxu0
  %4924 = vdwg.mxu0
  %4925 = vst [vmem:[%s359] sm:$0xff] %v4920
  %v4926 = vld [vmem:[%s475] sm:$0xff]
  %4927 = vmatprep.subr.bf16.mxu0 0
  %4928 = vmatpush1.bf16.msra.mxu0 %v4691
  %4929 = vmatprep.subr.bf16.mxu0 0
  %4930 = vmatpush1.bf16.msra.mxu0 %v4692
  %4931 = vmatprep.subr.bf16.mxu0 0
  %4932 = vmatpush1.bf16.msra.mxu0 0
  %4933 = vmatprep.subr.bf16.mxu0 0
  %4934 = vmatpush1.bf16.msra.mxu0 0
  %4935 = vmatprep.subr.bf16.mxu0 0
  %4936 = vmatpush1.bf16.msra.mxu0 0
  %4937 = vmatprep.subr.bf16.mxu0 0
  %4938 = vmatpush1.bf16.msra.mxu0 0
  %4939 = vmatprep.subr.bf16.mxu0 0
  %4940 = vmatpush1.bf16.msra.mxu0 0
  %4941 = vmatprep.subr.bf16.mxu0 0
  %4942 = vmatpush1.bf16.msra.mxu0 0
  %4943 = vmatprep.subr.bf16.mxu0 0
  %4944 = vmatpush1.bf16.msra.mxu0 0
  %4945 = vmatprep.subr.bf16.mxu0 0
  %4946 = vmatpush1.bf16.msra.mxu0 0
  %4947 = vmatprep.subr.bf16.mxu0 0
  %4948 = vmatpush1.bf16.msra.mxu0 0
  %4949 = vmatprep.subr.bf16.mxu0 0
  %4950 = vmatpush1.bf16.msra.mxu0 0
  %4951 = vmatprep.subr.bf16.mxu0 0
  %4952 = vmatpush1.bf16.msra.mxu0 0
  %4953 = vmatprep.subr.bf16.mxu0 0
  %4954 = vmatpush1.bf16.msra.mxu0 0
  %4955 = vmatprep.subr.bf16.mxu0 0
  %4956 = vmatpush1.bf16.msra.mxu0 0
  %4957 = vmatprep.subr.bf16.mxu0 0
  %4958 = vmatpush1.bf16.msra.mxu0 0
  %4959 = vmatprep.mubr.bf16.mxu0 0
  %4960 = vmatmul.mubr.bf16.gmra.mrb[0].mxu0 %v4883
  %v4961 = vpop.f32.mrb[0].mxu0
  %v4962 = vadd.f32 0.0, %v4961
  %v4963 = vpop.f32.mrb[0].mxu0
  %v4964 = vpop.f32.mrb[0].mxu0
  %v4965 = vpop.f32.mrb[0].mxu0
  %4966 = vdwg.mxu0
  %v4967 = vadd.f32 %v4926, %v4962
  %v4968 = vxor.u32 %v4967, 2147483648
  %v4969 = vmul.f32 %v4968, 1.442695
  %v4970 = vpow.pop %v4969
  %v4971 = vadd.f32 %v4970, 1.0
  %v4972 = vrcp.pop %v4971
  %v4973 = vmul.f32 1.0, %v4972
  %v4974 = vtanh.pop %v4967
  %v4975 = vmul.f32 %v4973, %v4871
  %4977 = vrot.lane.b32.xlu0 %v4974, 32
  %v4978 = vpop.permute.xlu0 %4977
  %v4980 = vmul.f32 %v4973, %v4978
  %4982 = vrot.lane.b32.xlu0 %v4980, 32
  %v4983 = vpop.permute.xlu0 %4982
  %v4985 = vadd.f32 %v4975, %v4983
  %v4986 = vtanh.pop %v4985
  %4988 = vrot.lane.b32.xlu0 %v4986, 32
  %v4989 = vpop.permute.xlu0 %4988
  %v4991 = vmul.f32 %v4973, %v4989
  %v4992 = vpack.c.bf16 %v4991, %v4991
  %4994 = vrot.lane.b32.xlu0 %v4992, 64
  %v4995 = vpop.permute.xlu0 %4994
  %v4997 = vsel %vm68, %v4995, 0
  %4999 = vmatprep.subr.bf16.mxu0 0
  %5000 = vmatpush1.bf16.msra.mxu0 %v4634
  %5001 = vmatprep.subr.bf16.mxu0 0
  %5002 = vmatpush1.bf16.msra.mxu0 %v4635
  %5003 = vmatprep.subr.bf16.mxu0 0
  %5004 = vmatpush1.bf16.msra.mxu0 0
  %5005 = vmatprep.subr.bf16.mxu0 0
  %5006 = vmatpush1.bf16.msra.mxu0 0
  %5007 = vmatprep.subr.bf16.mxu0 0
  %5008 = vmatpush1.bf16.msra.mxu0 0
  %5009 = vmatprep.subr.bf16.mxu0 0
  %5010 = vmatpush1.bf16.msra.mxu0 0
  %5011 = vmatprep.subr.bf16.mxu0 0
  %5012 = vmatpush1.bf16.msra.mxu0 0
  %5013 = vmatprep.subr.bf16.mxu0 0
  %5014 = vmatpush1.bf16.msra.mxu0 0
  %5015 = vmatprep.subr.bf16.mxu0 0
  %5016 = vmatpush1.bf16.msra.mxu0 0
  %5017 = vmatprep.subr.bf16.mxu0 0
  %5018 = vmatpush1.bf16.msra.mxu0 0
  %5019 = vmatprep.subr.bf16.mxu0 0
  %5020 = vmatpush1.bf16.msra.mxu0 0
  %5021 = vmatprep.subr.bf16.mxu0 0
  %5022 = vmatpush1.bf16.msra.mxu0 0
  %5023 = vmatprep.subr.bf16.mxu0 0
  %5024 = vmatpush1.bf16.msra.mxu0 0
  %5025 = vmatprep.subr.bf16.mxu0 0
  %5026 = vmatpush1.bf16.msra.mxu0 0
  %5027 = vmatprep.subr.bf16.mxu0 0
  %5028 = vmatpush1.bf16.msra.mxu0 0
  %5029 = vmatprep.subr.bf16.mxu0 0
  %5030 = vmatpush1.bf16.msra.mxu0 0
  %5031 = vmatprep.mubr.bf16.mxu0 0
  %5032 = vmatmul.mubr.bf16.gmra.mrb[0].mxu0 %v4997
  %v5033 = vpop.f32.mrb[0].mxu0
  %v5034 = vadd.f32 %v4621, %v5033
  %v5035 = vpop.f32.mrb[0].mxu0
  %v5036 = vpop.f32.mrb[0].mxu0
  %v5037 = vpop.f32.mrb[0].mxu0
  %5038 = vdwg.mxu0
  %5039 = vst [vmem:[%s475] sm:$0xff] %v5034
  %v5040 = vld [vmem:[%s591] sm:$0xff]
  %5041 = vmatprep.subr.bf16.mxu0 0
  %5042 = vmatpush1.bf16.msra.mxu0 %v4691
  %5043 = vmatprep.subr.bf16.mxu0 0
  %5044 = vmatpush1.bf16.msra.mxu0 %v4692
  %5045 = vmatprep.subr.bf16.mxu0 0
  %5046 = vmatpush1.bf16.msra.mxu0 0
  %5047 = vmatprep.subr.bf16.mxu0 0
  %5048 = vmatpush1.bf16.msra.mxu0 0
  %5049 = vmatprep.subr.bf16.mxu0 0
  %5050 = vmatpush1.bf16.msra.mxu0 0
  %5051 = vmatprep.subr.bf16.mxu0 0
  %5052 = vmatpush1.bf16.msra.mxu0 0
  %5053 = vmatprep.subr.bf16.mxu0 0
  %5054 = vmatpush1.bf16.msra.mxu0 0
  %5055 = vmatprep.subr.bf16.mxu0 0
  %5056 = vmatpush1.bf16.msra.mxu0 0
  %5057 = vmatprep.subr.bf16.mxu0 0
  %5058 = vmatpush1.bf16.msra.mxu0 0
  %5059 = vmatprep.subr.bf16.mxu0 0
  %5060 = vmatpush1.bf16.msra.mxu0 0
  %5061 = vmatprep.subr.bf16.mxu0 0
  %5062 = vmatpush1.bf16.msra.mxu0 0
  %5063 = vmatprep.subr.bf16.mxu0 0
  %5064 = vmatpush1.bf16.msra.mxu0 0
  %5065 = vmatprep.subr.bf16.mxu0 0
  %5066 = vmatpush1.bf16.msra.mxu0 0
  %5067 = vmatprep.subr.bf16.mxu0 0
  %5068 = vmatpush1.bf16.msra.mxu0 0
  %5069 = vmatprep.subr.bf16.mxu0 0
  %5070 = vmatpush1.bf16.msra.mxu0 0
  %5071 = vmatprep.subr.bf16.mxu0 0
  %5072 = vmatpush1.bf16.msra.mxu0 0
  %5073 = vmatprep.mubr.bf16.mxu0 0
  %5074 = vmatmul.mubr.bf16.gmra.mrb[0].mxu0 %v4997
  %v5075 = vpop.f32.mrb[0].mxu0
  %v5076 = vadd.f32 0.0, %v5075
  %v5077 = vpop.f32.mrb[0].mxu0
  %v5078 = vpop.f32.mrb[0].mxu0
  %v5079 = vpop.f32.mrb[0].mxu0
  %5080 = vdwg.mxu0
  %v5081 = vadd.f32 %v5040, %v5076
  %v5082 = vxor.u32 %v5081, 2147483648
  %v5083 = vmul.f32 %v5082, 1.442695
  %v5084 = vpow.pop %v5083
  %v5085 = vadd.f32 %v5084, 1.0
  %v5086 = vrcp.pop %v5085
  %v5087 = vmul.f32 1.0, %v5086
  %v5088 = vtanh.pop %v5081
  %v5089 = vmul.f32 %v5087, %v4985
  %5091 = vrot.lane.b32.xlu0 %v5088, 32
  %v5092 = vpop.permute.xlu0 %5091
  %v5094 = vmul.f32 %v5087, %v5092
  %5096 = vrot.lane.b32.xlu0 %v5094, 32
  %v5097 = vpop.permute.xlu0 %5096
  %v5099 = vadd.f32 %v5089, %v5097
  %v5100 = vtanh.pop %v5099
  %5102 = vrot.lane.b32.xlu0 %v5100, 32
  %v5103 = vpop.permute.xlu0 %5102
  %v5105 = vmul.f32 %v5087, %v5103
  %v5106 = vpack.c.bf16 %v5105, %v5105
  %5108 = vrot.lane.b32.xlu0 %v5106, 64
  %v5109 = vpop.permute.xlu0 %5108
  %v5111 = vsel %vm68, %v5109, 0
  %5113 = vmatprep.subr.bf16.mxu0 0
  %5114 = vmatpush1.bf16.msra.mxu0 %v4634
  %5115 = vmatprep.subr.bf16.mxu0 0
  %5116 = vmatpush1.bf16.msra.mxu0 %v4635
  %5117 = vmatprep.subr.bf16.mxu0 0
  %5118 = vmatpush1.bf16.msra.mxu0 0
  %5119 = vmatprep.subr.bf16.mxu0 0
  %5120 = vmatpush1.bf16.msra.mxu0 0
  %5121 = vmatprep.subr.bf16.mxu0 0
  %5122 = vmatpush1.bf16.msra.mxu0 0
  %5123 = vmatprep.subr.bf16.mxu0 0
  %5124 = vmatpush1.bf16.msra.mxu0 0
  %5125 = vmatprep.subr.bf16.mxu0 0
  %5126 = vmatpush1.bf16.msra.mxu0 0
  %5127 = vmatprep.subr.bf16.mxu0 0
  %5128 = vmatpush1.bf16.msra.mxu0 0
  %5129 = vmatprep.subr.bf16.mxu0 0
  %5130 = vmatpush1.bf16.msra.mxu0 0
  %5131 = vmatprep.subr.bf16.mxu0 0
  %5132 = vmatpush1.bf16.msra.mxu0 0
  %5133 = vmatprep.subr.bf16.mxu0 0
  %5134 = vmatpush1.bf16.msra.mxu0 0
  %5135 = vmatprep.subr.bf16.mxu0 0
  %5136 = vmatpush1.bf16.msra.mxu0 0
  %5137 = vmatprep.subr.bf16.mxu0 0
  %5138 = vmatpush1.bf16.msra.mxu0 0
  %5139 = vmatprep.subr.bf16.mxu0 0
  %5140 = vmatpush1.bf16.msra.mxu0 0
  %5141 = vmatprep.subr.bf16.mxu0 0
  %5142 = vmatpush1.bf16.msra.mxu0 0
  %5143 = vmatprep.subr.bf16.mxu0 0
  %5144 = vmatpush1.bf16.msra.mxu0 0
  %5145 = vmatprep.mubr.bf16.mxu0 0
  %5146 = vmatmul.mubr.bf16.gmra.mrb[0].mxu0 %v5111
  %v5147 = vpop.f32.mrb[0].mxu0
  %v5148 = vadd.f32 %v4621, %v5147
  %v5149 = vpop.f32.mrb[0].mxu0
  %v5150 = vpop.f32.mrb[0].mxu0
  %v5151 = vpop.f32.mrb[0].mxu0
  %5152 = vdwg.mxu0
  %5153 = vst [vmem:[%s591] sm:$0xff] %v5148
  %v5154 = vld [vmem:[%s707] sm:$0xff]
  %5155 = vmatprep.subr.bf16.mxu0 0
  %5156 = vmatpush1.bf16.msra.mxu0 %v4691
  %5157 = vmatprep.subr.bf16.mxu0 0
  %5158 = vmatpush1.bf16.msra.mxu0 %v4692
  %5159 = vmatprep.subr.bf16.mxu0 0
  %5160 = vmatpush1.bf16.msra.mxu0 0
  %5161 = vmatprep.subr.bf16.mxu0 0
  %5162 = vmatpush1.bf16.msra.mxu0 0
  %5163 = vmatprep.subr.bf16.mxu0 0
  %5164 = vmatpush1.bf16.msra.mxu0 0
  %5165 = vmatprep.subr.bf16.mxu0 0
  %5166 = vmatpush1.bf16.msra.mxu0 0
  %5167 = vmatprep.subr.bf16.mxu0 0
  %5168 = vmatpush1.bf16.msra.mxu0 0
  %5169 = vmatprep.subr.bf16.mxu0 0
  %5170 = vmatpush1.bf16.msra.mxu0 0
  %5171 = vmatprep.subr.bf16.mxu0 0
  %5172 = vmatpush1.bf16.msra.mxu0 0
  %5173 = vmatprep.subr.bf16.mxu0 0
  %5174 = vmatpush1.bf16.msra.mxu0 0
  %5175 = vmatprep.subr.bf16.mxu0 0
  %5176 = vmatpush1.bf16.msra.mxu0 0
  %5177 = vmatprep.subr.bf16.mxu0 0
  %5178 = vmatpush1.bf16.msra.mxu0 0
  %5179 = vmatprep.subr.bf16.mxu0 0
  %5180 = vmatpush1.bf16.msra.mxu0 0
  %5181 = vmatprep.subr.bf16.mxu0 0
  %5182 = vmatpush1.bf16.msra.mxu0 0
  %5183 = vmatprep.subr.bf16.mxu0 0
  %5184 = vmatpush1.bf16.msra.mxu0 0
  %5185 = vmatprep.subr.bf16.mxu0 0
  %5186 = vmatpush1.bf16.msra.mxu0 0
  %5187 = vmatprep.mubr.bf16.mxu0 0
  %5188 = vmatmul.mubr.bf16.gmra.mrb[0].mxu0 %v5111
  %v5189 = vpop.f32.mrb[0].mxu0
  %v5190 = vadd.f32 0.0, %v5189
  %v5191 = vpop.f32.mrb[0].mxu0
  %v5192 = vpop.f32.mrb[0].mxu0
  %v5193 = vpop.f32.mrb[0].mxu0
  %5194 = vdwg.mxu0
  %v5195 = vadd.f32 %v5154, %v5190
  %v5196 = vxor.u32 %v5195, 2147483648
  %v5197 = vmul.f32 %v5196, 1.442695
  %v5198 = vpow.pop %v5197
  %v5199 = vadd.f32 %v5198, 1.0
  %v5200 = vrcp.pop %v5199
  %v5201 = vmul.f32 1.0, %v5200
  %v5202 = vtanh.pop %v5195
  %v5203 = vmul.f32 %v5201, %v5099
  %5205 = vrot.lane.b32.xlu0 %v5202, 32
  %v5206 = vpop.permute.xlu0 %5205
  %v5208 = vmul.f32 %v5201, %v5206
  %5210 = vrot.lane.b32.xlu0 %v5208, 32
  %v5211 = vpop.permute.xlu0 %5210
  %v5213 = vadd.f32 %v5203, %v5211
  %v5214 = vtanh.pop %v5213
  %5216 = vrot.lane.b32.xlu0 %v5214, 32
  %v5217 = vpop.permute.xlu0 %5216
  %v5219 = vmul.f32 %v5201, %v5217
  %v5220 = vpack.c.bf16 %v5219, %v5219
  %5222 = vrot.lane.b32.xlu0 %v5220, 64
  %v5223 = vpop.permute.xlu0 %5222
  %v5225 = vsel %vm68, %v5223, 0
  %5227 = vmatprep.subr.bf16.mxu0 0
  %5228 = vmatpush1.bf16.msra.mxu0 %v4634
  %5229 = vmatprep.subr.bf16.mxu0 0
  %5230 = vmatpush1.bf16.msra.mxu0 %v4635
  %5231 = vmatprep.subr.bf16.mxu0 0
  %5232 = vmatpush1.bf16.msra.mxu0 0
  %5233 = vmatprep.subr.bf16.mxu0 0
  %5234 = vmatpush1.bf16.msra.mxu0 0
  %5235 = vmatprep.subr.bf16.mxu0 0
  %5236 = vmatpush1.bf16.msra.mxu0 0
  %5237 = vmatprep.subr.bf16.mxu0 0
  %5238 = vmatpush1.bf16.msra.mxu0 0
  %5239 = vmatprep.subr.bf16.mxu0 0
  %5240 = vmatpush1.bf16.msra.mxu0 0
  %5241 = vmatprep.subr.bf16.mxu0 0
  %5242 = vmatpush1.bf16.msra.mxu0 0
  %5243 = vmatprep.subr.bf16.mxu0 0
  %5244 = vmatpush1.bf16.msra.mxu0 0
  %5245 = vmatprep.subr.bf16.mxu0 0
  %5246 = vmatpush1.bf16.msra.mxu0 0
  %5247 = vmatprep.subr.bf16.mxu0 0
  %5248 = vmatpush1.bf16.msra.mxu0 0
  %5249 = vmatprep.subr.bf16.mxu0 0
  %5250 = vmatpush1.bf16.msra.mxu0 0
  %5251 = vmatprep.subr.bf16.mxu0 0
  %5252 = vmatpush1.bf16.msra.mxu0 0
  %5253 = vmatprep.subr.bf16.mxu0 0
  %5254 = vmatpush1.bf16.msra.mxu0 0
  %5255 = vmatprep.subr.bf16.mxu0 0
  %5256 = vmatpush1.bf16.msra.mxu0 0
  %5257 = vmatprep.subr.bf16.mxu0 0
  %5258 = vmatpush1.bf16.msra.mxu0 0
  %5259 = vmatprep.mubr.bf16.mxu0 0
  %5260 = vmatmul.mubr.bf16.gmra.mrb[0].mxu0 %v5225
  %v5261 = vpop.f32.mrb[0].mxu0
  %v5262 = vadd.f32 %v4621, %v5261
  %v5263 = vpop.f32.mrb[0].mxu0
  %v5264 = vpop.f32.mrb[0].mxu0
  %v5265 = vpop.f32.mrb[0].mxu0
  %5266 = vdwg.mxu0
  %5267 = vst [vmem:[%s707] sm:$0xff] %v5262
  %v5268 = vld [vmem:[%s823] sm:$0xff]
  %5269 = vmatprep.subr.bf16.mxu0 0
  %5270 = vmatpush1.bf16.msra.mxu0 %v4691
  %5271 = vmatprep.subr.bf16.mxu0 0
  %5272 = vmatpush1.bf16.msra.mxu0 %v4692
  %5273 = vmatprep.subr.bf16.mxu0 0
  %5274 = vmatpush1.bf16.msra.mxu0 0
  %5275 = vmatprep.subr.bf16.mxu0 0
  %5276 = vmatpush1.bf16.msra.mxu0 0
  %5277 = vmatprep.subr.bf16.mxu0 0
  %5278 = vmatpush1.bf16.msra.mxu0 0
  %5279 = vmatprep.subr.bf16.mxu0 0
  %5280 = vmatpush1.bf16.msra.mxu0 0
  %5281 = vmatprep.subr.bf16.mxu0 0
  %5282 = vmatpush1.bf16.msra.mxu0 0
  %5283 = vmatprep.subr.bf16.mxu0 0
  %5284 = vmatpush1.bf16.msra.mxu0 0
  %5285 = vmatprep.subr.bf16.mxu0 0
  %5286 = vmatpush1.bf16.msra.mxu0 0
  %5287 = vmatprep.subr.bf16.mxu0 0
  %5288 = vmatpush1.bf16.msra.mxu0 0
  %5289 = vmatprep.subr.bf16.mxu0 0
  %5290 = vmatpush1.bf16.msra.mxu0 0
  %5291 = vmatprep.subr.bf16.mxu0 0
  %5292 = vmatpush1.bf16.msra.mxu0 0
  %5293 = vmatprep.subr.bf16.mxu0 0
  %5294 = vmatpush1.bf16.msra.mxu0 0
  %5295 = vmatprep.subr.bf16.mxu0 0
  %5296 = vmatpush1.bf16.msra.mxu0 0
  %5297 = vmatprep.subr.bf16.mxu0 0
  %5298 = vmatpush1.bf16.msra.mxu0 0
  %5299 = vmatprep.subr.bf16.mxu0 0
  %5300 = vmatpush1.bf16.msra.mxu0 0
  %5301 = vmatprep.mubr.bf16.mxu0 0
  %5302 = vmatmul.mubr.bf16.gmra.mrb[0].mxu0 %v5225
  %v5303 = vpop.f32.mrb[0].mxu0
  %v5304 = vadd.f32 0.0, %v5303
  %v5305 = vpop.f32.mrb[0].mxu0
  %v5306 = vpop.f32.mrb[0].mxu0
  %v5307 = vpop.f32.mrb[0].mxu0
  %5308 = vdwg.mxu0
  %v5309 = vadd.f32 %v5268, %v5304
  %v5310 = vxor.u32 %v5309, 2147483648
  %v5311 = vmul.f32 %v5310, 1.442695
  %v5312 = vpow.pop %v5311
  %v5313 = vadd.f32 %v5312, 1.0
  %v5314 = vrcp.pop %v5313
  %v5315 = vmul.f32 1.0, %v5314
  %v5316 = vtanh.pop %v5309
  %v5317 = vmul.f32 %v5315, %v5213
  %5319 = vrot.lane.b32.xlu0 %v5316, 32
  %v5320 = vpop.permute.xlu0 %5319
  %v5322 = vmul.f32 %v5315, %v5320
  %5324 = vrot.lane.b32.xlu0 %v5322, 32
  %v5325 = vpop.permute.xlu0 %5324
  %v5327 = vadd.f32 %v5317, %v5325
  %v5328 = vtanh.pop %v5327
  %5330 = vrot.lane.b32.xlu0 %v5328, 32
  %v5331 = vpop.permute.xlu0 %5330
  %v5333 = vmul.f32 %v5315, %v5331
  %v5334 = vpack.c.bf16 %v5333, %v5333
  %5336 = vrot.lane.b32.xlu0 %v5334, 64
  %v5337 = vpop.permute.xlu0 %5336
  %v5339 = vsel %vm68, %v5337, 0
  %5341 = vmatprep.subr.bf16.mxu0 0
  %5342 = vmatpush1.bf16.msra.mxu0 %v4634
  %5343 = vmatprep.subr.bf16.mxu0 0
  %5344 = vmatpush1.bf16.msra.mxu0 %v4635
  %5345 = vmatprep.subr.bf16.mxu0 0
  %5346 = vmatpush1.bf16.msra.mxu0 0
  %5347 = vmatprep.subr.bf16.mxu0 0
  %5348 = vmatpush1.bf16.msra.mxu0 0
  %5349 = vmatprep.subr.bf16.mxu0 0
  %5350 = vmatpush1.bf16.msra.mxu0 0
  %5351 = vmatprep.subr.bf16.mxu0 0
  %5352 = vmatpush1.bf16.msra.mxu0 0
  %5353 = vmatprep.subr.bf16.mxu0 0
  %5354 = vmatpush1.bf16.msra.mxu0 0
  %5355 = vmatprep.subr.bf16.mxu0 0
  %5356 = vmatpush1.bf16.msra.mxu0 0
  %5357 = vmatprep.subr.bf16.mxu0 0
  %5358 = vmatpush1.bf16.msra.mxu0 0
  %5359 = vmatprep.subr.bf16.mxu0 0
  %5360 = vmatpush1.bf16.msra.mxu0 0
  %5361 = vmatprep.subr.bf16.mxu0 0
  %5362 = vmatpush1.bf16.msra.mxu0 0
  %5363 = vmatprep.subr.bf16.mxu0 0
  %5364 = vmatpush1.bf16.msra.mxu0 0
  %5365 = vmatprep.subr.bf16.mxu0 0
  %5366 = vmatpush1.bf16.msra.mxu0 0
  %5367 = vmatprep.subr.bf16.mxu0 0
  %5368 = vmatpush1.bf16.msra.mxu0 0
  %5369 = vmatprep.subr.bf16.mxu0 0
  %5370 = vmatpush1.bf16.msra.mxu0 0
  %5371 = vmatprep.subr.bf16.mxu0 0
  %5372 = vmatpush1.bf16.msra.mxu0 0
  %5373 = vmatprep.mubr.bf16.mxu0 0
  %5374 = vmatmul.mubr.bf16.gmra.mrb[0].mxu0 %v5339
  %v5375 = vpop.f32.mrb[0].mxu0
  %v5376 = vadd.f32 %v4621, %v5375
  %v5377 = vpop.f32.mrb[0].mxu0
  %v5378 = vpop.f32.mrb[0].mxu0
  %v5379 = vpop.f32.mrb[0].mxu0
  %5380 = vdwg.mxu0
  %5381 = vst [vmem:[%s823] sm:$0xff] %v5376
  %v5382 = vld [vmem:[%s939] sm:$0xff]
  %5383 = vmatprep.subr.bf16.mxu0 0
  %5384 = vmatpush1.bf16.msra.mxu0 %v4691
  %5385 = vmatprep.subr.bf16.mxu0 0
  %5386 = vmatpush1.bf16.msra.mxu0 %v4692
  %5387 = vmatprep.subr.bf16.mxu0 0
  %5388 = vmatpush1.bf16.msra.mxu0 0
  %5389 = vmatprep.subr.bf16.mxu0 0
  %5390 = vmatpush1.bf16.msra.mxu0 0
  %5391 = vmatprep.subr.bf16.mxu0 0
  %5392 = vmatpush1.bf16.msra.mxu0 0
  %5393 = vmatprep.subr.bf16.mxu0 0
  %5394 = vmatpush1.bf16.msra.mxu0 0
  %5395 = vmatprep.subr.bf16.mxu0 0
  %5396 = vmatpush1.bf16.msra.mxu0 0
  %5397 = vmatprep.subr.bf16.mxu0 0
  %5398 = vmatpush1.bf16.msra.mxu0 0
  %5399 = vmatprep.subr.bf16.mxu0 0
  %5400 = vmatpush1.bf16.msra.mxu0 0
  %5401 = vmatprep.subr.bf16.mxu0 0
  %5402 = vmatpush1.bf16.msra.mxu0 0
  %5403 = vmatprep.subr.bf16.mxu0 0
  %5404 = vmatpush1.bf16.msra.mxu0 0
  %5405 = vmatprep.subr.bf16.mxu0 0
  %5406 = vmatpush1.bf16.msra.mxu0 0
  %5407 = vmatprep.subr.bf16.mxu0 0
  %5408 = vmatpush1.bf16.msra.mxu0 0
  %5409 = vmatprep.subr.bf16.mxu0 0
  %5410 = vmatpush1.bf16.msra.mxu0 0
  %5411 = vmatprep.subr.bf16.mxu0 0
  %5412 = vmatpush1.bf16.msra.mxu0 0
  %5413 = vmatprep.subr.bf16.mxu0 0
  %5414 = vmatpush1.bf16.msra.mxu0 0
  %5415 = vmatprep.mubr.bf16.mxu0 0
  %5416 = vmatmul.mubr.bf16.gmra.mrb[0].mxu0 %v5339
  %v5417 = vpop.f32.mrb[0].mxu0
  %v5418 = vadd.f32 0.0, %v5417
  %v5419 = vpop.f32.mrb[0].mxu0
  %v5420 = vpop.f32.mrb[0].mxu0
  %v5421 = vpop.f32.mrb[0].mxu0
  %5422 = vdwg.mxu0
  %v5423 = vadd.f32 %v5382, %v5418
  %v5424 = vxor.u32 %v5423, 2147483648
  %v5425 = vmul.f32 %v5424, 1.442695
  %v5426 = vpow.pop %v5425
  %v5427 = vadd.f32 %v5426, 1.0
  %v5428 = vrcp.pop %v5427
  %v5429 = vmul.f32 1.0, %v5428
  %v5430 = vtanh.pop %v5423
  %v5431 = vmul.f32 %v5429, %v5327
  %5433 = vrot.lane.b32.xlu0 %v5430, 32
  %v5434 = vpop.permute.xlu0 %5433
  %v5436 = vmul.f32 %v5429, %v5434
  %5438 = vrot.lane.b32.xlu0 %v5436, 32
  %v5439 = vpop.permute.xlu0 %5438
  %v5441 = vadd.f32 %v5431, %v5439
  %v5442 = vtanh.pop %v5441
  %5444 = vrot.lane.b32.xlu0 %v5442, 32
  %v5445 = vpop.permute.xlu0 %5444
  %v5447 = vmul.f32 %v5429, %v5445
  %v5448 = vpack.c.bf16 %v5447, %v5447
  %5450 = vrot.lane.b32.xlu0 %v5448, 64
  %v5451 = vpop.permute.xlu0 %5450
  %v5453 = vsel %vm68, %v5451, 0
  %5455 = vmatprep.subr.bf16.mxu0 0
  %5456 = vmatpush1.bf16.msra.mxu0 %v4634
  %5457 = vmatprep.subr.bf16.mxu0 0
  %5458 = vmatpush1.bf16.msra.mxu0 %v4635
  %5459 = vmatprep.subr.bf16.mxu0 0
  %5460 = vmatpush1.bf16.msra.mxu0 0
  %5461 = vmatprep.subr.bf16.mxu0 0
  %5462 = vmatpush1.bf16.msra.mxu0 0
  %5463 = vmatprep.subr.bf16.mxu0 0
  %5464 = vmatpush1.bf16.msra.mxu0 0
  %5465 = vmatprep.subr.bf16.mxu0 0
  %5466 = vmatpush1.bf16.msra.mxu0 0
  %5467 = vmatprep.subr.bf16.mxu0 0
  %5468 = vmatpush1.bf16.msra.mxu0 0
  %5469 = vmatprep.subr.bf16.mxu0 0
  %5470 = vmatpush1.bf16.msra.mxu0 0
  %5471 = vmatprep.subr.bf16.mxu0 0
  %5472 = vmatpush1.bf16.msra.mxu0 0
  %5473 = vmatprep.subr.bf16.mxu0 0
  %5474 = vmatpush1.bf16.msra.mxu0 0
  %5475 = vmatprep.subr.bf16.mxu0 0
  %5476 = vmatpush1.bf16.msra.mxu0 0
  %5477 = vmatprep.subr.bf16.mxu0 0
  %5478 = vmatpush1.bf16.msra.mxu0 0
  %5479 = vmatprep.subr.bf16.mxu0 0
  %5480 = vmatpush1.bf16.msra.mxu0 0
  %5481 = vmatprep.subr.bf16.mxu0 0
  %5482 = vmatpush1.bf16.msra.mxu0 0
  %5483 = vmatprep.subr.bf16.mxu0 0
  %5484 = vmatpush1.bf16.msra.mxu0 0
  %5485 = vmatprep.subr.bf16.mxu0 0
  %5486 = vmatpush1.bf16.msra.mxu0 0
  %5487 = vmatprep.mubr.bf16.mxu0 0
  %5488 = vmatmul.mubr.bf16.gmra.mrb[0].mxu0 %v5453
  %v5489 = vpop.f32.mrb[0].mxu0
  %v5490 = vadd.f32 %v4621, %v5489
  %v5491 = vpop.f32.mrb[0].mxu0
  %v5492 = vpop.f32.mrb[0].mxu0
  %v5493 = vpop.f32.mrb[0].mxu0
  %5494 = vdwg.mxu0
  %5495 = vst [vmem:[%s939] sm:$0xff] %v5490
  %s5496 = scalar_lea.vmem %s2, 96
  %v5497 = vld [vmem:[%s5496] sm:$0xf]
  %v5498 = vld [vmem:[%s5496 + $0x4] sm:$0xf]
  %v5499 = vld [vmem:[%s5496 + $0x8] sm:$0xf]
  %v5500 = vld [vmem:[%s5496 + $0xc] sm:$0xf]
  %v5501 = vld [vmem:[#allocation2] sm:$0xff]
  %v5502 = vxor.u32 %v5501, 2147483648
  %v5503 = vmul.f32 %v5502, 1.442695
  %v5504 = vpow.pop %v5503
  %v5505 = vadd.f32 %v5504, 1.0
  %v5506 = vrcp.pop %v5505
  %v5507 = vmul.f32 1.0, %v5506
  %v5508 = vtanh.pop %v5501
  %5510 = vrot.lane.b32.xlu0 %v5508, 32
  %v5511 = vpop.permute.xlu0 %5510
  %v5513 = vmul.f32 %v5507, %v5511
  %v5514 = vtanh.pop %v5513
  %5516 = vrot.lane.b32.xlu0 %v5514, 64
  %v5517 = vpop.permute.xlu0 %5516
  %v5519 = vmul.f32 %v5507, %v5517
  %v5520 = vld [vmem:[%s243] sm:$0xff]
  %v5521 = vpack.c.bf16 %v5519, %v5519
  %5523 = vrot.lane.b32.xlu0 %v5521, 64
  %v5524 = vpop.permute.xlu0 %5523
  %v5529 = vunpack.c.l.b16 %v5497
  %v5530 = vunpack.c.l.b16 %v5498
  %v5531 = vunpack.c.l.b16 %v5499
  %v5532 = vunpack.c.l.b16 %v5500
  %v5533 = vpack.c.b16 %v5530, %v5529
  %v5534 = vpack.c.b16 %v5532, %v5531
  %v5538 = vsel %vm68, %v5524, 0
  %5540 = vmatprep.subr.bf16.mxu0 0
  %5541 = vmatpush1.bf16.msra.mxu0 %v5533
  %5542 = vmatprep.subr.bf16.mxu0 0
  %5543 = vmatpush1.bf16.msra.mxu0 %v5534
  %5544 = vmatprep.subr.bf16.mxu0 0
  %5545 = vmatpush1.bf16.msra.mxu0 0
  %5546 = vmatprep.subr.bf16.mxu0 0
  %5547 = vmatpush1.bf16.msra.mxu0 0
  %5548 = vmatprep.subr.bf16.mxu0 0
  %5549 = vmatpush1.bf16.msra.mxu0 0
  %5550 = vmatprep.subr.bf16.mxu0 0
  %5551 = vmatpush1.bf16.msra.mxu0 0
  %5552 = vmatprep.subr.bf16.mxu0 0
  %5553 = vmatpush1.bf16.msra.mxu0 0
  %5554 = vmatprep.subr.bf16.mxu0 0
  %5555 = vmatpush1.bf16.msra.mxu0 0
  %5556 = vmatprep.subr.bf16.mxu0 0
  %5557 = vmatpush1.bf16.msra.mxu0 0
  %5558 = vmatprep.subr.bf16.mxu0 0
  %5559 = vmatpush1.bf16.msra.mxu0 0
  %5560 = vmatprep.subr.bf16.mxu0 0
  %5561 = vmatpush1.bf16.msra.mxu0 0
  %5562 = vmatprep.subr.bf16.mxu0 0
  %5563 = vmatpush1.bf16.msra.mxu0 0
  %5564 = vmatprep.subr.bf16.mxu0 0
  %5565 = vmatpush1.bf16.msra.mxu0 0
  %5566 = vmatprep.subr.bf16.mxu0 0
  %5567 = vmatpush1.bf16.msra.mxu0 0
  %5568 = vmatprep.subr.bf16.mxu0 0
  %5569 = vmatpush1.bf16.msra.mxu0 0
  %5570 = vmatprep.subr.bf16.mxu0 0
  %5571 = vmatpush1.bf16.msra.mxu0 0
  %5572 = vmatprep.mubr.bf16.mxu0 0
  %5573 = vmatmul.mubr.bf16.gmra.mrb[0].mxu0 %v5538
  %v5574 = vpop.f32.mrb[0].mxu0
  %v5575 = vadd.f32 0.0, %v5574
  %v5576 = vpop.f32.mrb[0].mxu0
  %v5577 = vpop.f32.mrb[0].mxu0
  %v5578 = vpop.f32.mrb[0].mxu0
  %5579 = vdwg.mxu0
  %v5580 = vadd.f32 %v5520, %v5575
  %v5581 = vxor.u32 %v5580, 2147483648
  %v5582 = vmul.f32 %v5581, 1.442695
  %v5583 = vpow.pop %v5582
  %v5584 = vadd.f32 %v5583, 1.0
  %v5585 = vrcp.pop %v5584
  %v5586 = vmul.f32 1.0, %v5585
  %v5587 = vtanh.pop %v5580
  %5589 = vrot.lane.b32.xlu0 %v5513, 32
  %v5590 = vpop.permute.xlu0 %5589
  %v5592 = vmul.f32 %v5586, %v5590
  %5594 = vrot.lane.b32.xlu0 %v5587, 32
  %v5595 = vpop.permute.xlu0 %5594
  %v5597 = vmul.f32 %v5586, %v5595
  %5599 = vrot.lane.b32.xlu0 %v5597, 32
  %v5600 = vpop.permute.xlu0 %5599
  %v5602 = vadd.f32 %v5592, %v5600
  %v5603 = vtanh.pop %v5602
  %5605 = vrot.lane.b32.xlu0 %v5603, 32
  %v5606 = vpop.permute.xlu0 %5605
  %v5608 = vmul.f32 %v5586, %v5606
  %v5609 = vld [vmem:[%s359] sm:$0xff]
  %v5610 = vpack.c.bf16 %v5608, %v5608
  %5612 = vrot.lane.b32.xlu0 %v5610, 64
  %v5613 = vpop.permute.xlu0 %5612
  %v5615 = vsel %vm68, %v5613, 0
  %5617 = vmatprep.subr.bf16.mxu0 0
  %5618 = vmatpush1.bf16.msra.mxu0 %v5533
  %5619 = vmatprep.subr.bf16.mxu0 0
  %5620 = vmatpush1.bf16.msra.mxu0 %v5534
  %5621 = vmatprep.subr.bf16.mxu0 0
  %5622 = vmatpush1.bf16.msra.mxu0 0
  %5623 = vmatprep.subr.bf16.mxu0 0
  %5624 = vmatpush1.bf16.msra.mxu0 0
  %5625 = vmatprep.subr.bf16.mxu0 0
  %5626 = vmatpush1.bf16.msra.mxu0 0
  %5627 = vmatprep.subr.bf16.mxu0 0
  %5628 = vmatpush1.bf16.msra.mxu0 0
  %5629 = vmatprep.subr.bf16.mxu0 0
  %5630 = vmatpush1.bf16.msra.mxu0 0
  %5631 = vmatprep.subr.bf16.mxu0 0
  %5632 = vmatpush1.bf16.msra.mxu0 0
  %5633 = vmatprep.subr.bf16.mxu0 0
  %5634 = vmatpush1.bf16.msra.mxu0 0
  %5635 = vmatprep.subr.bf16.mxu0 0
  %5636 = vmatpush1.bf16.msra.mxu0 0
  %5637 = vmatprep.subr.bf16.mxu0 0
  %5638 = vmatpush1.bf16.msra.mxu0 0
  %5639 = vmatprep.subr.bf16.mxu0 0
  %5640 = vmatpush1.bf16.msra.mxu0 0
  %5641 = vmatprep.subr.bf16.mxu0 0
  %5642 = vmatpush1.bf16.msra.mxu0 0
  %5643 = vmatprep.subr.bf16.mxu0 0
  %5644 = vmatpush1.bf16.msra.mxu0 0
  %5645 = vmatprep.subr.bf16.mxu0 0
  %5646 = vmatpush1.bf16.msra.mxu0 0
  %5647 = vmatprep.subr.bf16.mxu0 0
  %5648 = vmatpush1.bf16.msra.mxu0 0
  %5649 = vmatprep.mubr.bf16.mxu0 0
  %5650 = vmatmul.mubr.bf16.gmra.mrb[0].mxu0 %v5615
  %v5651 = vpop.f32.mrb[0].mxu0
  %v5652 = vadd.f32 0.0, %v5651
  %v5653 = vpop.f32.mrb[0].mxu0
  %v5654 = vpop.f32.mrb[0].mxu0
  %v5655 = vpop.f32.mrb[0].mxu0
  %5656 = vdwg.mxu0
  %v5657 = vadd.f32 %v5609, %v5652
  %v5658 = vxor.u32 %v5657, 2147483648
  %v5659 = vmul.f32 %v5658, 1.442695
  %v5660 = vpow.pop %v5659
  %v5661 = vadd.f32 %v5660, 1.0
  %v5662 = vrcp.pop %v5661
  %v5663 = vmul.f32 1.0, %v5662
  %v5664 = vtanh.pop %v5657
  %v5665 = vmul.f32 %v5663, %v5602
  %5667 = vrot.lane.b32.xlu0 %v5664, 32
  %v5668 = vpop.permute.xlu0 %5667
  %v5670 = vmul.f32 %v5663, %v5668
  %5672 = vrot.lane.b32.xlu0 %v5670, 32
  %v5673 = vpop.permute.xlu0 %5672
  %v5675 = vadd.f32 %v5665, %v5673
  %v5676 = vtanh.pop %v5675
  %5678 = vrot.lane.b32.xlu0 %v5676, 32
  %v5679 = vpop.permute.xlu0 %5678
  %v5681 = vmul.f32 %v5663, %v5679
  %v5682 = vld [vmem:[%s475] sm:$0xff]
  %v5683 = vpack.c.bf16 %v5681, %v5681
  %5685 = vrot.lane.b32.xlu0 %v5683, 64
  %v5686 = vpop.permute.xlu0 %5685
  %v5688 = vsel %vm68, %v5686, 0
  %5690 = vmatprep.subr.bf16.mxu0 0
  %5691 = vmatpush1.bf16.msra.mxu0 %v5533
  %5692 = vmatprep.subr.bf16.mxu0 0
  %5693 = vmatpush1.bf16.msra.mxu0 %v5534
  %5694 = vmatprep.subr.bf16.mxu0 0
  %5695 = vmatpush1.bf16.msra.mxu0 0
  %5696 = vmatprep.subr.bf16.mxu0 0
  %5697 = vmatpush1.bf16.msra.mxu0 0
  %5698 = vmatprep.subr.bf16.mxu0 0
  %5699 = vmatpush1.bf16.msra.mxu0 0
  %5700 = vmatprep.subr.bf16.mxu0 0
  %5701 = vmatpush1.bf16.msra.mxu0 0
  %5702 = vmatprep.subr.bf16.mxu0 0
  %5703 = vmatpush1.bf16.msra.mxu0 0
  %5704 = vmatprep.subr.bf16.mxu0 0
  %5705 = vmatpush1.bf16.msra.mxu0 0
  %5706 = vmatprep.subr.bf16.mxu0 0
  %5707 = vmatpush1.bf16.msra.mxu0 0
  %5708 = vmatprep.subr.bf16.mxu0 0
  %5709 = vmatpush1.bf16.msra.mxu0 0
  %5710 = vmatprep.subr.bf16.mxu0 0
  %5711 = vmatpush1.bf16.msra.mxu0 0
  %5712 = vmatprep.subr.bf16.mxu0 0
  %5713 = vmatpush1.bf16.msra.mxu0 0
  %5714 = vmatprep.subr.bf16.mxu0 0
  %5715 = vmatpush1.bf16.msra.mxu0 0
  %5716 = vmatprep.subr.bf16.mxu0 0
  %5717 = vmatpush1.bf16.msra.mxu0 0
  %5718 = vmatprep.subr.bf16.mxu0 0
  %5719 = vmatpush1.bf16.msra.mxu0 0
  %5720 = vmatprep.subr.bf16.mxu0 0
  %5721 = vmatpush1.bf16.msra.mxu0 0
  %5722 = vmatprep.mubr.bf16.mxu0 0
  %5723 = vmatmul.mubr.bf16.gmra.mrb[0].mxu0 %v5688
  %v5724 = vpop.f32.mrb[0].mxu0
  %v5725 = vadd.f32 0.0, %v5724
  %v5726 = vpop.f32.mrb[0].mxu0
  %v5727 = vpop.f32.mrb[0].mxu0
  %v5728 = vpop.f32.mrb[0].mxu0
  %5729 = vdwg.mxu0
  %v5730 = vadd.f32 %v5682, %v5725
  %v5731 = vxor.u32 %v5730, 2147483648
  %v5732 = vmul.f32 %v5731, 1.442695
  %v5733 = vpow.pop %v5732
  %v5734 = vadd.f32 %v5733, 1.0
  %v5735 = vrcp.pop %v5734
  %v5736 = vmul.f32 1.0, %v5735
  %v5737 = vtanh.pop %v5730
  %v5738 = vmul.f32 %v5736, %v5675
  %5740 = vrot.lane.b32.xlu0 %v5737, 32
  %v5741 = vpop.permute.xlu0 %5740
  %v5743 = vmul.f32 %v5736, %v5741
  %5745 = vrot.lane.b32.xlu0 %v5743, 32
  %v5746 = vpop.permute.xlu0 %5745
  %v5748 = vadd.f32 %v5738, %v5746
  %v5749 = vtanh.pop %v5748
  %5751 = vrot.lane.b32.xlu0 %v5749, 32
  %v5752 = vpop.permute.xlu0 %5751
  %v5754 = vmul.f32 %v5736, %v5752
  %v5755 = vld [vmem:[%s591] sm:$0xff]
  %v5756 = vpack.c.bf16 %v5754, %v5754
  %5758 = vrot.lane.b32.xlu0 %v5756, 64
  %v5759 = vpop.permute.xlu0 %5758
  %v5761 = vsel %vm68, %v5759, 0
  %5763 = vmatprep.subr.bf16.mxu0 0
  %5764 = vmatpush1.bf16.msra.mxu0 %v5533
  %5765 = vmatprep.subr.bf16.mxu0 0
  %5766 = vmatpush1.bf16.msra.mxu0 %v5534
  %5767 = vmatprep.subr.bf16.mxu0 0
  %5768 = vmatpush1.bf16.msra.mxu0 0
  %5769 = vmatprep.subr.bf16.mxu0 0
  %5770 = vmatpush1.bf16.msra.mxu0 0
  %5771 = vmatprep.subr.bf16.mxu0 0
  %5772 = vmatpush1.bf16.msra.mxu0 0
  %5773 = vmatprep.subr.bf16.mxu0 0
  %5774 = vmatpush1.bf16.msra.mxu0 0
  %5775 = vmatprep.subr.bf16.mxu0 0
  %5776 = vmatpush1.bf16.msra.mxu0 0
  %5777 = vmatprep.subr.bf16.mxu0 0
  %5778 = vmatpush1.bf16.msra.mxu0 0
  %5779 = vmatprep.subr.bf16.mxu0 0
  %5780 = vmatpush1.bf16.msra.mxu0 0
  %5781 = vmatprep.subr.bf16.mxu0 0
  %5782 = vmatpush1.bf16.msra.mxu0 0
  %5783 = vmatprep.subr.bf16.mxu0 0
  %5784 = vmatpush1.bf16.msra.mxu0 0
  %5785 = vmatprep.subr.bf16.mxu0 0
  %5786 = vmatpush1.bf16.msra.mxu0 0
  %5787 = vmatprep.subr.bf16.mxu0 0
  %5788 = vmatpush1.bf16.msra.mxu0 0
  %5789 = vmatprep.subr.bf16.mxu0 0
  %5790 = vmatpush1.bf16.msra.mxu0 0
  %5791 = vmatprep.subr.bf16.mxu0 0
  %5792 = vmatpush1.bf16.msra.mxu0 0
  %5793 = vmatprep.subr.bf16.mxu0 0
  %5794 = vmatpush1.bf16.msra.mxu0 0
  %5795 = vmatprep.mubr.bf16.mxu0 0
  %5796 = vmatmul.mubr.bf16.gmra.mrb[0].mxu0 %v5761
  %v5797 = vpop.f32.mrb[0].mxu0
  %v5798 = vadd.f32 0.0, %v5797
  %v5799 = vpop.f32.mrb[0].mxu0
  %v5800 = vpop.f32.mrb[0].mxu0
  %v5801 = vpop.f32.mrb[0].mxu0
  %5802 = vdwg.mxu0
  %v5803 = vadd.f32 %v5755, %v5798
  %v5804 = vxor.u32 %v5803, 2147483648
  %v5805 = vmul.f32 %v5804, 1.442695
  %v5806 = vpow.pop %v5805
  %v5807 = vadd.f32 %v5806, 1.0
  %v5808 = vrcp.pop %v5807
  %v5809 = vmul.f32 1.0, %v5808
  %v5810 = vtanh.pop %v5803
  %v5811 = vmul.f32 %v5809, %v5748
  %5813 = vrot.lane.b32.xlu0 %v5810, 32
  %v5814 = vpop.permute.xlu0 %5813
  %v5816 = vmul.f32 %v5809, %v5814
  %5818 = vrot.lane.b32.xlu0 %v5816, 32
  %v5819 = vpop.permute.xlu0 %5818
  %v5821 = vadd.f32 %v5811, %v5819
  %v5822 = vtanh.pop %v5821
  %5824 = vrot.lane.b32.xlu0 %v5822, 32
  %v5825 = vpop.permute.xlu0 %5824
  %v5827 = vmul.f32 %v5809, %v5825
  %v5828 = vld [vmem:[%s707] sm:$0xff]
  %v5829 = vpack.c.bf16 %v5827, %v5827
  %5831 = vrot.lane.b32.xlu0 %v5829, 64
  %v5832 = vpop.permute.xlu0 %5831
  %v5834 = vsel %vm68, %v5832, 0
  %5836 = vmatprep.subr.bf16.mxu0 0
  %5837 = vmatpush1.bf16.msra.mxu0 %v5533
  %5838 = vmatprep.subr.bf16.mxu0 0
  %5839 = vmatpush1.bf16.msra.mxu0 %v5534
  %5840 = vmatprep.subr.bf16.mxu0 0
  %5841 = vmatpush1.bf16.msra.mxu0 0
  %5842 = vmatprep.subr.bf16.mxu0 0
  %5843 = vmatpush1.bf16.msra.mxu0 0
  %5844 = vmatprep.subr.bf16.mxu0 0
  %5845 = vmatpush1.bf16.msra.mxu0 0
  %5846 = vmatprep.subr.bf16.mxu0 0
  %5847 = vmatpush1.bf16.msra.mxu0 0
  %5848 = vmatprep.subr.bf16.mxu0 0
  %5849 = vmatpush1.bf16.msra.mxu0 0
  %5850 = vmatprep.subr.bf16.mxu0 0
  %5851 = vmatpush1.bf16.msra.mxu0 0
  %5852 = vmatprep.subr.bf16.mxu0 0
  %5853 = vmatpush1.bf16.msra.mxu0 0
  %5854 = vmatprep.subr.bf16.mxu0 0
  %5855 = vmatpush1.bf16.msra.mxu0 0
  %5856 = vmatprep.subr.bf16.mxu0 0
  %5857 = vmatpush1.bf16.msra.mxu0 0
  %5858 = vmatprep.subr.bf16.mxu0 0
  %5859 = vmatpush1.bf16.msra.mxu0 0
  %5860 = vmatprep.subr.bf16.mxu0 0
  %5861 = vmatpush1.bf16.msra.mxu0 0
  %5862 = vmatprep.subr.bf16.mxu0 0
  %5863 = vmatpush1.bf16.msra.mxu0 0
  %5864 = vmatprep.subr.bf16.mxu0 0
  %5865 = vmatpush1.bf16.msra.mxu0 0
  %5866 = vmatprep.subr.bf16.mxu0 0
  %5867 = vmatpush1.bf16.msra.mxu0 0
  %5868 = vmatprep.mubr.bf16.mxu0 0
  %5869 = vmatmul.mubr.bf16.gmra.mrb[0].mxu0 %v5834
  %v5870 = vpop.f32.mrb[0].mxu0
  %v5871 = vadd.f32 0.0, %v5870
  %v5872 = vpop.f32.mrb[0].mxu0
  %v5873 = vpop.f32.mrb[0].mxu0
  %v5874 = vpop.f32.mrb[0].mxu0
  %5875 = vdwg.mxu0
  %v5876 = vadd.f32 %v5828, %v5871
  %v5877 = vxor.u32 %v5876, 2147483648
  %v5878 = vmul.f32 %v5877, 1.442695
  %v5879 = vpow.pop %v5878
  %v5880 = vadd.f32 %v5879, 1.0
  %v5881 = vrcp.pop %v5880
  %v5882 = vmul.f32 1.0, %v5881
  %v5883 = vtanh.pop %v5876
  %v5884 = vmul.f32 %v5882, %v5821
  %5886 = vrot.lane.b32.xlu0 %v5883, 32
  %v5887 = vpop.permute.xlu0 %5886
  %v5889 = vmul.f32 %v5882, %v5887
  %5891 = vrot.lane.b32.xlu0 %v5889, 32
  %v5892 = vpop.permute.xlu0 %5891
  %v5894 = vadd.f32 %v5884, %v5892
  %v5895 = vtanh.pop %v5894
  %5897 = vrot.lane.b32.xlu0 %v5895, 32
  %v5898 = vpop.permute.xlu0 %5897
  %v5900 = vmul.f32 %v5882, %v5898
  %v5901 = vld [vmem:[%s823] sm:$0xff]
  %v5902 = vpack.c.bf16 %v5900, %v5900
  %5904 = vrot.lane.b32.xlu0 %v5902, 64
  %v5905 = vpop.permute.xlu0 %5904
  %v5907 = vsel %vm68, %v5905, 0
  %5909 = vmatprep.subr.bf16.mxu0 0
  %5910 = vmatpush1.bf16.msra.mxu0 %v5533
  %5911 = vmatprep.subr.bf16.mxu0 0
  %5912 = vmatpush1.bf16.msra.mxu0 %v5534
  %5913 = vmatprep.subr.bf16.mxu0 0
  %5914 = vmatpush1.bf16.msra.mxu0 0
  %5915 = vmatprep.subr.bf16.mxu0 0
  %5916 = vmatpush1.bf16.msra.mxu0 0
  %5917 = vmatprep.subr.bf16.mxu0 0
  %5918 = vmatpush1.bf16.msra.mxu0 0
  %5919 = vmatprep.subr.bf16.mxu0 0
  %5920 = vmatpush1.bf16.msra.mxu0 0
  %5921 = vmatprep.subr.bf16.mxu0 0
  %5922 = vmatpush1.bf16.msra.mxu0 0
  %5923 = vmatprep.subr.bf16.mxu0 0
  %5924 = vmatpush1.bf16.msra.mxu0 0
  %5925 = vmatprep.subr.bf16.mxu0 0
  %5926 = vmatpush1.bf16.msra.mxu0 0
  %5927 = vmatprep.subr.bf16.mxu0 0
  %5928 = vmatpush1.bf16.msra.mxu0 0
  %5929 = vmatprep.subr.bf16.mxu0 0
  %5930 = vmatpush1.bf16.msra.mxu0 0
  %5931 = vmatprep.subr.bf16.mxu0 0
  %5932 = vmatpush1.bf16.msra.mxu0 0
  %5933 = vmatprep.subr.bf16.mxu0 0
  %5934 = vmatpush1.bf16.msra.mxu0 0
  %5935 = vmatprep.subr.bf16.mxu0 0
  %5936 = vmatpush1.bf16.msra.mxu0 0
  %5937 = vmatprep.subr.bf16.mxu0 0
  %5938 = vmatpush1.bf16.msra.mxu0 0
  %5939 = vmatprep.subr.bf16.mxu0 0
  %5940 = vmatpush1.bf16.msra.mxu0 0
  %5941 = vmatprep.mubr.bf16.mxu0 0
  %5942 = vmatmul.mubr.bf16.gmra.mrb[0].mxu0 %v5907
  %v5943 = vpop.f32.mrb[0].mxu0
  %v5944 = vadd.f32 0.0, %v5943
  %v5945 = vpop.f32.mrb[0].mxu0
  %v5946 = vpop.f32.mrb[0].mxu0
  %v5947 = vpop.f32.mrb[0].mxu0
  %5948 = vdwg.mxu0
  %v5949 = vadd.f32 %v5901, %v5944
  %v5950 = vxor.u32 %v5949, 2147483648
  %v5951 = vmul.f32 %v5950, 1.442695
  %v5952 = vpow.pop %v5951
  %v5953 = vadd.f32 %v5952, 1.0
  %v5954 = vrcp.pop %v5953
  %v5955 = vmul.f32 1.0, %v5954
  %v5956 = vtanh.pop %v5949
  %v5957 = vmul.f32 %v5955, %v5894
  %5959 = vrot.lane.b32.xlu0 %v5956, 32
  %v5960 = vpop.permute.xlu0 %5959
  %v5962 = vmul.f32 %v5955, %v5960
  %5964 = vrot.lane.b32.xlu0 %v5962, 32
  %v5965 = vpop.permute.xlu0 %5964
  %v5967 = vadd.f32 %v5957, %v5965
  %v5968 = vtanh.pop %v5967
  %5970 = vrot.lane.b32.xlu0 %v5968, 32
  %v5971 = vpop.permute.xlu0 %5970
  %v5973 = vmul.f32 %v5955, %v5971
  %v5974 = vld [vmem:[%s939] sm:$0xff]
  %v5975 = vpack.c.bf16 %v5973, %v5973
  %5977 = vrot.lane.b32.xlu0 %v5975, 64
  %v5978 = vpop.permute.xlu0 %5977
  %v5980 = vsel %vm68, %v5978, 0
  %5982 = vmatprep.subr.bf16.mxu0 0
  %5983 = vmatpush1.bf16.msra.mxu0 %v5533
  %5984 = vmatprep.subr.bf16.mxu0 0
  %5985 = vmatpush1.bf16.msra.mxu0 %v5534
  %5986 = vmatprep.subr.bf16.mxu0 0
  %5987 = vmatpush1.bf16.msra.mxu0 0
  %5988 = vmatprep.subr.bf16.mxu0 0
  %5989 = vmatpush1.bf16.msra.mxu0 0
  %5990 = vmatprep.subr.bf16.mxu0 0
  %5991 = vmatpush1.bf16.msra.mxu0 0
  %5992 = vmatprep.subr.bf16.mxu0 0
  %5993 = vmatpush1.bf16.msra.mxu0 0
  %5994 = vmatprep.subr.bf16.mxu0 0
  %5995 = vmatpush1.bf16.msra.mxu0 0
  %5996 = vmatprep.subr.bf16.mxu0 0
  %5997 = vmatpush1.bf16.msra.mxu0 0
  %5998 = vmatprep.subr.bf16.mxu0 0
  %5999 = vmatpush1.bf16.msra.mxu0 0
  %6000 = vmatprep.subr.bf16.mxu0 0
  %6001 = vmatpush1.bf16.msra.mxu0 0
  %6002 = vmatprep.subr.bf16.mxu0 0
  %6003 = vmatpush1.bf16.msra.mxu0 0
  %6004 = vmatprep.subr.bf16.mxu0 0
  %6005 = vmatpush1.bf16.msra.mxu0 0
  %6006 = vmatprep.subr.bf16.mxu0 0
  %6007 = vmatpush1.bf16.msra.mxu0 0
  %6008 = vmatprep.subr.bf16.mxu0 0
  %6009 = vmatpush1.bf16.msra.mxu0 0
  %6010 = vmatprep.subr.bf16.mxu0 0
  %6011 = vmatpush1.bf16.msra.mxu0 0
  %6012 = vmatprep.subr.bf16.mxu0 0
  %6013 = vmatpush1.bf16.msra.mxu0 0
  %6014 = vmatprep.mubr.bf16.mxu0 0
  %6015 = vmatmul.mubr.bf16.gmra.mrb[0].mxu0 %v5980
  %v6016 = vpop.f32.mrb[0].mxu0
  %v6017 = vadd.f32 0.0, %v6016
  %v6018 = vpop.f32.mrb[0].mxu0
  %v6019 = vpop.f32.mrb[0].mxu0
  %v6020 = vpop.f32.mrb[0].mxu0
  %6021 = vdwg.mxu0
  %v6022 = vadd.f32 %v5974, %v6017
  %v6023 = vxor.u32 %v6022, 2147483648
  %v6024 = vmul.f32 %v6023, 1.442695
  %v6025 = vpow.pop %v6024
  %v6026 = vadd.f32 %v6025, 1.0
  %v6027 = vrcp.pop %v6026
  %v6028 = vmul.f32 1.0, %v6027
  %v6029 = vtanh.pop %v6022
  %v6030 = vmul.f32 %v6028, %v5967
  %6032 = vrot.lane.b32.xlu0 %v6029, 32
  %v6033 = vpop.permute.xlu0 %6032
  %v6035 = vmul.f32 %v6028, %v6033
  %6037 = vrot.lane.b32.xlu0 %v6035, 32
  %v6038 = vpop.permute.xlu0 %6037
  %v6040 = vadd.f32 %v6030, %v6038
  %v6041 = vtanh.pop %v6040
  %6043 = vrot.lane.b32.xlu0 %v6041, 32
  %v6044 = vpop.permute.xlu0 %6043
  %v6046 = vmul.f32 %v6028, %v6044
  %6048 = vrot.lane.b32.xlu0 %v6046, 64
  %v6049 = vpop.permute.xlu0 %6048
  %6051 = vst.msk [vmem:[%s4] sm:$0xff] %vm68, %v6049
  // Predicated region
  $region18: #{lstm_forward.1} parent=0 // pred_check
    _
  $region19: #{lstm_forward.1} parent=0 // pred_check_branch
    %6053 = sbr.rel (0) target = $region21
  $region20: #{lstm_forward.1} parent=0 // pred_region
    _
  $region21: #{lstm_forward.1} parent=0 // pred_fallthru
    _
  // Predicated region
  $region22: #{lstm_forward.1} parent=0 // pred_check
    _
  $region23: #{lstm_forward.1} parent=0 // pred_check_branch
    %6055 = sbr.rel (0) target = $region25
  $region24: #{lstm_forward.1} parent=0 // pred_region
    _
  $region25: #{lstm_forward.1} parent=0 // pred_fallthru
    _

</llo_original>
